<compile_context>
chip_gen: v5e
topology: v5e:2x2
jax: 0.10.0
libtpu: 0.0.40
codegen_flags: <defaults>
</compile_context>

<pallas_src>
import functools
import math

import jax
import jax.image
import jax.numpy as jnp
from jax import lax
from jax.experimental import pallas as pl
from jax.experimental.pallas import tpu as pltpu

_VMEM_LIMIT = 48 * 1024 * 1024    # scoped-VMEM cap (> 16/32 MiB defaults, < v7x 64 MiB)
_VMEM_BUDGET = 24 * 1024 * 1024   # working-set target used to size row tiles


# ----------------------------------------------------------------------------
# In-kernel helpers
# ----------------------------------------------------------------------------
def _apply_act(x, act, slope=0.1):
    if act == "relu":
        return jnp.maximum(x, 0.0)
    if act == "lrelu":
        return jnp.where(x >= 0.0, x, slope * x)
    return x


def _zero_col_pad(v):
    """(R, W, C) -> (R, W+2, C) with zero columns at 0 and W+1 (built as a value)."""
    z = jnp.zeros((v.shape[0], 1, v.shape[2]), v.dtype)
    return jnp.concatenate([z, v, z], axis=1)


def _conv3x3_dots(xp, w_ref, rows_out, W, cin):
    """3x3 'same' conv of a padded tile as three per-dy MXU matmuls (K=3*Cin each).

    xp:    (rows_out+2, W+2, cin) bf16 value (zero halo already built in).
    w_ref: (3, 3*cin, cout) bf16 Ref; rows of w_ref[dy] ordered (dx, cin).
    returns (rows_out*W, cout) float32.
    """
    acc = None
    for dy in range(3):
        sl = xp[dy:dy + rows_out]                                    # (rows_out, W+2, cin)
        slab = jnp.concatenate([sl[:, 0:W], sl[:, 1:W + 1], sl[:, 2:W + 2]], axis=-1)
        slab = slab.reshape(rows_out * W, 3 * cin)
        d = jnp.dot(slab, w_ref[dy], preferred_element_type=jnp.float32)
        acc = d if acc is None else acc + d
    return acc


# ----------------------------------------------------------------------------
# Pallas kernels
# ----------------------------------------------------------------------------
def _conv_tile(x_ref, top_ref, bot_ref, w_ref, b_ref, *, rows, W, H, cin, act, slope):
    t = pl.program_id(1)
    r0 = t * rows
    zr = jnp.zeros((1, W, cin), jnp.bfloat16)
    top = jnp.where(r0 - 1 >= 0, top_ref[0].astype(jnp.bfloat16), zr)
    bot = jnp.where(r0 + rows <= H - 1, bot_ref[0].astype(jnp.bfloat16), zr)
    xp = _zero_col_pad(jnp.concatenate([top, x_ref[0].astype(jnp.bfloat16), bot], axis=0))
    acc = _conv3x3_dots(xp, w_ref, rows, W, cin) + b_ref[...]
    return _apply_act(acc, act, slope)


def _conv_kernel(x_ref, top_ref, bot_ref, w_ref, b_ref, o_ref,
                 *, rows, W, H, cin, cout, act, slope):
    acc = _conv_tile(x_ref, top_ref, bot_ref, w_ref, b_ref,
                     rows=rows, W=W, H=H, cin=cin, act=act, slope=slope)
    o_ref[0] = acc.reshape(rows, W, cout).astype(o_ref.dtype)


def _conv_res_kernel(x_ref, top_ref, bot_ref, w_ref, b_ref, r_ref, o_ref,
                     *, rows, W, H, cin, cout, act, slope):
    acc = _conv_tile(x_ref, top_ref, bot_ref, w_ref, b_ref,
                     rows=rows, W=W, H=H, cin=cin, act=act, slope=slope)
    acc = acc + r_ref[0].reshape(rows * W, cout).astype(jnp.float32)   # fused residual add
    o_ref[0] = acc.reshape(rows, W, cout).astype(o_ref.dtype)


def _resblock_kernel(x_ref, tm2_ref, tm1_ref, bp0_ref, bp1_ref,
                     w1_ref, b1_ref, w2_ref, b2_ref, o_ref,
                     *, rows, W, H, C):
    """ResidualBlock_noBN (conv-ReLU-conv + identity) on one row tile.

    conv2's halo is obtained by overlap-recompute: conv1 is evaluated on rows
    [r0-1, r0+rows+1), which needs a 2-row input halo on each side."""
    t = pl.program_id(1)
    r0 = t * rows
    zr = jnp.zeros((1, W, C), jnp.bfloat16)
    tm2 = jnp.where(r0 - 2 >= 0, tm2_ref[0].astype(jnp.bfloat16), zr)
    tm1 = jnp.where(r0 - 1 >= 0, tm1_ref[0].astype(jnp.bfloat16), zr)
    bp0 = jnp.where(r0 + rows <= H - 1, bp0_ref[0].astype(jnp.bfloat16), zr)
    bp1 = jnp.where(r0 + rows + 1 <= H - 1, bp1_ref[0].astype(jnp.bfloat16), zr)
    x = x_ref[0].astype(jnp.bfloat16)

    xp1 = _zero_col_pad(jnp.concatenate([tm2, tm1, x, bp0, bp1], axis=0))   # (rows+4, W+2, C)
    y1 = _conv3x3_dots(xp1, w1_ref, rows + 2, W, C) + b1_ref[...]
    y1 = jnp.maximum(y1, 0.0).reshape(rows + 2, W, C)                       # f32 intermediate

    # conv2 'same' zero padding: conv1 rows lying outside the image contribute zero.
    gr = (r0 - 1) + lax.broadcasted_iota(jnp.int32, (rows + 2, 1, 1), 0)
    y1 = jnp.where((gr >= 0) & (gr < H), y1, 0.0)

    xp2 = _zero_col_pad(y1.astype(jnp.bfloat16))                            # (rows+2, W+2, C)
    y2 = _conv3x3_dots(xp2, w2_ref, rows, W, C) + b2_ref[...]
    y2 = y2 + x_ref[0].reshape(rows * W, C).astype(jnp.float32)             # identity
    o_ref[0] = y2.reshape(rows, W, C).astype(o_ref.dtype)


# ----------------------------------------------------------------------------
# Pallas wrappers
# ----------------------------------------------------------------------------
def _tile_rows(H, W, cin, cout, *, out_bytes=2, n_convs=1, resid=False, max_rows=None):
    """Largest divisor of H whose per-tile working set fits the VMEM budget."""
    per_row = W * (
        2 * cin * 2                                   # double-buffered bf16 input block
        + 2 * cout * out_bytes                        # double-buffered output block
        + n_convs * (2 * cin + 6 * cin + 4 * cout)    # padded tile + im2col slab + f32 acc
        + (4 * cout if resid else 0))                 # double-buffered bf16 residual block
    best = 1
    for r in sorted((d for d in range(1, H + 1) if H % d == 0), reverse=True):
        if max_rows is not None and r > max_rows:
            continue
        if r * per_row <= _VMEM_BUDGET:
            best = r
            break
    return best


def _halo_spec(W, C, rows, H, off):
    """One halo row (clamped at the image border; zero-masked inside the kernel)."""
    return pl.BlockSpec(
        (1, 1, W, C),
        lambda n, t, rows=rows, H=H, off=off: (n, jnp.clip(t * rows + off, 0, H - 1), 0, 0))


def _compiler_params():
    return pltpu.CompilerParams(
        dimension_semantics=("parallel", "parallel"),   # batch x row-tile, both independent
        vmem_limit_bytes=_VMEM_LIMIT)


def conv3x3_pallas(x, layer, *, act="none", slope=0.1, residual=None,
                   out_dtype=jnp.bfloat16, max_tile_rows=None):
    """Row-tiled 3x3 'same' conv (+bias, +activation, +optional fused residual add).

    x: (N, H, W, Cin) bf16; layer['w_dy']: (3, 3*Cin, Cout) bf16; layer['b']: (Cout,).
    residual (optional): (N, H, W, Cout), added after the activation."""
    N, H, W, Cin = x.shape
    Cout = layer["w_dy"].shape[-1]
    rows = _tile_rows(H, W, Cin, Cout, out_bytes=jnp.dtype(out_dtype).itemsize,
                      resid=residual is not None, max_rows=max_tile_rows)
    bias = layer["b"].reshape(1, Cout).astype(jnp.float32)

    in_specs = [
        pl.BlockSpec((1, rows, W, Cin), lambda n, t: (n, t, 0, 0)),
        _halo_spec(W, Cin, rows, H, -1),
        _halo_spec(W, Cin, rows, H, rows),
        pl.BlockSpec((3, 3 * Cin, Cout), lambda n, t: (0, 0, 0)),    # VMEM-resident weights
        pl.BlockSpec((1, Cout), lambda n, t: (0, 0)),
    ]
    args = [x, x, x, layer["w_dy"], bias]
    kw = dict(rows=rows, W=W, H=H, cin=Cin, cout=Cout, act=act, slope=slope)
    if residual is None:
        kernel = functools.partial(_conv_kernel, **kw)
    else:
        in_specs.append(pl.BlockSpec((1, rows, W, Cout), lambda n, t: (n, t, 0, 0)))
        args.append(residual)
        kernel = functools.partial(_conv_res_kernel, **kw)

    return pl.pallas_call(
        kernel,
        out_shape=jax.ShapeDtypeStruct((N, H, W, Cout), out_dtype),
        grid=(N, H // rows),
        in_specs=in_specs,
        out_specs=pl.BlockSpec((1, rows, W, Cout), lambda n, t: (n, t, 0, 0)),
        compiler_params=_compiler_params(),
    )(*args)


def resblock_pallas(x, blk, *, max_tile_rows=None):
    """ResidualBlock_noBN as one row-tiled kernel; x: (N, H, W, C) bf16."""
    N, H, W, C = x.shape
    rows = _tile_rows(H, W, C, C, out_bytes=2, n_convs=2, max_rows=max_tile_rows)
    b1 = blk["c1"]["b"].reshape(1, C).astype(jnp.float32)
    b2 = blk["c2"]["b"].reshape(1, C).astype(jnp.float32)
    kernel = functools.partial(_resblock_kernel, rows=rows, W=W, H=H, C=C)
    return pl.pallas_call(
        kernel,
        out_shape=jax.ShapeDtypeStruct((N, H, W, C), jnp.bfloat16),
        grid=(N, H // rows),
        in_specs=[
            pl.BlockSpec((1, rows, W, C), lambda n, t: (n, t, 0, 0)),
            _halo_spec(W, C, rows, H, -2),
            _halo_spec(W, C, rows, H, -1),
            _halo_spec(W, C, rows, H, rows),
            _halo_spec(W, C, rows, H, rows + 1),
            pl.BlockSpec((3, 3 * C, C), lambda n, t: (0, 0, 0)),
            pl.BlockSpec((1, C), lambda n, t: (0, 0)),
            pl.BlockSpec((3, 3 * C, C), lambda n, t: (0, 0, 0)),
            pl.BlockSpec((1, C), lambda n, t: (0, 0)),
        ],
        out_specs=pl.BlockSpec((1, rows, W, C), lambda n, t: (n, t, 0, 0)),
        compiler_params=_compiler_params(),
    )(x, x, x, x, x, blk["c1"]["w_dy"], b1, blk["c2"]["w_dy"], b2)


# ----------------------------------------------------------------------------
# Plain-JAX glue (PixelShuffle, bilinear base, conv_first)
# ----------------------------------------------------------------------------
def pixel_shuffle_nhwc(x, r):
    """NHWC PixelShuffle matching torch.nn.PixelShuffle channel grouping (C, r, r)."""
    # TODO(synk): fuse into the upconv kernels' output store to drop this HBM round trip.
    N, H, W, Crr = x.shape
    C = Crr // (r * r)
    x = x.reshape(N, H, W, C, r, r)
    x = jnp.transpose(x, (0, 1, 4, 2, 5, 3))
    return x.reshape(N, H * r, W * r, C)


def bilinear_base(x, upscale):
    # F.interpolate(mode='bilinear', align_corners=False) for integer upsampling.
    # TODO(synk): fuse the fixed separable stencil into the conv_last kernel.
    N, H, W, C = x.shape
    return jax.image.resize(x, (N, H * upscale, W * upscale, C), method="bilinear")


def _conv3x3_ref(x, layer, *, act="none", slope=0.1, residual=None):
    y = lax.conv_general_dilated(
        x.astype(jnp.float32), layer["w_hwio"], (1, 1), "SAME",
        dimension_numbers=("NHWC", "HWIO", "NHWC"),
        precision=lax.Precision.HIGHEST)
    y = y + layer["b"]
    y = _apply_act(y, act, slope)
    if residual is not None:
        y = y + residual
    return y


# ----------------------------------------------------------------------------
# Model forward (Pallas path)
# ----------------------------------------------------------------------------
def forward_pallas(x_nchw, params, *, max_tile_rows=None):
    up = params["upscale"]
    x = jnp.transpose(x_nchw, (0, 2, 3, 1)).astype(jnp.float32)       # NHWC f32

    # conv_first: Cin=3 -> im2col K=27 (~10% MXU K-util); per the perf review this
    # single small conv is left to XLA so the Pallas budget goes to the layers that matter.
    fea = _conv3x3_ref(x, params["conv_first"], act="lrelu").astype(jnp.bfloat16)

    out = fea
    for blk in params["trunk"]["blocks"]:
        out = resblock_pallas(out, blk, max_tile_rows=max_tile_rows)

    # LeakyReLU commutes with PixelShuffle, so it is fused into the upconv kernels.
    if up == 4:
        out = pixel_shuffle_nhwc(
            conv3x3_pallas(out, params["upconv1"], act="lrelu", max_tile_rows=max_tile_rows), 2)
        out = pixel_shuffle_nhwc(
            conv3x3_pallas(out, params["upconv2"], act="lrelu", max_tile_rows=max_tile_rows), 2)
    else:  # upscale 2 or 3
        out = pixel_shuffle_nhwc(
            conv3x3_pallas(out, params["upconv1"], act="lrelu", max_tile_rows=max_tile_rows), up)
    out = conv3x3_pallas(out, params["HRconv"], act="lrelu", max_tile_rows=max_tile_rows)
    base = bilinear_base(x, up).astype(jnp.bfloat16)                   # bf16 residual in HBM
    out = conv3x3_pallas(out, params["conv_last"], act="none", residual=base,
                         out_dtype=jnp.float32, max_tile_rows=max_tile_rows)
    return jnp.transpose(out, (0, 3, 1, 2))                            # NCHW


# ----------------------------------------------------------------------------
# Pure-JAX reference model (correctness check only)
# ----------------------------------------------------------------------------
def forward_ref(x_nchw, params):
    up = params["upscale"]
    x = jnp.transpose(x_nchw, (0, 2, 3, 1)).astype(jnp.float32)
    fea = _conv3x3_ref(x, params["conv_first"], act="lrelu")
    out = fea
    for blk in params["trunk"]["blocks"]:
        t = _conv3x3_ref(out, blk["c1"], act="relu")
        out = _conv3x3_ref(t, blk["c2"], residual=out)
    if up == 4:
        out = _apply_act(pixel_shuffle_nhwc(_conv3x3_ref(out, params["upconv1"]), 2), "lrelu", 0.1)
        out = _apply_act(pixel_shuffle_nhwc(_conv3x3_ref(out, params["upconv2"]), 2), "lrelu", 0.1)
    else:
        out = _apply_act(pixel_shuffle_nhwc(_conv3x3_ref(out, params["upconv1"]), up), "lrelu", 0.1)
    out = _conv3x3_ref(out, params["HRconv"], act="lrelu")
    out = _conv3x3_ref(out, params["conv_last"], residual=bilinear_base(x, up))
    return jnp.transpose(out, (0, 3, 1, 2))


# ----------------------------------------------------------------------------
# Parameters (deterministic synthetic init)
# ----------------------------------------------------------------------------
def _make_conv(key, cin, cout):
    kw, kb = jax.random.split(key)
    # kaiming_normal_(a=0, fan_in); the module's 0.1 scale / zero bias is replaced by
    # 0.7 / small random bias so the numerical cross-check stays meaningful.
    std = math.sqrt(2.0 / (9.0 * cin)) * 0.7
    w = (jax.random.normal(kw, (3, 3, cin, cout), jnp.float32) * std).astype(jnp.bfloat16)
    b = jax.random.normal(kb, (cout,), jnp.float32) * 0.05
    return {
        "w_hwio": w.astype(jnp.float32),       # HWIO f32 (reference conv)
        "w_dy": w.reshape(3, 3 * cin, cout),   # (dy, dx*cin, cout) bf16, per-dy im2col layout
        "b": b,
    }


def init_params(key, in_nc=3, out_nc=3, nc=64, nb=16, upscale=4):
    keys = jax.random.split(key, 2 * nb + 8)
    it = iter(keys)
    p = {"upscale": upscale}
    p["conv_first"] = _make_conv(next(it), in_nc, nc)
    p["trunk"] = {"blocks": [{"c1": _make_conv(next(it), nc, nc),
                              "c2": _make_conv(next(it), nc, nc)} for _ in range(nb)]}
    if upscale == 3:
        p["upconv1"] = _make_conv(next(it), nc, nc * 9)
    else:
        p["upconv1"] = _make_conv(next(it), nc, nc * 4)
        if upscale == 4:
            p["upconv2"] = _make_conv(next(it), nc, nc * 4)
    p["HRconv"] = _make_conv(next(it), nc, nc)
    p["conv_last"] = _make_conv(next(it), nc, out_nc)
    return p


# ----------------------------------------------------------------------------
# Main
# ----------------------------------------------------------------------------
if __name__ == "__main__":
    # Small shapes consistent with the module: in_nc=out_nc=3, nc=16, nb=2, upscale=4;
    # input 2x3x16x16 -> output 2x3x64x64.
    N, IN_NC, OUT_NC, NC, NB, UPSCALE, H, W = 2, 3, 3, 16, 2, 4, 16, 16

    key = jax.random.PRNGKey(0)
    kx, kp = jax.random.split(key)
    x = jax.random.normal(kx, (N, IN_NC, H, W), jnp.float32)
    params = init_params(kp, IN_NC, OUT_NC, NC, NB, UPSCALE)

    # max_tile_rows=4 forces several row tiles even at this toy resolution so the
    # cross-tile halo / overlap-recompute paths are exercised (production sizing is
    # VMEM-budget driven when max_tile_rows is None).
    pallas_fwd = jax.jit(functools.partial(forward_pallas, params=params, max_tile_rows=4))
    out = jax.block_until_ready(pallas_fwd(x))
    assert out.shape == (N, OUT_NC, H * UPSCALE, W * UPSCALE), out.shape
    assert bool(jnp.all(jnp.isfinite(out)))

    ref_fwd = jax.jit(functools.partial(forward_ref, params=params))
    ref = jax.block_until_ready(ref_fwd(x))
    max_err = float(jnp.max(jnp.abs(out - ref)))
    assert jnp.allclose(out, ref, rtol=5e-2, atol=5e-2), max_err

    print("KERNEL_OK")
</pallas_src>

<mosaic_0001>
module attributes {stable_mosaic.version = 11 : i64} {
  func.func @_resblock_kernel(%arg0: i32, %arg1: i32, %arg2: memref<1x4x16x16xbf16, #tpu.memory_space<vmem>>, %arg3: memref<1x1x16x16xbf16, #tpu.memory_space<vmem>>, %arg4: memref<1x1x16x16xbf16, #tpu.memory_space<vmem>>, %arg5: memref<1x1x16x16xbf16, #tpu.memory_space<vmem>>, %arg6: memref<1x1x16x16xbf16, #tpu.memory_space<vmem>>, %arg7: memref<3x48x16xbf16, #tpu.memory_space<vmem>>, %arg8: memref<1x16xf32, #tpu.memory_space<vmem>>, %arg9: memref<3x48x16xbf16, #tpu.memory_space<vmem>>, %arg10: memref<1x16xf32, #tpu.memory_space<vmem>>, %arg11: memref<1x4x16x16xbf16, #tpu.memory_space<vmem>>) attributes {dimension_semantics = [#tpu.dimension_semantics<parallel>, #tpu.dimension_semantics<parallel>], iteration_bounds = array<i64: 2, 4>, scalar_prefetch = 0 : i64, scratch_operands = 0 : i64, tpu.core_type = #tpu.core_type<tc>, window_params = [{transform_indices = @transform_0, window_bounds = array<i64: 1, 4, 16, 16>}, {transform_indices = @transform_1, window_bounds = array<i64: 1, 1, 16, 16>}, {transform_indices = @transform_2, window_bounds = array<i64: 1, 1, 16, 16>}, {transform_indices = @transform_3, window_bounds = array<i64: 1, 1, 16, 16>}, {transform_indices = @transform_4, window_bounds = array<i64: 1, 1, 16, 16>}, {pipeline_mode = #tpu.pipeline_mode<synchronous>, transform_indices = @transform_5, window_bounds = array<i64: 3, 48, 16>}, {pipeline_mode = #tpu.pipeline_mode<synchronous>, transform_indices = @transform_6, window_bounds = array<i64: 1, 16>}, {pipeline_mode = #tpu.pipeline_mode<synchronous>, transform_indices = @transform_7, window_bounds = array<i64: 3, 48, 16>}, {pipeline_mode = #tpu.pipeline_mode<synchronous>, transform_indices = @transform_8, window_bounds = array<i64: 1, 16>}, {transform_indices = @transform_9, window_bounds = array<i64: 1, 4, 16, 16>}]} {
    %c4_i32 = arith.constant 4 : i32
    %0 = arith.muli %arg1, %c4_i32 : i32
    %cst = arith.constant 0.000000e+00 : bf16
    %1 = vector.broadcast %cst : bf16 to vector<1x16x16xbf16>
    %c2_i32 = arith.constant 2 : i32
    %2 = arith.subi %0, %c2_i32 : i32
    %c0_i32 = arith.constant 0 : i32
    %3 = arith.cmpi sge, %2, %c0_i32 : i32
    %c0 = arith.constant 0 : index
    %c0_0 = arith.constant 0 : index
    %c0_1 = arith.constant 0 : index
    %c0_2 = arith.constant 0 : index
    %4 = vector.load %arg3[%c0, %c0_0, %c0_1, %c0_2] : memref<1x1x16x16xbf16, #tpu.memory_space<vmem>>, vector<1x1x16x16xbf16>
    %5 = vector.shape_cast %4 : vector<1x1x16x16xbf16> to vector<1x16x16xbf16>
    %6 = arith.select %3, %5, %1 : vector<1x16x16xbf16>
    %c1_i32 = arith.constant 1 : i32
    %7 = arith.subi %0, %c1_i32 : i32
    %c0_i32_3 = arith.constant 0 : i32
    %8 = arith.cmpi sge, %7, %c0_i32_3 : i32
    %c0_4 = arith.constant 0 : index
    %c0_5 = arith.constant 0 : index
    %c0_6 = arith.constant 0 : index
    %c0_7 = arith.constant 0 : index
    %9 = vector.load %arg4[%c0_4, %c0_5, %c0_6, %c0_7] : memref<1x1x16x16xbf16, #tpu.memory_space<vmem>>, vector<1x1x16x16xbf16>
    %10 = vector.shape_cast %9 : vector<1x1x16x16xbf16> to vector<1x16x16xbf16>
    %11 = arith.select %8, %10, %1 : vector<1x16x16xbf16>
    %c4_i32_8 = arith.constant 4 : i32
    %12 = arith.addi %0, %c4_i32_8 : i32
    %c15_i32 = arith.constant 15 : i32
    %13 = arith.cmpi sle, %12, %c15_i32 : i32
    %c0_9 = arith.constant 0 : index
    %c0_10 = arith.constant 0 : index
    %c0_11 = arith.constant 0 : index
    %c0_12 = arith.constant 0 : index
    %14 = vector.load %arg5[%c0_9, %c0_10, %c0_11, %c0_12] : memref<1x1x16x16xbf16, #tpu.memory_space<vmem>>, vector<1x1x16x16xbf16>
    %15 = vector.shape_cast %14 : vector<1x1x16x16xbf16> to vector<1x16x16xbf16>
    %16 = arith.select %13, %15, %1 : vector<1x16x16xbf16>
    %c4_i32_13 = arith.constant 4 : i32
    %17 = arith.addi %0, %c4_i32_13 : i32
    %c1_i32_14 = arith.constant 1 : i32
    %18 = arith.addi %17, %c1_i32_14 : i32
    %c15_i32_15 = arith.constant 15 : i32
    %19 = arith.cmpi sle, %18, %c15_i32_15 : i32
    %c0_16 = arith.constant 0 : index
    %c0_17 = arith.constant 0 : index
    %c0_18 = arith.constant 0 : index
    %c0_19 = arith.constant 0 : index
    %20 = vector.load %arg6[%c0_16, %c0_17, %c0_18, %c0_19] : memref<1x1x16x16xbf16, #tpu.memory_space<vmem>>, vector<1x1x16x16xbf16>
    %21 = vector.shape_cast %20 : vector<1x1x16x16xbf16> to vector<1x16x16xbf16>
    %22 = arith.select %19, %21, %1 : vector<1x16x16xbf16>
    %c0_20 = arith.constant 0 : index
    %c0_21 = arith.constant 0 : index
    %c0_22 = arith.constant 0 : index
    %c0_23 = arith.constant 0 : index
    %23 = vector.load %arg2[%c0_20, %c0_21, %c0_22, %c0_23] : memref<1x4x16x16xbf16, #tpu.memory_space<vmem>>, vector<1x4x16x16xbf16>
    %24 = vector.shape_cast %23 : vector<1x4x16x16xbf16> to vector<4x16x16xbf16>
    %25 = tpu.concatenate %6, %11, %24, %16, %22 in 0 : vector<1x16x16xbf16>, vector<1x16x16xbf16>, vector<4x16x16xbf16>, vector<1x16x16xbf16>, vector<1x16x16xbf16> -> vector<8x16x16xbf16>
    %cst_24 = arith.constant 0.000000e+00 : bf16
    %26 = vector.broadcast %cst_24 : bf16 to vector<8x1x16xbf16>
    %27 = tpu.concatenate %26, %25, %26 in 1 : vector<8x1x16xbf16>, vector<8x16x16xbf16>, vector<8x1x16xbf16> -> vector<8x18x16xbf16>
    %28 = vector.extract_strided_slice %27 {offsets = [0, 0, 0], sizes = [6, 18, 16], strides = [1, 1, 1]} : vector<8x18x16xbf16> to vector<6x18x16xbf16>
    %29 = vector.extract_strided_slice %28 {offsets = [0, 0, 0], sizes = [6, 16, 16], strides = [1, 1, 1]} : vector<6x18x16xbf16> to vector<6x16x16xbf16>
    %30 = vector.extract_strided_slice %28 {offsets = [0, 1, 0], sizes = [6, 16, 16], strides = [1, 1, 1]} : vector<6x18x16xbf16> to vector<6x16x16xbf16>
    %31 = vector.extract_strided_slice %28 {offsets = [0, 2, 0], sizes = [6, 16, 16], strides = [1, 1, 1]} : vector<6x18x16xbf16> to vector<6x16x16xbf16>
    %32 = tpu.concatenate %29, %30, %31 in 2 : vector<6x16x16xbf16>, vector<6x16x16xbf16>, vector<6x16x16xbf16> -> vector<6x16x48xbf16>
    %33 = vector.shape_cast %32 : vector<6x16x48xbf16> to vector<96x48xbf16>
    %c0_25 = arith.constant 0 : index
    %c0_26 = arith.constant 0 : index
    %c0_27 = arith.constant 0 : index
    %34 = vector.load %arg7[%c0_25, %c0_26, %c0_27] : memref<3x48x16xbf16, #tpu.memory_space<vmem>>, vector<1x48x16xbf16>
    %35 = vector.shape_cast %34 : vector<1x48x16xbf16> to vector<48x16xbf16>
    %cst_28 = arith.constant dense<0.000000e+00> : vector<96x16xf32>
    %36 = tpu.matmul %33, %35, %cst_28 {dimension_numbers = #tpu.dot_dimension_numbers<[1], [0], [0], [1], [0, 0, 1, 1], [], []>} : vector<96x48xbf16>, vector<48x16xbf16>, vector<96x16xf32> -> vector<96x16xf32>
    %37 = vector.extract_strided_slice %27 {offsets = [1, 0, 0], sizes = [6, 18, 16], strides = [1, 1, 1]} : vector<8x18x16xbf16> to vector<6x18x16xbf16>
    %38 = vector.extract_strided_slice %37 {offsets = [0, 0, 0], sizes = [6, 16, 16], strides = [1, 1, 1]} : vector<6x18x16xbf16> to vector<6x16x16xbf16>
    %39 = vector.extract_strided_slice %37 {offsets = [0, 1, 0], sizes = [6, 16, 16], strides = [1, 1, 1]} : vector<6x18x16xbf16> to vector<6x16x16xbf16>
    %40 = vector.extract_strided_slice %37 {offsets = [0, 2, 0], sizes = [6, 16, 16], strides = [1, 1, 1]} : vector<6x18x16xbf16> to vector<6x16x16xbf16>
    %41 = tpu.concatenate %38, %39, %40 in 2 : vector<6x16x16xbf16>, vector<6x16x16xbf16>, vector<6x16x16xbf16> -> vector<6x16x48xbf16>
    %42 = vector.shape_cast %41 : vector<6x16x48xbf16> to vector<96x48xbf16>
    %c1 = arith.constant 1 : index
    %c0_29 = arith.constant 0 : index
    %c0_30 = arith.constant 0 : index
    %43 = vector.load %arg7[%c1, %c0_29, %c0_30] : memref<3x48x16xbf16, #tpu.memory_space<vmem>>, vector<1x48x16xbf16>
    %44 = vector.shape_cast %43 : vector<1x48x16xbf16> to vector<48x16xbf16>
    %cst_31 = arith.constant dense<0.000000e+00> : vector<96x16xf32>
    %45 = tpu.matmul %42, %44, %cst_31 {dimension_numbers = #tpu.dot_dimension_numbers<[1], [0], [0], [1], [0, 0, 1, 1], [], []>} : vector<96x48xbf16>, vector<48x16xbf16>, vector<96x16xf32> -> vector<96x16xf32>
    %46 = arith.addf %36, %45 : vector<96x16xf32>
    %47 = vector.extract_strided_slice %27 {offsets = [2, 0, 0], sizes = [6, 18, 16], strides = [1, 1, 1]} : vector<8x18x16xbf16> to vector<6x18x16xbf16>
    %48 = vector.extract_strided_slice %47 {offsets = [0, 0, 0], sizes = [6, 16, 16], strides = [1, 1, 1]} : vector<6x18x16xbf16> to vector<6x16x16xbf16>
    %49 = vector.extract_strided_slice %47 {offsets = [0, 1, 0], sizes = [6, 16, 16], strides = [1, 1, 1]} : vector<6x18x16xbf16> to vector<6x16x16xbf16>
    %50 = vector.extract_strided_slice %47 {offsets = [0, 2, 0], sizes = [6, 16, 16], strides = [1, 1, 1]} : vector<6x18x16xbf16> to vector<6x16x16xbf16>
    %51 = tpu.concatenate %48, %49, %50 in 2 : vector<6x16x16xbf16>, vector<6x16x16xbf16>, vector<6x16x16xbf16> -> vector<6x16x48xbf16>
    %52 = vector.shape_cast %51 : vector<6x16x48xbf16> to vector<96x48xbf16>
    %c2 = arith.constant 2 : index
    %c0_32 = arith.constant 0 : index
    %c0_33 = arith.constant 0 : index
    %53 = vector.load %arg7[%c2, %c0_32, %c0_33] : memref<3x48x16xbf16, #tpu.memory_space<vmem>>, vector<1x48x16xbf16>
    %54 = vector.shape_cast %53 : vector<1x48x16xbf16> to vector<48x16xbf16>
    %cst_34 = arith.constant dense<0.000000e+00> : vector<96x16xf32>
    %55 = tpu.matmul %52, %54, %cst_34 {dimension_numbers = #tpu.dot_dimension_numbers<[1], [0], [0], [1], [0, 0, 1, 1], [], []>} : vector<96x48xbf16>, vector<48x16xbf16>, vector<96x16xf32> -> vector<96x16xf32>
    %56 = arith.addf %46, %55 : vector<96x16xf32>
    %c0_35 = arith.constant 0 : index
    %c0_36 = arith.constant 0 : index
    %57 = vector.load %arg8[%c0_35, %c0_36] : memref<1x16xf32, #tpu.memory_space<vmem>>, vector<1x16xf32>
    %58 = vector.broadcast %57 : vector<1x16xf32> to vector<96x16xf32>
    %59 = arith.addf %56, %58 : vector<96x16xf32>
    %cst_37 = arith.constant 0.000000e+00 : f32
    %60 = vector.broadcast %cst_37 : f32 to vector<96x16xf32>
    %61 = arith.maximumf %59, %60 : vector<96x16xf32>
    %62 = vector.shape_cast %61 : vector<96x16xf32> to vector<6x16x16xf32>
    %c1_i32_38 = arith.constant 1 : i32
    %63 = arith.subi %0, %c1_i32_38 : i32
    %64 = tpu.iota {dimensions = array<i32: 0>} : vector<6x1x1xi32>
    %65 = vector.broadcast %63 : i32 to vector<6x1x1xi32>
    %66 = arith.addi %65, %64 : vector<6x1x1xi32>
    %c0_i32_39 = arith.constant 0 : i32
    %67 = vector.broadcast %c0_i32_39 : i32 to vector<6x1x1xi32>
    %68 = arith.cmpi sge, %66, %67 : vector<6x1x1xi32>
    %c16_i32 = arith.constant 16 : i32
    %69 = vector.broadcast %c16_i32 : i32 to vector<6x1x1xi32>
    %70 = arith.cmpi slt, %66, %69 : vector<6x1x1xi32>
    %71 = arith.andi %68, %70 : vector<6x1x1xi1>
    %cst_40 = arith.constant 0.000000e+00 : f32
    %72 = vector.shape_cast %71 : vector<6x1x1xi1> to vector<6x1x1xi1>
    %73 = vector.broadcast %72 : vector<6x1x1xi1> to vector<6x16x16xi1>
    %74 = vector.broadcast %cst_40 : f32 to vector<6x16x16xf32>
    %75 = arith.select %73, %62, %74 : vector<6x16x16xi1>, vector<6x16x16xf32>
    %76 = arith.truncf %75 : vector<6x16x16xf32> to vector<6x16x16xbf16>
    %cst_41 = arith.constant 0.000000e+00 : bf16
    %77 = vector.broadcast %cst_41 : bf16 to vector<6x1x16xbf16>
    %78 = tpu.concatenate %77, %76, %77 in 1 : vector<6x1x16xbf16>, vector<6x16x16xbf16>, vector<6x1x16xbf16> -> vector<6x18x16xbf16>
    %79 = vector.extract_strided_slice %78 {offsets = [0, 0, 0], sizes = [4, 18, 16], strides = [1, 1, 1]} : vector<6x18x16xbf16> to vector<4x18x16xbf16>
    %80 = vector.extract_strided_slice %79 {offsets = [0, 0, 0], sizes = [4, 16, 16], strides = [1, 1, 1]} : vector<4x18x16xbf16> to vector<4x16x16xbf16>
    %81 = vector.extract_strided_slice %79 {offsets = [0, 1, 0], sizes = [4, 16, 16], strides = [1, 1, 1]} : vector<4x18x16xbf16> to vector<4x16x16xbf16>
    %82 = vector.extract_strided_slice %79 {offsets = [0, 2, 0], sizes = [4, 16, 16], strides = [1, 1, 1]} : vector<4x18x16xbf16> to vector<4x16x16xbf16>
    %83 = tpu.concatenate %80, %81, %82 in 2 : vector<4x16x16xbf16>, vector<4x16x16xbf16>, vector<4x16x16xbf16> -> vector<4x16x48xbf16>
    %84 = vector.shape_cast %83 : vector<4x16x48xbf16> to vector<64x48xbf16>
    %c0_42 = arith.constant 0 : index
    %c0_43 = arith.constant 0 : index
    %c0_44 = arith.constant 0 : index
    %85 = vector.load %arg9[%c0_42, %c0_43, %c0_44] : memref<3x48x16xbf16, #tpu.memory_space<vmem>>, vector<1x48x16xbf16>
    %86 = vector.shape_cast %85 : vector<1x48x16xbf16> to vector<48x16xbf16>
    %cst_45 = arith.constant dense<0.000000e+00> : vector<64x16xf32>
    %87 = tpu.matmul %84, %86, %cst_45 {dimension_numbers = #tpu.dot_dimension_numbers<[1], [0], [0], [1], [0, 0, 1, 1], [], []>} : vector<64x48xbf16>, vector<48x16xbf16>, vector<64x16xf32> -> vector<64x16xf32>
    %88 = vector.extract_strided_slice %78 {offsets = [1, 0, 0], sizes = [4, 18, 16], strides = [1, 1, 1]} : vector<6x18x16xbf16> to vector<4x18x16xbf16>
    %89 = vector.extract_strided_slice %88 {offsets = [0, 0, 0], sizes = [4, 16, 16], strides = [1, 1, 1]} : vector<4x18x16xbf16> to vector<4x16x16xbf16>
    %90 = vector.extract_strided_slice %88 {offsets = [0, 1, 0], sizes = [4, 16, 16], strides = [1, 1, 1]} : vector<4x18x16xbf16> to vector<4x16x16xbf16>
    %91 = vector.extract_strided_slice %88 {offsets = [0, 2, 0], sizes = [4, 16, 16], strides = [1, 1, 1]} : vector<4x18x16xbf16> to vector<4x16x16xbf16>
    %92 = tpu.concatenate %89, %90, %91 in 2 : vector<4x16x16xbf16>, vector<4x16x16xbf16>, vector<4x16x16xbf16> -> vector<4x16x48xbf16>
    %93 = vector.shape_cast %92 : vector<4x16x48xbf16> to vector<64x48xbf16>
    %c1_46 = arith.constant 1 : index
    %c0_47 = arith.constant 0 : index
    %c0_48 = arith.constant 0 : index
    %94 = vector.load %arg9[%c1_46, %c0_47, %c0_48] : memref<3x48x16xbf16, #tpu.memory_space<vmem>>, vector<1x48x16xbf16>
    %95 = vector.shape_cast %94 : vector<1x48x16xbf16> to vector<48x16xbf16>
    %cst_49 = arith.constant dense<0.000000e+00> : vector<64x16xf32>
    %96 = tpu.matmul %93, %95, %cst_49 {dimension_numbers = #tpu.dot_dimension_numbers<[1], [0], [0], [1], [0, 0, 1, 1], [], []>} : vector<64x48xbf16>, vector<48x16xbf16>, vector<64x16xf32> -> vector<64x16xf32>
    %97 = arith.addf %87, %96 : vector<64x16xf32>
    %98 = vector.extract_strided_slice %78 {offsets = [2, 0, 0], sizes = [4, 18, 16], strides = [1, 1, 1]} : vector<6x18x16xbf16> to vector<4x18x16xbf16>
    %99 = vector.extract_strided_slice %98 {offsets = [0, 0, 0], sizes = [4, 16, 16], strides = [1, 1, 1]} : vector<4x18x16xbf16> to vector<4x16x16xbf16>
    %100 = vector.extract_strided_slice %98 {offsets = [0, 1, 0], sizes = [4, 16, 16], strides = [1, 1, 1]} : vector<4x18x16xbf16> to vector<4x16x16xbf16>
    %101 = vector.extract_strided_slice %98 {offsets = [0, 2, 0], sizes = [4, 16, 16], strides = [1, 1, 1]} : vector<4x18x16xbf16> to vector<4x16x16xbf16>
    %102 = tpu.concatenate %99, %100, %101 in 2 : vector<4x16x16xbf16>, vector<4x16x16xbf16>, vector<4x16x16xbf16> -> vector<4x16x48xbf16>
    %103 = vector.shape_cast %102 : vector<4x16x48xbf16> to vector<64x48xbf16>
    %c2_50 = arith.constant 2 : index
    %c0_51 = arith.constant 0 : index
    %c0_52 = arith.constant 0 : index
    %104 = vector.load %arg9[%c2_50, %c0_51, %c0_52] : memref<3x48x16xbf16, #tpu.memory_space<vmem>>, vector<1x48x16xbf16>
    %105 = vector.shape_cast %104 : vector<1x48x16xbf16> to vector<48x16xbf16>
    %cst_53 = arith.constant dense<0.000000e+00> : vector<64x16xf32>
    %106 = tpu.matmul %103, %105, %cst_53 {dimension_numbers = #tpu.dot_dimension_numbers<[1], [0], [0], [1], [0, 0, 1, 1], [], []>} : vector<64x48xbf16>, vector<48x16xbf16>, vector<64x16xf32> -> vector<64x16xf32>
    %107 = arith.addf %97, %106 : vector<64x16xf32>
    %c0_54 = arith.constant 0 : index
    %c0_55 = arith.constant 0 : index
    %108 = vector.load %arg10[%c0_54, %c0_55] : memref<1x16xf32, #tpu.memory_space<vmem>>, vector<1x16xf32>
    %109 = vector.broadcast %108 : vector<1x16xf32> to vector<64x16xf32>
    %110 = arith.addf %107, %109 : vector<64x16xf32>
    %c0_56 = arith.constant 0 : index
    %c0_57 = arith.constant 0 : index
    %c0_58 = arith.constant 0 : index
    %c0_59 = arith.constant 0 : index
    %111 = vector.load %arg2[%c0_56, %c0_57, %c0_58, %c0_59] : memref<1x4x16x16xbf16, #tpu.memory_space<vmem>>, vector<1x4x16x16xbf16>
    %112 = vector.shape_cast %111 : vector<1x4x16x16xbf16> to vector<4x16x16xbf16>
    %113 = vector.shape_cast %112 : vector<4x16x16xbf16> to vector<64x16xbf16>
    %114 = arith.extf %113 : vector<64x16xbf16> to vector<64x16xf32>
    %115 = arith.addf %110, %114 : vector<64x16xf32>
    %116 = vector.shape_cast %115 : vector<64x16xf32> to vector<4x16x16xf32>
    %117 = arith.truncf %116 : vector<4x16x16xf32> to vector<4x16x16xbf16>
    %c0_60 = arith.constant 0 : index
    %c0_61 = arith.constant 0 : index
    %c0_62 = arith.constant 0 : index
    %c0_63 = arith.constant 0 : index
    %118 = vector.load %arg11[%c0_60, %c0_61, %c0_62, %c0_63] : memref<1x4x16x16xbf16, #tpu.memory_space<vmem>>, vector<1x4x16x16xbf16>
    %119 = vector.shape_cast %118 : vector<1x4x16x16xbf16> to vector<4x16x16xbf16>
    %120 = vector.shape_cast %117 : vector<4x16x16xbf16> to vector<1x4x16x16xbf16>
    tpu.vector_store %arg11[%c0_60, %c0_61, %c0_62, %c0_63], %120 {strides = array<i32>} : memref<1x4x16x16xbf16, #tpu.memory_space<vmem>>, vector<1x4x16x16xbf16>,
    return
  }
  func.func @transform_0(%arg0: i32, %arg1: i32) -> (i32, i32, i32, i32) {
    %c0_i32 = arith.constant 0 : i32
    %c0_i32_0 = arith.constant 0 : i32
    %c0_i32_1 = arith.constant 0 : i32
    return %arg0, %arg1, %c0_i32, %c0_i32_0 : i32, i32, i32, i32
  }
  func.func @transform_1(%arg0: i32, %arg1: i32) -> (i32, i32, i32, i32) {
    %c4_i32 = arith.constant 4 : i32
    %0 = arith.muli %arg1, %c4_i32 : i32
    %c-2_i32 = arith.constant -2 : i32
    %1 = arith.addi %0, %c-2_i32 : i32
    %c0_i32 = arith.constant 0 : i32
    %c15_i32 = arith.constant 15 : i32
    %2 = arith.maxsi %c0_i32, %1 : i32
    %3 = arith.minsi %c15_i32, %2 : i32
    %c0_i32_0 = arith.constant 0 : i32
    %c0_i32_1 = arith.constant 0 : i32
    %c0_i32_2 = arith.constant 0 : i32
    return %arg0, %3, %c0_i32_0, %c0_i32_1 : i32, i32, i32, i32
  }
  func.func @transform_2(%arg0: i32, %arg1: i32) -> (i32, i32, i32, i32) {
    %c4_i32 = arith.constant 4 : i32
    %0 = arith.muli %arg1, %c4_i32 : i32
    %c-1_i32 = arith.constant -1 : i32
    %1 = arith.addi %0, %c-1_i32 : i32
    %c0_i32 = arith.constant 0 : i32
    %c15_i32 = arith.constant 15 : i32
    %2 = arith.maxsi %c0_i32, %1 : i32
    %3 = arith.minsi %c15_i32, %2 : i32
    %c0_i32_0 = arith.constant 0 : i32
    %c0_i32_1 = arith.constant 0 : i32
    %c0_i32_2 = arith.constant 0 : i32
    return %arg0, %3, %c0_i32_0, %c0_i32_1 : i32, i32, i32, i32
  }
  func.func @transform_3(%arg0: i32, %arg1: i32) -> (i32, i32, i32, i32) {
    %c4_i32 = arith.constant 4 : i32
    %0 = arith.muli %arg1, %c4_i32 : i32
    %c4_i32_0 = arith.constant 4 : i32
    %1 = arith.addi %0, %c4_i32_0 : i32
    %c0_i32 = arith.constant 0 : i32
    %c15_i32 = arith.constant 15 : i32
    %2 = arith.maxsi %c0_i32, %1 : i32
    %3 = arith.minsi %c15_i32, %2 : i32
    %c0_i32_1 = arith.constant 0 : i32
    %c0_i32_2 = arith.constant 0 : i32
    %c0_i32_3 = arith.constant 0 : i32
    return %arg0, %3, %c0_i32_1, %c0_i32_2 : i32, i32, i32, i32
  }
  func.func @transform_4(%arg0: i32, %arg1: i32) -> (i32, i32, i32, i32) {
    %c4_i32 = arith.constant 4 : i32
    %0 = arith.muli %arg1, %c4_i32 : i32
    %c5_i32 = arith.constant 5 : i32
    %1 = arith.addi %0, %c5_i32 : i32
    %c0_i32 = arith.constant 0 : i32
    %c15_i32 = arith.constant 15 : i32
    %2 = arith.maxsi %c0_i32, %1 : i32
    %3 = arith.minsi %c15_i32, %2 : i32
    %c0_i32_0 = arith.constant 0 : i32
    %c0_i32_1 = arith.constant 0 : i32
    %c0_i32_2 = arith.constant 0 : i32
    return %arg0, %3, %c0_i32_0, %c0_i32_1 : i32, i32, i32, i32
  }
  func.func @transform_5(%arg0: i32, %arg1: i32) -> (i32, i32, i32) {
    %c0_i32 = arith.constant 0 : i32
    %c0_i32_0 = arith.constant 0 : i32
    %c0_i32_1 = arith.constant 0 : i32
    %c0_i32_2 = arith.constant 0 : i32
    return %c0_i32, %c0_i32_0, %c0_i32_1 : i32, i32, i32
  }
  func.func @transform_6(%arg0: i32, %arg1: i32) -> (i32, i32) {
    %c0_i32 = arith.constant 0 : i32
    %c0_i32_0 = arith.constant 0 : i32
    %c0_i32_1 = arith.constant 0 : i32
    return %c0_i32, %c0_i32_0 : i32, i32
  }
  func.func @transform_7(%arg0: i32, %arg1: i32) -> (i32, i32, i32) {
    %c0_i32 = arith.constant 0 : i32
    %c0_i32_0 = arith.constant 0 : i32
    %c0_i32_1 = arith.constant 0 : i32
    %c0_i32_2 = arith.constant 0 : i32
    return %c0_i32, %c0_i32_0, %c0_i32_1 : i32, i32, i32
  }
  func.func @transform_8(%arg0: i32, %arg1: i32) -> (i32, i32) {
    %c0_i32 = arith.constant 0 : i32
    %c0_i32_0 = arith.constant 0 : i32
    %c0_i32_1 = arith.constant 0 : i32
    return %c0_i32, %c0_i32_0 : i32, i32
  }
  func.func @transform_9(%arg0: i32, %arg1: i32) -> (i32, i32, i32, i32) {
    %c0_i32 = arith.constant 0 : i32
    %c0_i32_0 = arith.constant 0 : i32
    %c0_i32_1 = arith.constant 0 : i32
    return %arg0, %arg1, %c0_i32, %c0_i32_0 : i32, i32, i32, i32
  }
}

module attributes {stable_mosaic.version = 11 : i64} {
  func.func @_conv_kernel(%arg0: i32, %arg1: i32, %arg2: memref<1x4x16x16xbf16, #tpu.memory_space<vmem>>, %arg3: memref<1x1x16x16xbf16, #tpu.memory_space<vmem>>, %arg4: memref<1x1x16x16xbf16, #tpu.memory_space<vmem>>, %arg5: memref<3x48x64xbf16, #tpu.memory_space<vmem>>, %arg6: memref<1x64xf32, #tpu.memory_space<vmem>>, %arg7: memref<1x4x16x64xbf16, #tpu.memory_space<vmem>>) attributes {dimension_semantics = [#tpu.dimension_semantics<parallel>, #tpu.dimension_semantics<parallel>], iteration_bounds = array<i64: 2, 4>, scalar_prefetch = 0 : i64, scratch_operands = 0 : i64, tpu.core_type = #tpu.core_type<tc>, window_params = [{transform_indices = @transform_0, window_bounds = array<i64: 1, 4, 16, 16>}, {transform_indices = @transform_1, window_bounds = array<i64: 1, 1, 16, 16>}, {transform_indices = @transform_2, window_bounds = array<i64: 1, 1, 16, 16>}, {pipeline_mode = #tpu.pipeline_mode<synchronous>, transform_indices = @transform_3, window_bounds = array<i64: 3, 48, 64>}, {pipeline_mode = #tpu.pipeline_mode<synchronous>, transform_indices = @transform_4, window_bounds = array<i64: 1, 64>}, {transform_indices = @transform_5, window_bounds = array<i64: 1, 4, 16, 64>}]} {
    %c4_i32 = arith.constant 4 : i32
    %0 = arith.muli %arg1, %c4_i32 : i32
    %cst = arith.constant 0.000000e+00 : bf16
    %1 = vector.broadcast %cst : bf16 to vector<1x16x16xbf16>
    %c1_i32 = arith.constant 1 : i32
    %2 = arith.subi %0, %c1_i32 : i32
    %c0_i32 = arith.constant 0 : i32
    %3 = arith.cmpi sge, %2, %c0_i32 : i32
    %c0 = arith.constant 0 : index
    %c0_0 = arith.constant 0 : index
    %c0_1 = arith.constant 0 : index
    %c0_2 = arith.constant 0 : index
    %4 = vector.load %arg3[%c0, %c0_0, %c0_1, %c0_2] : memref<1x1x16x16xbf16, #tpu.memory_space<vmem>>, vector<1x1x16x16xbf16>
    %5 = vector.shape_cast %4 : vector<1x1x16x16xbf16> to vector<1x16x16xbf16>
    %6 = arith.select %3, %5, %1 : vector<1x16x16xbf16>
    %c4_i32_3 = arith.constant 4 : i32
    %7 = arith.addi %0, %c4_i32_3 : i32
    %c15_i32 = arith.constant 15 : i32
    %8 = arith.cmpi sle, %7, %c15_i32 : i32
    %c0_4 = arith.constant 0 : index
    %c0_5 = arith.constant 0 : index
    %c0_6 = arith.constant 0 : index
    %c0_7 = arith.constant 0 : index
    %9 = vector.load %arg4[%c0_4, %c0_5, %c0_6, %c0_7] : memref<1x1x16x16xbf16, #tpu.memory_space<vmem>>, vector<1x1x16x16xbf16>
    %10 = vector.shape_cast %9 : vector<1x1x16x16xbf16> to vector<1x16x16xbf16>
    %11 = arith.select %8, %10, %1 : vector<1x16x16xbf16>
    %c0_8 = arith.constant 0 : index
    %c0_9 = arith.constant 0 : index
    %c0_10 = arith.constant 0 : index
    %c0_11 = arith.constant 0 : index
    %12 = vector.load %arg2[%c0_8, %c0_9, %c0_10, %c0_11] : memref<1x4x16x16xbf16, #tpu.memory_space<vmem>>, vector<1x4x16x16xbf16>
    %13 = vector.shape_cast %12 : vector<1x4x16x16xbf16> to vector<4x16x16xbf16>
    %14 = tpu.concatenate %6, %13, %11 in 0 : vector<1x16x16xbf16>, vector<4x16x16xbf16>, vector<1x16x16xbf16> -> vector<6x16x16xbf16>
    %cst_12 = arith.constant 0.000000e+00 : bf16
    %15 = vector.broadcast %cst_12 : bf16 to vector<6x1x16xbf16>
    %16 = tpu.concatenate %15, %14, %15 in 1 : vector<6x1x16xbf16>, vector<6x16x16xbf16>, vector<6x1x16xbf16> -> vector<6x18x16xbf16>
    %17 = vector.extract_strided_slice %16 {offsets = [0, 0, 0], sizes = [4, 18, 16], strides = [1, 1, 1]} : vector<6x18x16xbf16> to vector<4x18x16xbf16>
    %18 = vector.extract_strided_slice %17 {offsets = [0, 0, 0], sizes = [4, 16, 16], strides = [1, 1, 1]} : vector<4x18x16xbf16> to vector<4x16x16xbf16>
    %19 = vector.extract_strided_slice %17 {offsets = [0, 1, 0], sizes = [4, 16, 16], strides = [1, 1, 1]} : vector<4x18x16xbf16> to vector<4x16x16xbf16>
    %20 = vector.extract_strided_slice %17 {offsets = [0, 2, 0], sizes = [4, 16, 16], strides = [1, 1, 1]} : vector<4x18x16xbf16> to vector<4x16x16xbf16>
    %21 = tpu.concatenate %18, %19, %20 in 2 : vector<4x16x16xbf16>, vector<4x16x16xbf16>, vector<4x16x16xbf16> -> vector<4x16x48xbf16>
    %22 = vector.shape_cast %21 : vector<4x16x48xbf16> to vector<64x48xbf16>
    %c0_13 = arith.constant 0 : index
    %c0_14 = arith.constant 0 : index
    %c0_15 = arith.constant 0 : index
    %23 = vector.load %arg5[%c0_13, %c0_14, %c0_15] : memref<3x48x64xbf16, #tpu.memory_space<vmem>>, vector<1x48x64xbf16>
    %24 = vector.shape_cast %23 : vector<1x48x64xbf16> to vector<48x64xbf16>
    %cst_16 = arith.constant dense<0.000000e+00> : vector<64x64xf32>
    %25 = tpu.matmul %22, %24, %cst_16 {dimension_numbers = #tpu.dot_dimension_numbers<[1], [0], [0], [1], [0, 0, 1, 1], [], []>} : vector<64x48xbf16>, vector<48x64xbf16>, vector<64x64xf32> -> vector<64x64xf32>
    %26 = vector.extract_strided_slice %16 {offsets = [1, 0, 0], sizes = [4, 18, 16], strides = [1, 1, 1]} : vector<6x18x16xbf16> to vector<4x18x16xbf16>
    %27 = vector.extract_strided_slice %26 {offsets = [0, 0, 0], sizes = [4, 16, 16], strides = [1, 1, 1]} : vector<4x18x16xbf16> to vector<4x16x16xbf16>
    %28 = vector.extract_strided_slice %26 {offsets = [0, 1, 0], sizes = [4, 16, 16], strides = [1, 1, 1]} : vector<4x18x16xbf16> to vector<4x16x16xbf16>
    %29 = vector.extract_strided_slice %26 {offsets = [0, 2, 0], sizes = [4, 16, 16], strides = [1, 1, 1]} : vector<4x18x16xbf16> to vector<4x16x16xbf16>
    %30 = tpu.concatenate %27, %28, %29 in 2 : vector<4x16x16xbf16>, vector<4x16x16xbf16>, vector<4x16x16xbf16> -> vector<4x16x48xbf16>
    %31 = vector.shape_cast %30 : vector<4x16x48xbf16> to vector<64x48xbf16>
    %c1 = arith.constant 1 : index
    %c0_17 = arith.constant 0 : index
    %c0_18 = arith.constant 0 : index
    %32 = vector.load %arg5[%c1, %c0_17, %c0_18] : memref<3x48x64xbf16, #tpu.memory_space<vmem>>, vector<1x48x64xbf16>
    %33 = vector.shape_cast %32 : vector<1x48x64xbf16> to vector<48x64xbf16>
    %cst_19 = arith.constant dense<0.000000e+00> : vector<64x64xf32>
    %34 = tpu.matmul %31, %33, %cst_19 {dimension_numbers = #tpu.dot_dimension_numbers<[1], [0], [0], [1], [0, 0, 1, 1], [], []>} : vector<64x48xbf16>, vector<48x64xbf16>, vector<64x64xf32> -> vector<64x64xf32>
    %35 = arith.addf %25, %34 : vector<64x64xf32>
    %36 = vector.extract_strided_slice %16 {offsets = [2, 0, 0], sizes = [4, 18, 16], strides = [1, 1, 1]} : vector<6x18x16xbf16> to vector<4x18x16xbf16>
    %37 = vector.extract_strided_slice %36 {offsets = [0, 0, 0], sizes = [4, 16, 16], strides = [1, 1, 1]} : vector<4x18x16xbf16> to vector<4x16x16xbf16>
    %38 = vector.extract_strided_slice %36 {offsets = [0, 1, 0], sizes = [4, 16, 16], strides = [1, 1, 1]} : vector<4x18x16xbf16> to vector<4x16x16xbf16>
    %39 = vector.extract_strided_slice %36 {offsets = [0, 2, 0], sizes = [4, 16, 16], strides = [1, 1, 1]} : vector<4x18x16xbf16> to vector<4x16x16xbf16>
    %40 = tpu.concatenate %37, %38, %39 in 2 : vector<4x16x16xbf16>, vector<4x16x16xbf16>, vector<4x16x16xbf16> -> vector<4x16x48xbf16>
    %41 = vector.shape_cast %40 : vector<4x16x48xbf16> to vector<64x48xbf16>
    %c2 = arith.constant 2 : index
    %c0_20 = arith.constant 0 : index
    %c0_21 = arith.constant 0 : index
    %42 = vector.load %arg5[%c2, %c0_20, %c0_21] : memref<3x48x64xbf16, #tpu.memory_space<vmem>>, vector<1x48x64xbf16>
    %43 = vector.shape_cast %42 : vector<1x48x64xbf16> to vector<48x64xbf16>
    %cst_22 = arith.constant dense<0.000000e+00> : vector<64x64xf32>
    %44 = tpu.matmul %41, %43, %cst_22 {dimension_numbers = #tpu.dot_dimension_numbers<[1], [0], [0], [1], [0, 0, 1, 1], [], []>} : vector<64x48xbf16>, vector<48x64xbf16>, vector<64x64xf32> -> vector<64x64xf32>
    %45 = arith.addf %35, %44 : vector<64x64xf32>
    %c0_23 = arith.constant 0 : index
    %c0_24 = arith.constant 0 : index
    %46 = vector.load %arg6[%c0_23, %c0_24] : memref<1x64xf32, #tpu.memory_space<vmem>>, vector<1x64xf32>
    %47 = vector.broadcast %46 : vector<1x64xf32> to vector<64x64xf32>
    %48 = arith.addf %45, %47 : vector<64x64xf32>
    %cst_25 = arith.constant 0.000000e+00 : f32
    %49 = vector.broadcast %cst_25 : f32 to vector<64x64xf32>
    %50 = arith.cmpf oge, %48, %49 : vector<64x64xf32>
    %cst_26 = arith.constant 1.000000e-01 : f32
    %51 = vector.broadcast %cst_26 : f32 to vector<64x64xf32>
    %52 = arith.mulf %51, %48 : vector<64x64xf32>
    %53 = arith.select %50, %48, %52 : vector<64x64xi1>, vector<64x64xf32>
    %54 = vector.shape_cast %53 : vector<64x64xf32> to vector<4x16x64xf32>
    %55 = arith.truncf %54 : vector<4x16x64xf32> to vector<4x16x64xbf16>
    %c0_27 = arith.constant 0 : index
    %c0_28 = arith.constant 0 : index
    %c0_29 = arith.constant 0 : index
    %c0_30 = arith.constant 0 : index
    %56 = vector.load %arg7[%c0_27, %c0_28, %c0_29, %c0_30] : memref<1x4x16x64xbf16, #tpu.memory_space<vmem>>, vector<1x4x16x64xbf16>
    %57 = vector.shape_cast %56 : vector<1x4x16x64xbf16> to vector<4x16x64xbf16>
    %58 = vector.shape_cast %55 : vector<4x16x64xbf16> to vector<1x4x16x64xbf16>
    tpu.vector_store %arg7[%c0_27, %c0_28, %c0_29, %c0_30], %58 {strides = array<i32>} : memref<1x4x16x64xbf16, #tpu.memory_space<vmem>>, vector<1x4x16x64xbf16>,
    return
  }
  func.func @transform_0(%arg0: i32, %arg1: i32) -> (i32, i32, i32, i32) {
    %c0_i32 = arith.constant 0 : i32
    %c0_i32_0 = arith.constant 0 : i32
    %c0_i32_1 = arith.constant 0 : i32
    return %arg0, %arg1, %c0_i32, %c0_i32_0 : i32, i32, i32, i32
  }
  func.func @transform_1(%arg0: i32, %arg1: i32) -> (i32, i32, i32, i32) {
    %c4_i32 = arith.constant 4 : i32
    %0 = arith.muli %arg1, %c4_i32 : i32
    %c-1_i32 = arith.constant -1 : i32
    %1 = arith.addi %0, %c-1_i32 : i32
    %c0_i32 = arith.constant 0 : i32
    %c15_i32 = arith.constant 15 : i32
    %2 = arith.maxsi %c0_i32, %1 : i32
    %3 = arith.minsi %c15_i32, %2 : i32
    %c0_i32_0 = arith.constant 0 : i32
    %c0_i32_1 = arith.constant 0 : i32
    %c0_i32_2 = arith.constant 0 : i32
    return %arg0, %3, %c0_i32_0, %c0_i32_1 : i32, i32, i32, i32
  }
  func.func @transform_2(%arg0: i32, %arg1: i32) -> (i32, i32, i32, i32) {
    %c4_i32 = arith.constant 4 : i32
    %0 = arith.muli %arg1, %c4_i32 : i32
    %c4_i32_0 = arith.constant 4 : i32
    %1 = arith.addi %0, %c4_i32_0 : i32
    %c0_i32 = arith.constant 0 : i32
    %c15_i32 = arith.constant 15 : i32
    %2 = arith.maxsi %c0_i32, %1 : i32
    %3 = arith.minsi %c15_i32, %2 : i32
    %c0_i32_1 = arith.constant 0 : i32
    %c0_i32_2 = arith.constant 0 : i32
    %c0_i32_3 = arith.constant 0 : i32
    return %arg0, %3, %c0_i32_1, %c0_i32_2 : i32, i32, i32, i32
  }
  func.func @transform_3(%arg0: i32, %arg1: i32) -> (i32, i32, i32) {
    %c0_i32 = arith.constant 0 : i32
    %c0_i32_0 = arith.constant 0 : i32
    %c0_i32_1 = arith.constant 0 : i32
    %c0_i32_2 = arith.constant 0 : i32
    return %c0_i32, %c0_i32_0, %c0_i32_1 : i32, i32, i32
  }
  func.func @transform_4(%arg0: i32, %arg1: i32) -> (i32, i32) {
    %c0_i32 = arith.constant 0 : i32
    %c0_i32_0 = arith.constant 0 : i32
    %c0_i32_1 = arith.constant 0 : i32
    return %c0_i32, %c0_i32_0 : i32, i32
  }
  func.func @transform_5(%arg0: i32, %arg1: i32) -> (i32, i32, i32, i32) {
    %c0_i32 = arith.constant 0 : i32
    %c0_i32_0 = arith.constant 0 : i32
    %c0_i32_1 = arith.constant 0 : i32
    return %arg0, %arg1, %c0_i32, %c0_i32_0 : i32, i32, i32, i32
  }
}

module attributes {stable_mosaic.version = 11 : i64} {
  func.func @_conv_kernel(%arg0: i32, %arg1: i32, %arg2: memref<1x4x32x16xbf16, #tpu.memory_space<vmem>>, %arg3: memref<1x1x32x16xbf16, #tpu.memory_space<vmem>>, %arg4: memref<1x1x32x16xbf16, #tpu.memory_space<vmem>>, %arg5: memref<3x48x64xbf16, #tpu.memory_space<vmem>>, %arg6: memref<1x64xf32, #tpu.memory_space<vmem>>, %arg7: memref<1x4x32x64xbf16, #tpu.memory_space<vmem>>) attributes {dimension_semantics = [#tpu.dimension_semantics<parallel>, #tpu.dimension_semantics<parallel>], iteration_bounds = array<i64: 2, 8>, scalar_prefetch = 0 : i64, scratch_operands = 0 : i64, tpu.core_type = #tpu.core_type<tc>, window_params = [{transform_indices = @transform_0, window_bounds = array<i64: 1, 4, 32, 16>}, {transform_indices = @transform_1, window_bounds = array<i64: 1, 1, 32, 16>}, {transform_indices = @transform_2, window_bounds = array<i64: 1, 1, 32, 16>}, {pipeline_mode = #tpu.pipeline_mode<synchronous>, transform_indices = @transform_3, window_bounds = array<i64: 3, 48, 64>}, {pipeline_mode = #tpu.pipeline_mode<synchronous>, transform_indices = @transform_4, window_bounds = array<i64: 1, 64>}, {transform_indices = @transform_5, window_bounds = array<i64: 1, 4, 32, 64>}]} {
    %c4_i32 = arith.constant 4 : i32
    %0 = arith.muli %arg1, %c4_i32 : i32
    %cst = arith.constant 0.000000e+00 : bf16
    %1 = vector.broadcast %cst : bf16 to vector<1x32x16xbf16>
    %c1_i32 = arith.constant 1 : i32
    %2 = arith.subi %0, %c1_i32 : i32
    %c0_i32 = arith.constant 0 : i32
    %3 = arith.cmpi sge, %2, %c0_i32 : i32
    %c0 = arith.constant 0 : index
    %c0_0 = arith.constant 0 : index
    %c0_1 = arith.constant 0 : index
    %c0_2 = arith.constant 0 : index
    %4 = vector.load %arg3[%c0, %c0_0, %c0_1, %c0_2] : memref<1x1x32x16xbf16, #tpu.memory_space<vmem>>, vector<1x1x32x16xbf16>
    %5 = vector.shape_cast %4 : vector<1x1x32x16xbf16> to vector<1x32x16xbf16>
    %6 = arith.select %3, %5, %1 : vector<1x32x16xbf16>
    %c4_i32_3 = arith.constant 4 : i32
    %7 = arith.addi %0, %c4_i32_3 : i32
    %c31_i32 = arith.constant 31 : i32
    %8 = arith.cmpi sle, %7, %c31_i32 : i32
    %c0_4 = arith.constant 0 : index
    %c0_5 = arith.constant 0 : index
    %c0_6 = arith.constant 0 : index
    %c0_7 = arith.constant 0 : index
    %9 = vector.load %arg4[%c0_4, %c0_5, %c0_6, %c0_7] : memref<1x1x32x16xbf16, #tpu.memory_space<vmem>>, vector<1x1x32x16xbf16>
    %10 = vector.shape_cast %9 : vector<1x1x32x16xbf16> to vector<1x32x16xbf16>
    %11 = arith.select %8, %10, %1 : vector<1x32x16xbf16>
    %c0_8 = arith.constant 0 : index
    %c0_9 = arith.constant 0 : index
    %c0_10 = arith.constant 0 : index
    %c0_11 = arith.constant 0 : index
    %12 = vector.load %arg2[%c0_8, %c0_9, %c0_10, %c0_11] : memref<1x4x32x16xbf16, #tpu.memory_space<vmem>>, vector<1x4x32x16xbf16>
    %13 = vector.shape_cast %12 : vector<1x4x32x16xbf16> to vector<4x32x16xbf16>
    %14 = tpu.concatenate %6, %13, %11 in 0 : vector<1x32x16xbf16>, vector<4x32x16xbf16>, vector<1x32x16xbf16> -> vector<6x32x16xbf16>
    %cst_12 = arith.constant 0.000000e+00 : bf16
    %15 = vector.broadcast %cst_12 : bf16 to vector<6x1x16xbf16>
    %16 = tpu.concatenate %15, %14, %15 in 1 : vector<6x1x16xbf16>, vector<6x32x16xbf16>, vector<6x1x16xbf16> -> vector<6x34x16xbf16>
    %17 = vector.extract_strided_slice %16 {offsets = [0, 0, 0], sizes = [4, 34, 16], strides = [1, 1, 1]} : vector<6x34x16xbf16> to vector<4x34x16xbf16>
    %18 = vector.extract_strided_slice %17 {offsets = [0, 0, 0], sizes = [4, 32, 16], strides = [1, 1, 1]} : vector<4x34x16xbf16> to vector<4x32x16xbf16>
    %19 = vector.extract_strided_slice %17 {offsets = [0, 1, 0], sizes = [4, 32, 16], strides = [1, 1, 1]} : vector<4x34x16xbf16> to vector<4x32x16xbf16>
    %20 = vector.extract_strided_slice %17 {offsets = [0, 2, 0], sizes = [4, 32, 16], strides = [1, 1, 1]} : vector<4x34x16xbf16> to vector<4x32x16xbf16>
    %21 = tpu.concatenate %18, %19, %20 in 2 : vector<4x32x16xbf16>, vector<4x32x16xbf16>, vector<4x32x16xbf16> -> vector<4x32x48xbf16>
    %22 = vector.shape_cast %21 : vector<4x32x48xbf16> to vector<128x48xbf16>
    %c0_13 = arith.constant 0 : index
    %c0_14 = arith.constant 0 : index
    %c0_15 = arith.constant 0 : index
    %23 = vector.load %arg5[%c0_13, %c0_14, %c0_15] : memref<3x48x64xbf16, #tpu.memory_space<vmem>>, vector<1x48x64xbf16>
    %24 = vector.shape_cast %23 : vector<1x48x64xbf16> to vector<48x64xbf16>
    %cst_16 = arith.constant dense<0.000000e+00> : vector<128x64xf32>
    %25 = tpu.matmul %22, %24, %cst_16 {dimension_numbers = #tpu.dot_dimension_numbers<[1], [0], [0], [1], [0, 0, 1, 1], [], []>} : vector<128x48xbf16>, vector<48x64xbf16>, vector<128x64xf32> -> vector<128x64xf32>
    %26 = vector.extract_strided_slice %16 {offsets = [1, 0, 0], sizes = [4, 34, 16], strides = [1, 1, 1]} : vector<6x34x16xbf16> to vector<4x34x16xbf16>
    %27 = vector.extract_strided_slice %26 {offsets = [0, 0, 0], sizes = [4, 32, 16], strides = [1, 1, 1]} : vector<4x34x16xbf16> to vector<4x32x16xbf16>
    %28 = vector.extract_strided_slice %26 {offsets = [0, 1, 0], sizes = [4, 32, 16], strides = [1, 1, 1]} : vector<4x34x16xbf16> to vector<4x32x16xbf16>
    %29 = vector.extract_strided_slice %26 {offsets = [0, 2, 0], sizes = [4, 32, 16], strides = [1, 1, 1]} : vector<4x34x16xbf16> to vector<4x32x16xbf16>
    %30 = tpu.concatenate %27, %28, %29 in 2 : vector<4x32x16xbf16>, vector<4x32x16xbf16>, vector<4x32x16xbf16> -> vector<4x32x48xbf16>
    %31 = vector.shape_cast %30 : vector<4x32x48xbf16> to vector<128x48xbf16>
    %c1 = arith.constant 1 : index
    %c0_17 = arith.constant 0 : index
    %c0_18 = arith.constant 0 : index
    %32 = vector.load %arg5[%c1, %c0_17, %c0_18] : memref<3x48x64xbf16, #tpu.memory_space<vmem>>, vector<1x48x64xbf16>
    %33 = vector.shape_cast %32 : vector<1x48x64xbf16> to vector<48x64xbf16>
    %cst_19 = arith.constant dense<0.000000e+00> : vector<128x64xf32>
    %34 = tpu.matmul %31, %33, %cst_19 {dimension_numbers = #tpu.dot_dimension_numbers<[1], [0], [0], [1], [0, 0, 1, 1], [], []>} : vector<128x48xbf16>, vector<48x64xbf16>, vector<128x64xf32> -> vector<128x64xf32>
    %35 = arith.addf %25, %34 : vector<128x64xf32>
    %36 = vector.extract_strided_slice %16 {offsets = [2, 0, 0], sizes = [4, 34, 16], strides = [1, 1, 1]} : vector<6x34x16xbf16> to vector<4x34x16xbf16>
    %37 = vector.extract_strided_slice %36 {offsets = [0, 0, 0], sizes = [4, 32, 16], strides = [1, 1, 1]} : vector<4x34x16xbf16> to vector<4x32x16xbf16>
    %38 = vector.extract_strided_slice %36 {offsets = [0, 1, 0], sizes = [4, 32, 16], strides = [1, 1, 1]} : vector<4x34x16xbf16> to vector<4x32x16xbf16>
    %39 = vector.extract_strided_slice %36 {offsets = [0, 2, 0], sizes = [4, 32, 16], strides = [1, 1, 1]} : vector<4x34x16xbf16> to vector<4x32x16xbf16>
    %40 = tpu.concatenate %37, %38, %39 in 2 : vector<4x32x16xbf16>, vector<4x32x16xbf16>, vector<4x32x16xbf16> -> vector<4x32x48xbf16>
    %41 = vector.shape_cast %40 : vector<4x32x48xbf16> to vector<128x48xbf16>
    %c2 = arith.constant 2 : index
    %c0_20 = arith.constant 0 : index
    %c0_21 = arith.constant 0 : index
    %42 = vector.load %arg5[%c2, %c0_20, %c0_21] : memref<3x48x64xbf16, #tpu.memory_space<vmem>>, vector<1x48x64xbf16>
    %43 = vector.shape_cast %42 : vector<1x48x64xbf16> to vector<48x64xbf16>
    %cst_22 = arith.constant dense<0.000000e+00> : vector<128x64xf32>
    %44 = tpu.matmul %41, %43, %cst_22 {dimension_numbers = #tpu.dot_dimension_numbers<[1], [0], [0], [1], [0, 0, 1, 1], [], []>} : vector<128x48xbf16>, vector<48x64xbf16>, vector<128x64xf32> -> vector<128x64xf32>
    %45 = arith.addf %35, %44 : vector<128x64xf32>
    %c0_23 = arith.constant 0 : index
    %c0_24 = arith.constant 0 : index
    %46 = vector.load %arg6[%c0_23, %c0_24] : memref<1x64xf32, #tpu.memory_space<vmem>>, vector<1x64xf32>
    %47 = vector.broadcast %46 : vector<1x64xf32> to vector<128x64xf32>
    %48 = arith.addf %45, %47 : vector<128x64xf32>
    %cst_25 = arith.constant 0.000000e+00 : f32
    %49 = vector.broadcast %cst_25 : f32 to vector<128x64xf32>
    %50 = arith.cmpf oge, %48, %49 : vector<128x64xf32>
    %cst_26 = arith.constant 1.000000e-01 : f32
    %51 = vector.broadcast %cst_26 : f32 to vector<128x64xf32>
    %52 = arith.mulf %51, %48 : vector<128x64xf32>
    %53 = arith.select %50, %48, %52 : vector<128x64xi1>, vector<128x64xf32>
    %54 = vector.shape_cast %53 : vector<128x64xf32> to vector<4x32x64xf32>
    %55 = arith.truncf %54 : vector<4x32x64xf32> to vector<4x32x64xbf16>
    %c0_27 = arith.constant 0 : index
    %c0_28 = arith.constant 0 : index
    %c0_29 = arith.constant 0 : index
    %c0_30 = arith.constant 0 : index
    %56 = vector.load %arg7[%c0_27, %c0_28, %c0_29, %c0_30] : memref<1x4x32x64xbf16, #tpu.memory_space<vmem>>, vector<1x4x32x64xbf16>
    %57 = vector.shape_cast %56 : vector<1x4x32x64xbf16> to vector<4x32x64xbf16>
    %58 = vector.shape_cast %55 : vector<4x32x64xbf16> to vector<1x4x32x64xbf16>
    tpu.vector_store %arg7[%c0_27, %c0_28, %c0_29, %c0_30], %58 {strides = array<i32>} : memref<1x4x32x64xbf16, #tpu.memory_space<vmem>>, vector<1x4x32x64xbf16>,
    return
  }
  func.func @transform_0(%arg0: i32, %arg1: i32) -> (i32, i32, i32, i32) {
    %c0_i32 = arith.constant 0 : i32
    %c0_i32_0 = arith.constant 0 : i32
    %c0_i32_1 = arith.constant 0 : i32
    return %arg0, %arg1, %c0_i32, %c0_i32_0 : i32, i32, i32, i32
  }
  func.func @transform_1(%arg0: i32, %arg1: i32) -> (i32, i32, i32, i32) {
    %c4_i32 = arith.constant 4 : i32
    %0 = arith.muli %arg1, %c4_i32 : i32
    %c-1_i32 = arith.constant -1 : i32
    %1 = arith.addi %0, %c-1_i32 : i32
    %c0_i32 = arith.constant 0 : i32
    %c31_i32 = arith.constant 31 : i32
    %2 = arith.maxsi %c0_i32, %1 : i32
    %3 = arith.minsi %c31_i32, %2 : i32
    %c0_i32_0 = arith.constant 0 : i32
    %c0_i32_1 = arith.constant 0 : i32
    %c0_i32_2 = arith.constant 0 : i32
    return %arg0, %3, %c0_i32_0, %c0_i32_1 : i32, i32, i32, i32
  }
  func.func @transform_2(%arg0: i32, %arg1: i32) -> (i32, i32, i32, i32) {
    %c4_i32 = arith.constant 4 : i32
    %0 = arith.muli %arg1, %c4_i32 : i32
    %c4_i32_0 = arith.constant 4 : i32
    %1 = arith.addi %0, %c4_i32_0 : i32
    %c0_i32 = arith.constant 0 : i32
    %c31_i32 = arith.constant 31 : i32
    %2 = arith.maxsi %c0_i32, %1 : i32
    %3 = arith.minsi %c31_i32, %2 : i32
    %c0_i32_1 = arith.constant 0 : i32
    %c0_i32_2 = arith.constant 0 : i32
    %c0_i32_3 = arith.constant 0 : i32
    return %arg0, %3, %c0_i32_1, %c0_i32_2 : i32, i32, i32, i32
  }
  func.func @transform_3(%arg0: i32, %arg1: i32) -> (i32, i32, i32) {
    %c0_i32 = arith.constant 0 : i32
    %c0_i32_0 = arith.constant 0 : i32
    %c0_i32_1 = arith.constant 0 : i32
    %c0_i32_2 = arith.constant 0 : i32
    return %c0_i32, %c0_i32_0, %c0_i32_1 : i32, i32, i32
  }
  func.func @transform_4(%arg0: i32, %arg1: i32) -> (i32, i32) {
    %c0_i32 = arith.constant 0 : i32
    %c0_i32_0 = arith.constant 0 : i32
    %c0_i32_1 = arith.constant 0 : i32
    return %c0_i32, %c0_i32_0 : i32, i32
  }
  func.func @transform_5(%arg0: i32, %arg1: i32) -> (i32, i32, i32, i32) {
    %c0_i32 = arith.constant 0 : i32
    %c0_i32_0 = arith.constant 0 : i32
    %c0_i32_1 = arith.constant 0 : i32
    return %arg0, %arg1, %c0_i32, %c0_i32_0 : i32, i32, i32, i32
  }
}

module attributes {stable_mosaic.version = 11 : i64} {
  func.func @_conv_kernel(%arg0: i32, %arg1: i32, %arg2: memref<1x4x64x16xbf16, #tpu.memory_space<vmem>>, %arg3: memref<1x1x64x16xbf16, #tpu.memory_space<vmem>>, %arg4: memref<1x1x64x16xbf16, #tpu.memory_space<vmem>>, %arg5: memref<3x48x16xbf16, #tpu.memory_space<vmem>>, %arg6: memref<1x16xf32, #tpu.memory_space<vmem>>, %arg7: memref<1x4x64x16xbf16, #tpu.memory_space<vmem>>) attributes {dimension_semantics = [#tpu.dimension_semantics<parallel>, #tpu.dimension_semantics<parallel>], iteration_bounds = array<i64: 2, 16>, scalar_prefetch = 0 : i64, scratch_operands = 0 : i64, tpu.core_type = #tpu.core_type<tc>, window_params = [{transform_indices = @transform_0, window_bounds = array<i64: 1, 4, 64, 16>}, {transform_indices = @transform_1, window_bounds = array<i64: 1, 1, 64, 16>}, {transform_indices = @transform_2, window_bounds = array<i64: 1, 1, 64, 16>}, {pipeline_mode = #tpu.pipeline_mode<synchronous>, transform_indices = @transform_3, window_bounds = array<i64: 3, 48, 16>}, {pipeline_mode = #tpu.pipeline_mode<synchronous>, transform_indices = @transform_4, window_bounds = array<i64: 1, 16>}, {transform_indices = @transform_5, window_bounds = array<i64: 1, 4, 64, 16>}]} {
    %c4_i32 = arith.constant 4 : i32
    %0 = arith.muli %arg1, %c4_i32 : i32
    %cst = arith.constant 0.000000e+00 : bf16
    %1 = vector.broadcast %cst : bf16 to vector<1x64x16xbf16>
    %c1_i32 = arith.constant 1 : i32
    %2 = arith.subi %0, %c1_i32 : i32
    %c0_i32 = arith.constant 0 : i32
    %3 = arith.cmpi sge, %2, %c0_i32 : i32
    %c0 = arith.constant 0 : index
    %c0_0 = arith.constant 0 : index
    %c0_1 = arith.constant 0 : index
    %c0_2 = arith.constant 0 : index
    %4 = vector.load %arg3[%c0, %c0_0, %c0_1, %c0_2] : memref<1x1x64x16xbf16, #tpu.memory_space<vmem>>, vector<1x1x64x16xbf16>
    %5 = vector.shape_cast %4 : vector<1x1x64x16xbf16> to vector<1x64x16xbf16>
    %6 = arith.select %3, %5, %1 : vector<1x64x16xbf16>
    %c4_i32_3 = arith.constant 4 : i32
    %7 = arith.addi %0, %c4_i32_3 : i32
    %c63_i32 = arith.constant 63 : i32
    %8 = arith.cmpi sle, %7, %c63_i32 : i32
    %c0_4 = arith.constant 0 : index
    %c0_5 = arith.constant 0 : index
    %c0_6 = arith.constant 0 : index
    %c0_7 = arith.constant 0 : index
    %9 = vector.load %arg4[%c0_4, %c0_5, %c0_6, %c0_7] : memref<1x1x64x16xbf16, #tpu.memory_space<vmem>>, vector<1x1x64x16xbf16>
    %10 = vector.shape_cast %9 : vector<1x1x64x16xbf16> to vector<1x64x16xbf16>
    %11 = arith.select %8, %10, %1 : vector<1x64x16xbf16>
    %c0_8 = arith.constant 0 : index
    %c0_9 = arith.constant 0 : index
    %c0_10 = arith.constant 0 : index
    %c0_11 = arith.constant 0 : index
    %12 = vector.load %arg2[%c0_8, %c0_9, %c0_10, %c0_11] : memref<1x4x64x16xbf16, #tpu.memory_space<vmem>>, vector<1x4x64x16xbf16>
    %13 = vector.shape_cast %12 : vector<1x4x64x16xbf16> to vector<4x64x16xbf16>
    %14 = tpu.concatenate %6, %13, %11 in 0 : vector<1x64x16xbf16>, vector<4x64x16xbf16>, vector<1x64x16xbf16> -> vector<6x64x16xbf16>
    %cst_12 = arith.constant 0.000000e+00 : bf16
    %15 = vector.broadcast %cst_12 : bf16 to vector<6x1x16xbf16>
    %16 = tpu.concatenate %15, %14, %15 in 1 : vector<6x1x16xbf16>, vector<6x64x16xbf16>, vector<6x1x16xbf16> -> vector<6x66x16xbf16>
    %17 = vector.extract_strided_slice %16 {offsets = [0, 0, 0], sizes = [4, 66, 16], strides = [1, 1, 1]} : vector<6x66x16xbf16> to vector<4x66x16xbf16>
    %18 = vector.extract_strided_slice %17 {offsets = [0, 0, 0], sizes = [4, 64, 16], strides = [1, 1, 1]} : vector<4x66x16xbf16> to vector<4x64x16xbf16>
    %19 = vector.extract_strided_slice %17 {offsets = [0, 1, 0], sizes = [4, 64, 16], strides = [1, 1, 1]} : vector<4x66x16xbf16> to vector<4x64x16xbf16>
    %20 = vector.extract_strided_slice %17 {offsets = [0, 2, 0], sizes = [4, 64, 16], strides = [1, 1, 1]} : vector<4x66x16xbf16> to vector<4x64x16xbf16>
    %21 = tpu.concatenate %18, %19, %20 in 2 : vector<4x64x16xbf16>, vector<4x64x16xbf16>, vector<4x64x16xbf16> -> vector<4x64x48xbf16>
    %22 = vector.shape_cast %21 : vector<4x64x48xbf16> to vector<256x48xbf16>
    %c0_13 = arith.constant 0 : index
    %c0_14 = arith.constant 0 : index
    %c0_15 = arith.constant 0 : index
    %23 = vector.load %arg5[%c0_13, %c0_14, %c0_15] : memref<3x48x16xbf16, #tpu.memory_space<vmem>>, vector<1x48x16xbf16>
    %24 = vector.shape_cast %23 : vector<1x48x16xbf16> to vector<48x16xbf16>
    %cst_16 = arith.constant dense<0.000000e+00> : vector<256x16xf32>
    %25 = tpu.matmul %22, %24, %cst_16 {dimension_numbers = #tpu.dot_dimension_numbers<[1], [0], [0], [1], [0, 0, 1, 1], [], []>} : vector<256x48xbf16>, vector<48x16xbf16>, vector<256x16xf32> -> vector<256x16xf32>
    %26 = vector.extract_strided_slice %16 {offsets = [1, 0, 0], sizes = [4, 66, 16], strides = [1, 1, 1]} : vector<6x66x16xbf16> to vector<4x66x16xbf16>
    %27 = vector.extract_strided_slice %26 {offsets = [0, 0, 0], sizes = [4, 64, 16], strides = [1, 1, 1]} : vector<4x66x16xbf16> to vector<4x64x16xbf16>
    %28 = vector.extract_strided_slice %26 {offsets = [0, 1, 0], sizes = [4, 64, 16], strides = [1, 1, 1]} : vector<4x66x16xbf16> to vector<4x64x16xbf16>
    %29 = vector.extract_strided_slice %26 {offsets = [0, 2, 0], sizes = [4, 64, 16], strides = [1, 1, 1]} : vector<4x66x16xbf16> to vector<4x64x16xbf16>
    %30 = tpu.concatenate %27, %28, %29 in 2 : vector<4x64x16xbf16>, vector<4x64x16xbf16>, vector<4x64x16xbf16> -> vector<4x64x48xbf16>
    %31 = vector.shape_cast %30 : vector<4x64x48xbf16> to vector<256x48xbf16>
    %c1 = arith.constant 1 : index
    %c0_17 = arith.constant 0 : index
    %c0_18 = arith.constant 0 : index
    %32 = vector.load %arg5[%c1, %c0_17, %c0_18] : memref<3x48x16xbf16, #tpu.memory_space<vmem>>, vector<1x48x16xbf16>
    %33 = vector.shape_cast %32 : vector<1x48x16xbf16> to vector<48x16xbf16>
    %cst_19 = arith.constant dense<0.000000e+00> : vector<256x16xf32>
    %34 = tpu.matmul %31, %33, %cst_19 {dimension_numbers = #tpu.dot_dimension_numbers<[1], [0], [0], [1], [0, 0, 1, 1], [], []>} : vector<256x48xbf16>, vector<48x16xbf16>, vector<256x16xf32> -> vector<256x16xf32>
    %35 = arith.addf %25, %34 : vector<256x16xf32>
    %36 = vector.extract_strided_slice %16 {offsets = [2, 0, 0], sizes = [4, 66, 16], strides = [1, 1, 1]} : vector<6x66x16xbf16> to vector<4x66x16xbf16>
    %37 = vector.extract_strided_slice %36 {offsets = [0, 0, 0], sizes = [4, 64, 16], strides = [1, 1, 1]} : vector<4x66x16xbf16> to vector<4x64x16xbf16>
    %38 = vector.extract_strided_slice %36 {offsets = [0, 1, 0], sizes = [4, 64, 16], strides = [1, 1, 1]} : vector<4x66x16xbf16> to vector<4x64x16xbf16>
    %39 = vector.extract_strided_slice %36 {offsets = [0, 2, 0], sizes = [4, 64, 16], strides = [1, 1, 1]} : vector<4x66x16xbf16> to vector<4x64x16xbf16>
    %40 = tpu.concatenate %37, %38, %39 in 2 : vector<4x64x16xbf16>, vector<4x64x16xbf16>, vector<4x64x16xbf16> -> vector<4x64x48xbf16>
    %41 = vector.shape_cast %40 : vector<4x64x48xbf16> to vector<256x48xbf16>
    %c2 = arith.constant 2 : index
    %c0_20 = arith.constant 0 : index
    %c0_21 = arith.constant 0 : index
    %42 = vector.load %arg5[%c2, %c0_20, %c0_21] : memref<3x48x16xbf16, #tpu.memory_space<vmem>>, vector<1x48x16xbf16>
    %43 = vector.shape_cast %42 : vector<1x48x16xbf16> to vector<48x16xbf16>
    %cst_22 = arith.constant dense<0.000000e+00> : vector<256x16xf32>
    %44 = tpu.matmul %41, %43, %cst_22 {dimension_numbers = #tpu.dot_dimension_numbers<[1], [0], [0], [1], [0, 0, 1, 1], [], []>} : vector<256x48xbf16>, vector<48x16xbf16>, vector<256x16xf32> -> vector<256x16xf32>
    %45 = arith.addf %35, %44 : vector<256x16xf32>
    %c0_23 = arith.constant 0 : index
    %c0_24 = arith.constant 0 : index
    %46 = vector.load %arg6[%c0_23, %c0_24] : memref<1x16xf32, #tpu.memory_space<vmem>>, vector<1x16xf32>
    %47 = vector.broadcast %46 : vector<1x16xf32> to vector<256x16xf32>
    %48 = arith.addf %45, %47 : vector<256x16xf32>
    %cst_25 = arith.constant 0.000000e+00 : f32
    %49 = vector.broadcast %cst_25 : f32 to vector<256x16xf32>
    %50 = arith.cmpf oge, %48, %49 : vector<256x16xf32>
    %cst_26 = arith.constant 1.000000e-01 : f32
    %51 = vector.broadcast %cst_26 : f32 to vector<256x16xf32>
    %52 = arith.mulf %51, %48 : vector<256x16xf32>
    %53 = arith.select %50, %48, %52 : vector<256x16xi1>, vector<256x16xf32>
    %54 = vector.shape_cast %53 : vector<256x16xf32> to vector<4x64x16xf32>
    %55 = arith.truncf %54 : vector<4x64x16xf32> to vector<4x64x16xbf16>
    %c0_27 = arith.constant 0 : index
    %c0_28 = arith.constant 0 : index
    %c0_29 = arith.constant 0 : index
    %c0_30 = arith.constant 0 : index
    %56 = vector.load %arg7[%c0_27, %c0_28, %c0_29, %c0_30] : memref<1x4x64x16xbf16, #tpu.memory_space<vmem>>, vector<1x4x64x16xbf16>
    %57 = vector.shape_cast %56 : vector<1x4x64x16xbf16> to vector<4x64x16xbf16>
    %58 = vector.shape_cast %55 : vector<4x64x16xbf16> to vector<1x4x64x16xbf16>
    tpu.vector_store %arg7[%c0_27, %c0_28, %c0_29, %c0_30], %58 {strides = array<i32>} : memref<1x4x64x16xbf16, #tpu.memory_space<vmem>>, vector<1x4x64x16xbf16>,
    return
  }
  func.func @transform_0(%arg0: i32, %arg1: i32) -> (i32, i32, i32, i32) {
    %c0_i32 = arith.constant 0 : i32
    %c0_i32_0 = arith.constant 0 : i32
    %c0_i32_1 = arith.constant 0 : i32
    return %arg0, %arg1, %c0_i32, %c0_i32_0 : i32, i32, i32, i32
  }
  func.func @transform_1(%arg0: i32, %arg1: i32) -> (i32, i32, i32, i32) {
    %c4_i32 = arith.constant 4 : i32
    %0 = arith.muli %arg1, %c4_i32 : i32
    %c-1_i32 = arith.constant -1 : i32
    %1 = arith.addi %0, %c-1_i32 : i32
    %c0_i32 = arith.constant 0 : i32
    %c63_i32 = arith.constant 63 : i32
    %2 = arith.maxsi %c0_i32, %1 : i32
    %3 = arith.minsi %c63_i32, %2 : i32
    %c0_i32_0 = arith.constant 0 : i32
    %c0_i32_1 = arith.constant 0 : i32
    %c0_i32_2 = arith.constant 0 : i32
    return %arg0, %3, %c0_i32_0, %c0_i32_1 : i32, i32, i32, i32
  }
  func.func @transform_2(%arg0: i32, %arg1: i32) -> (i32, i32, i32, i32) {
    %c4_i32 = arith.constant 4 : i32
    %0 = arith.muli %arg1, %c4_i32 : i32
    %c4_i32_0 = arith.constant 4 : i32
    %1 = arith.addi %0, %c4_i32_0 : i32
    %c0_i32 = arith.constant 0 : i32
    %c63_i32 = arith.constant 63 : i32
    %2 = arith.maxsi %c0_i32, %1 : i32
    %3 = arith.minsi %c63_i32, %2 : i32
    %c0_i32_1 = arith.constant 0 : i32
    %c0_i32_2 = arith.constant 0 : i32
    %c0_i32_3 = arith.constant 0 : i32
    return %arg0, %3, %c0_i32_1, %c0_i32_2 : i32, i32, i32, i32
  }
  func.func @transform_3(%arg0: i32, %arg1: i32) -> (i32, i32, i32) {
    %c0_i32 = arith.constant 0 : i32
    %c0_i32_0 = arith.constant 0 : i32
    %c0_i32_1 = arith.constant 0 : i32
    %c0_i32_2 = arith.constant 0 : i32
    return %c0_i32, %c0_i32_0, %c0_i32_1 : i32, i32, i32
  }
  func.func @transform_4(%arg0: i32, %arg1: i32) -> (i32, i32) {
    %c0_i32 = arith.constant 0 : i32
    %c0_i32_0 = arith.constant 0 : i32
    %c0_i32_1 = arith.constant 0 : i32
    return %c0_i32, %c0_i32_0 : i32, i32
  }
  func.func @transform_5(%arg0: i32, %arg1: i32) -> (i32, i32, i32, i32) {
    %c0_i32 = arith.constant 0 : i32
    %c0_i32_0 = arith.constant 0 : i32
    %c0_i32_1 = arith.constant 0 : i32
    return %arg0, %arg1, %c0_i32, %c0_i32_0 : i32, i32, i32, i32
  }
}

module attributes {stable_mosaic.version = 11 : i64} {
  func.func @_conv_res_kernel(%arg0: i32, %arg1: i32, %arg2: memref<1x4x64x16xbf16, #tpu.memory_space<vmem>>, %arg3: memref<1x1x64x16xbf16, #tpu.memory_space<vmem>>, %arg4: memref<1x1x64x16xbf16, #tpu.memory_space<vmem>>, %arg5: memref<3x48x3xbf16, #tpu.memory_space<vmem>>, %arg6: memref<1x3xf32, #tpu.memory_space<vmem>>, %arg7: memref<1x4x64x3xbf16, #tpu.memory_space<vmem>>, %arg8: memref<1x4x64x3xf32, #tpu.memory_space<vmem>>) attributes {dimension_semantics = [#tpu.dimension_semantics<parallel>, #tpu.dimension_semantics<parallel>], iteration_bounds = array<i64: 2, 16>, scalar_prefetch = 0 : i64, scratch_operands = 0 : i64, tpu.core_type = #tpu.core_type<tc>, window_params = [{transform_indices = @transform_0, window_bounds = array<i64: 1, 4, 64, 16>}, {transform_indices = @transform_1, window_bounds = array<i64: 1, 1, 64, 16>}, {transform_indices = @transform_2, window_bounds = array<i64: 1, 1, 64, 16>}, {pipeline_mode = #tpu.pipeline_mode<synchronous>, transform_indices = @transform_3, window_bounds = array<i64: 3, 48, 3>}, {pipeline_mode = #tpu.pipeline_mode<synchronous>, transform_indices = @transform_4, window_bounds = array<i64: 1, 3>}, {transform_indices = @transform_5, window_bounds = array<i64: 1, 4, 64, 3>}, {transform_indices = @transform_6, window_bounds = array<i64: 1, 4, 64, 3>}]} {
    %c4_i32 = arith.constant 4 : i32
    %0 = arith.muli %arg1, %c4_i32 : i32
    %cst = arith.constant 0.000000e+00 : bf16
    %1 = vector.broadcast %cst : bf16 to vector<1x64x16xbf16>
    %c1_i32 = arith.constant 1 : i32
    %2 = arith.subi %0, %c1_i32 : i32
    %c0_i32 = arith.constant 0 : i32
    %3 = arith.cmpi sge, %2, %c0_i32 : i32
    %c0 = arith.constant 0 : index
    %c0_0 = arith.constant 0 : index
    %c0_1 = arith.constant 0 : index
    %c0_2 = arith.constant 0 : index
    %4 = vector.load %arg3[%c0, %c0_0, %c0_1, %c0_2] : memref<1x1x64x16xbf16, #tpu.memory_space<vmem>>, vector<1x1x64x16xbf16>
    %5 = vector.shape_cast %4 : vector<1x1x64x16xbf16> to vector<1x64x16xbf16>
    %6 = arith.select %3, %5, %1 : vector<1x64x16xbf16>
    %c4_i32_3 = arith.constant 4 : i32
    %7 = arith.addi %0, %c4_i32_3 : i32
    %c63_i32 = arith.constant 63 : i32
    %8 = arith.cmpi sle, %7, %c63_i32 : i32
    %c0_4 = arith.constant 0 : index
    %c0_5 = arith.constant 0 : index
    %c0_6 = arith.constant 0 : index
    %c0_7 = arith.constant 0 : index
    %9 = vector.load %arg4[%c0_4, %c0_5, %c0_6, %c0_7] : memref<1x1x64x16xbf16, #tpu.memory_space<vmem>>, vector<1x1x64x16xbf16>
    %10 = vector.shape_cast %9 : vector<1x1x64x16xbf16> to vector<1x64x16xbf16>
    %11 = arith.select %8, %10, %1 : vector<1x64x16xbf16>
    %c0_8 = arith.constant 0 : index
    %c0_9 = arith.constant 0 : index
    %c0_10 = arith.constant 0 : index
    %c0_11 = arith.constant 0 : index
    %12 = vector.load %arg2[%c0_8, %c0_9, %c0_10, %c0_11] : memref<1x4x64x16xbf16, #tpu.memory_space<vmem>>, vector<1x4x64x16xbf16>
    %13 = vector.shape_cast %12 : vector<1x4x64x16xbf16> to vector<4x64x16xbf16>
    %14 = tpu.concatenate %6, %13, %11 in 0 : vector<1x64x16xbf16>, vector<4x64x16xbf16>, vector<1x64x16xbf16> -> vector<6x64x16xbf16>
    %cst_12 = arith.constant 0.000000e+00 : bf16
    %15 = vector.broadcast %cst_12 : bf16 to vector<6x1x16xbf16>
    %16 = tpu.concatenate %15, %14, %15 in 1 : vector<6x1x16xbf16>, vector<6x64x16xbf16>, vector<6x1x16xbf16> -> vector<6x66x16xbf16>
    %17 = vector.extract_strided_slice %16 {offsets = [0, 0, 0], sizes = [4, 66, 16], strides = [1, 1, 1]} : vector<6x66x16xbf16> to vector<4x66x16xbf16>
    %18 = vector.extract_strided_slice %17 {offsets = [0, 0, 0], sizes = [4, 64, 16], strides = [1, 1, 1]} : vector<4x66x16xbf16> to vector<4x64x16xbf16>
    %19 = vector.extract_strided_slice %17 {offsets = [0, 1, 0], sizes = [4, 64, 16], strides = [1, 1, 1]} : vector<4x66x16xbf16> to vector<4x64x16xbf16>
    %20 = vector.extract_strided_slice %17 {offsets = [0, 2, 0], sizes = [4, 64, 16], strides = [1, 1, 1]} : vector<4x66x16xbf16> to vector<4x64x16xbf16>
    %21 = tpu.concatenate %18, %19, %20 in 2 : vector<4x64x16xbf16>, vector<4x64x16xbf16>, vector<4x64x16xbf16> -> vector<4x64x48xbf16>
    %22 = vector.shape_cast %21 : vector<4x64x48xbf16> to vector<256x48xbf16>
    %c0_13 = arith.constant 0 : index
    %c0_14 = arith.constant 0 : index
    %c0_15 = arith.constant 0 : index
    %23 = vector.load %arg5[%c0_13, %c0_14, %c0_15] : memref<3x48x3xbf16, #tpu.memory_space<vmem>>, vector<1x48x3xbf16>
    %24 = vector.shape_cast %23 : vector<1x48x3xbf16> to vector<48x3xbf16>
    %cst_16 = arith.constant dense<0.000000e+00> : vector<256x3xf32>
    %25 = tpu.matmul %22, %24, %cst_16 {dimension_numbers = #tpu.dot_dimension_numbers<[1], [0], [0], [1], [0, 0, 1, 1], [], []>} : vector<256x48xbf16>, vector<48x3xbf16>, vector<256x3xf32> -> vector<256x3xf32>
    %26 = vector.extract_strided_slice %16 {offsets = [1, 0, 0], sizes = [4, 66, 16], strides = [1, 1, 1]} : vector<6x66x16xbf16> to vector<4x66x16xbf16>
    %27 = vector.extract_strided_slice %26 {offsets = [0, 0, 0], sizes = [4, 64, 16], strides = [1, 1, 1]} : vector<4x66x16xbf16> to vector<4x64x16xbf16>
    %28 = vector.extract_strided_slice %26 {offsets = [0, 1, 0], sizes = [4, 64, 16], strides = [1, 1, 1]} : vector<4x66x16xbf16> to vector<4x64x16xbf16>
    %29 = vector.extract_strided_slice %26 {offsets = [0, 2, 0], sizes = [4, 64, 16], strides = [1, 1, 1]} : vector<4x66x16xbf16> to vector<4x64x16xbf16>
    %30 = tpu.concatenate %27, %28, %29 in 2 : vector<4x64x16xbf16>, vector<4x64x16xbf16>, vector<4x64x16xbf16> -> vector<4x64x48xbf16>
    %31 = vector.shape_cast %30 : vector<4x64x48xbf16> to vector<256x48xbf16>
    %c1 = arith.constant 1 : index
    %c0_17 = arith.constant 0 : index
    %c0_18 = arith.constant 0 : index
    %32 = vector.load %arg5[%c1, %c0_17, %c0_18] : memref<3x48x3xbf16, #tpu.memory_space<vmem>>, vector<1x48x3xbf16>
    %33 = vector.shape_cast %32 : vector<1x48x3xbf16> to vector<48x3xbf16>
    %cst_19 = arith.constant dense<0.000000e+00> : vector<256x3xf32>
    %34 = tpu.matmul %31, %33, %cst_19 {dimension_numbers = #tpu.dot_dimension_numbers<[1], [0], [0], [1], [0, 0, 1, 1], [], []>} : vector<256x48xbf16>, vector<48x3xbf16>, vector<256x3xf32> -> vector<256x3xf32>
    %35 = arith.addf %25, %34 : vector<256x3xf32>
    %36 = vector.extract_strided_slice %16 {offsets = [2, 0, 0], sizes = [4, 66, 16], strides = [1, 1, 1]} : vector<6x66x16xbf16> to vector<4x66x16xbf16>
    %37 = vector.extract_strided_slice %36 {offsets = [0, 0, 0], sizes = [4, 64, 16], strides = [1, 1, 1]} : vector<4x66x16xbf16> to vector<4x64x16xbf16>
    %38 = vector.extract_strided_slice %36 {offsets = [0, 1, 0], sizes = [4, 64, 16], strides = [1, 1, 1]} : vector<4x66x16xbf16> to vector<4x64x16xbf16>
    %39 = vector.extract_strided_slice %36 {offsets = [0, 2, 0], sizes = [4, 64, 16], strides = [1, 1, 1]} : vector<4x66x16xbf16> to vector<4x64x16xbf16>
    %40 = tpu.concatenate %37, %38, %39 in 2 : vector<4x64x16xbf16>, vector<4x64x16xbf16>, vector<4x64x16xbf16> -> vector<4x64x48xbf16>
    %41 = vector.shape_cast %40 : vector<4x64x48xbf16> to vector<256x48xbf16>
    %c2 = arith.constant 2 : index
    %c0_20 = arith.constant 0 : index
    %c0_21 = arith.constant 0 : index
    %42 = vector.load %arg5[%c2, %c0_20, %c0_21] : memref<3x48x3xbf16, #tpu.memory_space<vmem>>, vector<1x48x3xbf16>
    %43 = vector.shape_cast %42 : vector<1x48x3xbf16> to vector<48x3xbf16>
    %cst_22 = arith.constant dense<0.000000e+00> : vector<256x3xf32>
    %44 = tpu.matmul %41, %43, %cst_22 {dimension_numbers = #tpu.dot_dimension_numbers<[1], [0], [0], [1], [0, 0, 1, 1], [], []>} : vector<256x48xbf16>, vector<48x3xbf16>, vector<256x3xf32> -> vector<256x3xf32>
    %45 = arith.addf %35, %44 : vector<256x3xf32>
    %c0_23 = arith.constant 0 : index
    %c0_24 = arith.constant 0 : index
    %46 = vector.load %arg6[%c0_23, %c0_24] : memref<1x3xf32, #tpu.memory_space<vmem>>, vector<1x3xf32>
    %47 = vector.broadcast %46 : vector<1x3xf32> to vector<256x3xf32>
    %48 = arith.addf %45, %47 : vector<256x3xf32>
    %c0_25 = arith.constant 0 : index
    %c0_26 = arith.constant 0 : index
    %c0_27 = arith.constant 0 : index
    %c0_28 = arith.constant 0 : index
    %49 = vector.load %arg7[%c0_25, %c0_26, %c0_27, %c0_28] : memref<1x4x64x3xbf16, #tpu.memory_space<vmem>>, vector<1x4x64x3xbf16>
    %50 = vector.shape_cast %49 : vector<1x4x64x3xbf16> to vector<4x64x3xbf16>
    %51 = vector.shape_cast %50 : vector<4x64x3xbf16> to vector<256x3xbf16>
    %52 = arith.extf %51 : vector<256x3xbf16> to vector<256x3xf32>
    %53 = arith.addf %48, %52 : vector<256x3xf32>
    %54 = vector.shape_cast %53 : vector<256x3xf32> to vector<4x64x3xf32>
    %c0_29 = arith.constant 0 : index
    %c0_30 = arith.constant 0 : index
    %c0_31 = arith.constant 0 : index
    %c0_32 = arith.constant 0 : index
    %55 = vector.load %arg8[%c0_29, %c0_30, %c0_31, %c0_32] : memref<1x4x64x3xf32, #tpu.memory_space<vmem>>, vector<1x4x64x3xf32>
    %56 = vector.shape_cast %55 : vector<1x4x64x3xf32> to vector<4x64x3xf32>
    %57 = vector.shape_cast %54 : vector<4x64x3xf32> to vector<1x4x64x3xf32>
    tpu.vector_store %arg8[%c0_29, %c0_30, %c0_31, %c0_32], %57 {strides = array<i32>} : memref<1x4x64x3xf32, #tpu.memory_space<vmem>>, vector<1x4x64x3xf32>,
    return
  }
  func.func @transform_0(%arg0: i32, %arg1: i32) -> (i32, i32, i32, i32) {
    %c0_i32 = arith.constant 0 : i32
    %c0_i32_0 = arith.constant 0 : i32
    %c0_i32_1 = arith.constant 0 : i32
    return %arg0, %arg1, %c0_i32, %c0_i32_0 : i32, i32, i32, i32
  }
  func.func @transform_1(%arg0: i32, %arg1: i32) -> (i32, i32, i32, i32) {
    %c4_i32 = arith.constant 4 : i32
    %0 = arith.muli %arg1, %c4_i32 : i32
    %c-1_i32 = arith.constant -1 : i32
    %1 = arith.addi %0, %c-1_i32 : i32
    %c0_i32 = arith.constant 0 : i32
    %c63_i32 = arith.constant 63 : i32
    %2 = arith.maxsi %c0_i32, %1 : i32
    %3 = arith.minsi %c63_i32, %2 : i32
    %c0_i32_0 = arith.constant 0 : i32
    %c0_i32_1 = arith.constant 0 : i32
    %c0_i32_2 = arith.constant 0 : i32
    return %arg0, %3, %c0_i32_0, %c0_i32_1 : i32, i32, i32, i32
  }
  func.func @transform_2(%arg0: i32, %arg1: i32) -> (i32, i32, i32, i32) {
    %c4_i32 = arith.constant 4 : i32
    %0 = arith.muli %arg1, %c4_i32 : i32
    %c4_i32_0 = arith.constant 4 : i32
    %1 = arith.addi %0, %c4_i32_0 : i32
    %c0_i32 = arith.constant 0 : i32
    %c63_i32 = arith.constant 63 : i32
    %2 = arith.maxsi %c0_i32, %1 : i32
    %3 = arith.minsi %c63_i32, %2 : i32
    %c0_i32_1 = arith.constant 0 : i32
    %c0_i32_2 = arith.constant 0 : i32
    %c0_i32_3 = arith.constant 0 : i32
    return %arg0, %3, %c0_i32_1, %c0_i32_2 : i32, i32, i32, i32
  }
  func.func @transform_3(%arg0: i32, %arg1: i32) -> (i32, i32, i32) {
    %c0_i32 = arith.constant 0 : i32
    %c0_i32_0 = arith.constant 0 : i32
    %c0_i32_1 = arith.constant 0 : i32
    %c0_i32_2 = arith.constant 0 : i32
    return %c0_i32, %c0_i32_0, %c0_i32_1 : i32, i32, i32
  }
  func.func @transform_4(%arg0: i32, %arg1: i32) -> (i32, i32) {
    %c0_i32 = arith.constant 0 : i32
    %c0_i32_0 = arith.constant 0 : i32
    %c0_i32_1 = arith.constant 0 : i32
    return %c0_i32, %c0_i32_0 : i32, i32
  }
  func.func @transform_5(%arg0: i32, %arg1: i32) -> (i32, i32, i32, i32) {
    %c0_i32 = arith.constant 0 : i32
    %c0_i32_0 = arith.constant 0 : i32
    %c0_i32_1 = arith.constant 0 : i32
    return %arg0, %arg1, %c0_i32, %c0_i32_0 : i32, i32, i32, i32
  }
  func.func @transform_6(%arg0: i32, %arg1: i32) -> (i32, i32, i32, i32) {
    %c0_i32 = arith.constant 0 : i32
    %c0_i32_0 = arith.constant 0 : i32
    %c0_i32_1 = arith.constant 0 : i32
    return %arg0, %arg1, %c0_i32, %c0_i32_0 : i32, i32, i32, i32
  }
}

</mosaic_0001>

<llo_original>
// kernel: forward_pallas.8
$region0: #{forward_pallas.8}
  #allocation0 [shape = 'u32[]', space=smem, size = 0x4, offset = 0x4, fixed_abs, tag = 'smem constant byte address 0x4 - core index']
  #allocation1 [shape = 'u32[72,128]{1,0:T(1,128)}', space=vmem, size = 0x9000, scoped, tag = 'internal scratch']
  %s0 = inlined_call_operand.vmem [shape: bf16[2,16,16,16], index: 0, kind: input, shape index: {}, may-alias: {0,1,2}]
  %s1 = inlined_call_operand.vmem [shape: bf16[2,16,16,16], index: 1, kind: input, shape index: {}, may-alias: {0,1,2}]
  %s2 = inlined_call_operand.vmem [shape: bf16[2,16,16,16], index: 2, kind: input, shape index: {}, may-alias: {0,1,2}]
  %s3 = inlined_call_operand.hbm [shape: bf16[3,48,64], index: 3, kind: input, shape index: {}]
  %s4 = inlined_call_operand.hbm [shape: f32[1,64], index: 4, kind: input, shape index: {}]
  %s5 = inlined_call_operand.vmem [shape: bf16[2,16,16,64], index: 5, kind: output, shape index: {}]
  %s6 = sld [smem:[#allocation0]]
  $region61: #{forward_pallas.8} parent=0
    _
  %s8 = ssub.s32 1, %s6
  %s9 = scalar_select 0, %s8, %s6
  $region1: #{forward_pallas.8} parent=0
    #allocation2 [shape = 'u8[36864]{0}', space=vmem, size = 0x9000, scoped, tag = 'input window, operand 3, single buffered']
    #allocation3 [shape = 's32[2]{0}', space=sflag, size = 0x8, scoped, tag = 'scoped memory for forward_pallas.8']
    #allocation4 [shape = 'u8[512]{0}', space=vmem, size = 0x400, scoped, tag = 'input window, operand 4, single buffered']
    #allocation5 [shape = 's32[1]{0}', space=sflag, size = 0x4, scoped, tag = 'scoped memory for forward_pallas.8']
    %10 = vsyncpa [#allocation3], 0
    %11 = vsyncpa [#allocation5], 0
    loop: start=0, step=1, limit=10
    $region2: #{forward_pallas.8} parent=1 // loop_pre_header
      _
    $region3: #{forward_pallas.8} parent=1 // loop_header
      %s13 = sphi 0, %s17
      %p14 = scmp.ge.s32.totalorder %s13, 10
      %s20 = sphi 0, %s32
      %s21 = sphi 0, %s28
      %s22 = sphi 0, %s20
      %s23 = sphi 0, %s21
      %s24 = sphi 0, %s22
      %s25 = sphi 0, %s23
      %s37 = sphi 0, %s39
      %s40 = sphi 0, %s37
      %s41 = sphi 0, %s40
      %s57 = sphi 0, %s41
      %s77 = sphi 0, %s79
      %s80 = sphi 0, %s77
      %s81 = sphi 0, %s80
      %s97 = sphi 0, %s81
      %s117 = sphi 0, %s119
      %s120 = sphi 0, %s117
      %s121 = sphi 0, %s120
      %s137 = sphi 0, %s121
      %s141 = sphi 0, %s141
      %s143 = sphi 0, %s141
      %s144 = sphi 0, %s143
      %s158 = sphi 0, %s144
      %s162 = sphi 0, %s162
      %s164 = sphi 0, %s162
      %s165 = sphi 0, %s164
      %s179 = sphi 0, %s165
      %s187 = sphi 0, %s189
      %s190 = sphi 0, %s187
      %s191 = sphi 0, %s190
      %s207 = sphi 0, %s191
    $region4: #{forward_pallas.8} parent=1 // loop_header_branch
      %16 = sbr.rel (%p14) target = $region8
    $region5: #{forward_pallas.8} parent=1 // loop_body
      %s18 = ssub.s32 %s13, 1
      %s19 = ssub.s32 %s13, 2
      %s26 = sadd.s32 1, %s21
      %p27 = scmp.ge.s32.totalorder %s26, 4
      %s28 = scalar_select %p27, 0, %s26
      %s29 = sadd.s32 1, %s20
      %s30 = scalar_select %p27, %s29, %s20
      %p31 = scmp.ge.s32.totalorder %s30, 2
      %s32 = scalar_select %p31, 0, %s30
      %s33 = ssub.s32 %s20, %s32
      %s34 = ssub.s32 %s21, %s28
      %s35 = sor.u32 %s33, %s34
      %p36 = scmp.eq.s32.totalorder %s35, 0
      %s38 = sadd.s32 %s37, 1
      %s39 = scalar_select %p36, %s37, %s38
      %p42 = pneg %p36
      %p43 = scmp.eq.s32.totalorder %s13, 7
      %p44 = por %p42, %p43
      %p45 = scmp.ne.s32.totalorder %s37, %s40
      %p46 = scmp.eq.s32.totalorder %s13, 0
      %p47 = por %p45, %p46
      %p48 = scmp.ne.s32.totalorder %s37, %s40
      %p49 = scmp.eq.s32.totalorder %s18, 7
      %p50 = por %p48, %p49
      %p51 = scmp.ne.s32.totalorder %s40, %s41
      %p52 = scmp.eq.s32.totalorder %s18, 0
      %p53 = por %p51, %p52
      %p54 = scmp.ne.s32.totalorder %s40, %s41
      %p55 = scmp.eq.s32.totalorder %s19, 7
      %p56 = por %p54, %p55
      %p58 = scmp.ne.s32.totalorder %s41, %s57
      %p59 = scmp.eq.s32.totalorder %s19, 0
      %p60 = por %p58, %p59
      %s61 = smul.u32 %s21, 4
      %s62 = sadd.s32 %s61, 4294967295
      %p63 = scmp.gt.s32.totalorder %s62, 0
      %s64 = scalar_select %p63, %s62, 0
      %p65 = scmp.lt.s32.totalorder %s64, 15
      %s66 = scalar_select %p65, %s64, 15
      %s67 = smul.u32 %s28, 4
      %s68 = sadd.s32 %s67, 4294967295
      %p69 = scmp.gt.s32.totalorder %s68, 0
      %s70 = scalar_select %p69, %s68, 0
      %p71 = scmp.lt.s32.totalorder %s70, 15
      %s72 = scalar_select %p71, %s70, 15
      %s73 = ssub.s32 %s20, %s32
      %s74 = ssub.s32 %s66, %s72
      %s75 = sor.u32 %s73, %s74
      %p76 = scmp.eq.s32.totalorder %s75, 0
      %s78 = sadd.s32 %s77, 1
      %s79 = scalar_select %p76, %s77, %s78
      %p82 = pneg %p76
      %p83 = scmp.eq.s32.totalorder %s13, 7
      %p84 = por %p82, %p83
      %p85 = scmp.ne.s32.totalorder %s77, %s80
      %p86 = scmp.eq.s32.totalorder %s13, 0
      %p87 = por %p85, %p86
      %p88 = scmp.ne.s32.totalorder %s77, %s80
      %p89 = scmp.eq.s32.totalorder %s18, 7
      %p90 = por %p88, %p89
      %p91 = scmp.ne.s32.totalorder %s80, %s81
      %p92 = scmp.eq.s32.totalorder %s18, 0
      %p93 = por %p91, %p92
      %p94 = scmp.ne.s32.totalorder %s80, %s81
      %p95 = scmp.eq.s32.totalorder %s19, 7
      %p96 = por %p94, %p95
      %p98 = scmp.ne.s32.totalorder %s81, %s97
      %p99 = scmp.eq.s32.totalorder %s19, 0
      %p100 = por %p98, %p99
      %s101 = smul.u32 %s21, 4
      %s102 = sadd.s32 %s101, 4
      %p103 = scmp.gt.s32.totalorder %s102, 0
      %s104 = scalar_select %p103, %s102, 0
      %p105 = scmp.lt.s32.totalorder %s104, 15
      %s106 = scalar_select %p105, %s104, 15
      %s107 = smul.u32 %s28, 4
      %s108 = sadd.s32 %s107, 4
      %p109 = scmp.gt.s32.totalorder %s108, 0
      %s110 = scalar_select %p109, %s108, 0
      %p111 = scmp.lt.s32.totalorder %s110, 15
      %s112 = scalar_select %p111, %s110, 15
      %s113 = ssub.s32 %s20, %s32
      %s114 = ssub.s32 %s106, %s112
      %s115 = sor.u32 %s113, %s114
      %p116 = scmp.eq.s32.totalorder %s115, 0
      %s118 = sadd.s32 %s117, 1
      %s119 = scalar_select %p116, %s117, %s118
      %p122 = pneg %p116
      %p123 = scmp.eq.s32.totalorder %s13, 7
      %p124 = por %p122, %p123
      %p125 = scmp.ne.s32.totalorder %s117, %s120
      %p126 = scmp.eq.s32.totalorder %s13, 0
      %p127 = por %p125, %p126
      %p128 = scmp.ne.s32.totalorder %s117, %s120
      %p129 = scmp.eq.s32.totalorder %s18, 7
      %p130 = por %p128, %p129
      %p131 = scmp.ne.s32.totalorder %s120, %s121
      %p132 = scmp.eq.s32.totalorder %s18, 0
      %p133 = por %p131, %p132
      %p134 = scmp.ne.s32.totalorder %s120, %s121
      %p135 = scmp.eq.s32.totalorder %s19, 7
      %p136 = por %p134, %p135
      %p138 = scmp.ne.s32.totalorder %s121, %s137
      %p139 = scmp.eq.s32.totalorder %s19, 0
      %p140 = por %p138, %p139
      %s142 = sadd.s32 %s141, 1
      %p145 = scmp.eq.s32.totalorder %s13, 7
      %p146 = scmp.ne.s32.totalorder %s141, %s143
      %p147 = scmp.eq.s32.totalorder %s13, 0
      %p148 = por %p146, %p147
      %p149 = scmp.ne.s32.totalorder %s141, %s143
      %p150 = scmp.eq.s32.totalorder %s18, 7
      %p151 = por %p149, %p150
      %p152 = scmp.ne.s32.totalorder %s143, %s144
      %p153 = scmp.eq.s32.totalorder %s18, 0
      %p154 = por %p152, %p153
      %p155 = scmp.ne.s32.totalorder %s143, %s144
      %p156 = scmp.eq.s32.totalorder %s19, 7
      %p157 = por %p155, %p156
      %p159 = scmp.ne.s32.totalorder %s144, %s158
      %p160 = scmp.eq.s32.totalorder %s19, 0
      %p161 = por %p159, %p160
      %s163 = sadd.s32 %s162, 1
      %p166 = scmp.eq.s32.totalorder %s13, 7
      %p167 = scmp.ne.s32.totalorder %s162, %s164
      %p168 = scmp.eq.s32.totalorder %s13, 0
      %p169 = por %p167, %p168
      %p170 = scmp.ne.s32.totalorder %s162, %s164
      %p171 = scmp.eq.s32.totalorder %s18, 7
      %p172 = por %p170, %p171
      %p173 = scmp.ne.s32.totalorder %s164, %s165
      %p174 = scmp.eq.s32.totalorder %s18, 0
      %p175 = por %p173, %p174
      %p176 = scmp.ne.s32.totalorder %s164, %s165
      %p177 = scmp.eq.s32.totalorder %s19, 7
      %p178 = por %p176, %p177
      %p180 = scmp.ne.s32.totalorder %s165, %s179
      %p181 = scmp.eq.s32.totalorder %s19, 0
      %p182 = por %p180, %p181
      %s183 = ssub.s32 %s20, %s32
      %s184 = ssub.s32 %s21, %s28
      %s185 = sor.u32 %s183, %s184
      %p186 = scmp.eq.s32.totalorder %s185, 0
      %s188 = sadd.s32 %s187, 1
      %s189 = scalar_select %p186, %s187, %s188
      %p192 = pneg %p186
      %p193 = scmp.eq.s32.totalorder %s13, 7
      %p194 = por %p192, %p193
      %p195 = scmp.ne.s32.totalorder %s187, %s190
      %p196 = scmp.eq.s32.totalorder %s13, 0
      %p197 = por %p195, %p196
      %p198 = scmp.ne.s32.totalorder %s187, %s190
      %p199 = scmp.eq.s32.totalorder %s18, 7
      %p200 = por %p198, %p199
      %p201 = scmp.ne.s32.totalorder %s190, %s191
      %p202 = scmp.eq.s32.totalorder %s18, 0
      %p203 = por %p201, %p202
      %p204 = scmp.ne.s32.totalorder %s190, %s191
      %p205 = scmp.eq.s32.totalorder %s19, 7
      %p206 = por %p204, %p205
      %p208 = scmp.ne.s32.totalorder %s191, %s207
      %p209 = scmp.eq.s32.totalorder %s19, 0
      %p210 = por %p208, %p209
      %p211 = scmp.le.s32.totalorder 1, %s13
      %p212 = scmp.lt.s32.totalorder %s13, 9
      %p213 = pnand %p211, %p212
      %p214 = pneg %p213
      // Predicated region
      $region9: #{forward_pallas.8} parent=5 // pred_check
        _
      $region10: #{forward_pallas.8} parent=5 // pred_check_branch
        %216 = sbr.rel (%p213) target = $region12
      $region11: #{forward_pallas.8} parent=5 // pred_region
        %s217 = ssub.s32 %s13, 1
        // Predicated region
        $region13: #{forward_pallas.8} parent=11 // pred_check
          %p218 = pneg %p154
        $region14: #{forward_pallas.8} parent=11 // pred_check_branch
          %220 = sbr.rel (%p218) target = $region16
        $region15: #{forward_pallas.8} parent=11 // pred_region
          %222 = vsyncadd [#allocation3], 0
          %s223 = sshll.u32 %s3, 4
          %s224 = int_to_ptr.hbm [resolvable:$true] %s223
          %s225 = sshll.u32 [#allocation2], 4
          %s226 = int_to_ptr.vmem [resolvable:$true] %s225
          %231 = dma.hbm_to_vmem [thread:$0]  %s224, 1152, %s226, [#allocation3], 64, 64, 4
        $region16: #{forward_pallas.8} parent=11 // pred_fallthru
          _
        // Predicated region
        $region17: #{forward_pallas.8} parent=11 // pred_check
          %p232 = pneg %p175
        $region18: #{forward_pallas.8} parent=11 // pred_check_branch
          %234 = sbr.rel (%p232) target = $region20
        $region19: #{forward_pallas.8} parent=11 // pred_region
          %236 = vsyncadd [#allocation5], 0
          %s238 = sshll.u32 %s4, 4
          %s239 = int_to_ptr.hbm [resolvable:$true] %s238
          %s240 = sshll.u32 [#allocation4], 4
          %s241 = int_to_ptr.vmem [resolvable:$true] %s240
          %243 = dma.hbm_to_vmem [thread:$0]  %s239, 16, %s241, [#allocation5]
        $region20: #{forward_pallas.8} parent=11 // pred_fallthru
          _
      $region12: #{forward_pallas.8} parent=5 // pred_fallthru
        _
      %p244 = scmp.lt.s32.totalorder %s13, 8
      // Predicated region
      $region21: #{forward_pallas.8} parent=5 // pred_check
        %p245 = pneg %p244
      $region22: #{forward_pallas.8} parent=5 // pred_check_branch
        %247 = sbr.rel (%p245) target = $region24
      $region23: #{forward_pallas.8} parent=5 // pred_region
        // Predicated region
        $region25: #{forward_pallas.8} parent=23 // pred_check
          %p248 = pneg %p47
        $region26: #{forward_pallas.8} parent=23 // pred_check_branch
          %250 = sbr.rel (%p248) target = $region28
        $region27: #{forward_pallas.8} parent=23 // pred_region
          %s251 = smul.u32 4, %s21
          %p252 = scmp.lt.s32.totalorder %s20, 1
          %s253 = scalar_select %p252, %s20, 1
          %p254 = scmp.lt.s32.totalorder %s251, 15
          %s255 = scalar_select %p254, %s251, 15
          %s256 = smul.addr %s255, 2
          %s257 = smul.addr %s253, 32
          %s258 = sadd.s32 %s256, %s257
          %s259 = smul.addr %s258, 4
          %s260 = scalar_lea.vmem %s0, %s259
          %s261 = smul.u32 4, %s21
        $region28: #{forward_pallas.8} parent=23 // pred_fallthru
          _
        // Predicated region
        $region29: #{forward_pallas.8} parent=23 // pred_check
          %p262 = pneg %p87
        $region30: #{forward_pallas.8} parent=23 // pred_check_branch
          %264 = sbr.rel (%p262) target = $region32
        $region31: #{forward_pallas.8} parent=23 // pred_region
          %s265 = smul.u32 %s21, 4
          %s266 = sadd.s32 %s265, 4294967295
          %p267 = scmp.gt.s32.totalorder %s266, 0
          %s268 = scalar_select %p267, %s266, 0
          %p269 = scmp.lt.s32.totalorder %s268, 15
          %s270 = scalar_select %p269, %s268, 15
          %p271 = scmp.lt.s32.totalorder %s20, 1
          %s272 = scalar_select %p271, %s20, 1
          %p273 = scmp.lt.s32.totalorder %s270, 15
          %s274 = scalar_select %p273, %s270, 15
          %s275 = smul.addr %s274, 2
          %s276 = smul.addr %s272, 32
          %s277 = sadd.s32 %s275, %s276
          %s278 = smul.addr %s277, 4
          %s279 = scalar_lea.vmem %s1, %s278
          %s280 = smul.u32 %s21, 4
          %s281 = sadd.s32 %s280, 4294967295
          %p282 = scmp.gt.s32.totalorder %s281, 0
          %s283 = scalar_select %p282, %s281, 0
          %p284 = scmp.lt.s32.totalorder %s283, 15
          %s285 = scalar_select %p284, %s283, 15
        $region32: #{forward_pallas.8} parent=23 // pred_fallthru
          _
        // Predicated region
        $region33: #{forward_pallas.8} parent=23 // pred_check
          %p286 = pneg %p127
        $region34: #{forward_pallas.8} parent=23 // pred_check_branch
          %288 = sbr.rel (%p286) target = $region36
        $region35: #{forward_pallas.8} parent=23 // pred_region
          %s289 = smul.u32 %s21, 4
          %s290 = sadd.s32 %s289, 4
          %p291 = scmp.gt.s32.totalorder %s290, 0
          %s292 = scalar_select %p291, %s290, 0
          %p293 = scmp.lt.s32.totalorder %s292, 15
          %s294 = scalar_select %p293, %s292, 15
          %p295 = scmp.lt.s32.totalorder %s20, 1
          %s296 = scalar_select %p295, %s20, 1
          %p297 = scmp.lt.s32.totalorder %s294, 15
          %s298 = scalar_select %p297, %s294, 15
          %s299 = smul.addr %s298, 2
          %s300 = smul.addr %s296, 32
          %s301 = sadd.s32 %s299, %s300
          %s302 = smul.addr %s301, 4
          %s303 = scalar_lea.vmem %s2, %s302
          %s304 = smul.u32 %s21, 4
          %s305 = sadd.s32 %s304, 4
          %p306 = scmp.gt.s32.totalorder %s305, 0
          %s307 = scalar_select %p306, %s305, 0
          %p308 = scmp.lt.s32.totalorder %s307, 15
          %s309 = scalar_select %p308, %s307, 15
        $region36: #{forward_pallas.8} parent=23 // pred_fallthru
          _
      $region24: #{forward_pallas.8} parent=5 // pred_fallthru
        _
      %p310 = scmp.le.s32.totalorder 1, %s13
      %p311 = scmp.lt.s32.totalorder %s13, 9
      %p312 = pnand %p310, %p311
      %p313 = pneg %p312
      // Predicated region
      $region37: #{forward_pallas.8} parent=5 // pred_check
        _
      $region38: #{forward_pallas.8} parent=5 // pred_check_branch
        %315 = sbr.rel (%p312) target = $region40
      $region39: #{forward_pallas.8} parent=5 // pred_region
        %s316 = ssub.s32 %s13, 1
        // Predicated region
        $region41: #{forward_pallas.8} parent=39 // pred_check
          %p317 = pneg %p154
        $region42: #{forward_pallas.8} parent=39 // pred_check_branch
          %319 = sbr.rel (%p317) target = $region44
        $region43: #{forward_pallas.8} parent=39 // pred_region
          %321 = dma.done [#allocation3], 1152
        $region44: #{forward_pallas.8} parent=39 // pred_fallthru
          _
        // Predicated region
        $region45: #{forward_pallas.8} parent=39 // pred_check
          %p322 = pneg %p175
        $region46: #{forward_pallas.8} parent=39 // pred_check_branch
          %324 = sbr.rel (%p322) target = $region48
        $region47: #{forward_pallas.8} parent=39 // pred_region
          %326 = dma.done [#allocation5], 16
        $region48: #{forward_pallas.8} parent=39 // pred_fallthru
          _
        %s327 = smul.u32 4, %s23
        %p328 = scmp.lt.s32.totalorder %s22, 1
        %s329 = scalar_select %p328, %s22, 1
        %p330 = scmp.lt.s32.totalorder %s327, 15
        %s331 = scalar_select %p330, %s327, 15
        %s332 = smul.addr %s331, 2
        %s333 = smul.addr %s329, 32
        %s334 = sadd.s32 %s332, %s333
        %s335 = smul.addr %s334, 4
        %s336 = scalar_lea.vmem %s0, %s335
        %p337 = pneg %p53
        %p338 = pneg %p50
        %s339 = smul.u32 %s23, 4
        %s340 = sadd.s32 %s339, 4294967295
        %p341 = scmp.gt.s32.totalorder %s340, 0
        %s342 = scalar_select %p341, %s340, 0
        %p343 = scmp.lt.s32.totalorder %s342, 15
        %s344 = scalar_select %p343, %s342, 15
        %p345 = scmp.lt.s32.totalorder %s22, 1
        %s346 = scalar_select %p345, %s22, 1
        %p347 = scmp.lt.s32.totalorder %s344, 15
        %s348 = scalar_select %p347, %s344, 15
        %s349 = smul.addr %s348, 2
        %s350 = smul.addr %s346, 32
        %s351 = sadd.s32 %s349, %s350
        %s352 = smul.addr %s351, 4
        %s353 = scalar_lea.vmem %s1, %s352
        %p354 = pneg %p93
        %p355 = pneg %p90
        %s356 = smul.u32 %s23, 4
        %s357 = sadd.s32 %s356, 4
        %p358 = scmp.gt.s32.totalorder %s357, 0
        %s359 = scalar_select %p358, %s357, 0
        %p360 = scmp.lt.s32.totalorder %s359, 15
        %s361 = scalar_select %p360, %s359, 15
        %p362 = scmp.lt.s32.totalorder %s22, 1
        %s363 = scalar_select %p362, %s22, 1
        %p364 = scmp.lt.s32.totalorder %s361, 15
        %s365 = scalar_select %p364, %s361, 15
        %s366 = smul.addr %s365, 2
        %s367 = smul.addr %s363, 32
        %s368 = sadd.s32 %s366, %s367
        %s369 = smul.addr %s368, 4
        %s370 = scalar_lea.vmem %s2, %s369
        %p371 = pneg %p133
        %p372 = pneg %p130
        %p373 = pneg %p154
        %p374 = pneg %p151
        %p375 = pneg %p175
        %p376 = pneg %p172
        %p377 = pneg %p203
        %p378 = pneg %p200
        %s379 = smul.u32 4, %s23
        %p380 = scmp.lt.s32.totalorder %s22, 1
        %s381 = scalar_select %p380, %s22, 1
        %p382 = scmp.lt.s32.totalorder %s379, 15
        %s383 = scalar_select %p382, %s379, 15
        %s384 = smul.addr %s383, 2
        %s385 = smul.addr %s381, 32
        %s386 = sadd.s32 %s384, %s385
        %s387 = smul.addr %s386, 4
        %s388 = scalar_lea.vmem %s5, %s387
        %s389 = smul.u32 4, %s23
        %p390 = scmp.lt.s32.totalorder %s22, 1
        %s391 = scalar_select %p390, %s22, 1
        %p392 = scmp.lt.s32.totalorder %s389, 15
        %s393 = scalar_select %p392, %s389, 15
        %s394 = smul.addr %s393, 2
        %s395 = smul.addr %s391, 32
        %s396 = sadd.s32 %s394, %s395
        %s397 = smul.addr %s396, 4
        %s398 = scalar_lea.vmem %s0, %s397
        %s399 = smul.u32 4, %s23
        %s400 = smul.u32 %s23, 4
        %s401 = sadd.s32 %s400, 4294967295
        %p402 = scmp.gt.s32.totalorder %s401, 0
        %s403 = scalar_select %p402, %s401, 0
        %p404 = scmp.lt.s32.totalorder %s403, 15
        %s405 = scalar_select %p404, %s403, 15
        %p406 = scmp.lt.s32.totalorder %s22, 1
        %s407 = scalar_select %p406, %s22, 1
        %p408 = scmp.lt.s32.totalorder %s405, 15
        %s409 = scalar_select %p408, %s405, 15
        %s410 = smul.addr %s409, 2
        %s411 = smul.addr %s407, 32
        %s412 = sadd.s32 %s410, %s411
        %s413 = smul.addr %s412, 4
        %s414 = scalar_lea.vmem %s1, %s413
        %s415 = smul.u32 %s23, 4
        %s416 = sadd.s32 %s415, 4294967295
        %p417 = scmp.gt.s32.totalorder %s416, 0
        %s418 = scalar_select %p417, %s416, 0
        %p419 = scmp.lt.s32.totalorder %s418, 15
        %s420 = scalar_select %p419, %s418, 15
        %s421 = smul.u32 %s23, 4
        %s422 = sadd.s32 %s421, 4
        %p423 = scmp.gt.s32.totalorder %s422, 0
        %s424 = scalar_select %p423, %s422, 0
        %p425 = scmp.lt.s32.totalorder %s424, 15
        %s426 = scalar_select %p425, %s424, 15
        %p427 = scmp.lt.s32.totalorder %s22, 1
        %s428 = scalar_select %p427, %s22, 1
        %p429 = scmp.lt.s32.totalorder %s426, 15
        %s430 = scalar_select %p429, %s426, 15
        %s431 = smul.addr %s430, 2
        %s432 = smul.addr %s428, 32
        %s433 = sadd.s32 %s431, %s432
        %s434 = smul.addr %s433, 4
        %s435 = scalar_lea.vmem %s2, %s434
        %s436 = smul.u32 %s23, 4
        %s437 = sadd.s32 %s436, 4
        %p438 = scmp.gt.s32.totalorder %s437, 0
        %s439 = scalar_select %p438, %s437, 0
        %p440 = scmp.lt.s32.totalorder %s439, 15
        %s441 = scalar_select %p440, %s439, 15
        %s442 = smul.u32 4, %s23
        %p443 = scmp.lt.s32.totalorder %s22, 1
        %s444 = scalar_select %p443, %s22, 1
        %p445 = scmp.lt.s32.totalorder %s442, 15
        %s446 = scalar_select %p445, %s442, 15
        %s447 = smul.addr %s446, 2
        %s448 = smul.addr %s444, 32
        %s449 = sadd.s32 %s447, %s448
        %s450 = smul.addr %s449, 4
        %s451 = scalar_lea.vmem %s5, %s450
        %s452 = smul.u32 4, %s23
        %s454 = smul.u32 %s23, 4
        %s455 = ssub.s32 %s454, 1
        %p456 = scmp.ge.s32.totalorder %s455, 0
        %v457 = vld [vmem:[%s414] sm:$0xf]
        %v458 = vld [vmem:[%s414 + $0x4] sm:$0xf]
        %s459 = scalar_select %p456, 1, 0
        %v460 = vstv %s459
        %vm461 = vcmp.eq.s32.totalorder %v460, 1
        %v462 = vsel %vm461, %v457, 0
        %v463 = vsel %vm461, %v458, 0
        %s464 = sadd.s32 %s454, 4
        %p465 = scmp.le.s32.totalorder %s464, 15
        %v466 = vld [vmem:[%s435] sm:$0xf]
        %v467 = vld [vmem:[%s435 + $0x4] sm:$0xf]
        %s468 = scalar_select %p465, 1, 0
        %v469 = vstv %s468
        %vm470 = vcmp.eq.s32.totalorder %v469, 1
        %v471 = vsel %vm470, %v466, 0
        %v472 = vsel %vm470, %v467, 0
        %v473 = vld [vmem:[%s398] sm:$0xf]
        %v474 = vld [vmem:[%s398 + $0x4] sm:$0xf]
        %v475 = vld [vmem:[%s398 + $0x8] sm:$0xf]
        %v476 = vld [vmem:[%s398 + $0xc] sm:$0xf]
        %v477 = vld [vmem:[%s398 + $0x10] sm:$0xf]
        %v478 = vld [vmem:[%s398 + $0x14] sm:$0xf]
        %v479 = vld [vmem:[%s398 + $0x18] sm:$0xf]
        %v480 = vld [vmem:[%s398 + $0x1c] sm:$0xf]
        %v493 = vunpack.c.l.b16 %v462
        %v494 = vunpack.c.l.b16 %v463
        %v495 = vunpack.c.l.b16 %v473
        %v496 = vunpack.c.l.b16 %v474
        %v497 = vunpack.c.l.b16 %v475
        %v498 = vunpack.c.l.b16 %v476
        %v499 = vunpack.c.l.b16 %v477
        %v500 = vunpack.c.l.b16 %v478
        %v501 = vunpack.c.l.b16 %v479
        %v502 = vunpack.c.l.b16 %v480
        %v503 = vunpack.c.l.b16 %v471
        %v504 = vunpack.c.l.b16 %v472
        %v505 = vpack.c.b16 %v494, %v493
        %v506 = vpack.c.b16 %v496, %v495
        %v507 = vpack.c.b16 %v498, %v497
        %v508 = vpack.c.b16 %v500, %v499
        %v509 = vpack.c.b16 %v502, %v501
        %v510 = vpack.c.b16 %v504, %v503
        %v512 = vshrl.u32 %v505, 16
        %v514 = vrot.slane %v512, 7
        %v515 = vshll.u32 %v505, 16
        %v517 = vor.u32 %v514, %v515
        %v519 = vshrl.u32 %v506, 16
        %v521 = vrot.slane %v519, 7
        %v522 = vshll.u32 %v506, 16
        %v524 = vor.u32 %v521, %v522
        %v526 = vshrl.u32 %v507, 16
        %v528 = vrot.slane %v526, 7
        %v529 = vshll.u32 %v507, 16
        %v531 = vor.u32 %v528, %v529
        %v533 = vshrl.u32 %v508, 16
        %v535 = vrot.slane %v533, 7
        %v536 = vshll.u32 %v508, 16
        %v538 = vor.u32 %v535, %v536
        %v540 = vshrl.u32 %v509, 16
        %v542 = vrot.slane %v540, 7
        %v543 = vshll.u32 %v509, 16
        %v545 = vor.u32 %v542, %v543
        %v547 = vshrl.u32 %v510, 16
        %v549 = vrot.slane %v547, 7
        %v550 = vshll.u32 %v510, 16
        %v552 = vor.u32 %v549, %v550
        %vm565 = vcmask 1040384
        %vm566 = vsmask.f32 256
        %vm567 = vmand %vm565, %vm566
        %v568 = vsel %vm567, 0, %v517
        %v569 = vsel %vm567, 0, %v524
        %v570 = vsel %vm567, 0, %v531
        %v571 = vsel %vm567, 0, %v538
        %v572 = vsel %vm567, 0, %v545
        %v573 = vsel %vm567, 0, %v552
        %v574 = vsel %vm567, %v514, 0
        %v575 = vsel %vm567, %v521, 0
        %v576 = vsel %vm567, %v528, 0
        %v577 = vsel %vm567, %v535, 0
        %v578 = vsel %vm567, %v542, 0
        %v579 = vsel %vm567, %v549, 0
        %vm580 = vsmask.f32 7424
        %v582 = vshrl.u32 %v568, 16
        %v584 = vshll.u32 %v568, 16
        %v586 = vrot.slane %v584, 1
        %v587 = vor.u32 %v582, %v586
        %v589 = vshll.u32 %v574, 16
        %v591 = vrot.slane %v589, 1
        %v592 = vsel %vm580, %v587, %v591
        %v594 = vshrl.u32 %v569, 16
        %v596 = vshll.u32 %v569, 16
        %v598 = vrot.slane %v596, 1
        %v599 = vor.u32 %v594, %v598
        %v601 = vshll.u32 %v575, 16
        %v603 = vrot.slane %v601, 1
        %v604 = vsel %vm580, %v599, %v603
        %v606 = vshrl.u32 %v570, 16
        %v608 = vshll.u32 %v570, 16
        %v610 = vrot.slane %v608, 1
        %v611 = vor.u32 %v606, %v610
        %v613 = vshll.u32 %v576, 16
        %v615 = vrot.slane %v613, 1
        %v616 = vsel %vm580, %v611, %v615
        %v618 = vshrl.u32 %v571, 16
        %v620 = vshll.u32 %v571, 16
        %v622 = vrot.slane %v620, 1
        %v623 = vor.u32 %v618, %v622
        %v625 = vshll.u32 %v577, 16
        %v627 = vrot.slane %v625, 1
        %v628 = vsel %vm580, %v623, %v627
        %629 = vrot.lane.b32.xlu0 %v592, 16
        %v630 = vpop.permute.xlu0 %629
        %631 = vrot.lane.b32.xlu0 %v604, 16
        %v632 = vpop.permute.xlu0 %631
        %633 = vrot.lane.b32.xlu0 %v616, 16
        %v634 = vpop.permute.xlu0 %633
        %635 = vrot.lane.b32.xlu0 %v628, 16
        %v636 = vpop.permute.xlu0 %635
        %vm645 = vcmask 1046528
        %v646 = vrot.slane %v568, 1
        %v647 = vrot.slane %v574, 1
        %v648 = vsel %vm645, %v646, %v647
        %v649 = vrot.slane %v569, 1
        %v650 = vrot.slane %v575, 1
        %v651 = vsel %vm645, %v649, %v650
        %v652 = vrot.slane %v570, 1
        %v653 = vrot.slane %v576, 1
        %v654 = vsel %vm645, %v652, %v653
        %v655 = vrot.slane %v571, 1
        %v656 = vrot.slane %v577, 1
        %v657 = vsel %vm645, %v655, %v656
        %658 = vrot.lane.b32.xlu0 %v648, 32
        %v659 = vpop.permute.xlu0 %658
        %660 = vrot.lane.b32.xlu0 %v651, 32
        %v661 = vpop.permute.xlu0 %660
        %662 = vrot.lane.b32.xlu0 %v654, 32
        %v663 = vpop.permute.xlu0 %662
        %664 = vrot.lane.b32.xlu0 %v657, 32
        %v665 = vpop.permute.xlu0 %664
        %vm666 = vcmask 130048
        %v668 = vsel %vm666, %v568, %v630
        %v670 = vsel %vm666, %v569, %v632
        %v672 = vsel %vm666, %v570, %v634
        %v674 = vsel %vm666, %v571, %v636
        %vm675 = vcmask 261120
        %v677 = vsel %vm675, %v668, %v659
        %v679 = vsel %vm675, %v670, %v661
        %v681 = vsel %vm675, %v672, %v663
        %v683 = vsel %vm675, %v674, %v665
        %v684 = vld [vmem:[#allocation2] sm:$0xf]
        %v685 = vld [vmem:[#allocation2 + $0x4] sm:$0xf]
        %v686 = vld [vmem:[#allocation2 + $0x8] sm:$0xf]
        %v687 = vld [vmem:[#allocation2 + $0xc] sm:$0xf]
        %v688 = vld [vmem:[#allocation2 + $0x10] sm:$0xf]
        %v689 = vld [vmem:[#allocation2 + $0x14] sm:$0xf]
        %v691 = vshrl.u32 %v572, 16
        %v693 = vshll.u32 %v572, 16
        %v695 = vrot.slane %v693, 1
        %v696 = vor.u32 %v691, %v695
        %v698 = vshll.u32 %v578, 16
        %v700 = vrot.slane %v698, 1
        %v701 = vsel %vm580, %v696, %v700
        %702 = vrot.lane.b32.xlu0 %v701, 16
        %v703 = vpop.permute.xlu0 %702
        %v706 = vrot.slane %v572, 1
        %v707 = vrot.slane %v578, 1
        %v708 = vsel %vm645, %v706, %v707
        %709 = vrot.lane.b32.xlu0 %v708, 32
        %v710 = vpop.permute.xlu0 %709
        %v712 = vsel %vm666, %v572, %v703
        %v714 = vsel %vm675, %v712, %v710
        %s715 = scalar_lea.vmem [#allocation2], 24
        %v716 = vld [vmem:[%s715] sm:$0xf]
        %v717 = vld [vmem:[%s715 + $0x4] sm:$0xf]
        %v718 = vld [vmem:[%s715 + $0x8] sm:$0xf]
        %v719 = vld [vmem:[%s715 + $0xc] sm:$0xf]
        %v720 = vld [vmem:[%s715 + $0x10] sm:$0xf]
        %v721 = vld [vmem:[%s715 + $0x14] sm:$0xf]
        %v728 = vunpack.c.l.b16 %v716
        %v729 = vunpack.c.l.b16 %v717
        %v730 = vunpack.c.l.b16 %v718
        %v731 = vunpack.c.l.b16 %v719
        %v732 = vunpack.c.l.b16 %v720
        %v733 = vunpack.c.l.b16 %v721
        %v734 = vpack.c.b16 %v729, %v728
        %v735 = vpack.c.b16 %v731, %v730
        %v736 = vpack.c.b16 %v733, %v732
        %vm740 = vcmask 392192
        %v741 = vsel %vm740, %v679, 0
        %v743 = vsel %vm740, %v681, 0
        %v745 = vsel %vm740, %v683, 0
        %v747 = vsel %vm740, %v714, 0
        %749 = vmatpush.bf16.msra.mxu0 0
        %750 = vmatpush.bf16.msra.mxu0 0
        %751 = vmatpush.bf16.msra.mxu0 0
        %752 = vmatpush.bf16.msra.mxu0 0
        %753 = vmatpush.bf16.msra.mxu0 0
        %754 = vmatpush.bf16.msra.mxu0 %v736
        %755 = vmatpush.bf16.msra.mxu0 %v735
        %756 = vmatpush.bf16.msra.mxu0 %v734
        %757 = vmatmul.bf16.gmra.mxu0 %v741
        %v758 = vpop.f32.mrf.mxu0
        %v759 = vadd.f32 0.0, %v758
        %v760 = vpop.f32.mrf.mxu0
        %v761 = vadd.f32 0.0, %v760
        %762 = vmatmul.bf16.gmra.mxu0 %v743
        %v763 = vpop.f32.mrf.mxu0
        %v764 = vadd.f32 0.0, %v763
        %v765 = vpop.f32.mrf.mxu0
        %v766 = vadd.f32 0.0, %v765
        %767 = vmatmul.bf16.gmra.mxu0 %v745
        %v768 = vpop.f32.mrf.mxu0
        %v769 = vadd.f32 0.0, %v768
        %v770 = vpop.f32.mrf.mxu0
        %v771 = vadd.f32 0.0, %v770
        %772 = vmatmul.bf16.gmra.mxu0 %v747
        %v773 = vpop.f32.mrf.mxu0
        %v774 = vadd.f32 0.0, %v773
        %v775 = vpop.f32.mrf.mxu0
        %v776 = vadd.f32 0.0, %v775
        %777 = vdwg.mxu0
        %v784 = vunpack.c.l.b16 %v684
        %v785 = vunpack.c.l.b16 %v685
        %v786 = vunpack.c.l.b16 %v686
        %v787 = vunpack.c.l.b16 %v687
        %v788 = vunpack.c.l.b16 %v688
        %v789 = vunpack.c.l.b16 %v689
        %v790 = vpack.c.b16 %v785, %v784
        %v791 = vpack.c.b16 %v787, %v786
        %v792 = vpack.c.b16 %v789, %v788
        %v796 = vsel %vm740, %v677, 0
        %798 = vmatpush.bf16.msra.mxu0 0
        %799 = vmatpush.bf16.msra.mxu0 0
        %800 = vmatpush.bf16.msra.mxu0 0
        %801 = vmatpush.bf16.msra.mxu0 0
        %802 = vmatpush.bf16.msra.mxu0 0
        %803 = vmatpush.bf16.msra.mxu0 %v792
        %804 = vmatpush.bf16.msra.mxu0 %v791
        %805 = vmatpush.bf16.msra.mxu0 %v790
        %806 = vmatmul.bf16.gmra.mxu0 %v796
        %v807 = vpop.f32.mrf.mxu0
        %v808 = vadd.f32 %v759, %v807
        %v809 = vpop.f32.mrf.mxu0
        %v810 = vadd.f32 %v761, %v809
        %811 = vmatmul.bf16.gmra.mxu0 %v741
        %v812 = vpop.f32.mrf.mxu0
        %v813 = vadd.f32 %v764, %v812
        %v814 = vpop.f32.mrf.mxu0
        %v815 = vadd.f32 %v766, %v814
        %816 = vmatmul.bf16.gmra.mxu0 %v743
        %v817 = vpop.f32.mrf.mxu0
        %v818 = vadd.f32 %v769, %v817
        %v819 = vpop.f32.mrf.mxu0
        %v820 = vadd.f32 %v771, %v819
        %821 = vmatmul.bf16.gmra.mxu0 %v745
        %v822 = vpop.f32.mrf.mxu0
        %v823 = vadd.f32 %v774, %v822
        %v824 = vpop.f32.mrf.mxu0
        %v825 = vadd.f32 %v776, %v824
        %826 = vdwg.mxu0
        %v828 = vshrl.u32 %v573, 16
        %v830 = vshll.u32 %v573, 16
        %v832 = vrot.slane %v830, 1
        %v833 = vor.u32 %v828, %v832
        %v835 = vshll.u32 %v579, 16
        %v837 = vrot.slane %v835, 1
        %v838 = vsel %vm580, %v833, %v837
        %839 = vrot.lane.b32.xlu0 %v838, 16
        %v840 = vpop.permute.xlu0 %839
        %v843 = vrot.slane %v573, 1
        %v844 = vrot.slane %v579, 1
        %v845 = vsel %vm645, %v843, %v844
        %846 = vrot.lane.b32.xlu0 %v845, 32
        %v847 = vpop.permute.xlu0 %846
        %v849 = vsel %vm666, %v573, %v840
        %v851 = vsel %vm675, %v849, %v847
        %s852 = scalar_lea.vmem [#allocation2], 48
        %v853 = vld [vmem:[%s852] sm:$0xf]
        %v854 = vld [vmem:[%s852 + $0x4] sm:$0xf]
        %v855 = vld [vmem:[%s852 + $0x8] sm:$0xf]
        %v856 = vld [vmem:[%s852 + $0xc] sm:$0xf]
        %v857 = vld [vmem:[%s852 + $0x10] sm:$0xf]
        %v858 = vld [vmem:[%s852 + $0x14] sm:$0xf]
        %v865 = vunpack.c.l.b16 %v853
        %v866 = vunpack.c.l.b16 %v854
        %v867 = vunpack.c.l.b16 %v855
        %v868 = vunpack.c.l.b16 %v856
        %v869 = vunpack.c.l.b16 %v857
        %v870 = vunpack.c.l.b16 %v858
        %v871 = vpack.c.b16 %v866, %v865
        %v872 = vpack.c.b16 %v868, %v867
        %v873 = vpack.c.b16 %v870, %v869
        %v877 = vsel %vm740, %v851, 0
        %879 = vmatpush.bf16.msra.mxu0 0
        %880 = vmatpush.bf16.msra.mxu0 0
        %881 = vmatpush.bf16.msra.mxu0 0
        %882 = vmatpush.bf16.msra.mxu0 0
        %883 = vmatpush.bf16.msra.mxu0 0
        %884 = vmatpush.bf16.msra.mxu0 %v873
        %885 = vmatpush.bf16.msra.mxu0 %v872
        %886 = vmatpush.bf16.msra.mxu0 %v871
        %887 = vmatmul.bf16.gmra.mxu0 %v743
        %v888 = vpop.f32.mrf.mxu0
        %v889 = vadd.f32 0.0, %v888
        %v890 = vpop.f32.mrf.mxu0
        %v891 = vadd.f32 0.0, %v890
        %892 = vmatmul.bf16.gmra.mxu0 %v745
        %v893 = vpop.f32.mrf.mxu0
        %v894 = vadd.f32 0.0, %v893
        %v895 = vpop.f32.mrf.mxu0
        %v896 = vadd.f32 0.0, %v895
        %897 = vmatmul.bf16.gmra.mxu0 %v747
        %v898 = vpop.f32.mrf.mxu0
        %v899 = vadd.f32 0.0, %v898
        %v900 = vpop.f32.mrf.mxu0
        %v901 = vadd.f32 0.0, %v900
        %902 = vmatmul.bf16.gmra.mxu0 %v877
        %v903 = vpop.f32.mrf.mxu0
        %v904 = vadd.f32 0.0, %v903
        %v905 = vpop.f32.mrf.mxu0
        %v906 = vadd.f32 0.0, %v905
        %907 = vdwg.mxu0
        %v908 = vadd.f32 %v808, %v889
        %v909 = vadd.f32 %v810, %v891
        %v910 = vadd.f32 %v813, %v894
        %v911 = vadd.f32 %v815, %v896
        %v912 = vadd.f32 %v818, %v899
        %v913 = vadd.f32 %v820, %v901
        %v914 = vadd.f32 %v823, %v904
        %v915 = vadd.f32 %v825, %v906
        %v916 = vld [vmem:[#allocation4] sm:$0x1]
        %v918 = vperm.slane %v916, 0
        %v920 = vadd.f32 %v908, %v918
        %v921 = vadd.f32 %v909, %v918
        %v922 = vadd.f32 %v910, %v918
        %v923 = vadd.f32 %v911, %v918
        %v924 = vadd.f32 %v912, %v918
        %v925 = vadd.f32 %v913, %v918
        %v926 = vadd.f32 %v914, %v918
        %v927 = vadd.f32 %v915, %v918
        %vm928 = vcmp.ge.f32.partialorder %v920, 0.0
        %vm929 = vcmp.ge.f32.partialorder %v921, 0.0
        %vm930 = vcmp.ge.f32.partialorder %v922, 0.0
        %vm931 = vcmp.ge.f32.partialorder %v923, 0.0
        %vm932 = vcmp.ge.f32.partialorder %v924, 0.0
        %vm933 = vcmp.ge.f32.partialorder %v925, 0.0
        %vm934 = vcmp.ge.f32.partialorder %v926, 0.0
        %vm935 = vcmp.ge.f32.partialorder %v927, 0.0
        %v936 = vmul.f32 %v920, 0.1
        %v937 = vmul.f32 %v921, 0.1
        %v938 = vmul.f32 %v922, 0.1
        %v939 = vmul.f32 %v923, 0.1
        %v940 = vmul.f32 %v924, 0.1
        %v941 = vmul.f32 %v925, 0.1
        %v942 = vmul.f32 %v926, 0.1
        %v943 = vmul.f32 %v927, 0.1
        %v944 = vsel %vm928, %v920, %v936
        %v945 = vsel %vm929, %v921, %v937
        %v946 = vsel %vm930, %v922, %v938
        %v947 = vsel %vm931, %v923, %v939
        %v948 = vsel %vm932, %v924, %v940
        %v949 = vsel %vm933, %v925, %v941
        %v950 = vsel %vm934, %v926, %v942
        %v951 = vsel %vm935, %v927, %v943
        %v952 = vpack.c.bf16 %v944, %v944
        %v953 = vpack.c.bf16 %v945, %v945
        %v954 = vpack.c.bf16 %v946, %v946
        %v955 = vpack.c.bf16 %v947, %v947
        %v956 = vpack.c.bf16 %v948, %v948
        %v957 = vpack.c.bf16 %v949, %v949
        %v958 = vpack.c.bf16 %v950, %v950
        %v959 = vpack.c.bf16 %v951, %v951
        %vm960 = vcmask 519168
        %961 = vst.msk [vmem:[%s451] sm:$0xf] %vm960, %v952
        %962 = vst.msk [vmem:[%s451 + $0x4] sm:$0xf] %vm960, %v953
        %963 = vst.msk [vmem:[%s451 + $0x8] sm:$0xf] %vm960, %v954
        %964 = vst.msk [vmem:[%s451 + $0xc] sm:$0xf] %vm960, %v955
        %965 = vst.msk [vmem:[%s451 + $0x10] sm:$0xf] %vm960, %v956
        %966 = vst.msk [vmem:[%s451 + $0x14] sm:$0xf] %vm960, %v957
        %967 = vst.msk [vmem:[%s451 + $0x18] sm:$0xf] %vm960, %v958
        %968 = vst.msk [vmem:[%s451 + $0x1c] sm:$0xf] %vm960, %v959
        %s969 = smul.u32 4, %s23
        %p970 = scmp.lt.s32.totalorder %s22, 1
        %s971 = scalar_select %p970, %s22, 1
        %p972 = scmp.lt.s32.totalorder %s969, 15
        %s973 = scalar_select %p972, %s969, 15
        %s974 = smul.addr %s973, 2
        %s975 = smul.addr %s971, 32
        %s976 = sadd.s32 %s974, %s975
        %s977 = smul.addr %s976, 4
        %s978 = scalar_lea.vmem %s5, %s977
        // Predicated region
        $region49: #{forward_pallas.8} parent=39 // pred_check
          %p979 = pneg %p200
        $region50: #{forward_pallas.8} parent=39 // pred_check_branch
          %981 = sbr.rel (%p979) target = $region52
        $region51: #{forward_pallas.8} parent=39 // pred_region
          %s982 = smul.u32 4, %s23
        $region52: #{forward_pallas.8} parent=39 // pred_fallthru
          _
      $region40: #{forward_pallas.8} parent=5 // pred_fallthru
        _
      %p983 = scmp.le.s32.totalorder 2, %s13
      // Predicated region
      $region53: #{forward_pallas.8} parent=5 // pred_check
        %p984 = pneg %p983
      $region54: #{forward_pallas.8} parent=5 // pred_check_branch
        %986 = sbr.rel (%p984) target = $region56
      $region55: #{forward_pallas.8} parent=5 // pred_region
        %s987 = ssub.s32 %s13, 2
        // Predicated region
        $region57: #{forward_pallas.8} parent=55 // pred_check
          %p988 = pneg %p206
        $region58: #{forward_pallas.8} parent=55 // pred_check_branch
          %990 = sbr.rel (%p988) target = $region60
        $region59: #{forward_pallas.8} parent=55 // pred_region
          %s991 = smul.u32 4, %s25
          %p992 = scmp.lt.s32.totalorder %s24, 1
          %s993 = scalar_select %p992, %s24, 1
          %p994 = scmp.lt.s32.totalorder %s991, 15
          %s995 = scalar_select %p994, %s991, 15
          %s996 = smul.addr %s995, 2
          %s997 = smul.addr %s993, 32
          %s998 = sadd.s32 %s996, %s997
          %s999 = smul.addr %s998, 4
          %s1000 = scalar_lea.vmem %s5, %s999
        $region60: #{forward_pallas.8} parent=55 // pred_fallthru
          _
      $region56: #{forward_pallas.8} parent=5 // pred_fallthru
        _
    $region6: #{forward_pallas.8} parent=1 // loop_footer
      %s17 = sadd.s32 1, %s13
    $region7: #{forward_pallas.8} parent=1 // loop_footer_branch
      %12 = sbr.rel target = $region3
    $region8: #{forward_pallas.8} parent=1 // loop_exit
      _
    %1001 = vsyncpa [#allocation3], 1
    %s1002 = scalar_lea.sflag [#allocation3], 1
    %1003 = vsyncpa %s1002, 1
    %1004 = vsyncpa [#allocation5], 1

// kernel: forward_pallas.6
$region0: #{forward_pallas.6}
  #allocation0 [shape = 'u32[]', space=smem, size = 0x4, offset = 0x4, fixed_abs, tag = 'smem constant byte address 0x4 - core index']
  #allocation1 [shape = 'u32[72,128]{1,0:T(1,128)}', space=vmem, size = 0x9000, scoped, tag = 'internal scratch']
  %s0 = inlined_call_operand.vmem [shape: bf16[2,16,16,16], index: 0, kind: input, shape index: {}, may-alias: {0,1,2,3,4}]
  %s1 = inlined_call_operand.vmem [shape: bf16[2,16,16,16], index: 1, kind: input, shape index: {}, may-alias: {0,1,2,3,4}]
  %s2 = inlined_call_operand.vmem [shape: bf16[2,16,16,16], index: 2, kind: input, shape index: {}, may-alias: {0,1,2,3,4}]
  %s3 = inlined_call_operand.vmem [shape: bf16[2,16,16,16], index: 3, kind: input, shape index: {}, may-alias: {0,1,2,3,4}]
  %s4 = inlined_call_operand.vmem [shape: bf16[2,16,16,16], index: 4, kind: input, shape index: {}, may-alias: {0,1,2,3,4}]
  %s5 = inlined_call_operand.hbm [shape: bf16[3,48,16], index: 5, kind: input, shape index: {}]
  %s6 = inlined_call_operand.hbm [shape: f32[1,16], index: 6, kind: input, shape index: {}]
  %s7 = inlined_call_operand.hbm [shape: bf16[3,48,16], index: 7, kind: input, shape index: {}]
  %s8 = inlined_call_operand.hbm [shape: f32[1,16], index: 8, kind: input, shape index: {}]
  %s9 = inlined_call_operand.vmem [shape: bf16[2,16,16,16], index: 9, kind: output, shape index: {}]
  %s10 = sld [smem:[#allocation0]]
  $region85: #{forward_pallas.6} parent=0
    _
  %s12 = ssub.s32 1, %s10
  %s13 = scalar_select 0, %s12, %s10
  $region1: #{forward_pallas.6} parent=0
    #allocation2 [shape = 'u8[36864]{0}', space=vmem, size = 0x9000, scoped, tag = 'input window, operand 5, single buffered']
    #allocation3 [shape = 's32[2]{0}', space=sflag, size = 0x8, scoped, tag = 'scoped memory for forward_pallas.6']
    #allocation4 [shape = 'u8[512]{0}', space=vmem, size = 0x400, scoped, tag = 'input window, operand 6, single buffered']
    #allocation5 [shape = 's32[1]{0}', space=sflag, size = 0x4, scoped, tag = 'scoped memory for forward_pallas.6']
    #allocation6 [shape = 'u8[36864]{0}', space=vmem, size = 0x9000, scoped, tag = 'input window, operand 7, single buffered']
    #allocation7 [shape = 'u8[512]{0}', space=vmem, size = 0x400, scoped, tag = 'input window, operand 8, single buffered']
    #allocation8 [shape = 's32[1]{0}', space=sflag, size = 0x4, scoped, tag = 'scoped memory for forward_pallas.6']
    %14 = vsyncpa [#allocation3], 0
    %15 = vsyncpa [#allocation5], 0
    %16 = vsyncpa [#allocation8], 0
    loop: start=0, step=1, limit=10
    $region2: #{forward_pallas.6} parent=1 // loop_pre_header
      _
    $region3: #{forward_pallas.6} parent=1 // loop_header
      %s18 = sphi 0, %s22
      %p19 = scmp.ge.s32.totalorder %s18, 10
      %s25 = sphi 0, %s37
      %s26 = sphi 0, %s33
      %s27 = sphi 0, %s25
      %s28 = sphi 0, %s26
      %s29 = sphi 0, %s27
      %s30 = sphi 0, %s28
      %s42 = sphi 0, %s44
      %s45 = sphi 0, %s42
      %s46 = sphi 0, %s45
      %s62 = sphi 0, %s46
      %s82 = sphi 0, %s84
      %s85 = sphi 0, %s82
      %s86 = sphi 0, %s85
      %s102 = sphi 0, %s86
      %s122 = sphi 0, %s124
      %s125 = sphi 0, %s122
      %s126 = sphi 0, %s125
      %s142 = sphi 0, %s126
      %s162 = sphi 0, %s164
      %s165 = sphi 0, %s162
      %s166 = sphi 0, %s165
      %s182 = sphi 0, %s166
      %s202 = sphi 0, %s204
      %s205 = sphi 0, %s202
      %s206 = sphi 0, %s205
      %s222 = sphi 0, %s206
      %s226 = sphi 0, %s226
      %s228 = sphi 0, %s226
      %s229 = sphi 0, %s228
      %s243 = sphi 0, %s229
      %s247 = sphi 0, %s247
      %s249 = sphi 0, %s247
      %s250 = sphi 0, %s249
      %s264 = sphi 0, %s250
      %s268 = sphi 0, %s268
      %s270 = sphi 0, %s268
      %s271 = sphi 0, %s270
      %s285 = sphi 0, %s271
      %s289 = sphi 0, %s289
      %s291 = sphi 0, %s289
      %s292 = sphi 0, %s291
      %s306 = sphi 0, %s292
      %s314 = sphi 0, %s316
      %s317 = sphi 0, %s314
      %s318 = sphi 0, %s317
      %s334 = sphi 0, %s318
    $region4: #{forward_pallas.6} parent=1 // loop_header_branch
      %21 = sbr.rel (%p19) target = $region8
    $region5: #{forward_pallas.6} parent=1 // loop_body
      %s23 = ssub.s32 %s18, 1
      %s24 = ssub.s32 %s18, 2
      %s31 = sadd.s32 1, %s26
      %p32 = scmp.ge.s32.totalorder %s31, 4
      %s33 = scalar_select %p32, 0, %s31
      %s34 = sadd.s32 1, %s25
      %s35 = scalar_select %p32, %s34, %s25
      %p36 = scmp.ge.s32.totalorder %s35, 2
      %s37 = scalar_select %p36, 0, %s35
      %s38 = ssub.s32 %s25, %s37
      %s39 = ssub.s32 %s26, %s33
      %s40 = sor.u32 %s38, %s39
      %p41 = scmp.eq.s32.totalorder %s40, 0
      %s43 = sadd.s32 %s42, 1
      %s44 = scalar_select %p41, %s42, %s43
      %p47 = pneg %p41
      %p48 = scmp.eq.s32.totalorder %s18, 7
      %p49 = por %p47, %p48
      %p50 = scmp.ne.s32.totalorder %s42, %s45
      %p51 = scmp.eq.s32.totalorder %s18, 0
      %p52 = por %p50, %p51
      %p53 = scmp.ne.s32.totalorder %s42, %s45
      %p54 = scmp.eq.s32.totalorder %s23, 7
      %p55 = por %p53, %p54
      %p56 = scmp.ne.s32.totalorder %s45, %s46
      %p57 = scmp.eq.s32.totalorder %s23, 0
      %p58 = por %p56, %p57
      %p59 = scmp.ne.s32.totalorder %s45, %s46
      %p60 = scmp.eq.s32.totalorder %s24, 7
      %p61 = por %p59, %p60
      %p63 = scmp.ne.s32.totalorder %s46, %s62
      %p64 = scmp.eq.s32.totalorder %s24, 0
      %p65 = por %p63, %p64
      %s66 = smul.u32 %s26, 4
      %s67 = sadd.s32 %s66, 4294967294
      %p68 = scmp.gt.s32.totalorder %s67, 0
      %s69 = scalar_select %p68, %s67, 0
      %p70 = scmp.lt.s32.totalorder %s69, 15
      %s71 = scalar_select %p70, %s69, 15
      %s72 = smul.u32 %s33, 4
      %s73 = sadd.s32 %s72, 4294967294
      %p74 = scmp.gt.s32.totalorder %s73, 0
      %s75 = scalar_select %p74, %s73, 0
      %p76 = scmp.lt.s32.totalorder %s75, 15
      %s77 = scalar_select %p76, %s75, 15
      %s78 = ssub.s32 %s25, %s37
      %s79 = ssub.s32 %s71, %s77
      %s80 = sor.u32 %s78, %s79
      %p81 = scmp.eq.s32.totalorder %s80, 0
      %s83 = sadd.s32 %s82, 1
      %s84 = scalar_select %p81, %s82, %s83
      %p87 = pneg %p81
      %p88 = scmp.eq.s32.totalorder %s18, 7
      %p89 = por %p87, %p88
      %p90 = scmp.ne.s32.totalorder %s82, %s85
      %p91 = scmp.eq.s32.totalorder %s18, 0
      %p92 = por %p90, %p91
      %p93 = scmp.ne.s32.totalorder %s82, %s85
      %p94 = scmp.eq.s32.totalorder %s23, 7
      %p95 = por %p93, %p94
      %p96 = scmp.ne.s32.totalorder %s85, %s86
      %p97 = scmp.eq.s32.totalorder %s23, 0
      %p98 = por %p96, %p97
      %p99 = scmp.ne.s32.totalorder %s85, %s86
      %p100 = scmp.eq.s32.totalorder %s24, 7
      %p101 = por %p99, %p100
      %p103 = scmp.ne.s32.totalorder %s86, %s102
      %p104 = scmp.eq.s32.totalorder %s24, 0
      %p105 = por %p103, %p104
      %s106 = smul.u32 %s26, 4
      %s107 = sadd.s32 %s106, 4294967295
      %p108 = scmp.gt.s32.totalorder %s107, 0
      %s109 = scalar_select %p108, %s107, 0
      %p110 = scmp.lt.s32.totalorder %s109, 15
      %s111 = scalar_select %p110, %s109, 15
      %s112 = smul.u32 %s33, 4
      %s113 = sadd.s32 %s112, 4294967295
      %p114 = scmp.gt.s32.totalorder %s113, 0
      %s115 = scalar_select %p114, %s113, 0
      %p116 = scmp.lt.s32.totalorder %s115, 15
      %s117 = scalar_select %p116, %s115, 15
      %s118 = ssub.s32 %s25, %s37
      %s119 = ssub.s32 %s111, %s117
      %s120 = sor.u32 %s118, %s119
      %p121 = scmp.eq.s32.totalorder %s120, 0
      %s123 = sadd.s32 %s122, 1
      %s124 = scalar_select %p121, %s122, %s123
      %p127 = pneg %p121
      %p128 = scmp.eq.s32.totalorder %s18, 7
      %p129 = por %p127, %p128
      %p130 = scmp.ne.s32.totalorder %s122, %s125
      %p131 = scmp.eq.s32.totalorder %s18, 0
      %p132 = por %p130, %p131
      %p133 = scmp.ne.s32.totalorder %s122, %s125
      %p134 = scmp.eq.s32.totalorder %s23, 7
      %p135 = por %p133, %p134
      %p136 = scmp.ne.s32.totalorder %s125, %s126
      %p137 = scmp.eq.s32.totalorder %s23, 0
      %p138 = por %p136, %p137
      %p139 = scmp.ne.s32.totalorder %s125, %s126
      %p140 = scmp.eq.s32.totalorder %s24, 7
      %p141 = por %p139, %p140
      %p143 = scmp.ne.s32.totalorder %s126, %s142
      %p144 = scmp.eq.s32.totalorder %s24, 0
      %p145 = por %p143, %p144
      %s146 = smul.u32 %s26, 4
      %s147 = sadd.s32 %s146, 4
      %p148 = scmp.gt.s32.totalorder %s147, 0
      %s149 = scalar_select %p148, %s147, 0
      %p150 = scmp.lt.s32.totalorder %s149, 15
      %s151 = scalar_select %p150, %s149, 15
      %s152 = smul.u32 %s33, 4
      %s153 = sadd.s32 %s152, 4
      %p154 = scmp.gt.s32.totalorder %s153, 0
      %s155 = scalar_select %p154, %s153, 0
      %p156 = scmp.lt.s32.totalorder %s155, 15
      %s157 = scalar_select %p156, %s155, 15
      %s158 = ssub.s32 %s25, %s37
      %s159 = ssub.s32 %s151, %s157
      %s160 = sor.u32 %s158, %s159
      %p161 = scmp.eq.s32.totalorder %s160, 0
      %s163 = sadd.s32 %s162, 1
      %s164 = scalar_select %p161, %s162, %s163
      %p167 = pneg %p161
      %p168 = scmp.eq.s32.totalorder %s18, 7
      %p169 = por %p167, %p168
      %p170 = scmp.ne.s32.totalorder %s162, %s165
      %p171 = scmp.eq.s32.totalorder %s18, 0
      %p172 = por %p170, %p171
      %p173 = scmp.ne.s32.totalorder %s162, %s165
      %p174 = scmp.eq.s32.totalorder %s23, 7
      %p175 = por %p173, %p174
      %p176 = scmp.ne.s32.totalorder %s165, %s166
      %p177 = scmp.eq.s32.totalorder %s23, 0
      %p178 = por %p176, %p177
      %p179 = scmp.ne.s32.totalorder %s165, %s166
      %p180 = scmp.eq.s32.totalorder %s24, 7
      %p181 = por %p179, %p180
      %p183 = scmp.ne.s32.totalorder %s166, %s182
      %p184 = scmp.eq.s32.totalorder %s24, 0
      %p185 = por %p183, %p184
      %s186 = smul.u32 %s26, 4
      %s187 = sadd.s32 %s186, 5
      %p188 = scmp.gt.s32.totalorder %s187, 0
      %s189 = scalar_select %p188, %s187, 0
      %p190 = scmp.lt.s32.totalorder %s189, 15
      %s191 = scalar_select %p190, %s189, 15
      %s192 = smul.u32 %s33, 4
      %s193 = sadd.s32 %s192, 5
      %p194 = scmp.gt.s32.totalorder %s193, 0
      %s195 = scalar_select %p194, %s193, 0
      %p196 = scmp.lt.s32.totalorder %s195, 15
      %s197 = scalar_select %p196, %s195, 15
      %s198 = ssub.s32 %s25, %s37
      %s199 = ssub.s32 %s191, %s197
      %s200 = sor.u32 %s198, %s199
      %p201 = scmp.eq.s32.totalorder %s200, 0
      %s203 = sadd.s32 %s202, 1
      %s204 = scalar_select %p201, %s202, %s203
      %p207 = pneg %p201
      %p208 = scmp.eq.s32.totalorder %s18, 7
      %p209 = por %p207, %p208
      %p210 = scmp.ne.s32.totalorder %s202, %s205
      %p211 = scmp.eq.s32.totalorder %s18, 0
      %p212 = por %p210, %p211
      %p213 = scmp.ne.s32.totalorder %s202, %s205
      %p214 = scmp.eq.s32.totalorder %s23, 7
      %p215 = por %p213, %p214
      %p216 = scmp.ne.s32.totalorder %s205, %s206
      %p217 = scmp.eq.s32.totalorder %s23, 0
      %p218 = por %p216, %p217
      %p219 = scmp.ne.s32.totalorder %s205, %s206
      %p220 = scmp.eq.s32.totalorder %s24, 7
      %p221 = por %p219, %p220
      %p223 = scmp.ne.s32.totalorder %s206, %s222
      %p224 = scmp.eq.s32.totalorder %s24, 0
      %p225 = por %p223, %p224
      %s227 = sadd.s32 %s226, 1
      %p230 = scmp.eq.s32.totalorder %s18, 7
      %p231 = scmp.ne.s32.totalorder %s226, %s228
      %p232 = scmp.eq.s32.totalorder %s18, 0
      %p233 = por %p231, %p232
      %p234 = scmp.ne.s32.totalorder %s226, %s228
      %p235 = scmp.eq.s32.totalorder %s23, 7
      %p236 = por %p234, %p235
      %p237 = scmp.ne.s32.totalorder %s228, %s229
      %p238 = scmp.eq.s32.totalorder %s23, 0
      %p239 = por %p237, %p238
      %p240 = scmp.ne.s32.totalorder %s228, %s229
      %p241 = scmp.eq.s32.totalorder %s24, 7
      %p242 = por %p240, %p241
      %p244 = scmp.ne.s32.totalorder %s229, %s243
      %p245 = scmp.eq.s32.totalorder %s24, 0
      %p246 = por %p244, %p245
      %s248 = sadd.s32 %s247, 1
      %p251 = scmp.eq.s32.totalorder %s18, 7
      %p252 = scmp.ne.s32.totalorder %s247, %s249
      %p253 = scmp.eq.s32.totalorder %s18, 0
      %p254 = por %p252, %p253
      %p255 = scmp.ne.s32.totalorder %s247, %s249
      %p256 = scmp.eq.s32.totalorder %s23, 7
      %p257 = por %p255, %p256
      %p258 = scmp.ne.s32.totalorder %s249, %s250
      %p259 = scmp.eq.s32.totalorder %s23, 0
      %p260 = por %p258, %p259
      %p261 = scmp.ne.s32.totalorder %s249, %s250
      %p262 = scmp.eq.s32.totalorder %s24, 7
      %p263 = por %p261, %p262
      %p265 = scmp.ne.s32.totalorder %s250, %s264
      %p266 = scmp.eq.s32.totalorder %s24, 0
      %p267 = por %p265, %p266
      %s269 = sadd.s32 %s268, 1
      %p272 = scmp.eq.s32.totalorder %s18, 7
      %p273 = scmp.ne.s32.totalorder %s268, %s270
      %p274 = scmp.eq.s32.totalorder %s18, 0
      %p275 = por %p273, %p274
      %p276 = scmp.ne.s32.totalorder %s268, %s270
      %p277 = scmp.eq.s32.totalorder %s23, 7
      %p278 = por %p276, %p277
      %p279 = scmp.ne.s32.totalorder %s270, %s271
      %p280 = scmp.eq.s32.totalorder %s23, 0
      %p281 = por %p279, %p280
      %p282 = scmp.ne.s32.totalorder %s270, %s271
      %p283 = scmp.eq.s32.totalorder %s24, 7
      %p284 = por %p282, %p283
      %p286 = scmp.ne.s32.totalorder %s271, %s285
      %p287 = scmp.eq.s32.totalorder %s24, 0
      %p288 = por %p286, %p287
      %s290 = sadd.s32 %s289, 1
      %p293 = scmp.eq.s32.totalorder %s18, 7
      %p294 = scmp.ne.s32.totalorder %s289, %s291
      %p295 = scmp.eq.s32.totalorder %s18, 0
      %p296 = por %p294, %p295
      %p297 = scmp.ne.s32.totalorder %s289, %s291
      %p298 = scmp.eq.s32.totalorder %s23, 7
      %p299 = por %p297, %p298
      %p300 = scmp.ne.s32.totalorder %s291, %s292
      %p301 = scmp.eq.s32.totalorder %s23, 0
      %p302 = por %p300, %p301
      %p303 = scmp.ne.s32.totalorder %s291, %s292
      %p304 = scmp.eq.s32.totalorder %s24, 7
      %p305 = por %p303, %p304
      %p307 = scmp.ne.s32.totalorder %s292, %s306
      %p308 = scmp.eq.s32.totalorder %s24, 0
      %p309 = por %p307, %p308
      %s310 = ssub.s32 %s25, %s37
      %s311 = ssub.s32 %s26, %s33
      %s312 = sor.u32 %s310, %s311
      %p313 = scmp.eq.s32.totalorder %s312, 0
      %s315 = sadd.s32 %s314, 1
      %s316 = scalar_select %p313, %s314, %s315
      %p319 = pneg %p313
      %p320 = scmp.eq.s32.totalorder %s18, 7
      %p321 = por %p319, %p320
      %p322 = scmp.ne.s32.totalorder %s314, %s317
      %p323 = scmp.eq.s32.totalorder %s18, 0
      %p324 = por %p322, %p323
      %p325 = scmp.ne.s32.totalorder %s314, %s317
      %p326 = scmp.eq.s32.totalorder %s23, 7
      %p327 = por %p325, %p326
      %p328 = scmp.ne.s32.totalorder %s317, %s318
      %p329 = scmp.eq.s32.totalorder %s23, 0
      %p330 = por %p328, %p329
      %p331 = scmp.ne.s32.totalorder %s317, %s318
      %p332 = scmp.eq.s32.totalorder %s24, 7
      %p333 = por %p331, %p332
      %p335 = scmp.ne.s32.totalorder %s318, %s334
      %p336 = scmp.eq.s32.totalorder %s24, 0
      %p337 = por %p335, %p336
      %p338 = scmp.le.s32.totalorder 1, %s18
      %p339 = scmp.lt.s32.totalorder %s18, 9
      %p340 = pnand %p338, %p339
      %p341 = pneg %p340
      // Predicated region
      $region9: #{forward_pallas.6} parent=5 // pred_check
        _
      $region10: #{forward_pallas.6} parent=5 // pred_check_branch
        %343 = sbr.rel (%p340) target = $region12
      $region11: #{forward_pallas.6} parent=5 // pred_region
        %s344 = ssub.s32 %s18, 1
        // Predicated region
        $region13: #{forward_pallas.6} parent=11 // pred_check
          %p345 = pneg %p239
        $region14: #{forward_pallas.6} parent=11 // pred_check_branch
          %347 = sbr.rel (%p345) target = $region16
        $region15: #{forward_pallas.6} parent=11 // pred_region
          %349 = vsyncadd [#allocation3], 0
          %s350 = sshll.u32 %s5, 4
          %s351 = int_to_ptr.hbm [resolvable:$true] %s350
          %s352 = sshll.u32 [#allocation2], 4
          %s353 = int_to_ptr.vmem [resolvable:$true] %s352
          %358 = dma.hbm_to_vmem [thread:$0]  %s351, 1152, %s353, [#allocation3], 64, 64, 4
        $region16: #{forward_pallas.6} parent=11 // pred_fallthru
          _
        // Predicated region
        $region17: #{forward_pallas.6} parent=11 // pred_check
          %p359 = pneg %p260
        $region18: #{forward_pallas.6} parent=11 // pred_check_branch
          %361 = sbr.rel (%p359) target = $region20
        $region19: #{forward_pallas.6} parent=11 // pred_region
          %363 = vsyncadd [#allocation5], 0
          %s365 = sshll.u32 %s6, 4
          %s366 = int_to_ptr.hbm [resolvable:$true] %s365
          %s367 = sshll.u32 [#allocation4], 4
          %s368 = int_to_ptr.vmem [resolvable:$true] %s367
          %370 = dma.hbm_to_vmem [thread:$0]  %s366, 16, %s368, [#allocation5]
        $region20: #{forward_pallas.6} parent=11 // pred_fallthru
          _
        // Predicated region
        $region21: #{forward_pallas.6} parent=11 // pred_check
          %p371 = pneg %p281
        $region22: #{forward_pallas.6} parent=11 // pred_check_branch
          %373 = sbr.rel (%p371) target = $region24
        $region23: #{forward_pallas.6} parent=11 // pred_region
          %375 = vsyncadd [#allocation5], 0
          %s376 = sshll.u32 %s7, 4
          %s377 = int_to_ptr.hbm [resolvable:$true] %s376
          %s378 = sshll.u32 [#allocation6], 4
          %s379 = int_to_ptr.vmem [resolvable:$true] %s378
          %384 = dma.hbm_to_vmem [thread:$0]  %s377, 1152, %s379, [#allocation5], 64, 64, 4
        $region24: #{forward_pallas.6} parent=11 // pred_fallthru
          _
        // Predicated region
        $region25: #{forward_pallas.6} parent=11 // pred_check
          %p385 = pneg %p302
        $region26: #{forward_pallas.6} parent=11 // pred_check_branch
          %387 = sbr.rel (%p385) target = $region28
        $region27: #{forward_pallas.6} parent=11 // pred_region
          %389 = vsyncadd [#allocation8], 0
          %s391 = sshll.u32 %s8, 4
          %s392 = int_to_ptr.hbm [resolvable:$true] %s391
          %s393 = sshll.u32 [#allocation7], 4
          %s394 = int_to_ptr.vmem [resolvable:$true] %s393
          %396 = dma.hbm_to_vmem [thread:$0]  %s392, 16, %s394, [#allocation8]
        $region28: #{forward_pallas.6} parent=11 // pred_fallthru
          _
      $region12: #{forward_pallas.6} parent=5 // pred_fallthru
        _
      %p397 = scmp.lt.s32.totalorder %s18, 8
      // Predicated region
      $region29: #{forward_pallas.6} parent=5 // pred_check
        %p398 = pneg %p397
      $region30: #{forward_pallas.6} parent=5 // pred_check_branch
        %400 = sbr.rel (%p398) target = $region32
      $region31: #{forward_pallas.6} parent=5 // pred_region
        // Predicated region
        $region33: #{forward_pallas.6} parent=31 // pred_check
          %p401 = pneg %p52
        $region34: #{forward_pallas.6} parent=31 // pred_check_branch
          %403 = sbr.rel (%p401) target = $region36
        $region35: #{forward_pallas.6} parent=31 // pred_region
          %s404 = smul.u32 4, %s26
          %p405 = scmp.lt.s32.totalorder %s25, 1
          %s406 = scalar_select %p405, %s25, 1
          %p407 = scmp.lt.s32.totalorder %s404, 15
          %s408 = scalar_select %p407, %s404, 15
          %s409 = smul.addr %s408, 2
          %s410 = smul.addr %s406, 32
          %s411 = sadd.s32 %s409, %s410
          %s412 = smul.addr %s411, 4
          %s413 = scalar_lea.vmem %s0, %s412
          %s414 = smul.u32 4, %s26
        $region36: #{forward_pallas.6} parent=31 // pred_fallthru
          _
        // Predicated region
        $region37: #{forward_pallas.6} parent=31 // pred_check
          %p415 = pneg %p92
        $region38: #{forward_pallas.6} parent=31 // pred_check_branch
          %417 = sbr.rel (%p415) target = $region40
        $region39: #{forward_pallas.6} parent=31 // pred_region
          %s418 = smul.u32 %s26, 4
          %s419 = sadd.s32 %s418, 4294967294
          %p420 = scmp.gt.s32.totalorder %s419, 0
          %s421 = scalar_select %p420, %s419, 0
          %p422 = scmp.lt.s32.totalorder %s421, 15
          %s423 = scalar_select %p422, %s421, 15
          %p424 = scmp.lt.s32.totalorder %s25, 1
          %s425 = scalar_select %p424, %s25, 1
          %p426 = scmp.lt.s32.totalorder %s423, 15
          %s427 = scalar_select %p426, %s423, 15
          %s428 = smul.addr %s427, 2
          %s429 = smul.addr %s425, 32
          %s430 = sadd.s32 %s428, %s429
          %s431 = smul.addr %s430, 4
          %s432 = scalar_lea.vmem %s1, %s431
          %s433 = smul.u32 %s26, 4
          %s434 = sadd.s32 %s433, 4294967294
          %p435 = scmp.gt.s32.totalorder %s434, 0
          %s436 = scalar_select %p435, %s434, 0
          %p437 = scmp.lt.s32.totalorder %s436, 15
          %s438 = scalar_select %p437, %s436, 15
        $region40: #{forward_pallas.6} parent=31 // pred_fallthru
          _
        // Predicated region
        $region41: #{forward_pallas.6} parent=31 // pred_check
          %p439 = pneg %p132
        $region42: #{forward_pallas.6} parent=31 // pred_check_branch
          %441 = sbr.rel (%p439) target = $region44
        $region43: #{forward_pallas.6} parent=31 // pred_region
          %s442 = smul.u32 %s26, 4
          %s443 = sadd.s32 %s442, 4294967295
          %p444 = scmp.gt.s32.totalorder %s443, 0
          %s445 = scalar_select %p444, %s443, 0
          %p446 = scmp.lt.s32.totalorder %s445, 15
          %s447 = scalar_select %p446, %s445, 15
          %p448 = scmp.lt.s32.totalorder %s25, 1
          %s449 = scalar_select %p448, %s25, 1
          %p450 = scmp.lt.s32.totalorder %s447, 15
          %s451 = scalar_select %p450, %s447, 15
          %s452 = smul.addr %s451, 2
          %s453 = smul.addr %s449, 32
          %s454 = sadd.s32 %s452, %s453
          %s455 = smul.addr %s454, 4
          %s456 = scalar_lea.vmem %s2, %s455
          %s457 = smul.u32 %s26, 4
          %s458 = sadd.s32 %s457, 4294967295
          %p459 = scmp.gt.s32.totalorder %s458, 0
          %s460 = scalar_select %p459, %s458, 0
          %p461 = scmp.lt.s32.totalorder %s460, 15
          %s462 = scalar_select %p461, %s460, 15
        $region44: #{forward_pallas.6} parent=31 // pred_fallthru
          _
        // Predicated region
        $region45: #{forward_pallas.6} parent=31 // pred_check
          %p463 = pneg %p172
        $region46: #{forward_pallas.6} parent=31 // pred_check_branch
          %465 = sbr.rel (%p463) target = $region48
        $region47: #{forward_pallas.6} parent=31 // pred_region
          %s466 = smul.u32 %s26, 4
          %s467 = sadd.s32 %s466, 4
          %p468 = scmp.gt.s32.totalorder %s467, 0
          %s469 = scalar_select %p468, %s467, 0
          %p470 = scmp.lt.s32.totalorder %s469, 15
          %s471 = scalar_select %p470, %s469, 15
          %p472 = scmp.lt.s32.totalorder %s25, 1
          %s473 = scalar_select %p472, %s25, 1
          %p474 = scmp.lt.s32.totalorder %s471, 15
          %s475 = scalar_select %p474, %s471, 15
          %s476 = smul.addr %s475, 2
          %s477 = smul.addr %s473, 32
          %s478 = sadd.s32 %s476, %s477
          %s479 = smul.addr %s478, 4
          %s480 = scalar_lea.vmem %s3, %s479
          %s481 = smul.u32 %s26, 4
          %s482 = sadd.s32 %s481, 4
          %p483 = scmp.gt.s32.totalorder %s482, 0
          %s484 = scalar_select %p483, %s482, 0
          %p485 = scmp.lt.s32.totalorder %s484, 15
          %s486 = scalar_select %p485, %s484, 15
        $region48: #{forward_pallas.6} parent=31 // pred_fallthru
          _
        // Predicated region
        $region49: #{forward_pallas.6} parent=31 // pred_check
          %p487 = pneg %p212
        $region50: #{forward_pallas.6} parent=31 // pred_check_branch
          %489 = sbr.rel (%p487) target = $region52
        $region51: #{forward_pallas.6} parent=31 // pred_region
          %s490 = smul.u32 %s26, 4
          %s491 = sadd.s32 %s490, 5
          %p492 = scmp.gt.s32.totalorder %s491, 0
          %s493 = scalar_select %p492, %s491, 0
          %p494 = scmp.lt.s32.totalorder %s493, 15
          %s495 = scalar_select %p494, %s493, 15
          %p496 = scmp.lt.s32.totalorder %s25, 1
          %s497 = scalar_select %p496, %s25, 1
          %p498 = scmp.lt.s32.totalorder %s495, 15
          %s499 = scalar_select %p498, %s495, 15
          %s500 = smul.addr %s499, 2
          %s501 = smul.addr %s497, 32
          %s502 = sadd.s32 %s500, %s501
          %s503 = smul.addr %s502, 4
          %s504 = scalar_lea.vmem %s4, %s503
          %s505 = smul.u32 %s26, 4
          %s506 = sadd.s32 %s505, 5
          %p507 = scmp.gt.s32.totalorder %s506, 0
          %s508 = scalar_select %p507, %s506, 0
          %p509 = scmp.lt.s32.totalorder %s508, 15
          %s510 = scalar_select %p509, %s508, 15
        $region52: #{forward_pallas.6} parent=31 // pred_fallthru
          _
      $region32: #{forward_pallas.6} parent=5 // pred_fallthru
        _
      %p511 = scmp.le.s32.totalorder 1, %s18
      %p512 = scmp.lt.s32.totalorder %s18, 9
      %p513 = pnand %p511, %p512
      %p514 = pneg %p513
      // Predicated region
      $region53: #{forward_pallas.6} parent=5 // pred_check
        _
      $region54: #{forward_pallas.6} parent=5 // pred_check_branch
        %516 = sbr.rel (%p513) target = $region56
      $region55: #{forward_pallas.6} parent=5 // pred_region
        %s517 = ssub.s32 %s18, 1
        // Predicated region
        $region57: #{forward_pallas.6} parent=55 // pred_check
          %p518 = pneg %p239
        $region58: #{forward_pallas.6} parent=55 // pred_check_branch
          %520 = sbr.rel (%p518) target = $region60
        $region59: #{forward_pallas.6} parent=55 // pred_region
          %522 = dma.done [#allocation3], 1152
        $region60: #{forward_pallas.6} parent=55 // pred_fallthru
          _
        // Predicated region
        $region61: #{forward_pallas.6} parent=55 // pred_check
          %p523 = pneg %p260
        $region62: #{forward_pallas.6} parent=55 // pred_check_branch
          %525 = sbr.rel (%p523) target = $region64
        $region63: #{forward_pallas.6} parent=55 // pred_region
          %527 = dma.done [#allocation5], 16
        $region64: #{forward_pallas.6} parent=55 // pred_fallthru
          _
        // Predicated region
        $region65: #{forward_pallas.6} parent=55 // pred_check
          %p528 = pneg %p281
        $region66: #{forward_pallas.6} parent=55 // pred_check_branch
          %530 = sbr.rel (%p528) target = $region68
        $region67: #{forward_pallas.6} parent=55 // pred_region
          %532 = dma.done [#allocation5], 1152
        $region68: #{forward_pallas.6} parent=55 // pred_fallthru
          _
        // Predicated region
        $region69: #{forward_pallas.6} parent=55 // pred_check
          %p533 = pneg %p302
        $region70: #{forward_pallas.6} parent=55 // pred_check_branch
          %535 = sbr.rel (%p533) target = $region72
        $region71: #{forward_pallas.6} parent=55 // pred_region
          %537 = dma.done [#allocation8], 16
        $region72: #{forward_pallas.6} parent=55 // pred_fallthru
          _
        %s538 = smul.u32 4, %s28
        %p539 = scmp.lt.s32.totalorder %s27, 1
        %s540 = scalar_select %p539, %s27, 1
        %p541 = scmp.lt.s32.totalorder %s538, 15
        %s542 = scalar_select %p541, %s538, 15
        %s543 = smul.addr %s542, 2
        %s544 = smul.addr %s540, 32
        %s545 = sadd.s32 %s543, %s544
        %s546 = smul.addr %s545, 4
        %s547 = scalar_lea.vmem %s0, %s546
        %p548 = pneg %p58
        %p549 = pneg %p55
        %s550 = smul.u32 %s28, 4
        %s551 = sadd.s32 %s550, 4294967294
        %p552 = scmp.gt.s32.totalorder %s551, 0
        %s553 = scalar_select %p552, %s551, 0
        %p554 = scmp.lt.s32.totalorder %s553, 15
        %s555 = scalar_select %p554, %s553, 15
        %p556 = scmp.lt.s32.totalorder %s27, 1
        %s557 = scalar_select %p556, %s27, 1
        %p558 = scmp.lt.s32.totalorder %s555, 15
        %s559 = scalar_select %p558, %s555, 15
        %s560 = smul.addr %s559, 2
        %s561 = smul.addr %s557, 32
        %s562 = sadd.s32 %s560, %s561
        %s563 = smul.addr %s562, 4
        %s564 = scalar_lea.vmem %s1, %s563
        %p565 = pneg %p98
        %p566 = pneg %p95
        %s567 = smul.u32 %s28, 4
        %s568 = sadd.s32 %s567, 4294967295
        %p569 = scmp.gt.s32.totalorder %s568, 0
        %s570 = scalar_select %p569, %s568, 0
        %p571 = scmp.lt.s32.totalorder %s570, 15
        %s572 = scalar_select %p571, %s570, 15
        %p573 = scmp.lt.s32.totalorder %s27, 1
        %s574 = scalar_select %p573, %s27, 1
        %p575 = scmp.lt.s32.totalorder %s572, 15
        %s576 = scalar_select %p575, %s572, 15
        %s577 = smul.addr %s576, 2
        %s578 = smul.addr %s574, 32
        %s579 = sadd.s32 %s577, %s578
        %s580 = smul.addr %s579, 4
        %s581 = scalar_lea.vmem %s2, %s580
        %p582 = pneg %p138
        %p583 = pneg %p135
        %s584 = smul.u32 %s28, 4
        %s585 = sadd.s32 %s584, 4
        %p586 = scmp.gt.s32.totalorder %s585, 0
        %s587 = scalar_select %p586, %s585, 0
        %p588 = scmp.lt.s32.totalorder %s587, 15
        %s589 = scalar_select %p588, %s587, 15
        %p590 = scmp.lt.s32.totalorder %s27, 1
        %s591 = scalar_select %p590, %s27, 1
        %p592 = scmp.lt.s32.totalorder %s589, 15
        %s593 = scalar_select %p592, %s589, 15
        %s594 = smul.addr %s593, 2
        %s595 = smul.addr %s591, 32
        %s596 = sadd.s32 %s594, %s595
        %s597 = smul.addr %s596, 4
        %s598 = scalar_lea.vmem %s3, %s597
        %p599 = pneg %p178
        %p600 = pneg %p175
        %s601 = smul.u32 %s28, 4
        %s602 = sadd.s32 %s601, 5
        %p603 = scmp.gt.s32.totalorder %s602, 0
        %s604 = scalar_select %p603, %s602, 0
        %p605 = scmp.lt.s32.totalorder %s604, 15
        %s606 = scalar_select %p605, %s604, 15
        %p607 = scmp.lt.s32.totalorder %s27, 1
        %s608 = scalar_select %p607, %s27, 1
        %p609 = scmp.lt.s32.totalorder %s606, 15
        %s610 = scalar_select %p609, %s606, 15
        %s611 = smul.addr %s610, 2
        %s612 = smul.addr %s608, 32
        %s613 = sadd.s32 %s611, %s612
        %s614 = smul.addr %s613, 4
        %s615 = scalar_lea.vmem %s4, %s614
        %p616 = pneg %p218
        %p617 = pneg %p215
        %p618 = pneg %p239
        %p619 = pneg %p236
        %p620 = pneg %p260
        %p621 = pneg %p257
        %p622 = pneg %p281
        %p623 = pneg %p278
        %p624 = pneg %p302
        %p625 = pneg %p299
        %p626 = pneg %p330
        %p627 = pneg %p327
        %s628 = smul.u32 4, %s28
        %p629 = scmp.lt.s32.totalorder %s27, 1
        %s630 = scalar_select %p629, %s27, 1
        %p631 = scmp.lt.s32.totalorder %s628, 15
        %s632 = scalar_select %p631, %s628, 15
        %s633 = smul.addr %s632, 2
        %s634 = smul.addr %s630, 32
        %s635 = sadd.s32 %s633, %s634
        %s636 = smul.addr %s635, 4
        %s637 = scalar_lea.vmem %s9, %s636
        %s638 = smul.u32 4, %s28
        %p639 = scmp.lt.s32.totalorder %s27, 1
        %s640 = scalar_select %p639, %s27, 1
        %p641 = scmp.lt.s32.totalorder %s638, 15
        %s642 = scalar_select %p641, %s638, 15
        %s643 = smul.addr %s642, 2
        %s644 = smul.addr %s640, 32
        %s645 = sadd.s32 %s643, %s644
        %s646 = smul.addr %s645, 4
        %s647 = scalar_lea.vmem %s0, %s646
        %s648 = smul.u32 4, %s28
        %s649 = smul.u32 %s28, 4
        %s650 = sadd.s32 %s649, 4294967294
        %p651 = scmp.gt.s32.totalorder %s650, 0
        %s652 = scalar_select %p651, %s650, 0
        %p653 = scmp.lt.s32.totalorder %s652, 15
        %s654 = scalar_select %p653, %s652, 15
        %p655 = scmp.lt.s32.totalorder %s27, 1
        %s656 = scalar_select %p655, %s27, 1
        %p657 = scmp.lt.s32.totalorder %s654, 15
        %s658 = scalar_select %p657, %s654, 15
        %s659 = smul.addr %s658, 2
        %s660 = smul.addr %s656, 32
        %s661 = sadd.s32 %s659, %s660
        %s662 = smul.addr %s661, 4
        %s663 = scalar_lea.vmem %s1, %s662
        %s664 = smul.u32 %s28, 4
        %s665 = sadd.s32 %s664, 4294967294
        %p666 = scmp.gt.s32.totalorder %s665, 0
        %s667 = scalar_select %p666, %s665, 0
        %p668 = scmp.lt.s32.totalorder %s667, 15
        %s669 = scalar_select %p668, %s667, 15
        %s670 = smul.u32 %s28, 4
        %s671 = sadd.s32 %s670, 4294967295
        %p672 = scmp.gt.s32.totalorder %s671, 0
        %s673 = scalar_select %p672, %s671, 0
        %p674 = scmp.lt.s32.totalorder %s673, 15
        %s675 = scalar_select %p674, %s673, 15
        %p676 = scmp.lt.s32.totalorder %s27, 1
        %s677 = scalar_select %p676, %s27, 1
        %p678 = scmp.lt.s32.totalorder %s675, 15
        %s679 = scalar_select %p678, %s675, 15
        %s680 = smul.addr %s679, 2
        %s681 = smul.addr %s677, 32
        %s682 = sadd.s32 %s680, %s681
        %s683 = smul.addr %s682, 4
        %s684 = scalar_lea.vmem %s2, %s683
        %s685 = smul.u32 %s28, 4
        %s686 = sadd.s32 %s685, 4294967295
        %p687 = scmp.gt.s32.totalorder %s686, 0
        %s688 = scalar_select %p687, %s686, 0
        %p689 = scmp.lt.s32.totalorder %s688, 15
        %s690 = scalar_select %p689, %s688, 15
        %s691 = smul.u32 %s28, 4
        %s692 = sadd.s32 %s691, 4
        %p693 = scmp.gt.s32.totalorder %s692, 0
        %s694 = scalar_select %p693, %s692, 0
        %p695 = scmp.lt.s32.totalorder %s694, 15
        %s696 = scalar_select %p695, %s694, 15
        %p697 = scmp.lt.s32.totalorder %s27, 1
        %s698 = scalar_select %p697, %s27, 1
        %p699 = scmp.lt.s32.totalorder %s696, 15
        %s700 = scalar_select %p699, %s696, 15
        %s701 = smul.addr %s700, 2
        %s702 = smul.addr %s698, 32
        %s703 = sadd.s32 %s701, %s702
        %s704 = smul.addr %s703, 4
        %s705 = scalar_lea.vmem %s3, %s704
        %s706 = smul.u32 %s28, 4
        %s707 = sadd.s32 %s706, 4
        %p708 = scmp.gt.s32.totalorder %s707, 0
        %s709 = scalar_select %p708, %s707, 0
        %p710 = scmp.lt.s32.totalorder %s709, 15
        %s711 = scalar_select %p710, %s709, 15
        %s712 = smul.u32 %s28, 4
        %s713 = sadd.s32 %s712, 5
        %p714 = scmp.gt.s32.totalorder %s713, 0
        %s715 = scalar_select %p714, %s713, 0
        %p716 = scmp.lt.s32.totalorder %s715, 15
        %s717 = scalar_select %p716, %s715, 15
        %p718 = scmp.lt.s32.totalorder %s27, 1
        %s719 = scalar_select %p718, %s27, 1
        %p720 = scmp.lt.s32.totalorder %s717, 15
        %s721 = scalar_select %p720, %s717, 15
        %s722 = smul.addr %s721, 2
        %s723 = smul.addr %s719, 32
        %s724 = sadd.s32 %s722, %s723
        %s725 = smul.addr %s724, 4
        %s726 = scalar_lea.vmem %s4, %s725
        %s727 = smul.u32 %s28, 4
        %s728 = sadd.s32 %s727, 5
        %p729 = scmp.gt.s32.totalorder %s728, 0
        %s730 = scalar_select %p729, %s728, 0
        %p731 = scmp.lt.s32.totalorder %s730, 15
        %s732 = scalar_select %p731, %s730, 15
        %s733 = smul.u32 4, %s28
        %p734 = scmp.lt.s32.totalorder %s27, 1
        %s735 = scalar_select %p734, %s27, 1
        %p736 = scmp.lt.s32.totalorder %s733, 15
        %s737 = scalar_select %p736, %s733, 15
        %s738 = smul.addr %s737, 2
        %s739 = smul.addr %s735, 32
        %s740 = sadd.s32 %s738, %s739
        %s741 = smul.addr %s740, 4
        %s742 = scalar_lea.vmem %s9, %s741
        %s743 = smul.u32 4, %s28
        %s745 = smul.u32 %s28, 4
        %s746 = ssub.s32 %s745, 2
        %p747 = scmp.ge.s32.totalorder %s746, 0
        %v748 = vld [vmem:[%s663] sm:$0xf]
        %v749 = vld [vmem:[%s663 + $0x4] sm:$0xf]
        %s750 = scalar_select %p747, 1, 0
        %v751 = vstv %s750
        %vm752 = vcmp.eq.s32.totalorder %v751, 1
        %v753 = vsel %vm752, %v748, 0
        %v754 = vsel %vm752, %v749, 0
        %s755 = ssub.s32 %s745, 1
        %p756 = scmp.ge.s32.totalorder %s755, 0
        %v757 = vld [vmem:[%s684] sm:$0xf]
        %v758 = vld [vmem:[%s684 + $0x4] sm:$0xf]
        %s759 = scalar_select %p756, 1, 0
        %v760 = vstv %s759
        %vm761 = vcmp.eq.s32.totalorder %v760, 1
        %v762 = vsel %vm761, %v757, 0
        %v763 = vsel %vm761, %v758, 0
        %s764 = sadd.s32 %s745, 4
        %p765 = scmp.le.s32.totalorder %s764, 15
        %v766 = vld [vmem:[%s705] sm:$0xf]
        %v767 = vld [vmem:[%s705 + $0x4] sm:$0xf]
        %s768 = scalar_select %p765, 1, 0
        %v769 = vstv %s768
        %vm770 = vcmp.eq.s32.totalorder %v769, 1
        %v771 = vsel %vm770, %v766, 0
        %v772 = vsel %vm770, %v767, 0
        %s773 = sadd.s32 %s745, 5
        %p774 = scmp.le.s32.totalorder %s773, 15
        %v775 = vld [vmem:[%s726] sm:$0xf]
        %v776 = vld [vmem:[%s726 + $0x4] sm:$0xf]
        %s777 = scalar_select %p774, 1, 0
        %v778 = vstv %s777
        %vm779 = vcmp.eq.s32.totalorder %v778, 1
        %v780 = vsel %vm779, %v775, 0
        %v781 = vsel %vm779, %v776, 0
        %v782 = vld [vmem:[%s647] sm:$0xf]
        %v783 = vld [vmem:[%s647 + $0x4] sm:$0xf]
        %v784 = vld [vmem:[%s647 + $0x8] sm:$0xf]
        %v785 = vld [vmem:[%s647 + $0xc] sm:$0xf]
        %v786 = vld [vmem:[%s647 + $0x10] sm:$0xf]
        %v787 = vld [vmem:[%s647 + $0x14] sm:$0xf]
        %v788 = vld [vmem:[%s647 + $0x18] sm:$0xf]
        %v789 = vld [vmem:[%s647 + $0x1c] sm:$0xf]
        %v806 = vunpack.c.l.b16 %v753
        %v807 = vunpack.c.l.b16 %v754
        %v808 = vunpack.c.l.b16 %v762
        %v809 = vunpack.c.l.b16 %v763
        %v810 = vunpack.c.l.b16 %v782
        %v811 = vunpack.c.l.b16 %v783
        %v812 = vunpack.c.l.b16 %v784
        %v813 = vunpack.c.l.b16 %v785
        %v814 = vunpack.c.l.b16 %v786
        %v815 = vunpack.c.l.b16 %v787
        %v816 = vunpack.c.l.b16 %v788
        %v817 = vunpack.c.l.b16 %v789
        %v818 = vunpack.c.l.b16 %v771
        %v819 = vunpack.c.l.b16 %v772
        %v820 = vunpack.c.l.b16 %v780
        %v821 = vunpack.c.l.b16 %v781
        %v822 = vpack.c.b16 %v807, %v806
        %v823 = vpack.c.b16 %v809, %v808
        %v824 = vpack.c.b16 %v811, %v810
        %v825 = vpack.c.b16 %v813, %v812
        %v826 = vpack.c.b16 %v815, %v814
        %v827 = vpack.c.b16 %v817, %v816
        %v828 = vpack.c.b16 %v819, %v818
        %v829 = vpack.c.b16 %v821, %v820
        %v831 = vshrl.u32 %v822, 16
        %v833 = vrot.slane %v831, 7
        %v834 = vshll.u32 %v822, 16
        %v836 = vor.u32 %v833, %v834
        %v838 = vshrl.u32 %v823, 16
        %v840 = vrot.slane %v838, 7
        %v841 = vshll.u32 %v823, 16
        %v843 = vor.u32 %v840, %v841
        %v845 = vshrl.u32 %v824, 16
        %v847 = vrot.slane %v845, 7
        %v848 = vshll.u32 %v824, 16
        %v850 = vor.u32 %v847, %v848
        %v852 = vshrl.u32 %v825, 16
        %v854 = vrot.slane %v852, 7
        %v855 = vshll.u32 %v825, 16
        %v857 = vor.u32 %v854, %v855
        %v859 = vshrl.u32 %v826, 16
        %v861 = vrot.slane %v859, 7
        %v862 = vshll.u32 %v826, 16
        %v864 = vor.u32 %v861, %v862
        %v866 = vshrl.u32 %v827, 16
        %v868 = vrot.slane %v866, 7
        %v869 = vshll.u32 %v827, 16
        %v871 = vor.u32 %v868, %v869
        %v873 = vshrl.u32 %v828, 16
        %v875 = vrot.slane %v873, 7
        %v876 = vshll.u32 %v828, 16
        %v878 = vor.u32 %v875, %v876
        %v880 = vshrl.u32 %v829, 16
        %v882 = vrot.slane %v880, 7
        %v883 = vshll.u32 %v829, 16
        %v885 = vor.u32 %v882, %v883
        %vm902 = vcmask 1040384
        %vm903 = vsmask.f32 256
        %vm904 = vmand %vm902, %vm903
        %v905 = vsel %vm904, 0, %v836
        %v906 = vsel %vm904, 0, %v843
        %v907 = vsel %vm904, 0, %v850
        %v908 = vsel %vm904, 0, %v857
        %v909 = vsel %vm904, 0, %v864
        %v910 = vsel %vm904, 0, %v871
        %v911 = vsel %vm904, 0, %v878
        %v912 = vsel %vm904, 0, %v885
        %v913 = vsel %vm904, %v833, 0
        %v914 = vsel %vm904, %v840, 0
        %v915 = vsel %vm904, %v847, 0
        %v916 = vsel %vm904, %v854, 0
        %v917 = vsel %vm904, %v861, 0
        %v918 = vsel %vm904, %v868, 0
        %v919 = vsel %vm904, %v875, 0
        %v920 = vsel %vm904, %v882, 0
        %vm921 = vsmask.f32 7424
        %v923 = vshrl.u32 %v905, 16
        %v925 = vshll.u32 %v905, 16
        %v927 = vrot.slane %v925, 1
        %v928 = vor.u32 %v923, %v927
        %v930 = vshll.u32 %v913, 16
        %v932 = vrot.slane %v930, 1
        %v933 = vsel %vm921, %v928, %v932
        %v935 = vshrl.u32 %v906, 16
        %v937 = vshll.u32 %v906, 16
        %v939 = vrot.slane %v937, 1
        %v940 = vor.u32 %v935, %v939
        %v942 = vshll.u32 %v914, 16
        %v944 = vrot.slane %v942, 1
        %v945 = vsel %vm921, %v940, %v944
        %v947 = vshrl.u32 %v907, 16
        %v949 = vshll.u32 %v907, 16
        %v951 = vrot.slane %v949, 1
        %v952 = vor.u32 %v947, %v951
        %v954 = vshll.u32 %v915, 16
        %v956 = vrot.slane %v954, 1
        %v957 = vsel %vm921, %v952, %v956
        %v959 = vshrl.u32 %v908, 16
        %v961 = vshll.u32 %v908, 16
        %v963 = vrot.slane %v961, 1
        %v964 = vor.u32 %v959, %v963
        %v966 = vshll.u32 %v916, 16
        %v968 = vrot.slane %v966, 1
        %v969 = vsel %vm921, %v964, %v968
        %v971 = vshrl.u32 %v909, 16
        %v973 = vshll.u32 %v909, 16
        %v975 = vrot.slane %v973, 1
        %v976 = vor.u32 %v971, %v975
        %v978 = vshll.u32 %v917, 16
        %v980 = vrot.slane %v978, 1
        %v981 = vsel %vm921, %v976, %v980
        %v983 = vshrl.u32 %v910, 16
        %v985 = vshll.u32 %v910, 16
        %v987 = vrot.slane %v985, 1
        %v988 = vor.u32 %v983, %v987
        %v990 = vshll.u32 %v918, 16
        %v992 = vrot.slane %v990, 1
        %v993 = vsel %vm921, %v988, %v992
        %994 = vrot.lane.b32.xlu0 %v933, 16
        %v995 = vpop.permute.xlu0 %994
        %996 = vrot.lane.b32.xlu0 %v945, 16
        %v997 = vpop.permute.xlu0 %996
        %998 = vrot.lane.b32.xlu0 %v957, 16
        %v999 = vpop.permute.xlu0 %998
        %1000 = vrot.lane.b32.xlu0 %v969, 16
        %v1001 = vpop.permute.xlu0 %1000
        %1002 = vrot.lane.b32.xlu0 %v981, 16
        %v1003 = vpop.permute.xlu0 %1002
        %1004 = vrot.lane.b32.xlu0 %v993, 16
        %v1005 = vpop.permute.xlu0 %1004
        %vm1018 = vcmask 1046528
        %v1019 = vrot.slane %v905, 1
        %v1020 = vrot.slane %v913, 1
        %v1021 = vsel %vm1018, %v1019, %v1020
        %v1022 = vrot.slane %v906, 1
        %v1023 = vrot.slane %v914, 1
        %v1024 = vsel %vm1018, %v1022, %v1023
        %v1025 = vrot.slane %v907, 1
        %v1026 = vrot.slane %v915, 1
        %v1027 = vsel %vm1018, %v1025, %v1026
        %v1028 = vrot.slane %v908, 1
        %v1029 = vrot.slane %v916, 1
        %v1030 = vsel %vm1018, %v1028, %v1029
        %v1031 = vrot.slane %v909, 1
        %v1032 = vrot.slane %v917, 1
        %v1033 = vsel %vm1018, %v1031, %v1032
        %v1034 = vrot.slane %v910, 1
        %v1035 = vrot.slane %v918, 1
        %v1036 = vsel %vm1018, %v1034, %v1035
        %1037 = vrot.lane.b32.xlu0 %v1021, 32
        %v1038 = vpop.permute.xlu0 %1037
        %1039 = vrot.lane.b32.xlu0 %v1024, 32
        %v1040 = vpop.permute.xlu0 %1039
        %1041 = vrot.lane.b32.xlu0 %v1027, 32
        %v1042 = vpop.permute.xlu0 %1041
        %1043 = vrot.lane.b32.xlu0 %v1030, 32
        %v1044 = vpop.permute.xlu0 %1043
        %1045 = vrot.lane.b32.xlu0 %v1033, 32
        %v1046 = vpop.permute.xlu0 %1045
        %1047 = vrot.lane.b32.xlu0 %v1036, 32
        %v1048 = vpop.permute.xlu0 %1047
        %vm1049 = vcmask 130048
        %v1051 = vsel %vm1049, %v905, %v995
        %v1053 = vsel %vm1049, %v906, %v997
        %v1055 = vsel %vm1049, %v907, %v999
        %v1057 = vsel %vm1049, %v908, %v1001
        %v1059 = vsel %vm1049, %v909, %v1003
        %v1061 = vsel %vm1049, %v910, %v1005
        %vm1062 = vcmask 261120
        %v1064 = vsel %vm1062, %v1051, %v1038
        %v1066 = vsel %vm1062, %v1053, %v1040
        %v1068 = vsel %vm1062, %v1055, %v1042
        %v1070 = vsel %vm1062, %v1057, %v1044
        %v1072 = vsel %vm1062, %v1059, %v1046
        %v1074 = vsel %vm1062, %v1061, %v1048
        %v1075 = vld [vmem:[#allocation2] sm:$0xf]
        %v1076 = vld [vmem:[#allocation2 + $0x4] sm:$0xf]
        %v1077 = vld [vmem:[#allocation2 + $0x8] sm:$0xf]
        %v1078 = vld [vmem:[#allocation2 + $0xc] sm:$0xf]
        %v1079 = vld [vmem:[#allocation2 + $0x10] sm:$0xf]
        %v1080 = vld [vmem:[#allocation2 + $0x14] sm:$0xf]
        %v1082 = vshrl.u32 %v911, 16
        %v1084 = vshll.u32 %v911, 16
        %v1086 = vrot.slane %v1084, 1
        %v1087 = vor.u32 %v1082, %v1086
        %v1089 = vshll.u32 %v919, 16
        %v1091 = vrot.slane %v1089, 1
        %v1092 = vsel %vm921, %v1087, %v1091
        %1093 = vrot.lane.b32.xlu0 %v1092, 16
        %v1094 = vpop.permute.xlu0 %1093
        %v1097 = vrot.slane %v911, 1
        %v1098 = vrot.slane %v919, 1
        %v1099 = vsel %vm1018, %v1097, %v1098
        %1100 = vrot.lane.b32.xlu0 %v1099, 32
        %v1101 = vpop.permute.xlu0 %1100
        %v1103 = vsel %vm1049, %v911, %v1094
        %v1105 = vsel %vm1062, %v1103, %v1101
        %s1106 = scalar_lea.vmem [#allocation2], 24
        %v1107 = vld [vmem:[%s1106] sm:$0xf]
        %v1108 = vld [vmem:[%s1106 + $0x4] sm:$0xf]
        %v1109 = vld [vmem:[%s1106 + $0x8] sm:$0xf]
        %v1110 = vld [vmem:[%s1106 + $0xc] sm:$0xf]
        %v1111 = vld [vmem:[%s1106 + $0x10] sm:$0xf]
        %v1112 = vld [vmem:[%s1106 + $0x14] sm:$0xf]
        %v1119 = vunpack.c.l.b16 %v1107
        %v1120 = vunpack.c.l.b16 %v1108
        %v1121 = vunpack.c.l.b16 %v1109
        %v1122 = vunpack.c.l.b16 %v1110
        %v1123 = vunpack.c.l.b16 %v1111
        %v1124 = vunpack.c.l.b16 %v1112
        %v1125 = vpack.c.b16 %v1120, %v1119
        %v1126 = vpack.c.b16 %v1122, %v1121
        %v1127 = vpack.c.b16 %v1124, %v1123
        %vm1131 = vcmask 392192
        %v1132 = vsel %vm1131, %v1066, 0
        %v1134 = vsel %vm1131, %v1068, 0
        %v1136 = vsel %vm1131, %v1070, 0
        %v1138 = vsel %vm1131, %v1072, 0
        %v1140 = vsel %vm1131, %v1074, 0
        %v1142 = vsel %vm1131, %v1105, 0
        %1144 = vmatpush.bf16.msra.mxu0 0
        %1145 = vmatpush.bf16.msra.mxu0 0
        %1146 = vmatpush.bf16.msra.mxu0 0
        %1147 = vmatpush.bf16.msra.mxu0 0
        %1148 = vmatpush.bf16.msra.mxu0 0
        %1149 = vmatpush.bf16.msra.mxu0 %v1127
        %1150 = vmatpush.bf16.msra.mxu0 %v1126
        %1151 = vmatpush.bf16.msra.mxu0 %v1125
        %1152 = vmatmul.bf16.gmra.mxu0 %v1132
        %v1153 = vpop.f32.mrf.mxu0
        %v1154 = vadd.f32 0.0, %v1153
        %v1155 = vpop.f32.mrf.mxu0
        %v1156 = vadd.f32 0.0, %v1155
        %1157 = vmatmul.bf16.gmra.mxu0 %v1134
        %v1158 = vpop.f32.mrf.mxu0
        %v1159 = vadd.f32 0.0, %v1158
        %v1160 = vpop.f32.mrf.mxu0
        %v1161 = vadd.f32 0.0, %v1160
        %1162 = vmatmul.bf16.gmra.mxu0 %v1136
        %v1163 = vpop.f32.mrf.mxu0
        %v1164 = vadd.f32 0.0, %v1163
        %v1165 = vpop.f32.mrf.mxu0
        %v1166 = vadd.f32 0.0, %v1165
        %1167 = vmatmul.bf16.gmra.mxu0 %v1138
        %v1168 = vpop.f32.mrf.mxu0
        %v1169 = vadd.f32 0.0, %v1168
        %v1170 = vpop.f32.mrf.mxu0
        %v1171 = vadd.f32 0.0, %v1170
        %1172 = vmatmul.bf16.gmra.mxu0 %v1140
        %v1173 = vpop.f32.mrf.mxu0
        %v1174 = vadd.f32 0.0, %v1173
        %v1175 = vpop.f32.mrf.mxu0
        %v1176 = vadd.f32 0.0, %v1175
        %1177 = vmatmul.bf16.gmra.mxu0 %v1142
        %v1178 = vpop.f32.mrf.mxu0
        %v1179 = vadd.f32 0.0, %v1178
        %v1180 = vpop.f32.mrf.mxu0
        %v1181 = vadd.f32 0.0, %v1180
        %1182 = vdwg.mxu0
        %v1189 = vunpack.c.l.b16 %v1075
        %v1190 = vunpack.c.l.b16 %v1076
        %v1191 = vunpack.c.l.b16 %v1077
        %v1192 = vunpack.c.l.b16 %v1078
        %v1193 = vunpack.c.l.b16 %v1079
        %v1194 = vunpack.c.l.b16 %v1080
        %v1195 = vpack.c.b16 %v1190, %v1189
        %v1196 = vpack.c.b16 %v1192, %v1191
        %v1197 = vpack.c.b16 %v1194, %v1193
        %v1201 = vsel %vm1131, %v1064, 0
        %1203 = vmatpush.bf16.msra.mxu0 0
        %1204 = vmatpush.bf16.msra.mxu0 0
        %1205 = vmatpush.bf16.msra.mxu0 0
        %1206 = vmatpush.bf16.msra.mxu0 0
        %1207 = vmatpush.bf16.msra.mxu0 0
        %1208 = vmatpush.bf16.msra.mxu0 %v1197
        %1209 = vmatpush.bf16.msra.mxu0 %v1196
        %1210 = vmatpush.bf16.msra.mxu0 %v1195
        %1211 = vmatmul.bf16.gmra.mxu0 %v1201
        %v1212 = vpop.f32.mrf.mxu0
        %v1213 = vadd.f32 %v1154, %v1212
        %v1214 = vpop.f32.mrf.mxu0
        %v1215 = vadd.f32 %v1156, %v1214
        %1216 = vmatmul.bf16.gmra.mxu0 %v1132
        %v1217 = vpop.f32.mrf.mxu0
        %v1218 = vadd.f32 %v1159, %v1217
        %v1219 = vpop.f32.mrf.mxu0
        %v1220 = vadd.f32 %v1161, %v1219
        %1221 = vmatmul.bf16.gmra.mxu0 %v1134
        %v1222 = vpop.f32.mrf.mxu0
        %v1223 = vadd.f32 %v1164, %v1222
        %v1224 = vpop.f32.mrf.mxu0
        %v1225 = vadd.f32 %v1166, %v1224
        %1226 = vmatmul.bf16.gmra.mxu0 %v1136
        %v1227 = vpop.f32.mrf.mxu0
        %v1228 = vadd.f32 %v1169, %v1227
        %v1229 = vpop.f32.mrf.mxu0
        %v1230 = vadd.f32 %v1171, %v1229
        %1231 = vmatmul.bf16.gmra.mxu0 %v1138
        %v1232 = vpop.f32.mrf.mxu0
        %v1233 = vadd.f32 %v1174, %v1232
        %v1234 = vpop.f32.mrf.mxu0
        %v1235 = vadd.f32 %v1176, %v1234
        %1236 = vmatmul.bf16.gmra.mxu0 %v1140
        %v1237 = vpop.f32.mrf.mxu0
        %v1238 = vadd.f32 %v1179, %v1237
        %v1239 = vpop.f32.mrf.mxu0
        %v1240 = vadd.f32 %v1181, %v1239
        %1241 = vdwg.mxu0
        %v1243 = vshrl.u32 %v912, 16
        %v1245 = vshll.u32 %v912, 16
        %v1247 = vrot.slane %v1245, 1
        %v1248 = vor.u32 %v1243, %v1247
        %v1250 = vshll.u32 %v920, 16
        %v1252 = vrot.slane %v1250, 1
        %v1253 = vsel %vm921, %v1248, %v1252
        %1254 = vrot.lane.b32.xlu0 %v1253, 16
        %v1255 = vpop.permute.xlu0 %1254
        %v1258 = vrot.slane %v912, 1
        %v1259 = vrot.slane %v920, 1
        %v1260 = vsel %vm1018, %v1258, %v1259
        %1261 = vrot.lane.b32.xlu0 %v1260, 32
        %v1262 = vpop.permute.xlu0 %1261
        %v1264 = vsel %vm1049, %v912, %v1255
        %v1266 = vsel %vm1062, %v1264, %v1262
        %s1267 = scalar_lea.vmem [#allocation2], 48
        %v1268 = vld [vmem:[%s1267] sm:$0xf]
        %v1269 = vld [vmem:[%s1267 + $0x4] sm:$0xf]
        %v1270 = vld [vmem:[%s1267 + $0x8] sm:$0xf]
        %v1271 = vld [vmem:[%s1267 + $0xc] sm:$0xf]
        %v1272 = vld [vmem:[%s1267 + $0x10] sm:$0xf]
        %v1273 = vld [vmem:[%s1267 + $0x14] sm:$0xf]
        %v1280 = vunpack.c.l.b16 %v1268
        %v1281 = vunpack.c.l.b16 %v1269
        %v1282 = vunpack.c.l.b16 %v1270
        %v1283 = vunpack.c.l.b16 %v1271
        %v1284 = vunpack.c.l.b16 %v1272
        %v1285 = vunpack.c.l.b16 %v1273
        %v1286 = vpack.c.b16 %v1281, %v1280
        %v1287 = vpack.c.b16 %v1283, %v1282
        %v1288 = vpack.c.b16 %v1285, %v1284
        %v1292 = vsel %vm1131, %v1266, 0
        %1294 = vmatpush.bf16.msra.mxu0 0
        %1295 = vmatpush.bf16.msra.mxu0 0
        %1296 = vmatpush.bf16.msra.mxu0 0
        %1297 = vmatpush.bf16.msra.mxu0 0
        %1298 = vmatpush.bf16.msra.mxu0 0
        %1299 = vmatpush.bf16.msra.mxu0 %v1288
        %1300 = vmatpush.bf16.msra.mxu0 %v1287
        %1301 = vmatpush.bf16.msra.mxu0 %v1286
        %1302 = vmatmul.bf16.gmra.mxu0 %v1134
        %v1303 = vpop.f32.mrf.mxu0
        %v1304 = vadd.f32 0.0, %v1303
        %v1305 = vpop.f32.mrf.mxu0
        %v1306 = vadd.f32 0.0, %v1305
        %1307 = vmatmul.bf16.gmra.mxu0 %v1136
        %v1308 = vpop.f32.mrf.mxu0
        %v1309 = vadd.f32 0.0, %v1308
        %v1310 = vpop.f32.mrf.mxu0
        %v1311 = vadd.f32 0.0, %v1310
        %1312 = vmatmul.bf16.gmra.mxu0 %v1138
        %v1313 = vpop.f32.mrf.mxu0
        %v1314 = vadd.f32 0.0, %v1313
        %v1315 = vpop.f32.mrf.mxu0
        %v1316 = vadd.f32 0.0, %v1315
        %1317 = vmatmul.bf16.gmra.mxu0 %v1140
        %v1318 = vpop.f32.mrf.mxu0
        %v1319 = vadd.f32 0.0, %v1318
        %v1320 = vpop.f32.mrf.mxu0
        %v1321 = vadd.f32 0.0, %v1320
        %1322 = vmatmul.bf16.gmra.mxu0 %v1142
        %v1323 = vpop.f32.mrf.mxu0
        %v1324 = vadd.f32 0.0, %v1323
        %v1325 = vpop.f32.mrf.mxu0
        %v1326 = vadd.f32 0.0, %v1325
        %1327 = vmatmul.bf16.gmra.mxu0 %v1292
        %v1328 = vpop.f32.mrf.mxu0
        %v1329 = vadd.f32 0.0, %v1328
        %v1330 = vpop.f32.mrf.mxu0
        %v1331 = vadd.f32 0.0, %v1330
        %1332 = vdwg.mxu0
        %v1333 = vadd.f32 %v1213, %v1304
        %v1334 = vadd.f32 %v1215, %v1306
        %v1335 = vadd.f32 %v1218, %v1309
        %v1336 = vadd.f32 %v1220, %v1311
        %v1337 = vadd.f32 %v1223, %v1314
        %v1338 = vadd.f32 %v1225, %v1316
        %v1339 = vadd.f32 %v1228, %v1319
        %v1340 = vadd.f32 %v1230, %v1321
        %v1341 = vadd.f32 %v1233, %v1324
        %v1342 = vadd.f32 %v1235, %v1326
        %v1343 = vadd.f32 %v1238, %v1329
        %v1344 = vadd.f32 %v1240, %v1331
        %v1345 = vld [vmem:[#allocation4] sm:$0x1]
        %v1347 = vperm.slane %v1345, 0
        %v1349 = vadd.f32 %v1333, %v1347
        %v1350 = vadd.f32 %v1334, %v1347
        %v1351 = vadd.f32 %v1335, %v1347
        %v1352 = vadd.f32 %v1336, %v1347
        %v1353 = vadd.f32 %v1337, %v1347
        %v1354 = vadd.f32 %v1338, %v1347
        %v1355 = vadd.f32 %v1339, %v1347
        %v1356 = vadd.f32 %v1340, %v1347
        %v1357 = vadd.f32 %v1341, %v1347
        %v1358 = vadd.f32 %v1342, %v1347
        %v1359 = vadd.f32 %v1343, %v1347
        %v1360 = vadd.f32 %v1344, %v1347
        %v1361 = vmax.f32 %v1349, 0.0
        %v1362 = vmax.f32 %v1350, 0.0
        %v1363 = vmax.f32 %v1351, 0.0
        %v1364 = vmax.f32 %v1352, 0.0
        %v1365 = vmax.f32 %v1353, 0.0
        %v1366 = vmax.f32 %v1354, 0.0
        %v1367 = vmax.f32 %v1355, 0.0
        %v1368 = vmax.f32 %v1356, 0.0
        %v1369 = vmax.f32 %v1357, 0.0
        %v1370 = vmax.f32 %v1358, 0.0
        %v1371 = vmax.f32 %v1359, 0.0
        %v1372 = vmax.f32 %v1360, 0.0
        %v1373 = vstv %s755
        %v1374 = vadd.s32 %v1373, 1
        %v1375 = vadd.s32 %v1373, 2
        %v1376 = vadd.s32 %v1373, 3
        %v1377 = vadd.s32 %v1373, 4
        %v1378 = vadd.s32 %v1373, 5
        %vm1379 = vcmp.ge.s32.totalorder %v1373, 0
        %vm1380 = vcmp.ge.s32.totalorder %v1374, 0
        %vm1381 = vcmp.ge.s32.totalorder %v1375, 0
        %vm1382 = vcmp.ge.s32.totalorder %v1376, 0
        %vm1383 = vcmp.ge.s32.totalorder %v1377, 0
        %vm1384 = vcmp.ge.s32.totalorder %v1378, 0
        %vm1385 = vcmp.lt.s32.totalorder %v1373, 16
        %vm1386 = vcmp.lt.s32.totalorder %v1374, 16
        %vm1387 = vcmp.lt.s32.totalorder %v1375, 16
        %vm1388 = vcmp.lt.s32.totalorder %v1376, 16
        %vm1389 = vcmp.lt.s32.totalorder %v1377, 16
        %vm1390 = vcmp.lt.s32.totalorder %v1378, 16
        %vm1391 = vmand %vm1379, %vm1385
        %vm1392 = vmand %vm1380, %vm1386
        %vm1393 = vmand %vm1381, %vm1387
        %vm1394 = vmand %vm1382, %vm1388
        %vm1395 = vmand %vm1383, %vm1389
        %vm1396 = vmand %vm1384, %vm1390
        %v1397 = vsel %vm1391, 1, 0
        %v1398 = vsel %vm1392, 1, 0
        %v1399 = vsel %vm1393, 1, 0
        %v1400 = vsel %vm1394, 1, 0
        %v1401 = vsel %vm1395, 1, 0
        %v1402 = vsel %vm1396, 1, 0
        %vm1403 = vcmp.eq.s32.totalorder %v1397, 1
        %vm1404 = vcmp.eq.s32.totalorder %v1398, 1
        %vm1405 = vcmp.eq.s32.totalorder %v1399, 1
        %vm1406 = vcmp.eq.s32.totalorder %v1400, 1
        %vm1407 = vcmp.eq.s32.totalorder %v1401, 1
        %vm1408 = vcmp.eq.s32.totalorder %v1402, 1
        %v1409 = vsel %vm1403, %v1361, 0.0
        %v1410 = vsel %vm1403, %v1362, 0.0
        %v1411 = vsel %vm1404, %v1363, 0.0
        %v1412 = vsel %vm1404, %v1364, 0.0
        %v1413 = vsel %vm1405, %v1365, 0.0
        %v1414 = vsel %vm1405, %v1366, 0.0
        %v1415 = vsel %vm1406, %v1367, 0.0
        %v1416 = vsel %vm1406, %v1368, 0.0
        %v1417 = vsel %vm1407, %v1369, 0.0
        %v1418 = vsel %vm1407, %v1370, 0.0
        %v1419 = vsel %vm1408, %v1371, 0.0
        %v1420 = vsel %vm1408, %v1372, 0.0
        %v1421 = vpack.c.bf16 %v1409, %v1409
        %v1422 = vpack.c.bf16 %v1410, %v1410
        %v1423 = vpack.c.bf16 %v1411, %v1411
        %v1424 = vpack.c.bf16 %v1412, %v1412
        %v1425 = vpack.c.bf16 %v1413, %v1413
        %v1426 = vpack.c.bf16 %v1414, %v1414
        %v1427 = vpack.c.bf16 %v1415, %v1415
        %v1428 = vpack.c.bf16 %v1416, %v1416
        %v1429 = vpack.c.bf16 %v1417, %v1417
        %v1430 = vpack.c.bf16 %v1418, %v1418
        %v1431 = vpack.c.bf16 %v1419, %v1419
        %v1432 = vpack.c.bf16 %v1420, %v1420
        %v1445 = vunpack.c.l.b16 %v1421
        %v1446 = vunpack.c.l.b16 %v1422
        %v1447 = vunpack.c.l.b16 %v1423
        %v1448 = vunpack.c.l.b16 %v1424
        %v1449 = vunpack.c.l.b16 %v1425
        %v1450 = vunpack.c.l.b16 %v1426
        %v1451 = vunpack.c.l.b16 %v1427
        %v1452 = vunpack.c.l.b16 %v1428
        %v1453 = vunpack.c.l.b16 %v1429
        %v1454 = vunpack.c.l.b16 %v1430
        %v1455 = vunpack.c.l.b16 %v1431
        %v1456 = vunpack.c.l.b16 %v1432
        %v1457 = vpack.c.b16 %v1446, %v1445
        %v1458 = vpack.c.b16 %v1448, %v1447
        %v1459 = vpack.c.b16 %v1450, %v1449
        %v1460 = vpack.c.b16 %v1452, %v1451
        %v1461 = vpack.c.b16 %v1454, %v1453
        %v1462 = vpack.c.b16 %v1456, %v1455
        %v1464 = vshrl.u32 %v1457, 16
        %v1466 = vrot.slane %v1464, 7
        %v1467 = vshll.u32 %v1457, 16
        %v1469 = vor.u32 %v1466, %v1467
        %v1471 = vshrl.u32 %v1458, 16
        %v1473 = vrot.slane %v1471, 7
        %v1474 = vshll.u32 %v1458, 16
        %v1476 = vor.u32 %v1473, %v1474
        %v1478 = vshrl.u32 %v1459, 16
        %v1480 = vrot.slane %v1478, 7
        %v1481 = vshll.u32 %v1459, 16
        %v1483 = vor.u32 %v1480, %v1481
        %v1485 = vshrl.u32 %v1460, 16
        %v1487 = vrot.slane %v1485, 7
        %v1488 = vshll.u32 %v1460, 16
        %v1490 = vor.u32 %v1487, %v1488
        %v1492 = vshrl.u32 %v1461, 16
        %v1494 = vrot.slane %v1492, 7
        %v1495 = vshll.u32 %v1461, 16
        %v1497 = vor.u32 %v1494, %v1495
        %v1499 = vshrl.u32 %v1462, 16
        %v1501 = vrot.slane %v1499, 7
        %v1502 = vshll.u32 %v1462, 16
        %v1504 = vor.u32 %v1501, %v1502
        %v1517 = vsel %vm904, 0, %v1469
        %v1518 = vsel %vm904, 0, %v1476
        %v1519 = vsel %vm904, 0, %v1483
        %v1520 = vsel %vm904, 0, %v1490
        %v1521 = vsel %vm904, 0, %v1497
        %v1522 = vsel %vm904, 0, %v1504
        %v1523 = vsel %vm904, %v1466, 0
        %v1524 = vsel %vm904, %v1473, 0
        %v1525 = vsel %vm904, %v1480, 0
        %v1526 = vsel %vm904, %v1487, 0
        %v1527 = vsel %vm904, %v1494, 0
        %v1528 = vsel %vm904, %v1501, 0
        %v1530 = vshrl.u32 %v1517, 16
        %v1532 = vshll.u32 %v1517, 16
        %v1534 = vrot.slane %v1532, 1
        %v1535 = vor.u32 %v1530, %v1534
        %v1537 = vshll.u32 %v1523, 16
        %v1539 = vrot.slane %v1537, 1
        %v1540 = vsel %vm921, %v1535, %v1539
        %v1542 = vshrl.u32 %v1518, 16
        %v1544 = vshll.u32 %v1518, 16
        %v1546 = vrot.slane %v1544, 1
        %v1547 = vor.u32 %v1542, %v1546
        %v1549 = vshll.u32 %v1524, 16
        %v1551 = vrot.slane %v1549, 1
        %v1552 = vsel %vm921, %v1547, %v1551
        %v1554 = vshrl.u32 %v1519, 16
        %v1556 = vshll.u32 %v1519, 16
        %v1558 = vrot.slane %v1556, 1
        %v1559 = vor.u32 %v1554, %v1558
        %v1561 = vshll.u32 %v1525, 16
        %v1563 = vrot.slane %v1561, 1
        %v1564 = vsel %vm921, %v1559, %v1563
        %v1566 = vshrl.u32 %v1520, 16
        %v1568 = vshll.u32 %v1520, 16
        %v1570 = vrot.slane %v1568, 1
        %v1571 = vor.u32 %v1566, %v1570
        %v1573 = vshll.u32 %v1526, 16
        %v1575 = vrot.slane %v1573, 1
        %v1576 = vsel %vm921, %v1571, %v1575
        %1577 = vrot.lane.b32.xlu0 %v1540, 16
        %v1578 = vpop.permute.xlu0 %1577
        %1579 = vrot.lane.b32.xlu0 %v1552, 16
        %v1580 = vpop.permute.xlu0 %1579
        %1581 = vrot.lane.b32.xlu0 %v1564, 16
        %v1582 = vpop.permute.xlu0 %1581
        %1583 = vrot.lane.b32.xlu0 %v1576, 16
        %v1584 = vpop.permute.xlu0 %1583
        %v1593 = vrot.slane %v1517, 1
        %v1594 = vrot.slane %v1523, 1
        %v1595 = vsel %vm1018, %v1593, %v1594
        %v1596 = vrot.slane %v1518, 1
        %v1597 = vrot.slane %v1524, 1
        %v1598 = vsel %vm1018, %v1596, %v1597
        %v1599 = vrot.slane %v1519, 1
        %v1600 = vrot.slane %v1525, 1
        %v1601 = vsel %vm1018, %v1599, %v1600
        %v1602 = vrot.slane %v1520, 1
        %v1603 = vrot.slane %v1526, 1
        %v1604 = vsel %vm1018, %v1602, %v1603
        %1605 = vrot.lane.b32.xlu0 %v1595, 32
        %v1606 = vpop.permute.xlu0 %1605
        %1607 = vrot.lane.b32.xlu0 %v1598, 32
        %v1608 = vpop.permute.xlu0 %1607
        %1609 = vrot.lane.b32.xlu0 %v1601, 32
        %v1610 = vpop.permute.xlu0 %1609
        %1611 = vrot.lane.b32.xlu0 %v1604, 32
        %v1612 = vpop.permute.xlu0 %1611
        %v1614 = vsel %vm1049, %v1517, %v1578
        %v1616 = vsel %vm1049, %v1518, %v1580
        %v1618 = vsel %vm1049, %v1519, %v1582
        %v1620 = vsel %vm1049, %v1520, %v1584
        %v1622 = vsel %vm1062, %v1614, %v1606
        %v1624 = vsel %vm1062, %v1616, %v1608
        %v1626 = vsel %vm1062, %v1618, %v1610
        %v1628 = vsel %vm1062, %v1620, %v1612
        %v1629 = vld [vmem:[#allocation6] sm:$0xf]
        %v1630 = vld [vmem:[#allocation6 + $0x4] sm:$0xf]
        %v1631 = vld [vmem:[#allocation6 + $0x8] sm:$0xf]
        %v1632 = vld [vmem:[#allocation6 + $0xc] sm:$0xf]
        %v1633 = vld [vmem:[#allocation6 + $0x10] sm:$0xf]
        %v1634 = vld [vmem:[#allocation6 + $0x14] sm:$0xf]
        %v1636 = vshrl.u32 %v1521, 16
        %v1638 = vshll.u32 %v1521, 16
        %v1640 = vrot.slane %v1638, 1
        %v1641 = vor.u32 %v1636, %v1640
        %v1643 = vshll.u32 %v1527, 16
        %v1645 = vrot.slane %v1643, 1
        %v1646 = vsel %vm921, %v1641, %v1645
        %1647 = vrot.lane.b32.xlu0 %v1646, 16
        %v1648 = vpop.permute.xlu0 %1647
        %v1651 = vrot.slane %v1521, 1
        %v1652 = vrot.slane %v1527, 1
        %v1653 = vsel %vm1018, %v1651, %v1652
        %1654 = vrot.lane.b32.xlu0 %v1653, 32
        %v1655 = vpop.permute.xlu0 %1654
        %v1657 = vsel %vm1049, %v1521, %v1648
        %v1659 = vsel %vm1062, %v1657, %v1655
        %s1660 = scalar_lea.vmem [#allocation6], 24
        %v1661 = vld [vmem:[%s1660] sm:$0xf]
        %v1662 = vld [vmem:[%s1660 + $0x4] sm:$0xf]
        %v1663 = vld [vmem:[%s1660 + $0x8] sm:$0xf]
        %v1664 = vld [vmem:[%s1660 + $0xc] sm:$0xf]
        %v1665 = vld [vmem:[%s1660 + $0x10] sm:$0xf]
        %v1666 = vld [vmem:[%s1660 + $0x14] sm:$0xf]
        %v1673 = vunpack.c.l.b16 %v1661
        %v1674 = vunpack.c.l.b16 %v1662
        %v1675 = vunpack.c.l.b16 %v1663
        %v1676 = vunpack.c.l.b16 %v1664
        %v1677 = vunpack.c.l.b16 %v1665
        %v1678 = vunpack.c.l.b16 %v1666
        %v1679 = vpack.c.b16 %v1674, %v1673
        %v1680 = vpack.c.b16 %v1676, %v1675
        %v1681 = vpack.c.b16 %v1678, %v1677
        %v1685 = vsel %vm1131, %v1624, 0
        %v1687 = vsel %vm1131, %v1626, 0
        %v1689 = vsel %vm1131, %v1628, 0
        %v1691 = vsel %vm1131, %v1659, 0
        %1693 = vmatpush.bf16.msra.mxu0 0
        %1694 = vmatpush.bf16.msra.mxu0 0
        %1695 = vmatpush.bf16.msra.mxu0 0
        %1696 = vmatpush.bf16.msra.mxu0 0
        %1697 = vmatpush.bf16.msra.mxu0 0
        %1698 = vmatpush.bf16.msra.mxu0 %v1681
        %1699 = vmatpush.bf16.msra.mxu0 %v1680
        %1700 = vmatpush.bf16.msra.mxu0 %v1679
        %1701 = vmatmul.bf16.gmra.mxu0 %v1685
        %v1702 = vpop.f32.mrf.mxu0
        %v1703 = vadd.f32 0.0, %v1702
        %v1704 = vpop.f32.mrf.mxu0
        %v1705 = vadd.f32 0.0, %v1704
        %1706 = vmatmul.bf16.gmra.mxu0 %v1687
        %v1707 = vpop.f32.mrf.mxu0
        %v1708 = vadd.f32 0.0, %v1707
        %v1709 = vpop.f32.mrf.mxu0
        %v1710 = vadd.f32 0.0, %v1709
        %1711 = vmatmul.bf16.gmra.mxu0 %v1689
        %v1712 = vpop.f32.mrf.mxu0
        %v1713 = vadd.f32 0.0, %v1712
        %v1714 = vpop.f32.mrf.mxu0
        %v1715 = vadd.f32 0.0, %v1714
        %1716 = vmatmul.bf16.gmra.mxu0 %v1691
        %v1717 = vpop.f32.mrf.mxu0
        %v1718 = vadd.f32 0.0, %v1717
        %v1719 = vpop.f32.mrf.mxu0
        %v1720 = vadd.f32 0.0, %v1719
        %1721 = vdwg.mxu0
        %v1728 = vunpack.c.l.b16 %v1629
        %v1729 = vunpack.c.l.b16 %v1630
        %v1730 = vunpack.c.l.b16 %v1631
        %v1731 = vunpack.c.l.b16 %v1632
        %v1732 = vunpack.c.l.b16 %v1633
        %v1733 = vunpack.c.l.b16 %v1634
        %v1734 = vpack.c.b16 %v1729, %v1728
        %v1735 = vpack.c.b16 %v1731, %v1730
        %v1736 = vpack.c.b16 %v1733, %v1732
        %v1740 = vsel %vm1131, %v1622, 0
        %1742 = vmatpush.bf16.msra.mxu0 0
        %1743 = vmatpush.bf16.msra.mxu0 0
        %1744 = vmatpush.bf16.msra.mxu0 0
        %1745 = vmatpush.bf16.msra.mxu0 0
        %1746 = vmatpush.bf16.msra.mxu0 0
        %1747 = vmatpush.bf16.msra.mxu0 %v1736
        %1748 = vmatpush.bf16.msra.mxu0 %v1735
        %1749 = vmatpush.bf16.msra.mxu0 %v1734
        %1750 = vmatmul.bf16.gmra.mxu0 %v1740
        %v1751 = vpop.f32.mrf.mxu0
        %v1752 = vadd.f32 %v1703, %v1751
        %v1753 = vpop.f32.mrf.mxu0
        %v1754 = vadd.f32 %v1705, %v1753
        %1755 = vmatmul.bf16.gmra.mxu0 %v1685
        %v1756 = vpop.f32.mrf.mxu0
        %v1757 = vadd.f32 %v1708, %v1756
        %v1758 = vpop.f32.mrf.mxu0
        %v1759 = vadd.f32 %v1710, %v1758
        %1760 = vmatmul.bf16.gmra.mxu0 %v1687
        %v1761 = vpop.f32.mrf.mxu0
        %v1762 = vadd.f32 %v1713, %v1761
        %v1763 = vpop.f32.mrf.mxu0
        %v1764 = vadd.f32 %v1715, %v1763
        %1765 = vmatmul.bf16.gmra.mxu0 %v1689
        %v1766 = vpop.f32.mrf.mxu0
        %v1767 = vadd.f32 %v1718, %v1766
        %v1768 = vpop.f32.mrf.mxu0
        %v1769 = vadd.f32 %v1720, %v1768
        %1770 = vdwg.mxu0
        %v1772 = vshrl.u32 %v1522, 16
        %v1774 = vshll.u32 %v1522, 16
        %v1776 = vrot.slane %v1774, 1
        %v1777 = vor.u32 %v1772, %v1776
        %v1779 = vshll.u32 %v1528, 16
        %v1781 = vrot.slane %v1779, 1
        %v1782 = vsel %vm921, %v1777, %v1781
        %1783 = vrot.lane.b32.xlu0 %v1782, 16
        %v1784 = vpop.permute.xlu0 %1783
        %v1787 = vrot.slane %v1522, 1
        %v1788 = vrot.slane %v1528, 1
        %v1789 = vsel %vm1018, %v1787, %v1788
        %1790 = vrot.lane.b32.xlu0 %v1789, 32
        %v1791 = vpop.permute.xlu0 %1790
        %v1793 = vsel %vm1049, %v1522, %v1784
        %v1795 = vsel %vm1062, %v1793, %v1791
        %s1796 = scalar_lea.vmem [#allocation6], 48
        %v1797 = vld [vmem:[%s1796] sm:$0xf]
        %v1798 = vld [vmem:[%s1796 + $0x4] sm:$0xf]
        %v1799 = vld [vmem:[%s1796 + $0x8] sm:$0xf]
        %v1800 = vld [vmem:[%s1796 + $0xc] sm:$0xf]
        %v1801 = vld [vmem:[%s1796 + $0x10] sm:$0xf]
        %v1802 = vld [vmem:[%s1796 + $0x14] sm:$0xf]
        %v1809 = vunpack.c.l.b16 %v1797
        %v1810 = vunpack.c.l.b16 %v1798
        %v1811 = vunpack.c.l.b16 %v1799
        %v1812 = vunpack.c.l.b16 %v1800
        %v1813 = vunpack.c.l.b16 %v1801
        %v1814 = vunpack.c.l.b16 %v1802
        %v1815 = vpack.c.b16 %v1810, %v1809
        %v1816 = vpack.c.b16 %v1812, %v1811
        %v1817 = vpack.c.b16 %v1814, %v1813
        %v1821 = vsel %vm1131, %v1795, 0
        %1823 = vmatpush.bf16.msra.mxu0 0
        %1824 = vmatpush.bf16.msra.mxu0 0
        %1825 = vmatpush.bf16.msra.mxu0 0
        %1826 = vmatpush.bf16.msra.mxu0 0
        %1827 = vmatpush.bf16.msra.mxu0 0
        %1828 = vmatpush.bf16.msra.mxu0 %v1817
        %1829 = vmatpush.bf16.msra.mxu0 %v1816
        %1830 = vmatpush.bf16.msra.mxu0 %v1815
        %1831 = vmatmul.bf16.gmra.mxu0 %v1687
        %v1832 = vpop.f32.mrf.mxu0
        %v1833 = vadd.f32 0.0, %v1832
        %v1834 = vpop.f32.mrf.mxu0
        %v1835 = vadd.f32 0.0, %v1834
        %1836 = vmatmul.bf16.gmra.mxu0 %v1689
        %v1837 = vpop.f32.mrf.mxu0
        %v1838 = vadd.f32 0.0, %v1837
        %v1839 = vpop.f32.mrf.mxu0
        %v1840 = vadd.f32 0.0, %v1839
        %1841 = vmatmul.bf16.gmra.mxu0 %v1691
        %v1842 = vpop.f32.mrf.mxu0
        %v1843 = vadd.f32 0.0, %v1842
        %v1844 = vpop.f32.mrf.mxu0
        %v1845 = vadd.f32 0.0, %v1844
        %1846 = vmatmul.bf16.gmra.mxu0 %v1821
        %v1847 = vpop.f32.mrf.mxu0
        %v1848 = vadd.f32 0.0, %v1847
        %v1849 = vpop.f32.mrf.mxu0
        %v1850 = vadd.f32 0.0, %v1849
        %1851 = vdwg.mxu0
        %v1852 = vadd.f32 %v1752, %v1833
        %v1853 = vadd.f32 %v1754, %v1835
        %v1854 = vadd.f32 %v1757, %v1838
        %v1855 = vadd.f32 %v1759, %v1840
        %v1856 = vadd.f32 %v1762, %v1843
        %v1857 = vadd.f32 %v1764, %v1845
        %v1858 = vadd.f32 %v1767, %v1848
        %v1859 = vadd.f32 %v1769, %v1850
        %v1860 = vld [vmem:[#allocation7] sm:$0x1]
        %v1862 = vperm.slane %v1860, 0
        %v1864 = vadd.f32 %v1852, %v1862
        %v1865 = vadd.f32 %v1853, %v1862
        %v1866 = vadd.f32 %v1854, %v1862
        %v1867 = vadd.f32 %v1855, %v1862
        %v1868 = vadd.f32 %v1856, %v1862
        %v1869 = vadd.f32 %v1857, %v1862
        %v1870 = vadd.f32 %v1858, %v1862
        %v1871 = vadd.f32 %v1859, %v1862
        %v1872 = vunpack.c.l.bf16 %v782
        %v1873 = vunpack.c.l.bf16 %v783
        %v1874 = vunpack.c.l.bf16 %v784
        %v1875 = vunpack.c.l.bf16 %v785
        %v1876 = vunpack.c.l.bf16 %v786
        %v1877 = vunpack.c.l.bf16 %v787
        %v1878 = vunpack.c.l.bf16 %v788
        %v1879 = vunpack.c.l.bf16 %v789
        %v1880 = vadd.f32 %v1864, %v1872
        %v1881 = vadd.f32 %v1865, %v1873
        %v1882 = vadd.f32 %v1866, %v1874
        %v1883 = vadd.f32 %v1867, %v1875
        %v1884 = vadd.f32 %v1868, %v1876
        %v1885 = vadd.f32 %v1869, %v1877
        %v1886 = vadd.f32 %v1870, %v1878
        %v1887 = vadd.f32 %v1871, %v1879
        %v1888 = vpack.c.bf16 %v1880, %v1880
        %v1889 = vpack.c.bf16 %v1881, %v1881
        %v1890 = vpack.c.bf16 %v1882, %v1882
        %v1891 = vpack.c.bf16 %v1883, %v1883
        %v1892 = vpack.c.bf16 %v1884, %v1884
        %v1893 = vpack.c.bf16 %v1885, %v1885
        %v1894 = vpack.c.bf16 %v1886, %v1886
        %v1895 = vpack.c.bf16 %v1887, %v1887
        %vm1896 = vcmask 125952
        %1897 = vst.msk [vmem:[%s742] sm:$0xf] %vm1896, %v1888
        %1898 = vst.msk [vmem:[%s742 + $0x4] sm:$0xf] %vm1896, %v1889
        %1899 = vst.msk [vmem:[%s742 + $0x8] sm:$0xf] %vm1896, %v1890
        %1900 = vst.msk [vmem:[%s742 + $0xc] sm:$0xf] %vm1896, %v1891
        %1901 = vst.msk [vmem:[%s742 + $0x10] sm:$0xf] %vm1896, %v1892
        %1902 = vst.msk [vmem:[%s742 + $0x14] sm:$0xf] %vm1896, %v1893
        %1903 = vst.msk [vmem:[%s742 + $0x18] sm:$0xf] %vm1896, %v1894
        %1904 = vst.msk [vmem:[%s742 + $0x1c] sm:$0xf] %vm1896, %v1895
        %s1905 = smul.u32 4, %s28
        %p1906 = scmp.lt.s32.totalorder %s27, 1
        %s1907 = scalar_select %p1906, %s27, 1
        %p1908 = scmp.lt.s32.totalorder %s1905, 15
        %s1909 = scalar_select %p1908, %s1905, 15
        %s1910 = smul.addr %s1909, 2
        %s1911 = smul.addr %s1907, 32
        %s1912 = sadd.s32 %s1910, %s1911
        %s1913 = smul.addr %s1912, 4
        %s1914 = scalar_lea.vmem %s9, %s1913
        // Predicated region
        $region73: #{forward_pallas.6} parent=55 // pred_check
          %p1915 = pneg %p327
        $region74: #{forward_pallas.6} parent=55 // pred_check_branch
          %1917 = sbr.rel (%p1915) target = $region76
        $region75: #{forward_pallas.6} parent=55 // pred_region
          %s1918 = smul.u32 4, %s28
        $region76: #{forward_pallas.6} parent=55 // pred_fallthru
          _
      $region56: #{forward_pallas.6} parent=5 // pred_fallthru
        _
      %p1919 = scmp.le.s32.totalorder 2, %s18
      // Predicated region
      $region77: #{forward_pallas.6} parent=5 // pred_check
        %p1920 = pneg %p1919
      $region78: #{forward_pallas.6} parent=5 // pred_check_branch
        %1922 = sbr.rel (%p1920) target = $region80
      $region79: #{forward_pallas.6} parent=5 // pred_region
        %s1923 = ssub.s32 %s18, 2
        // Predicated region
        $region81: #{forward_pallas.6} parent=79 // pred_check
          %p1924 = pneg %p333
        $region82: #{forward_pallas.6} parent=79 // pred_check_branch
          %1926 = sbr.rel (%p1924) target = $region84
        $region83: #{forward_pallas.6} parent=79 // pred_region
          %s1927 = smul.u32 4, %s30
          %p1928 = scmp.lt.s32.totalorder %s29, 1
          %s1929 = scalar_select %p1928, %s29, 1
          %p1930 = scmp.lt.s32.totalorder %s1927, 15
          %s1931 = scalar_select %p1930, %s1927, 15
          %s1932 = smul.addr %s1931, 2
          %s1933 = smul.addr %s1929, 32
          %s1934 = sadd.s32 %s1932, %s1933
          %s1935 = smul.addr %s1934, 4
          %s1936 = scalar_lea.vmem %s9, %s1935
        $region84: #{forward_pallas.6} parent=79 // pred_fallthru
          _
      $region80: #{forward_pallas.6} parent=5 // pred_fallthru
        _
    $region6: #{forward_pallas.6} parent=1 // loop_footer
      %s22 = sadd.s32 1, %s18
    $region7: #{forward_pallas.6} parent=1 // loop_footer_branch
      %17 = sbr.rel target = $region3
    $region8: #{forward_pallas.6} parent=1 // loop_exit
      _
    %1937 = vsyncpa [#allocation3], 1
    %s1938 = scalar_lea.sflag [#allocation3], 1
    %1939 = vsyncpa %s1938, 1
    %1940 = vsyncpa [#allocation5], 1
    %1941 = vsyncpa [#allocation8], 1

// kernel: forward_pallas.9
$region0: #{forward_pallas.9}
  #allocation0 [shape = 'u32[]', space=smem, size = 0x4, offset = 0x4, fixed_abs, tag = 'smem constant byte address 0x4 - core index']
  #allocation1 [shape = 'u32[72,128]{1,0:T(1,128)}', space=vmem, size = 0x9000, scoped, tag = 'internal scratch']
  %s0 = inlined_call_operand.vmem [shape: bf16[2,32,32,16], index: 0, kind: input, shape index: {}, may-alias: {0,1,2}]
  %s1 = inlined_call_operand.vmem [shape: bf16[2,32,32,16], index: 1, kind: input, shape index: {}, may-alias: {0,1,2}]
  %s2 = inlined_call_operand.vmem [shape: bf16[2,32,32,16], index: 2, kind: input, shape index: {}, may-alias: {0,1,2}]
  %s3 = inlined_call_operand.vmem [shape: bf16[3,48,64], index: 3, kind: input, shape index: {}]
  %s4 = inlined_call_operand.vmem [shape: f32[1,64], index: 4, kind: input, shape index: {}]
  %s5 = inlined_call_operand.vmem [shape: bf16[2,32,32,64], index: 5, kind: output, shape index: {}]
  %s6 = sld [smem:[#allocation0]]
  $region53: #{forward_pallas.9} parent=0
    _
  %s8 = ssub.s32 1, %s6
  %s9 = scalar_select 0, %s8, %s6
  loop: start=0, step=1, limit=18
  $region2: #{forward_pallas.9} parent=0 // loop_pre_header
    _
  $region3: #{forward_pallas.9} parent=0 // loop_header
    %s11 = sphi 0, %s15
    %p12 = scmp.ge.s32.totalorder %s11, 18
    %s18 = sphi 0, %s30
    %s19 = sphi 0, %s26
    %s20 = sphi 0, %s18
    %s21 = sphi 0, %s19
    %s22 = sphi 0, %s20
    %s23 = sphi 0, %s21
    %s35 = sphi 0, %s37
    %s38 = sphi 0, %s35
    %s39 = sphi 0, %s38
    %s55 = sphi 0, %s39
    %s75 = sphi 0, %s77
    %s78 = sphi 0, %s75
    %s79 = sphi 0, %s78
    %s95 = sphi 0, %s79
    %s115 = sphi 0, %s117
    %s118 = sphi 0, %s115
    %s119 = sphi 0, %s118
    %s135 = sphi 0, %s119
    %s139 = sphi 0, %s139
    %s141 = sphi 0, %s139
    %s142 = sphi 0, %s141
    %s156 = sphi 0, %s142
    %s160 = sphi 0, %s160
    %s162 = sphi 0, %s160
    %s163 = sphi 0, %s162
    %s177 = sphi 0, %s163
    %s185 = sphi 0, %s187
    %s188 = sphi 0, %s185
    %s189 = sphi 0, %s188
    %s205 = sphi 0, %s189
  $region4: #{forward_pallas.9} parent=0 // loop_header_branch
    %14 = sbr.rel (%p12) target = $region8
  $region5: #{forward_pallas.9} parent=0 // loop_body
    %s16 = ssub.s32 %s11, 1
    %s17 = ssub.s32 %s11, 2
    %s24 = sadd.s32 1, %s19
    %p25 = scmp.ge.s32.totalorder %s24, 8
    %s26 = scalar_select %p25, 0, %s24
    %s27 = sadd.s32 1, %s18
    %s28 = scalar_select %p25, %s27, %s18
    %p29 = scmp.ge.s32.totalorder %s28, 2
    %s30 = scalar_select %p29, 0, %s28
    %s31 = ssub.s32 %s18, %s30
    %s32 = ssub.s32 %s19, %s26
    %s33 = sor.u32 %s31, %s32
    %p34 = scmp.eq.s32.totalorder %s33, 0
    %s36 = sadd.s32 %s35, 1
    %s37 = scalar_select %p34, %s35, %s36
    %p40 = pneg %p34
    %p41 = scmp.eq.s32.totalorder %s11, 15
    %p42 = por %p40, %p41
    %p43 = scmp.ne.s32.totalorder %s35, %s38
    %p44 = scmp.eq.s32.totalorder %s11, 0
    %p45 = por %p43, %p44
    %p46 = scmp.ne.s32.totalorder %s35, %s38
    %p47 = scmp.eq.s32.totalorder %s16, 15
    %p48 = por %p46, %p47
    %p49 = scmp.ne.s32.totalorder %s38, %s39
    %p50 = scmp.eq.s32.totalorder %s16, 0
    %p51 = por %p49, %p50
    %p52 = scmp.ne.s32.totalorder %s38, %s39
    %p53 = scmp.eq.s32.totalorder %s17, 15
    %p54 = por %p52, %p53
    %p56 = scmp.ne.s32.totalorder %s39, %s55
    %p57 = scmp.eq.s32.totalorder %s17, 0
    %p58 = por %p56, %p57
    %s59 = smul.u32 %s19, 4
    %s60 = sadd.s32 %s59, 4294967295
    %p61 = scmp.gt.s32.totalorder %s60, 0
    %s62 = scalar_select %p61, %s60, 0
    %p63 = scmp.lt.s32.totalorder %s62, 31
    %s64 = scalar_select %p63, %s62, 31
    %s65 = smul.u32 %s26, 4
    %s66 = sadd.s32 %s65, 4294967295
    %p67 = scmp.gt.s32.totalorder %s66, 0
    %s68 = scalar_select %p67, %s66, 0
    %p69 = scmp.lt.s32.totalorder %s68, 31
    %s70 = scalar_select %p69, %s68, 31
    %s71 = ssub.s32 %s18, %s30
    %s72 = ssub.s32 %s64, %s70
    %s73 = sor.u32 %s71, %s72
    %p74 = scmp.eq.s32.totalorder %s73, 0
    %s76 = sadd.s32 %s75, 1
    %s77 = scalar_select %p74, %s75, %s76
    %p80 = pneg %p74
    %p81 = scmp.eq.s32.totalorder %s11, 15
    %p82 = por %p80, %p81
    %p83 = scmp.ne.s32.totalorder %s75, %s78
    %p84 = scmp.eq.s32.totalorder %s11, 0
    %p85 = por %p83, %p84
    %p86 = scmp.ne.s32.totalorder %s75, %s78
    %p87 = scmp.eq.s32.totalorder %s16, 15
    %p88 = por %p86, %p87
    %p89 = scmp.ne.s32.totalorder %s78, %s79
    %p90 = scmp.eq.s32.totalorder %s16, 0
    %p91 = por %p89, %p90
    %p92 = scmp.ne.s32.totalorder %s78, %s79
    %p93 = scmp.eq.s32.totalorder %s17, 15
    %p94 = por %p92, %p93
    %p96 = scmp.ne.s32.totalorder %s79, %s95
    %p97 = scmp.eq.s32.totalorder %s17, 0
    %p98 = por %p96, %p97
    %s99 = smul.u32 %s19, 4
    %s100 = sadd.s32 %s99, 4
    %p101 = scmp.gt.s32.totalorder %s100, 0
    %s102 = scalar_select %p101, %s100, 0
    %p103 = scmp.lt.s32.totalorder %s102, 31
    %s104 = scalar_select %p103, %s102, 31
    %s105 = smul.u32 %s26, 4
    %s106 = sadd.s32 %s105, 4
    %p107 = scmp.gt.s32.totalorder %s106, 0
    %s108 = scalar_select %p107, %s106, 0
    %p109 = scmp.lt.s32.totalorder %s108, 31
    %s110 = scalar_select %p109, %s108, 31
    %s111 = ssub.s32 %s18, %s30
    %s112 = ssub.s32 %s104, %s110
    %s113 = sor.u32 %s111, %s112
    %p114 = scmp.eq.s32.totalorder %s113, 0
    %s116 = sadd.s32 %s115, 1
    %s117 = scalar_select %p114, %s115, %s116
    %p120 = pneg %p114
    %p121 = scmp.eq.s32.totalorder %s11, 15
    %p122 = por %p120, %p121
    %p123 = scmp.ne.s32.totalorder %s115, %s118
    %p124 = scmp.eq.s32.totalorder %s11, 0
    %p125 = por %p123, %p124
    %p126 = scmp.ne.s32.totalorder %s115, %s118
    %p127 = scmp.eq.s32.totalorder %s16, 15
    %p128 = por %p126, %p127
    %p129 = scmp.ne.s32.totalorder %s118, %s119
    %p130 = scmp.eq.s32.totalorder %s16, 0
    %p131 = por %p129, %p130
    %p132 = scmp.ne.s32.totalorder %s118, %s119
    %p133 = scmp.eq.s32.totalorder %s17, 15
    %p134 = por %p132, %p133
    %p136 = scmp.ne.s32.totalorder %s119, %s135
    %p137 = scmp.eq.s32.totalorder %s17, 0
    %p138 = por %p136, %p137
    %s140 = sadd.s32 %s139, 1
    %p143 = scmp.eq.s32.totalorder %s11, 15
    %p144 = scmp.ne.s32.totalorder %s139, %s141
    %p145 = scmp.eq.s32.totalorder %s11, 0
    %p146 = por %p144, %p145
    %p147 = scmp.ne.s32.totalorder %s139, %s141
    %p148 = scmp.eq.s32.totalorder %s16, 15
    %p149 = por %p147, %p148
    %p150 = scmp.ne.s32.totalorder %s141, %s142
    %p151 = scmp.eq.s32.totalorder %s16, 0
    %p152 = por %p150, %p151
    %p153 = scmp.ne.s32.totalorder %s141, %s142
    %p154 = scmp.eq.s32.totalorder %s17, 15
    %p155 = por %p153, %p154
    %p157 = scmp.ne.s32.totalorder %s142, %s156
    %p158 = scmp.eq.s32.totalorder %s17, 0
    %p159 = por %p157, %p158
    %s161 = sadd.s32 %s160, 1
    %p164 = scmp.eq.s32.totalorder %s11, 15
    %p165 = scmp.ne.s32.totalorder %s160, %s162
    %p166 = scmp.eq.s32.totalorder %s11, 0
    %p167 = por %p165, %p166
    %p168 = scmp.ne.s32.totalorder %s160, %s162
    %p169 = scmp.eq.s32.totalorder %s16, 15
    %p170 = por %p168, %p169
    %p171 = scmp.ne.s32.totalorder %s162, %s163
    %p172 = scmp.eq.s32.totalorder %s16, 0
    %p173 = por %p171, %p172
    %p174 = scmp.ne.s32.totalorder %s162, %s163
    %p175 = scmp.eq.s32.totalorder %s17, 15
    %p176 = por %p174, %p175
    %p178 = scmp.ne.s32.totalorder %s163, %s177
    %p179 = scmp.eq.s32.totalorder %s17, 0
    %p180 = por %p178, %p179
    %s181 = ssub.s32 %s18, %s30
    %s182 = ssub.s32 %s19, %s26
    %s183 = sor.u32 %s181, %s182
    %p184 = scmp.eq.s32.totalorder %s183, 0
    %s186 = sadd.s32 %s185, 1
    %s187 = scalar_select %p184, %s185, %s186
    %p190 = pneg %p184
    %p191 = scmp.eq.s32.totalorder %s11, 15
    %p192 = por %p190, %p191
    %p193 = scmp.ne.s32.totalorder %s185, %s188
    %p194 = scmp.eq.s32.totalorder %s11, 0
    %p195 = por %p193, %p194
    %p196 = scmp.ne.s32.totalorder %s185, %s188
    %p197 = scmp.eq.s32.totalorder %s16, 15
    %p198 = por %p196, %p197
    %p199 = scmp.ne.s32.totalorder %s188, %s189
    %p200 = scmp.eq.s32.totalorder %s16, 0
    %p201 = por %p199, %p200
    %p202 = scmp.ne.s32.totalorder %s188, %s189
    %p203 = scmp.eq.s32.totalorder %s17, 15
    %p204 = por %p202, %p203
    %p206 = scmp.ne.s32.totalorder %s189, %s205
    %p207 = scmp.eq.s32.totalorder %s17, 0
    %p208 = por %p206, %p207
    %p209 = scmp.le.s32.totalorder 1, %s11
    %p210 = scmp.lt.s32.totalorder %s11, 17
    %p211 = pnand %p209, %p210
    %p212 = pneg %p211
    // Predicated region
    $region9: #{forward_pallas.9} parent=5 // pred_check
      _
    $region10: #{forward_pallas.9} parent=5 // pred_check_branch
      %214 = sbr.rel (%p211) target = $region12
    $region11: #{forward_pallas.9} parent=5 // pred_region
      %s215 = ssub.s32 %s11, 1
      // Predicated region
      $region13: #{forward_pallas.9} parent=11 // pred_check
        %p216 = pneg %p152
      $region14: #{forward_pallas.9} parent=11 // pred_check_branch
        %218 = sbr.rel (%p216) target = $region16
      $region15: #{forward_pallas.9} parent=11 // pred_region
        _
      $region16: #{forward_pallas.9} parent=11 // pred_fallthru
        _
      // Predicated region
      $region17: #{forward_pallas.9} parent=11 // pred_check
        %p219 = pneg %p173
      $region18: #{forward_pallas.9} parent=11 // pred_check_branch
        %221 = sbr.rel (%p219) target = $region20
      $region19: #{forward_pallas.9} parent=11 // pred_region
        _
      $region20: #{forward_pallas.9} parent=11 // pred_fallthru
        _
    $region12: #{forward_pallas.9} parent=5 // pred_fallthru
      _
    %p222 = scmp.lt.s32.totalorder %s11, 16
    // Predicated region
    $region21: #{forward_pallas.9} parent=5 // pred_check
      %p223 = pneg %p222
    $region22: #{forward_pallas.9} parent=5 // pred_check_branch
      %225 = sbr.rel (%p223) target = $region24
    $region23: #{forward_pallas.9} parent=5 // pred_region
      // Predicated region
      $region25: #{forward_pallas.9} parent=23 // pred_check
        %p226 = pneg %p45
      $region26: #{forward_pallas.9} parent=23 // pred_check_branch
        %228 = sbr.rel (%p226) target = $region28
      $region27: #{forward_pallas.9} parent=23 // pred_region
        %s229 = smul.u32 4, %s19
        %p230 = scmp.lt.s32.totalorder %s18, 1
        %s231 = scalar_select %p230, %s18, 1
        %p232 = scmp.lt.s32.totalorder %s229, 31
        %s233 = scalar_select %p232, %s229, 31
        %s234 = smul.addr %s233, 4
        %s235 = smul.addr %s231, 128
        %s236 = sadd.s32 %s234, %s235
        %s237 = smul.addr %s236, 4
        %s238 = scalar_lea.vmem %s0, %s237
        %s239 = smul.u32 4, %s19
      $region28: #{forward_pallas.9} parent=23 // pred_fallthru
        _
      // Predicated region
      $region29: #{forward_pallas.9} parent=23 // pred_check
        %p240 = pneg %p85
      $region30: #{forward_pallas.9} parent=23 // pred_check_branch
        %242 = sbr.rel (%p240) target = $region32
      $region31: #{forward_pallas.9} parent=23 // pred_region
        %s243 = smul.u32 %s19, 4
        %s244 = sadd.s32 %s243, 4294967295
        %p245 = scmp.gt.s32.totalorder %s244, 0
        %s246 = scalar_select %p245, %s244, 0
        %p247 = scmp.lt.s32.totalorder %s246, 31
        %s248 = scalar_select %p247, %s246, 31
        %p249 = scmp.lt.s32.totalorder %s18, 1
        %s250 = scalar_select %p249, %s18, 1
        %p251 = scmp.lt.s32.totalorder %s248, 31
        %s252 = scalar_select %p251, %s248, 31
        %s253 = smul.addr %s252, 4
        %s254 = smul.addr %s250, 128
        %s255 = sadd.s32 %s253, %s254
        %s256 = smul.addr %s255, 4
        %s257 = scalar_lea.vmem %s1, %s256
        %s258 = smul.u32 %s19, 4
        %s259 = sadd.s32 %s258, 4294967295
        %p260 = scmp.gt.s32.totalorder %s259, 0
        %s261 = scalar_select %p260, %s259, 0
        %p262 = scmp.lt.s32.totalorder %s261, 31
        %s263 = scalar_select %p262, %s261, 31
      $region32: #{forward_pallas.9} parent=23 // pred_fallthru
        _
      // Predicated region
      $region33: #{forward_pallas.9} parent=23 // pred_check
        %p264 = pneg %p125
      $region34: #{forward_pallas.9} parent=23 // pred_check_branch
        %266 = sbr.rel (%p264) target = $region36
      $region35: #{forward_pallas.9} parent=23 // pred_region
        %s267 = smul.u32 %s19, 4
        %s268 = sadd.s32 %s267, 4
        %p269 = scmp.gt.s32.totalorder %s268, 0
        %s270 = scalar_select %p269, %s268, 0
        %p271 = scmp.lt.s32.totalorder %s270, 31
        %s272 = scalar_select %p271, %s270, 31
        %p273 = scmp.lt.s32.totalorder %s18, 1
        %s274 = scalar_select %p273, %s18, 1
        %p275 = scmp.lt.s32.totalorder %s272, 31
        %s276 = scalar_select %p275, %s272, 31
        %s277 = smul.addr %s276, 4
        %s278 = smul.addr %s274, 128
        %s279 = sadd.s32 %s277, %s278
        %s280 = smul.addr %s279, 4
        %s281 = scalar_lea.vmem %s2, %s280
        %s282 = smul.u32 %s19, 4
        %s283 = sadd.s32 %s282, 4
        %p284 = scmp.gt.s32.totalorder %s283, 0
        %s285 = scalar_select %p284, %s283, 0
        %p286 = scmp.lt.s32.totalorder %s285, 31
        %s287 = scalar_select %p286, %s285, 31
      $region36: #{forward_pallas.9} parent=23 // pred_fallthru
        _
    $region24: #{forward_pallas.9} parent=5 // pred_fallthru
      _
    %p288 = scmp.le.s32.totalorder 1, %s11
    %p289 = scmp.lt.s32.totalorder %s11, 17
    %p290 = pnand %p288, %p289
    %p291 = pneg %p290
    // Predicated region
    $region37: #{forward_pallas.9} parent=5 // pred_check
      _
    $region38: #{forward_pallas.9} parent=5 // pred_check_branch
      %293 = sbr.rel (%p290) target = $region40
    $region39: #{forward_pallas.9} parent=5 // pred_region
      %s294 = ssub.s32 %s11, 1
      %s295 = smul.u32 4, %s21
      %p296 = scmp.lt.s32.totalorder %s20, 1
      %s297 = scalar_select %p296, %s20, 1
      %p298 = scmp.lt.s32.totalorder %s295, 31
      %s299 = scalar_select %p298, %s295, 31
      %s300 = smul.addr %s299, 4
      %s301 = smul.addr %s297, 128
      %s302 = sadd.s32 %s300, %s301
      %s303 = smul.addr %s302, 4
      %s304 = scalar_lea.vmem %s0, %s303
      %p305 = pneg %p51
      %p306 = pneg %p48
      %s307 = smul.u32 %s21, 4
      %s308 = sadd.s32 %s307, 4294967295
      %p309 = scmp.gt.s32.totalorder %s308, 0
      %s310 = scalar_select %p309, %s308, 0
      %p311 = scmp.lt.s32.totalorder %s310, 31
      %s312 = scalar_select %p311, %s310, 31
      %p313 = scmp.lt.s32.totalorder %s20, 1
      %s314 = scalar_select %p313, %s20, 1
      %p315 = scmp.lt.s32.totalorder %s312, 31
      %s316 = scalar_select %p315, %s312, 31
      %s317 = smul.addr %s316, 4
      %s318 = smul.addr %s314, 128
      %s319 = sadd.s32 %s317, %s318
      %s320 = smul.addr %s319, 4
      %s321 = scalar_lea.vmem %s1, %s320
      %p322 = pneg %p91
      %p323 = pneg %p88
      %s324 = smul.u32 %s21, 4
      %s325 = sadd.s32 %s324, 4
      %p326 = scmp.gt.s32.totalorder %s325, 0
      %s327 = scalar_select %p326, %s325, 0
      %p328 = scmp.lt.s32.totalorder %s327, 31
      %s329 = scalar_select %p328, %s327, 31
      %p330 = scmp.lt.s32.totalorder %s20, 1
      %s331 = scalar_select %p330, %s20, 1
      %p332 = scmp.lt.s32.totalorder %s329, 31
      %s333 = scalar_select %p332, %s329, 31
      %s334 = smul.addr %s333, 4
      %s335 = smul.addr %s331, 128
      %s336 = sadd.s32 %s334, %s335
      %s337 = smul.addr %s336, 4
      %s338 = scalar_lea.vmem %s2, %s337
      %p339 = pneg %p131
      %p340 = pneg %p128
      %p341 = pneg %p152
      %p342 = pneg %p149
      %p343 = pneg %p173
      %p344 = pneg %p170
      %p345 = pneg %p201
      %p346 = pneg %p198
      %s347 = smul.u32 4, %s21
      %p348 = scmp.lt.s32.totalorder %s20, 1
      %s349 = scalar_select %p348, %s20, 1
      %p350 = scmp.lt.s32.totalorder %s347, 31
      %s351 = scalar_select %p350, %s347, 31
      %s352 = smul.addr %s351, 4
      %s353 = smul.addr %s349, 128
      %s354 = sadd.s32 %s352, %s353
      %s355 = smul.addr %s354, 4
      %s356 = scalar_lea.vmem %s5, %s355
      %s357 = smul.u32 4, %s21
      %p358 = scmp.lt.s32.totalorder %s20, 1
      %s359 = scalar_select %p358, %s20, 1
      %p360 = scmp.lt.s32.totalorder %s357, 31
      %s361 = scalar_select %p360, %s357, 31
      %s362 = smul.addr %s361, 4
      %s363 = smul.addr %s359, 128
      %s364 = sadd.s32 %s362, %s363
      %s365 = smul.addr %s364, 4
      %s366 = scalar_lea.vmem %s0, %s365
      %s367 = smul.u32 4, %s21
      %s368 = smul.u32 %s21, 4
      %s369 = sadd.s32 %s368, 4294967295
      %p370 = scmp.gt.s32.totalorder %s369, 0
      %s371 = scalar_select %p370, %s369, 0
      %p372 = scmp.lt.s32.totalorder %s371, 31
      %s373 = scalar_select %p372, %s371, 31
      %p374 = scmp.lt.s32.totalorder %s20, 1
      %s375 = scalar_select %p374, %s20, 1
      %p376 = scmp.lt.s32.totalorder %s373, 31
      %s377 = scalar_select %p376, %s373, 31
      %s378 = smul.addr %s377, 4
      %s379 = smul.addr %s375, 128
      %s380 = sadd.s32 %s378, %s379
      %s381 = smul.addr %s380, 4
      %s382 = scalar_lea.vmem %s1, %s381
      %s383 = smul.u32 %s21, 4
      %s384 = sadd.s32 %s383, 4294967295
      %p385 = scmp.gt.s32.totalorder %s384, 0
      %s386 = scalar_select %p385, %s384, 0
      %p387 = scmp.lt.s32.totalorder %s386, 31
      %s388 = scalar_select %p387, %s386, 31
      %s389 = smul.u32 %s21, 4
      %s390 = sadd.s32 %s389, 4
      %p391 = scmp.gt.s32.totalorder %s390, 0
      %s392 = scalar_select %p391, %s390, 0
      %p393 = scmp.lt.s32.totalorder %s392, 31
      %s394 = scalar_select %p393, %s392, 31
      %p395 = scmp.lt.s32.totalorder %s20, 1
      %s396 = scalar_select %p395, %s20, 1
      %p397 = scmp.lt.s32.totalorder %s394, 31
      %s398 = scalar_select %p397, %s394, 31
      %s399 = smul.addr %s398, 4
      %s400 = smul.addr %s396, 128
      %s401 = sadd.s32 %s399, %s400
      %s402 = smul.addr %s401, 4
      %s403 = scalar_lea.vmem %s2, %s402
      %s404 = smul.u32 %s21, 4
      %s405 = sadd.s32 %s404, 4
      %p406 = scmp.gt.s32.totalorder %s405, 0
      %s407 = scalar_select %p406, %s405, 0
      %p408 = scmp.lt.s32.totalorder %s407, 31
      %s409 = scalar_select %p408, %s407, 31
      %s410 = smul.u32 4, %s21
      %p411 = scmp.lt.s32.totalorder %s20, 1
      %s412 = scalar_select %p411, %s20, 1
      %p413 = scmp.lt.s32.totalorder %s410, 31
      %s414 = scalar_select %p413, %s410, 31
      %s415 = smul.addr %s414, 4
      %s416 = smul.addr %s412, 128
      %s417 = sadd.s32 %s415, %s416
      %s418 = smul.addr %s417, 4
      %s419 = scalar_lea.vmem %s5, %s418
      %s420 = smul.u32 4, %s21
      %s422 = smul.u32 %s21, 4
      %s423 = ssub.s32 %s422, 1
      %p424 = scmp.ge.s32.totalorder %s423, 0
      %v425 = vld [vmem:[%s382] sm:$0xf]
      %v426 = vld [vmem:[%s382 + $0x4] sm:$0xf]
      %v427 = vld [vmem:[%s382 + $0x8] sm:$0xf]
      %v428 = vld [vmem:[%s382 + $0xc] sm:$0xf]
      %s429 = scalar_select %p424, 1, 0
      %v430 = vstv %s429
      %vm431 = vcmp.eq.s32.totalorder %v430, 1
      %v432 = vsel %vm431, %v425, 0
      %v433 = vsel %vm431, %v426, 0
      %v434 = vsel %vm431, %v427, 0
      %v435 = vsel %vm431, %v428, 0
      %s436 = sadd.s32 %s422, 4
      %p437 = scmp.le.s32.totalorder %s436, 31
      %v438 = vld [vmem:[%s403] sm:$0xf]
      %v439 = vld [vmem:[%s403 + $0x4] sm:$0xf]
      %v440 = vld [vmem:[%s403 + $0x8] sm:$0xf]
      %v441 = vld [vmem:[%s403 + $0xc] sm:$0xf]
      %s442 = scalar_select %p437, 1, 0
      %v443 = vstv %s442
      %vm444 = vcmp.eq.s32.totalorder %v443, 1
      %v445 = vsel %vm444, %v438, 0
      %v446 = vsel %vm444, %v439, 0
      %v447 = vsel %vm444, %v440, 0
      %v448 = vsel %vm444, %v441, 0
      %v449 = vld [vmem:[%s366] sm:$0xf]
      %v450 = vld [vmem:[%s366 + $0x4] sm:$0xf]
      %v451 = vld [vmem:[%s366 + $0x8] sm:$0xf]
      %v452 = vld [vmem:[%s366 + $0xc] sm:$0xf]
      %v453 = vld [vmem:[%s366 + $0x10] sm:$0xf]
      %v454 = vld [vmem:[%s366 + $0x14] sm:$0xf]
      %v455 = vld [vmem:[%s366 + $0x18] sm:$0xf]
      %v456 = vld [vmem:[%s366 + $0x1c] sm:$0xf]
      %v457 = vld [vmem:[%s366 + $0x20] sm:$0xf]
      %v458 = vld [vmem:[%s366 + $0x24] sm:$0xf]
      %v459 = vld [vmem:[%s366 + $0x28] sm:$0xf]
      %v460 = vld [vmem:[%s366 + $0x2c] sm:$0xf]
      %v461 = vld [vmem:[%s366 + $0x30] sm:$0xf]
      %v462 = vld [vmem:[%s366 + $0x34] sm:$0xf]
      %v463 = vld [vmem:[%s366 + $0x38] sm:$0xf]
      %v464 = vld [vmem:[%s366 + $0x3c] sm:$0xf]
      %v489 = vunpack.c.l.b16 %v432
      %v490 = vunpack.c.l.b16 %v433
      %v491 = vunpack.c.l.b16 %v434
      %v492 = vunpack.c.l.b16 %v435
      %v493 = vunpack.c.l.b16 %v449
      %v494 = vunpack.c.l.b16 %v450
      %v495 = vunpack.c.l.b16 %v451
      %v496 = vunpack.c.l.b16 %v452
      %v497 = vunpack.c.l.b16 %v453
      %v498 = vunpack.c.l.b16 %v454
      %v499 = vunpack.c.l.b16 %v455
      %v500 = vunpack.c.l.b16 %v456
      %v501 = vunpack.c.l.b16 %v457
      %v502 = vunpack.c.l.b16 %v458
      %v503 = vunpack.c.l.b16 %v459
      %v504 = vunpack.c.l.b16 %v460
      %v505 = vunpack.c.l.b16 %v461
      %v506 = vunpack.c.l.b16 %v462
      %v507 = vunpack.c.l.b16 %v463
      %v508 = vunpack.c.l.b16 %v464
      %v509 = vunpack.c.l.b16 %v445
      %v510 = vunpack.c.l.b16 %v446
      %v511 = vunpack.c.l.b16 %v447
      %v512 = vunpack.c.l.b16 %v448
      %v513 = vpack.c.b16 %v490, %v489
      %v514 = vpack.c.b16 %v492, %v491
      %v515 = vpack.c.b16 %v494, %v493
      %v516 = vpack.c.b16 %v496, %v495
      %v517 = vpack.c.b16 %v498, %v497
      %v518 = vpack.c.b16 %v500, %v499
      %v519 = vpack.c.b16 %v502, %v501
      %v520 = vpack.c.b16 %v504, %v503
      %v521 = vpack.c.b16 %v506, %v505
      %v522 = vpack.c.b16 %v508, %v507
      %v523 = vpack.c.b16 %v510, %v509
      %v524 = vpack.c.b16 %v512, %v511
      %vm525 = vsmask.f32 256
      %v527 = vshrl.u32 %v513, 16
      %v529 = vrot.slane %v527, 7
      %v530 = vshll.u32 %v513, 16
      %v532 = vor.u32 %v529, %v530
      %v534 = vshrl.u32 %v514, 16
      %v536 = vrot.slane %v534, 7
      %v537 = vshll.u32 %v514, 16
      %v539 = vor.u32 %v536, %v537
      %v540 = vsel %vm525, %v529, %v539
      %v542 = vshrl.u32 %v515, 16
      %v544 = vrot.slane %v542, 7
      %v545 = vshll.u32 %v515, 16
      %v547 = vor.u32 %v544, %v545
      %v549 = vshrl.u32 %v516, 16
      %v551 = vrot.slane %v549, 7
      %v552 = vshll.u32 %v516, 16
      %v554 = vor.u32 %v551, %v552
      %v555 = vsel %vm525, %v544, %v554
      %v557 = vshrl.u32 %v517, 16
      %v559 = vrot.slane %v557, 7
      %v560 = vshll.u32 %v517, 16
      %v562 = vor.u32 %v559, %v560
      %v564 = vshrl.u32 %v518, 16
      %v566 = vrot.slane %v564, 7
      %v567 = vshll.u32 %v518, 16
      %v569 = vor.u32 %v566, %v567
      %v570 = vsel %vm525, %v559, %v569
      %v572 = vshrl.u32 %v519, 16
      %v574 = vrot.slane %v572, 7
      %v575 = vshll.u32 %v519, 16
      %v577 = vor.u32 %v574, %v575
      %v579 = vshrl.u32 %v520, 16
      %v581 = vrot.slane %v579, 7
      %v582 = vshll.u32 %v520, 16
      %v584 = vor.u32 %v581, %v582
      %v585 = vsel %vm525, %v574, %v584
      %v587 = vshrl.u32 %v521, 16
      %v589 = vrot.slane %v587, 7
      %v590 = vshll.u32 %v521, 16
      %v592 = vor.u32 %v589, %v590
      %v594 = vshrl.u32 %v522, 16
      %v596 = vrot.slane %v594, 7
      %v597 = vshll.u32 %v522, 16
      %v599 = vor.u32 %v596, %v597
      %v600 = vsel %vm525, %v589, %v599
      %v602 = vshrl.u32 %v523, 16
      %v604 = vrot.slane %v602, 7
      %v605 = vshll.u32 %v523, 16
      %v607 = vor.u32 %v604, %v605
      %v609 = vshrl.u32 %v524, 16
      %v611 = vrot.slane %v609, 7
      %v612 = vshll.u32 %v524, 16
      %v614 = vor.u32 %v611, %v612
      %v615 = vsel %vm525, %v604, %v614
      %vm628 = vcmask 1040384
      %vm629 = vmand %vm628, %vm525
      %v630 = vsel %vm629, 0, %v532
      %v631 = vsel %vm629, 0, %v547
      %v632 = vsel %vm629, 0, %v562
      %v633 = vsel %vm629, 0, %v577
      %v634 = vsel %vm629, 0, %v592
      %v635 = vsel %vm629, 0, %v607
      %v636 = vsel %vm629, %v536, 0
      %v637 = vsel %vm629, %v551, 0
      %v638 = vsel %vm629, %v566, 0
      %v639 = vsel %vm629, %v581, 0
      %v640 = vsel %vm629, %v596, 0
      %v641 = vsel %vm629, %v611, 0
      %vm642 = vsmask.f32 7424
      %v644 = vshrl.u32 %v630, 16
      %v646 = vshll.u32 %v630, 16
      %v648 = vrot.slane %v646, 1
      %v649 = vor.u32 %v644, %v648
      %v651 = vshll.u32 %v540, 16
      %v653 = vrot.slane %v651, 1
      %v654 = vsel %vm642, %v649, %v653
      %v655 = vshrl.u32 %v540, 16
      %v657 = vor.u32 %v655, %v653
      %v659 = vshll.u32 %v636, 16
      %v661 = vrot.slane %v659, 1
      %v662 = vsel %vm642, %v657, %v661
      %v664 = vshrl.u32 %v631, 16
      %v666 = vshll.u32 %v631, 16
      %v668 = vrot.slane %v666, 1
      %v669 = vor.u32 %v664, %v668
      %v671 = vshll.u32 %v555, 16
      %v673 = vrot.slane %v671, 1
      %v674 = vsel %vm642, %v669, %v673
      %v675 = vshrl.u32 %v555, 16
      %v677 = vor.u32 %v675, %v673
      %v679 = vshll.u32 %v637, 16
      %v681 = vrot.slane %v679, 1
      %v682 = vsel %vm642, %v677, %v681
      %v684 = vshrl.u32 %v632, 16
      %v686 = vshll.u32 %v632, 16
      %v688 = vrot.slane %v686, 1
      %v689 = vor.u32 %v684, %v688
      %v691 = vshll.u32 %v570, 16
      %v693 = vrot.slane %v691, 1
      %v694 = vsel %vm642, %v689, %v693
      %v695 = vshrl.u32 %v570, 16
      %v697 = vor.u32 %v695, %v693
      %v699 = vshll.u32 %v638, 16
      %v701 = vrot.slane %v699, 1
      %v702 = vsel %vm642, %v697, %v701
      %v704 = vshrl.u32 %v633, 16
      %v706 = vshll.u32 %v633, 16
      %v708 = vrot.slane %v706, 1
      %v709 = vor.u32 %v704, %v708
      %v711 = vshll.u32 %v585, 16
      %v713 = vrot.slane %v711, 1
      %v714 = vsel %vm642, %v709, %v713
      %v715 = vshrl.u32 %v585, 16
      %v717 = vor.u32 %v715, %v713
      %v719 = vshll.u32 %v639, 16
      %v721 = vrot.slane %v719, 1
      %v722 = vsel %vm642, %v717, %v721
      %723 = vrot.lane.b32.xlu0 %v654, 16
      %v724 = vpop.permute.xlu0 %723
      %725 = vrot.lane.b32.xlu0 %v662, 16
      %v726 = vpop.permute.xlu0 %725
      %727 = vrot.lane.b32.xlu0 %v674, 16
      %v728 = vpop.permute.xlu0 %727
      %729 = vrot.lane.b32.xlu0 %v682, 16
      %v730 = vpop.permute.xlu0 %729
      %731 = vrot.lane.b32.xlu0 %v694, 16
      %v732 = vpop.permute.xlu0 %731
      %733 = vrot.lane.b32.xlu0 %v702, 16
      %v734 = vpop.permute.xlu0 %733
      %735 = vrot.lane.b32.xlu0 %v714, 16
      %v736 = vpop.permute.xlu0 %735
      %737 = vrot.lane.b32.xlu0 %v722, 16
      %v738 = vpop.permute.xlu0 %737
      %vm747 = vcmask 1046528
      %v748 = vrot.slane %v630, 1
      %v749 = vrot.slane %v540, 1
      %v750 = vsel %vm747, %v748, %v749
      %v751 = vrot.slane %v636, 1
      %v752 = vsel %vm747, %v749, %v751
      %v753 = vrot.slane %v631, 1
      %v754 = vrot.slane %v555, 1
      %v755 = vsel %vm747, %v753, %v754
      %v756 = vrot.slane %v637, 1
      %v757 = vsel %vm747, %v754, %v756
      %v758 = vrot.slane %v632, 1
      %v759 = vrot.slane %v570, 1
      %v760 = vsel %vm747, %v758, %v759
      %v761 = vrot.slane %v638, 1
      %v762 = vsel %vm747, %v759, %v761
      %v763 = vrot.slane %v633, 1
      %v764 = vrot.slane %v585, 1
      %v765 = vsel %vm747, %v763, %v764
      %v766 = vrot.slane %v639, 1
      %v767 = vsel %vm747, %v764, %v766
      %768 = vrot.lane.b32.xlu0 %v750, 32
      %v769 = vpop.permute.xlu0 %768
      %770 = vrot.lane.b32.xlu0 %v752, 32
      %v771 = vpop.permute.xlu0 %770
      %772 = vrot.lane.b32.xlu0 %v755, 32
      %v773 = vpop.permute.xlu0 %772
      %774 = vrot.lane.b32.xlu0 %v757, 32
      %v775 = vpop.permute.xlu0 %774
      %776 = vrot.lane.b32.xlu0 %v760, 32
      %v777 = vpop.permute.xlu0 %776
      %778 = vrot.lane.b32.xlu0 %v762, 32
      %v779 = vpop.permute.xlu0 %778
      %780 = vrot.lane.b32.xlu0 %v765, 32
      %v781 = vpop.permute.xlu0 %780
      %782 = vrot.lane.b32.xlu0 %v767, 32
      %v783 = vpop.permute.xlu0 %782
      %vm784 = vcmask 130048
      %v786 = vsel %vm784, %v630, %v724
      %v788 = vsel %vm784, %v540, %v726
      %v790 = vsel %vm784, %v631, %v728
      %v792 = vsel %vm784, %v555, %v730
      %v794 = vsel %vm784, %v632, %v732
      %v796 = vsel %vm784, %v570, %v734
      %v798 = vsel %vm784, %v633, %v736
      %v800 = vsel %vm784, %v585, %v738
      %vm801 = vcmask 261120
      %v803 = vsel %vm801, %v786, %v769
      %v805 = vsel %vm801, %v788, %v771
      %v807 = vsel %vm801, %v790, %v773
      %v809 = vsel %vm801, %v792, %v775
      %v811 = vsel %vm801, %v794, %v777
      %v813 = vsel %vm801, %v796, %v779
      %v815 = vsel %vm801, %v798, %v781
      %v817 = vsel %vm801, %v800, %v783
      %v818 = vld [vmem:[%s3] sm:$0xf]
      %v819 = vld [vmem:[%s3 + $0x4] sm:$0xf]
      %v820 = vld [vmem:[%s3 + $0x8] sm:$0xf]
      %v821 = vld [vmem:[%s3 + $0xc] sm:$0xf]
      %v822 = vld [vmem:[%s3 + $0x10] sm:$0xf]
      %v823 = vld [vmem:[%s3 + $0x14] sm:$0xf]
      %v825 = vshrl.u32 %v634, 16
      %v827 = vshll.u32 %v634, 16
      %v829 = vrot.slane %v827, 1
      %v830 = vor.u32 %v825, %v829
      %v832 = vshll.u32 %v600, 16
      %v834 = vrot.slane %v832, 1
      %v835 = vsel %vm642, %v830, %v834
      %v836 = vshrl.u32 %v600, 16
      %v838 = vor.u32 %v836, %v834
      %v840 = vshll.u32 %v640, 16
      %v842 = vrot.slane %v840, 1
      %v843 = vsel %vm642, %v838, %v842
      %844 = vrot.lane.b32.xlu0 %v835, 16
      %v845 = vpop.permute.xlu0 %844
      %846 = vrot.lane.b32.xlu0 %v843, 16
      %v847 = vpop.permute.xlu0 %846
      %v850 = vrot.slane %v634, 1
      %v851 = vrot.slane %v600, 1
      %v852 = vsel %vm747, %v850, %v851
      %v853 = vrot.slane %v640, 1
      %v854 = vsel %vm747, %v851, %v853
      %855 = vrot.lane.b32.xlu0 %v852, 32
      %v856 = vpop.permute.xlu0 %855
      %857 = vrot.lane.b32.xlu0 %v854, 32
      %v858 = vpop.permute.xlu0 %857
      %v860 = vsel %vm784, %v634, %v845
      %v862 = vsel %vm784, %v600, %v847
      %v864 = vsel %vm801, %v860, %v856
      %v866 = vsel %vm801, %v862, %v858
      %s867 = scalar_lea.vmem %s3, 24
      %v868 = vld [vmem:[%s867] sm:$0xf]
      %v869 = vld [vmem:[%s867 + $0x4] sm:$0xf]
      %v870 = vld [vmem:[%s867 + $0x8] sm:$0xf]
      %v871 = vld [vmem:[%s867 + $0xc] sm:$0xf]
      %v872 = vld [vmem:[%s867 + $0x10] sm:$0xf]
      %v873 = vld [vmem:[%s867 + $0x14] sm:$0xf]
      %v880 = vunpack.c.l.b16 %v868
      %v881 = vunpack.c.l.b16 %v869
      %v882 = vunpack.c.l.b16 %v870
      %v883 = vunpack.c.l.b16 %v871
      %v884 = vunpack.c.l.b16 %v872
      %v885 = vunpack.c.l.b16 %v873
      %v886 = vpack.c.b16 %v881, %v880
      %v887 = vpack.c.b16 %v883, %v882
      %v888 = vpack.c.b16 %v885, %v884
      %vm892 = vcmask 392192
      %v893 = vsel %vm892, %v807, 0
      %v895 = vsel %vm892, %v809, 0
      %v897 = vsel %vm892, %v811, 0
      %v899 = vsel %vm892, %v813, 0
      %v901 = vsel %vm892, %v815, 0
      %v903 = vsel %vm892, %v817, 0
      %v905 = vsel %vm892, %v864, 0
      %v907 = vsel %vm892, %v866, 0
      %909 = vmatpush.bf16.msra.mxu0 0
      %910 = vmatpush.bf16.msra.mxu0 0
      %911 = vmatpush.bf16.msra.mxu0 0
      %912 = vmatpush.bf16.msra.mxu0 0
      %913 = vmatpush.bf16.msra.mxu0 0
      %914 = vmatpush.bf16.msra.mxu0 %v888
      %915 = vmatpush.bf16.msra.mxu0 %v887
      %916 = vmatpush.bf16.msra.mxu0 %v886
      %917 = vmatmul.bf16.gmra.mxu0 %v893
      %v918 = vpop.f32.mrf.mxu0
      %v919 = vadd.f32 0.0, %v918
      %v920 = vpop.f32.mrf.mxu0
      %v921 = vadd.f32 0.0, %v920
      %922 = vmatmul.bf16.gmra.mxu0 %v895
      %v923 = vpop.f32.mrf.mxu0
      %v924 = vadd.f32 0.0, %v923
      %v925 = vpop.f32.mrf.mxu0
      %v926 = vadd.f32 0.0, %v925
      %927 = vmatmul.bf16.gmra.mxu0 %v897
      %v928 = vpop.f32.mrf.mxu0
      %v929 = vadd.f32 0.0, %v928
      %v930 = vpop.f32.mrf.mxu0
      %v931 = vadd.f32 0.0, %v930
      %932 = vmatmul.bf16.gmra.mxu0 %v899
      %v933 = vpop.f32.mrf.mxu0
      %v934 = vadd.f32 0.0, %v933
      %v935 = vpop.f32.mrf.mxu0
      %v936 = vadd.f32 0.0, %v935
      %937 = vmatmul.bf16.gmra.mxu0 %v901
      %v938 = vpop.f32.mrf.mxu0
      %v939 = vadd.f32 0.0, %v938
      %v940 = vpop.f32.mrf.mxu0
      %v941 = vadd.f32 0.0, %v940
      %942 = vmatmul.bf16.gmra.mxu0 %v903
      %v943 = vpop.f32.mrf.mxu0
      %v944 = vadd.f32 0.0, %v943
      %v945 = vpop.f32.mrf.mxu0
      %v946 = vadd.f32 0.0, %v945
      %947 = vmatmul.bf16.gmra.mxu0 %v905
      %v948 = vpop.f32.mrf.mxu0
      %v949 = vadd.f32 0.0, %v948
      %v950 = vpop.f32.mrf.mxu0
      %v951 = vadd.f32 0.0, %v950
      %952 = vmatmul.bf16.gmra.mxu0 %v907
      %v953 = vpop.f32.mrf.mxu0
      %v954 = vadd.f32 0.0, %v953
      %v955 = vpop.f32.mrf.mxu0
      %v956 = vadd.f32 0.0, %v955
      %957 = vdwg.mxu0
      %v964 = vunpack.c.l.b16 %v818
      %v965 = vunpack.c.l.b16 %v819
      %v966 = vunpack.c.l.b16 %v820
      %v967 = vunpack.c.l.b16 %v821
      %v968 = vunpack.c.l.b16 %v822
      %v969 = vunpack.c.l.b16 %v823
      %v970 = vpack.c.b16 %v965, %v964
      %v971 = vpack.c.b16 %v967, %v966
      %v972 = vpack.c.b16 %v969, %v968
      %v976 = vsel %vm892, %v803, 0
      %v978 = vsel %vm892, %v805, 0
      %980 = vmatpush.bf16.msra.mxu0 0
      %981 = vmatpush.bf16.msra.mxu0 0
      %982 = vmatpush.bf16.msra.mxu0 0
      %983 = vmatpush.bf16.msra.mxu0 0
      %984 = vmatpush.bf16.msra.mxu0 0
      %985 = vmatpush.bf16.msra.mxu0 %v972
      %986 = vmatpush.bf16.msra.mxu0 %v971
      %987 = vmatpush.bf16.msra.mxu0 %v970
      %988 = vmatmul.bf16.gmra.mxu0 %v976
      %v989 = vpop.f32.mrf.mxu0
      %v990 = vadd.f32 %v919, %v989
      %v991 = vpop.f32.mrf.mxu0
      %v992 = vadd.f32 %v921, %v991
      %993 = vmatmul.bf16.gmra.mxu0 %v978
      %v994 = vpop.f32.mrf.mxu0
      %v995 = vadd.f32 %v924, %v994
      %v996 = vpop.f32.mrf.mxu0
      %v997 = vadd.f32 %v926, %v996
      %998 = vmatmul.bf16.gmra.mxu0 %v893
      %v999 = vpop.f32.mrf.mxu0
      %v1000 = vadd.f32 %v929, %v999
      %v1001 = vpop.f32.mrf.mxu0
      %v1002 = vadd.f32 %v931, %v1001
      %1003 = vmatmul.bf16.gmra.mxu0 %v895
      %v1004 = vpop.f32.mrf.mxu0
      %v1005 = vadd.f32 %v934, %v1004
      %v1006 = vpop.f32.mrf.mxu0
      %v1007 = vadd.f32 %v936, %v1006
      %1008 = vmatmul.bf16.gmra.mxu0 %v897
      %v1009 = vpop.f32.mrf.mxu0
      %v1010 = vadd.f32 %v939, %v1009
      %v1011 = vpop.f32.mrf.mxu0
      %v1012 = vadd.f32 %v941, %v1011
      %1013 = vmatmul.bf16.gmra.mxu0 %v899
      %v1014 = vpop.f32.mrf.mxu0
      %v1015 = vadd.f32 %v944, %v1014
      %v1016 = vpop.f32.mrf.mxu0
      %v1017 = vadd.f32 %v946, %v1016
      %1018 = vmatmul.bf16.gmra.mxu0 %v901
      %v1019 = vpop.f32.mrf.mxu0
      %v1020 = vadd.f32 %v949, %v1019
      %v1021 = vpop.f32.mrf.mxu0
      %v1022 = vadd.f32 %v951, %v1021
      %1023 = vmatmul.bf16.gmra.mxu0 %v903
      %v1024 = vpop.f32.mrf.mxu0
      %v1025 = vadd.f32 %v954, %v1024
      %v1026 = vpop.f32.mrf.mxu0
      %v1027 = vadd.f32 %v956, %v1026
      %1028 = vdwg.mxu0
      %v1030 = vshrl.u32 %v635, 16
      %v1032 = vshll.u32 %v635, 16
      %v1034 = vrot.slane %v1032, 1
      %v1035 = vor.u32 %v1030, %v1034
      %v1037 = vshll.u32 %v615, 16
      %v1039 = vrot.slane %v1037, 1
      %v1040 = vsel %vm642, %v1035, %v1039
      %v1041 = vshrl.u32 %v615, 16
      %v1043 = vor.u32 %v1041, %v1039
      %v1045 = vshll.u32 %v641, 16
      %v1047 = vrot.slane %v1045, 1
      %v1048 = vsel %vm642, %v1043, %v1047
      %1049 = vrot.lane.b32.xlu0 %v1040, 16
      %v1050 = vpop.permute.xlu0 %1049
      %1051 = vrot.lane.b32.xlu0 %v1048, 16
      %v1052 = vpop.permute.xlu0 %1051
      %v1055 = vrot.slane %v635, 1
      %v1056 = vrot.slane %v615, 1
      %v1057 = vsel %vm747, %v1055, %v1056
      %v1058 = vrot.slane %v641, 1
      %v1059 = vsel %vm747, %v1056, %v1058
      %1060 = vrot.lane.b32.xlu0 %v1057, 32
      %v1061 = vpop.permute.xlu0 %1060
      %1062 = vrot.lane.b32.xlu0 %v1059, 32
      %v1063 = vpop.permute.xlu0 %1062
      %v1065 = vsel %vm784, %v635, %v1050
      %v1067 = vsel %vm784, %v615, %v1052
      %v1069 = vsel %vm801, %v1065, %v1061
      %v1071 = vsel %vm801, %v1067, %v1063
      %s1072 = scalar_lea.vmem %s3, 48
      %v1073 = vld [vmem:[%s1072] sm:$0xf]
      %v1074 = vld [vmem:[%s1072 + $0x4] sm:$0xf]
      %v1075 = vld [vmem:[%s1072 + $0x8] sm:$0xf]
      %v1076 = vld [vmem:[%s1072 + $0xc] sm:$0xf]
      %v1077 = vld [vmem:[%s1072 + $0x10] sm:$0xf]
      %v1078 = vld [vmem:[%s1072 + $0x14] sm:$0xf]
      %v1085 = vunpack.c.l.b16 %v1073
      %v1086 = vunpack.c.l.b16 %v1074
      %v1087 = vunpack.c.l.b16 %v1075
      %v1088 = vunpack.c.l.b16 %v1076
      %v1089 = vunpack.c.l.b16 %v1077
      %v1090 = vunpack.c.l.b16 %v1078
      %v1091 = vpack.c.b16 %v1086, %v1085
      %v1092 = vpack.c.b16 %v1088, %v1087
      %v1093 = vpack.c.b16 %v1090, %v1089
      %v1097 = vsel %vm892, %v1069, 0
      %v1099 = vsel %vm892, %v1071, 0
      %1101 = vmatpush.bf16.msra.mxu0 0
      %1102 = vmatpush.bf16.msra.mxu0 0
      %1103 = vmatpush.bf16.msra.mxu0 0
      %1104 = vmatpush.bf16.msra.mxu0 0
      %1105 = vmatpush.bf16.msra.mxu0 0
      %1106 = vmatpush.bf16.msra.mxu0 %v1093
      %1107 = vmatpush.bf16.msra.mxu0 %v1092
      %1108 = vmatpush.bf16.msra.mxu0 %v1091
      %1109 = vmatmul.bf16.gmra.mxu0 %v897
      %v1110 = vpop.f32.mrf.mxu0
      %v1111 = vadd.f32 0.0, %v1110
      %v1112 = vpop.f32.mrf.mxu0
      %v1113 = vadd.f32 0.0, %v1112
      %1114 = vmatmul.bf16.gmra.mxu0 %v899
      %v1115 = vpop.f32.mrf.mxu0
      %v1116 = vadd.f32 0.0, %v1115
      %v1117 = vpop.f32.mrf.mxu0
      %v1118 = vadd.f32 0.0, %v1117
      %1119 = vmatmul.bf16.gmra.mxu0 %v901
      %v1120 = vpop.f32.mrf.mxu0
      %v1121 = vadd.f32 0.0, %v1120
      %v1122 = vpop.f32.mrf.mxu0
      %v1123 = vadd.f32 0.0, %v1122
      %1124 = vmatmul.bf16.gmra.mxu0 %v903
      %v1125 = vpop.f32.mrf.mxu0
      %v1126 = vadd.f32 0.0, %v1125
      %v1127 = vpop.f32.mrf.mxu0
      %v1128 = vadd.f32 0.0, %v1127
      %1129 = vmatmul.bf16.gmra.mxu0 %v905
      %v1130 = vpop.f32.mrf.mxu0
      %v1131 = vadd.f32 0.0, %v1130
      %v1132 = vpop.f32.mrf.mxu0
      %v1133 = vadd.f32 0.0, %v1132
      %1134 = vmatmul.bf16.gmra.mxu0 %v907
      %v1135 = vpop.f32.mrf.mxu0
      %v1136 = vadd.f32 0.0, %v1135
      %v1137 = vpop.f32.mrf.mxu0
      %v1138 = vadd.f32 0.0, %v1137
      %1139 = vmatmul.bf16.gmra.mxu0 %v1097
      %v1140 = vpop.f32.mrf.mxu0
      %v1141 = vadd.f32 0.0, %v1140
      %v1142 = vpop.f32.mrf.mxu0
      %v1143 = vadd.f32 0.0, %v1142
      %1144 = vmatmul.bf16.gmra.mxu0 %v1099
      %v1145 = vpop.f32.mrf.mxu0
      %v1146 = vadd.f32 0.0, %v1145
      %v1147 = vpop.f32.mrf.mxu0
      %v1148 = vadd.f32 0.0, %v1147
      %1149 = vdwg.mxu0
      %v1150 = vadd.f32 %v990, %v1111
      %v1151 = vadd.f32 %v992, %v1113
      %v1152 = vadd.f32 %v995, %v1116
      %v1153 = vadd.f32 %v997, %v1118
      %v1154 = vadd.f32 %v1000, %v1121
      %v1155 = vadd.f32 %v1002, %v1123
      %v1156 = vadd.f32 %v1005, %v1126
      %v1157 = vadd.f32 %v1007, %v1128
      %v1158 = vadd.f32 %v1010, %v1131
      %v1159 = vadd.f32 %v1012, %v1133
      %v1160 = vadd.f32 %v1015, %v1136
      %v1161 = vadd.f32 %v1017, %v1138
      %v1162 = vadd.f32 %v1020, %v1141
      %v1163 = vadd.f32 %v1022, %v1143
      %v1164 = vadd.f32 %v1025, %v1146
      %v1165 = vadd.f32 %v1027, %v1148
      %v1166 = vld [vmem:[%s4] sm:$0x1]
      %v1168 = vperm.slane %v1166, 0
      %v1170 = vadd.f32 %v1150, %v1168
      %v1171 = vadd.f32 %v1151, %v1168
      %v1172 = vadd.f32 %v1152, %v1168
      %v1173 = vadd.f32 %v1153, %v1168
      %v1174 = vadd.f32 %v1154, %v1168
      %v1175 = vadd.f32 %v1155, %v1168
      %v1176 = vadd.f32 %v1156, %v1168
      %v1177 = vadd.f32 %v1157, %v1168
      %v1178 = vadd.f32 %v1158, %v1168
      %v1179 = vadd.f32 %v1159, %v1168
      %v1180 = vadd.f32 %v1160, %v1168
      %v1181 = vadd.f32 %v1161, %v1168
      %v1182 = vadd.f32 %v1162, %v1168
      %v1183 = vadd.f32 %v1163, %v1168
      %v1184 = vadd.f32 %v1164, %v1168
      %v1185 = vadd.f32 %v1165, %v1168
      %vm1186 = vcmp.ge.f32.partialorder %v1170, 0.0
      %vm1187 = vcmp.ge.f32.partialorder %v1171, 0.0
      %vm1188 = vcmp.ge.f32.partialorder %v1172, 0.0
      %vm1189 = vcmp.ge.f32.partialorder %v1173, 0.0
      %vm1190 = vcmp.ge.f32.partialorder %v1174, 0.0
      %vm1191 = vcmp.ge.f32.partialorder %v1175, 0.0
      %vm1192 = vcmp.ge.f32.partialorder %v1176, 0.0
      %vm1193 = vcmp.ge.f32.partialorder %v1177, 0.0
      %vm1194 = vcmp.ge.f32.partialorder %v1178, 0.0
      %vm1195 = vcmp.ge.f32.partialorder %v1179, 0.0
      %vm1196 = vcmp.ge.f32.partialorder %v1180, 0.0
      %vm1197 = vcmp.ge.f32.partialorder %v1181, 0.0
      %vm1198 = vcmp.ge.f32.partialorder %v1182, 0.0
      %vm1199 = vcmp.ge.f32.partialorder %v1183, 0.0
      %vm1200 = vcmp.ge.f32.partialorder %v1184, 0.0
      %vm1201 = vcmp.ge.f32.partialorder %v1185, 0.0
      %v1202 = vmul.f32 %v1170, 0.1
      %v1203 = vmul.f32 %v1171, 0.1
      %v1204 = vmul.f32 %v1172, 0.1
      %v1205 = vmul.f32 %v1173, 0.1
      %v1206 = vmul.f32 %v1174, 0.1
      %v1207 = vmul.f32 %v1175, 0.1
      %v1208 = vmul.f32 %v1176, 0.1
      %v1209 = vmul.f32 %v1177, 0.1
      %v1210 = vmul.f32 %v1178, 0.1
      %v1211 = vmul.f32 %v1179, 0.1
      %v1212 = vmul.f32 %v1180, 0.1
      %v1213 = vmul.f32 %v1181, 0.1
      %v1214 = vmul.f32 %v1182, 0.1
      %v1215 = vmul.f32 %v1183, 0.1
      %v1216 = vmul.f32 %v1184, 0.1
      %v1217 = vmul.f32 %v1185, 0.1
      %v1218 = vsel %vm1186, %v1170, %v1202
      %v1219 = vsel %vm1187, %v1171, %v1203
      %v1220 = vsel %vm1188, %v1172, %v1204
      %v1221 = vsel %vm1189, %v1173, %v1205
      %v1222 = vsel %vm1190, %v1174, %v1206
      %v1223 = vsel %vm1191, %v1175, %v1207
      %v1224 = vsel %vm1192, %v1176, %v1208
      %v1225 = vsel %vm1193, %v1177, %v1209
      %v1226 = vsel %vm1194, %v1178, %v1210
      %v1227 = vsel %vm1195, %v1179, %v1211
      %v1228 = vsel %vm1196, %v1180, %v1212
      %v1229 = vsel %vm1197, %v1181, %v1213
      %v1230 = vsel %vm1198, %v1182, %v1214
      %v1231 = vsel %vm1199, %v1183, %v1215
      %v1232 = vsel %vm1200, %v1184, %v1216
      %v1233 = vsel %vm1201, %v1185, %v1217
      %v1234 = vpack.c.bf16 %v1218, %v1218
      %v1235 = vpack.c.bf16 %v1219, %v1219
      %v1236 = vpack.c.bf16 %v1220, %v1220
      %v1237 = vpack.c.bf16 %v1221, %v1221
      %v1238 = vpack.c.bf16 %v1222, %v1222
      %v1239 = vpack.c.bf16 %v1223, %v1223
      %v1240 = vpack.c.bf16 %v1224, %v1224
      %v1241 = vpack.c.bf16 %v1225, %v1225
      %v1242 = vpack.c.bf16 %v1226, %v1226
      %v1243 = vpack.c.bf16 %v1227, %v1227
      %v1244 = vpack.c.bf16 %v1228, %v1228
      %v1245 = vpack.c.bf16 %v1229, %v1229
      %v1246 = vpack.c.bf16 %v1230, %v1230
      %v1247 = vpack.c.bf16 %v1231, %v1231
      %v1248 = vpack.c.bf16 %v1232, %v1232
      %v1249 = vpack.c.bf16 %v1233, %v1233
      %vm1250 = vcmask 519168
      %1251 = vst.msk [vmem:[%s419] sm:$0xf] %vm1250, %v1234
      %1252 = vst.msk [vmem:[%s419 + $0x4] sm:$0xf] %vm1250, %v1235
      %1253 = vst.msk [vmem:[%s419 + $0x8] sm:$0xf] %vm1250, %v1236
      %1254 = vst.msk [vmem:[%s419 + $0xc] sm:$0xf] %vm1250, %v1237
      %1255 = vst.msk [vmem:[%s419 + $0x10] sm:$0xf] %vm1250, %v1238
      %1256 = vst.msk [vmem:[%s419 + $0x14] sm:$0xf] %vm1250, %v1239
      %1257 = vst.msk [vmem:[%s419 + $0x18] sm:$0xf] %vm1250, %v1240
      %1258 = vst.msk [vmem:[%s419 + $0x1c] sm:$0xf] %vm1250, %v1241
      %1259 = vst.msk [vmem:[%s419 + $0x20] sm:$0xf] %vm1250, %v1242
      %1260 = vst.msk [vmem:[%s419 + $0x24] sm:$0xf] %vm1250, %v1243
      %1261 = vst.msk [vmem:[%s419 + $0x28] sm:$0xf] %vm1250, %v1244
      %1262 = vst.msk [vmem:[%s419 + $0x2c] sm:$0xf] %vm1250, %v1245
      %1263 = vst.msk [vmem:[%s419 + $0x30] sm:$0xf] %vm1250, %v1246
      %1264 = vst.msk [vmem:[%s419 + $0x34] sm:$0xf] %vm1250, %v1247
      %1265 = vst.msk [vmem:[%s419 + $0x38] sm:$0xf] %vm1250, %v1248
      %1266 = vst.msk [vmem:[%s419 + $0x3c] sm:$0xf] %vm1250, %v1249
      %s1267 = smul.u32 4, %s21
      %p1268 = scmp.lt.s32.totalorder %s20, 1
      %s1269 = scalar_select %p1268, %s20, 1
      %p1270 = scmp.lt.s32.totalorder %s1267, 31
      %s1271 = scalar_select %p1270, %s1267, 31
      %s1272 = smul.addr %s1271, 4
      %s1273 = smul.addr %s1269, 128
      %s1274 = sadd.s32 %s1272, %s1273
      %s1275 = smul.addr %s1274, 4
      %s1276 = scalar_lea.vmem %s5, %s1275
      // Predicated region
      $region41: #{forward_pallas.9} parent=39 // pred_check
        %p1277 = pneg %p198
      $region42: #{forward_pallas.9} parent=39 // pred_check_branch
        %1279 = sbr.rel (%p1277) target = $region44
      $region43: #{forward_pallas.9} parent=39 // pred_region
        %s1280 = smul.u32 4, %s21
      $region44: #{forward_pallas.9} parent=39 // pred_fallthru
        _
    $region40: #{forward_pallas.9} parent=5 // pred_fallthru
      _
    %p1281 = scmp.le.s32.totalorder 2, %s11
    // Predicated region
    $region45: #{forward_pallas.9} parent=5 // pred_check
      %p1282 = pneg %p1281
    $region46: #{forward_pallas.9} parent=5 // pred_check_branch
      %1284 = sbr.rel (%p1282) target = $region48
    $region47: #{forward_pallas.9} parent=5 // pred_region
      %s1285 = ssub.s32 %s11, 2
      // Predicated region
      $region49: #{forward_pallas.9} parent=47 // pred_check
        %p1286 = pneg %p204
      $region50: #{forward_pallas.9} parent=47 // pred_check_branch
        %1288 = sbr.rel (%p1286) target = $region52
      $region51: #{forward_pallas.9} parent=47 // pred_region
        %s1289 = smul.u32 4, %s23
        %p1290 = scmp.lt.s32.totalorder %s22, 1
        %s1291 = scalar_select %p1290, %s22, 1
        %p1292 = scmp.lt.s32.totalorder %s1289, 31
        %s1293 = scalar_select %p1292, %s1289, 31
        %s1294 = smul.addr %s1293, 4
        %s1295 = smul.addr %s1291, 128
        %s1296 = sadd.s32 %s1294, %s1295
        %s1297 = smul.addr %s1296, 4
        %s1298 = scalar_lea.vmem %s5, %s1297
      $region52: #{forward_pallas.9} parent=47 // pred_fallthru
        _
    $region48: #{forward_pallas.9} parent=5 // pred_fallthru
      _
  $region6: #{forward_pallas.9} parent=0 // loop_footer
    %s15 = sadd.s32 1, %s11
  $region7: #{forward_pallas.9} parent=0 // loop_footer_branch
    %10 = sbr.rel target = $region3
  $region8: #{forward_pallas.9} parent=0 // loop_exit
    _

// kernel: forward_pallas.10
$region0: #{forward_pallas.10}
  #allocation0 [shape = 'u32[]', space=smem, size = 0x4, offset = 0x4, fixed_abs, tag = 'smem constant byte address 0x4 - core index']
  #allocation1 [shape = 'u32[72,128]{1,0:T(1,128)}', space=vmem, size = 0x9000, scoped, tag = 'internal scratch']
  %s0 = inlined_call_operand.vmem [shape: bf16[2,64,64,16], index: 0, kind: input, shape index: {}, may-alias: {0,1,2}]
  %s1 = inlined_call_operand.vmem [shape: bf16[2,64,64,16], index: 1, kind: input, shape index: {}, may-alias: {0,1,2}]
  %s2 = inlined_call_operand.vmem [shape: bf16[2,64,64,16], index: 2, kind: input, shape index: {}, may-alias: {0,1,2}]
  %s3 = inlined_call_operand.vmem [shape: bf16[3,48,16], index: 3, kind: input, shape index: {}]
  %s4 = inlined_call_operand.vmem [shape: f32[1,16], index: 4, kind: input, shape index: {}]
  %s5 = inlined_call_operand.vmem [shape: bf16[2,64,64,16], index: 5, kind: output, shape index: {}]
  %s6 = sld [smem:[#allocation0]]
  $region53: #{forward_pallas.10} parent=0
    _
  %s8 = ssub.s32 1, %s6
  %s9 = scalar_select 0, %s8, %s6
  loop: start=0, step=1, limit=34
  $region2: #{forward_pallas.10} parent=0 // loop_pre_header
    _
  $region3: #{forward_pallas.10} parent=0 // loop_header
    %s11 = sphi 0, %s15
    %p12 = scmp.ge.s32.totalorder %s11, 34
    %s18 = sphi 0, %s30
    %s19 = sphi 0, %s26
    %s20 = sphi 0, %s18
    %s21 = sphi 0, %s19
    %s22 = sphi 0, %s20
    %s23 = sphi 0, %s21
    %s35 = sphi 0, %s37
    %s38 = sphi 0, %s35
    %s39 = sphi 0, %s38
    %s55 = sphi 0, %s39
    %s75 = sphi 0, %s77
    %s78 = sphi 0, %s75
    %s79 = sphi 0, %s78
    %s95 = sphi 0, %s79
    %s115 = sphi 0, %s117
    %s118 = sphi 0, %s115
    %s119 = sphi 0, %s118
    %s135 = sphi 0, %s119
    %s139 = sphi 0, %s139
    %s141 = sphi 0, %s139
    %s142 = sphi 0, %s141
    %s156 = sphi 0, %s142
    %s160 = sphi 0, %s160
    %s162 = sphi 0, %s160
    %s163 = sphi 0, %s162
    %s177 = sphi 0, %s163
    %s185 = sphi 0, %s187
    %s188 = sphi 0, %s185
    %s189 = sphi 0, %s188
    %s205 = sphi 0, %s189
  $region4: #{forward_pallas.10} parent=0 // loop_header_branch
    %14 = sbr.rel (%p12) target = $region8
  $region5: #{forward_pallas.10} parent=0 // loop_body
    %s16 = ssub.s32 %s11, 1
    %s17 = ssub.s32 %s11, 2
    %s24 = sadd.s32 1, %s19
    %p25 = scmp.ge.s32.totalorder %s24, 16
    %s26 = scalar_select %p25, 0, %s24
    %s27 = sadd.s32 1, %s18
    %s28 = scalar_select %p25, %s27, %s18
    %p29 = scmp.ge.s32.totalorder %s28, 2
    %s30 = scalar_select %p29, 0, %s28
    %s31 = ssub.s32 %s18, %s30
    %s32 = ssub.s32 %s19, %s26
    %s33 = sor.u32 %s31, %s32
    %p34 = scmp.eq.s32.totalorder %s33, 0
    %s36 = sadd.s32 %s35, 1
    %s37 = scalar_select %p34, %s35, %s36
    %p40 = pneg %p34
    %p41 = scmp.eq.s32.totalorder %s11, 31
    %p42 = por %p40, %p41
    %p43 = scmp.ne.s32.totalorder %s35, %s38
    %p44 = scmp.eq.s32.totalorder %s11, 0
    %p45 = por %p43, %p44
    %p46 = scmp.ne.s32.totalorder %s35, %s38
    %p47 = scmp.eq.s32.totalorder %s16, 31
    %p48 = por %p46, %p47
    %p49 = scmp.ne.s32.totalorder %s38, %s39
    %p50 = scmp.eq.s32.totalorder %s16, 0
    %p51 = por %p49, %p50
    %p52 = scmp.ne.s32.totalorder %s38, %s39
    %p53 = scmp.eq.s32.totalorder %s17, 31
    %p54 = por %p52, %p53
    %p56 = scmp.ne.s32.totalorder %s39, %s55
    %p57 = scmp.eq.s32.totalorder %s17, 0
    %p58 = por %p56, %p57
    %s59 = smul.u32 %s19, 4
    %s60 = sadd.s32 %s59, 4294967295
    %p61 = scmp.gt.s32.totalorder %s60, 0
    %s62 = scalar_select %p61, %s60, 0
    %p63 = scmp.lt.s32.totalorder %s62, 63
    %s64 = scalar_select %p63, %s62, 63
    %s65 = smul.u32 %s26, 4
    %s66 = sadd.s32 %s65, 4294967295
    %p67 = scmp.gt.s32.totalorder %s66, 0
    %s68 = scalar_select %p67, %s66, 0
    %p69 = scmp.lt.s32.totalorder %s68, 63
    %s70 = scalar_select %p69, %s68, 63
    %s71 = ssub.s32 %s18, %s30
    %s72 = ssub.s32 %s64, %s70
    %s73 = sor.u32 %s71, %s72
    %p74 = scmp.eq.s32.totalorder %s73, 0
    %s76 = sadd.s32 %s75, 1
    %s77 = scalar_select %p74, %s75, %s76
    %p80 = pneg %p74
    %p81 = scmp.eq.s32.totalorder %s11, 31
    %p82 = por %p80, %p81
    %p83 = scmp.ne.s32.totalorder %s75, %s78
    %p84 = scmp.eq.s32.totalorder %s11, 0
    %p85 = por %p83, %p84
    %p86 = scmp.ne.s32.totalorder %s75, %s78
    %p87 = scmp.eq.s32.totalorder %s16, 31
    %p88 = por %p86, %p87
    %p89 = scmp.ne.s32.totalorder %s78, %s79
    %p90 = scmp.eq.s32.totalorder %s16, 0
    %p91 = por %p89, %p90
    %p92 = scmp.ne.s32.totalorder %s78, %s79
    %p93 = scmp.eq.s32.totalorder %s17, 31
    %p94 = por %p92, %p93
    %p96 = scmp.ne.s32.totalorder %s79, %s95
    %p97 = scmp.eq.s32.totalorder %s17, 0
    %p98 = por %p96, %p97
    %s99 = smul.u32 %s19, 4
    %s100 = sadd.s32 %s99, 4
    %p101 = scmp.gt.s32.totalorder %s100, 0
    %s102 = scalar_select %p101, %s100, 0
    %p103 = scmp.lt.s32.totalorder %s102, 63
    %s104 = scalar_select %p103, %s102, 63
    %s105 = smul.u32 %s26, 4
    %s106 = sadd.s32 %s105, 4
    %p107 = scmp.gt.s32.totalorder %s106, 0
    %s108 = scalar_select %p107, %s106, 0
    %p109 = scmp.lt.s32.totalorder %s108, 63
    %s110 = scalar_select %p109, %s108, 63
    %s111 = ssub.s32 %s18, %s30
    %s112 = ssub.s32 %s104, %s110
    %s113 = sor.u32 %s111, %s112
    %p114 = scmp.eq.s32.totalorder %s113, 0
    %s116 = sadd.s32 %s115, 1
    %s117 = scalar_select %p114, %s115, %s116
    %p120 = pneg %p114
    %p121 = scmp.eq.s32.totalorder %s11, 31
    %p122 = por %p120, %p121
    %p123 = scmp.ne.s32.totalorder %s115, %s118
    %p124 = scmp.eq.s32.totalorder %s11, 0
    %p125 = por %p123, %p124
    %p126 = scmp.ne.s32.totalorder %s115, %s118
    %p127 = scmp.eq.s32.totalorder %s16, 31
    %p128 = por %p126, %p127
    %p129 = scmp.ne.s32.totalorder %s118, %s119
    %p130 = scmp.eq.s32.totalorder %s16, 0
    %p131 = por %p129, %p130
    %p132 = scmp.ne.s32.totalorder %s118, %s119
    %p133 = scmp.eq.s32.totalorder %s17, 31
    %p134 = por %p132, %p133
    %p136 = scmp.ne.s32.totalorder %s119, %s135
    %p137 = scmp.eq.s32.totalorder %s17, 0
    %p138 = por %p136, %p137
    %s140 = sadd.s32 %s139, 1
    %p143 = scmp.eq.s32.totalorder %s11, 31
    %p144 = scmp.ne.s32.totalorder %s139, %s141
    %p145 = scmp.eq.s32.totalorder %s11, 0
    %p146 = por %p144, %p145
    %p147 = scmp.ne.s32.totalorder %s139, %s141
    %p148 = scmp.eq.s32.totalorder %s16, 31
    %p149 = por %p147, %p148
    %p150 = scmp.ne.s32.totalorder %s141, %s142
    %p151 = scmp.eq.s32.totalorder %s16, 0
    %p152 = por %p150, %p151
    %p153 = scmp.ne.s32.totalorder %s141, %s142
    %p154 = scmp.eq.s32.totalorder %s17, 31
    %p155 = por %p153, %p154
    %p157 = scmp.ne.s32.totalorder %s142, %s156
    %p158 = scmp.eq.s32.totalorder %s17, 0
    %p159 = por %p157, %p158
    %s161 = sadd.s32 %s160, 1
    %p164 = scmp.eq.s32.totalorder %s11, 31
    %p165 = scmp.ne.s32.totalorder %s160, %s162
    %p166 = scmp.eq.s32.totalorder %s11, 0
    %p167 = por %p165, %p166
    %p168 = scmp.ne.s32.totalorder %s160, %s162
    %p169 = scmp.eq.s32.totalorder %s16, 31
    %p170 = por %p168, %p169
    %p171 = scmp.ne.s32.totalorder %s162, %s163
    %p172 = scmp.eq.s32.totalorder %s16, 0
    %p173 = por %p171, %p172
    %p174 = scmp.ne.s32.totalorder %s162, %s163
    %p175 = scmp.eq.s32.totalorder %s17, 31
    %p176 = por %p174, %p175
    %p178 = scmp.ne.s32.totalorder %s163, %s177
    %p179 = scmp.eq.s32.totalorder %s17, 0
    %p180 = por %p178, %p179
    %s181 = ssub.s32 %s18, %s30
    %s182 = ssub.s32 %s19, %s26
    %s183 = sor.u32 %s181, %s182
    %p184 = scmp.eq.s32.totalorder %s183, 0
    %s186 = sadd.s32 %s185, 1
    %s187 = scalar_select %p184, %s185, %s186
    %p190 = pneg %p184
    %p191 = scmp.eq.s32.totalorder %s11, 31
    %p192 = por %p190, %p191
    %p193 = scmp.ne.s32.totalorder %s185, %s188
    %p194 = scmp.eq.s32.totalorder %s11, 0
    %p195 = por %p193, %p194
    %p196 = scmp.ne.s32.totalorder %s185, %s188
    %p197 = scmp.eq.s32.totalorder %s16, 31
    %p198 = por %p196, %p197
    %p199 = scmp.ne.s32.totalorder %s188, %s189
    %p200 = scmp.eq.s32.totalorder %s16, 0
    %p201 = por %p199, %p200
    %p202 = scmp.ne.s32.totalorder %s188, %s189
    %p203 = scmp.eq.s32.totalorder %s17, 31
    %p204 = por %p202, %p203
    %p206 = scmp.ne.s32.totalorder %s189, %s205
    %p207 = scmp.eq.s32.totalorder %s17, 0
    %p208 = por %p206, %p207
    %p209 = scmp.le.s32.totalorder 1, %s11
    %p210 = scmp.lt.s32.totalorder %s11, 33
    %p211 = pnand %p209, %p210
    %p212 = pneg %p211
    // Predicated region
    $region9: #{forward_pallas.10} parent=5 // pred_check
      _
    $region10: #{forward_pallas.10} parent=5 // pred_check_branch
      %214 = sbr.rel (%p211) target = $region12
    $region11: #{forward_pallas.10} parent=5 // pred_region
      %s215 = ssub.s32 %s11, 1
      // Predicated region
      $region13: #{forward_pallas.10} parent=11 // pred_check
        %p216 = pneg %p152
      $region14: #{forward_pallas.10} parent=11 // pred_check_branch
        %218 = sbr.rel (%p216) target = $region16
      $region15: #{forward_pallas.10} parent=11 // pred_region
        _
      $region16: #{forward_pallas.10} parent=11 // pred_fallthru
        _
      // Predicated region
      $region17: #{forward_pallas.10} parent=11 // pred_check
        %p219 = pneg %p173
      $region18: #{forward_pallas.10} parent=11 // pred_check_branch
        %221 = sbr.rel (%p219) target = $region20
      $region19: #{forward_pallas.10} parent=11 // pred_region
        _
      $region20: #{forward_pallas.10} parent=11 // pred_fallthru
        _
    $region12: #{forward_pallas.10} parent=5 // pred_fallthru
      _
    %p222 = scmp.lt.s32.totalorder %s11, 32
    // Predicated region
    $region21: #{forward_pallas.10} parent=5 // pred_check
      %p223 = pneg %p222
    $region22: #{forward_pallas.10} parent=5 // pred_check_branch
      %225 = sbr.rel (%p223) target = $region24
    $region23: #{forward_pallas.10} parent=5 // pred_region
      // Predicated region
      $region25: #{forward_pallas.10} parent=23 // pred_check
        %p226 = pneg %p45
      $region26: #{forward_pallas.10} parent=23 // pred_check_branch
        %228 = sbr.rel (%p226) target = $region28
      $region27: #{forward_pallas.10} parent=23 // pred_region
        %s229 = smul.u32 4, %s19
        %p230 = scmp.lt.s32.totalorder %s18, 1
        %s231 = scalar_select %p230, %s18, 1
        %p232 = scmp.lt.s32.totalorder %s229, 63
        %s233 = scalar_select %p232, %s229, 63
        %s234 = smul.addr %s233, 8
        %s235 = smul.addr %s231, 512
        %s236 = sadd.s32 %s234, %s235
        %s237 = smul.addr %s236, 4
        %s238 = scalar_lea.vmem %s0, %s237
        %s239 = smul.u32 4, %s19
      $region28: #{forward_pallas.10} parent=23 // pred_fallthru
        _
      // Predicated region
      $region29: #{forward_pallas.10} parent=23 // pred_check
        %p240 = pneg %p85
      $region30: #{forward_pallas.10} parent=23 // pred_check_branch
        %242 = sbr.rel (%p240) target = $region32
      $region31: #{forward_pallas.10} parent=23 // pred_region
        %s243 = smul.u32 %s19, 4
        %s244 = sadd.s32 %s243, 4294967295
        %p245 = scmp.gt.s32.totalorder %s244, 0
        %s246 = scalar_select %p245, %s244, 0
        %p247 = scmp.lt.s32.totalorder %s246, 63
        %s248 = scalar_select %p247, %s246, 63
        %p249 = scmp.lt.s32.totalorder %s18, 1
        %s250 = scalar_select %p249, %s18, 1
        %p251 = scmp.lt.s32.totalorder %s248, 63
        %s252 = scalar_select %p251, %s248, 63
        %s253 = smul.addr %s252, 8
        %s254 = smul.addr %s250, 512
        %s255 = sadd.s32 %s253, %s254
        %s256 = smul.addr %s255, 4
        %s257 = scalar_lea.vmem %s1, %s256
        %s258 = smul.u32 %s19, 4
        %s259 = sadd.s32 %s258, 4294967295
        %p260 = scmp.gt.s32.totalorder %s259, 0
        %s261 = scalar_select %p260, %s259, 0
        %p262 = scmp.lt.s32.totalorder %s261, 63
        %s263 = scalar_select %p262, %s261, 63
      $region32: #{forward_pallas.10} parent=23 // pred_fallthru
        _
      // Predicated region
      $region33: #{forward_pallas.10} parent=23 // pred_check
        %p264 = pneg %p125
      $region34: #{forward_pallas.10} parent=23 // pred_check_branch
        %266 = sbr.rel (%p264) target = $region36
      $region35: #{forward_pallas.10} parent=23 // pred_region
        %s267 = smul.u32 %s19, 4
        %s268 = sadd.s32 %s267, 4
        %p269 = scmp.gt.s32.totalorder %s268, 0
        %s270 = scalar_select %p269, %s268, 0
        %p271 = scmp.lt.s32.totalorder %s270, 63
        %s272 = scalar_select %p271, %s270, 63
        %p273 = scmp.lt.s32.totalorder %s18, 1
        %s274 = scalar_select %p273, %s18, 1
        %p275 = scmp.lt.s32.totalorder %s272, 63
        %s276 = scalar_select %p275, %s272, 63
        %s277 = smul.addr %s276, 8
        %s278 = smul.addr %s274, 512
        %s279 = sadd.s32 %s277, %s278
        %s280 = smul.addr %s279, 4
        %s281 = scalar_lea.vmem %s2, %s280
        %s282 = smul.u32 %s19, 4
        %s283 = sadd.s32 %s282, 4
        %p284 = scmp.gt.s32.totalorder %s283, 0
        %s285 = scalar_select %p284, %s283, 0
        %p286 = scmp.lt.s32.totalorder %s285, 63
        %s287 = scalar_select %p286, %s285, 63
      $region36: #{forward_pallas.10} parent=23 // pred_fallthru
        _
    $region24: #{forward_pallas.10} parent=5 // pred_fallthru
      _
    %p288 = scmp.le.s32.totalorder 1, %s11
    %p289 = scmp.lt.s32.totalorder %s11, 33
    %p290 = pnand %p288, %p289
    %p291 = pneg %p290
    // Predicated region
    $region37: #{forward_pallas.10} parent=5 // pred_check
      _
    $region38: #{forward_pallas.10} parent=5 // pred_check_branch
      %293 = sbr.rel (%p290) target = $region40
    $region39: #{forward_pallas.10} parent=5 // pred_region
      %s294 = ssub.s32 %s11, 1
      %s295 = smul.u32 4, %s21
      %p296 = scmp.lt.s32.totalorder %s20, 1
      %s297 = scalar_select %p296, %s20, 1
      %p298 = scmp.lt.s32.totalorder %s295, 63
      %s299 = scalar_select %p298, %s295, 63
      %s300 = smul.addr %s299, 8
      %s301 = smul.addr %s297, 512
      %s302 = sadd.s32 %s300, %s301
      %s303 = smul.addr %s302, 4
      %s304 = scalar_lea.vmem %s0, %s303
      %p305 = pneg %p51
      %p306 = pneg %p48
      %s307 = smul.u32 %s21, 4
      %s308 = sadd.s32 %s307, 4294967295
      %p309 = scmp.gt.s32.totalorder %s308, 0
      %s310 = scalar_select %p309, %s308, 0
      %p311 = scmp.lt.s32.totalorder %s310, 63
      %s312 = scalar_select %p311, %s310, 63
      %p313 = scmp.lt.s32.totalorder %s20, 1
      %s314 = scalar_select %p313, %s20, 1
      %p315 = scmp.lt.s32.totalorder %s312, 63
      %s316 = scalar_select %p315, %s312, 63
      %s317 = smul.addr %s316, 8
      %s318 = smul.addr %s314, 512
      %s319 = sadd.s32 %s317, %s318
      %s320 = smul.addr %s319, 4
      %s321 = scalar_lea.vmem %s1, %s320
      %p322 = pneg %p91
      %p323 = pneg %p88
      %s324 = smul.u32 %s21, 4
      %s325 = sadd.s32 %s324, 4
      %p326 = scmp.gt.s32.totalorder %s325, 0
      %s327 = scalar_select %p326, %s325, 0
      %p328 = scmp.lt.s32.totalorder %s327, 63
      %s329 = scalar_select %p328, %s327, 63
      %p330 = scmp.lt.s32.totalorder %s20, 1
      %s331 = scalar_select %p330, %s20, 1
      %p332 = scmp.lt.s32.totalorder %s329, 63
      %s333 = scalar_select %p332, %s329, 63
      %s334 = smul.addr %s333, 8
      %s335 = smul.addr %s331, 512
      %s336 = sadd.s32 %s334, %s335
      %s337 = smul.addr %s336, 4
      %s338 = scalar_lea.vmem %s2, %s337
      %p339 = pneg %p131
      %p340 = pneg %p128
      %p341 = pneg %p152
      %p342 = pneg %p149
      %p343 = pneg %p173
      %p344 = pneg %p170
      %p345 = pneg %p201
      %p346 = pneg %p198
      %s347 = smul.u32 4, %s21
      %p348 = scmp.lt.s32.totalorder %s20, 1
      %s349 = scalar_select %p348, %s20, 1
      %p350 = scmp.lt.s32.totalorder %s347, 63
      %s351 = scalar_select %p350, %s347, 63
      %s352 = smul.addr %s351, 8
      %s353 = smul.addr %s349, 512
      %s354 = sadd.s32 %s352, %s353
      %s355 = smul.addr %s354, 4
      %s356 = scalar_lea.vmem %s5, %s355
      %s357 = smul.u32 4, %s21
      %p358 = scmp.lt.s32.totalorder %s20, 1
      %s359 = scalar_select %p358, %s20, 1
      %p360 = scmp.lt.s32.totalorder %s357, 63
      %s361 = scalar_select %p360, %s357, 63
      %s362 = smul.addr %s361, 8
      %s363 = smul.addr %s359, 512
      %s364 = sadd.s32 %s362, %s363
      %s365 = smul.addr %s364, 4
      %s366 = scalar_lea.vmem %s0, %s365
      %s367 = smul.u32 4, %s21
      %s368 = smul.u32 %s21, 4
      %s369 = sadd.s32 %s368, 4294967295
      %p370 = scmp.gt.s32.totalorder %s369, 0
      %s371 = scalar_select %p370, %s369, 0
      %p372 = scmp.lt.s32.totalorder %s371, 63
      %s373 = scalar_select %p372, %s371, 63
      %p374 = scmp.lt.s32.totalorder %s20, 1
      %s375 = scalar_select %p374, %s20, 1
      %p376 = scmp.lt.s32.totalorder %s373, 63
      %s377 = scalar_select %p376, %s373, 63
      %s378 = smul.addr %s377, 8
      %s379 = smul.addr %s375, 512
      %s380 = sadd.s32 %s378, %s379
      %s381 = smul.addr %s380, 4
      %s382 = scalar_lea.vmem %s1, %s381
      %s383 = smul.u32 %s21, 4
      %s384 = sadd.s32 %s383, 4294967295
      %p385 = scmp.gt.s32.totalorder %s384, 0
      %s386 = scalar_select %p385, %s384, 0
      %p387 = scmp.lt.s32.totalorder %s386, 63
      %s388 = scalar_select %p387, %s386, 63
      %s389 = smul.u32 %s21, 4
      %s390 = sadd.s32 %s389, 4
      %p391 = scmp.gt.s32.totalorder %s390, 0
      %s392 = scalar_select %p391, %s390, 0
      %p393 = scmp.lt.s32.totalorder %s392, 63
      %s394 = scalar_select %p393, %s392, 63
      %p395 = scmp.lt.s32.totalorder %s20, 1
      %s396 = scalar_select %p395, %s20, 1
      %p397 = scmp.lt.s32.totalorder %s394, 63
      %s398 = scalar_select %p397, %s394, 63
      %s399 = smul.addr %s398, 8
      %s400 = smul.addr %s396, 512
      %s401 = sadd.s32 %s399, %s400
      %s402 = smul.addr %s401, 4
      %s403 = scalar_lea.vmem %s2, %s402
      %s404 = smul.u32 %s21, 4
      %s405 = sadd.s32 %s404, 4
      %p406 = scmp.gt.s32.totalorder %s405, 0
      %s407 = scalar_select %p406, %s405, 0
      %p408 = scmp.lt.s32.totalorder %s407, 63
      %s409 = scalar_select %p408, %s407, 63
      %s410 = smul.u32 4, %s21
      %p411 = scmp.lt.s32.totalorder %s20, 1
      %s412 = scalar_select %p411, %s20, 1
      %p413 = scmp.lt.s32.totalorder %s410, 63
      %s414 = scalar_select %p413, %s410, 63
      %s415 = smul.addr %s414, 8
      %s416 = smul.addr %s412, 512
      %s417 = sadd.s32 %s415, %s416
      %s418 = smul.addr %s417, 4
      %s419 = scalar_lea.vmem %s5, %s418
      %s420 = smul.u32 4, %s21
      %s422 = smul.u32 %s21, 4
      %s423 = ssub.s32 %s422, 1
      %p424 = scmp.ge.s32.totalorder %s423, 0
      %v425 = vld [vmem:[%s382] sm:$0xf]
      %v426 = vld [vmem:[%s382 + $0x4] sm:$0xf]
      %v427 = vld [vmem:[%s382 + $0x8] sm:$0xf]
      %v428 = vld [vmem:[%s382 + $0xc] sm:$0xf]
      %v429 = vld [vmem:[%s382 + $0x10] sm:$0xf]
      %v430 = vld [vmem:[%s382 + $0x14] sm:$0xf]
      %v431 = vld [vmem:[%s382 + $0x18] sm:$0xf]
      %v432 = vld [vmem:[%s382 + $0x1c] sm:$0xf]
      %s433 = scalar_select %p424, 1, 0
      %v434 = vstv %s433
      %vm435 = vcmp.eq.s32.totalorder %v434, 1
      %v436 = vsel %vm435, %v425, 0
      %v437 = vsel %vm435, %v426, 0
      %v438 = vsel %vm435, %v427, 0
      %v439 = vsel %vm435, %v428, 0
      %v440 = vsel %vm435, %v429, 0
      %v441 = vsel %vm435, %v430, 0
      %v442 = vsel %vm435, %v431, 0
      %v443 = vsel %vm435, %v432, 0
      %s444 = sadd.s32 %s422, 4
      %p445 = scmp.le.s32.totalorder %s444, 63
      %v446 = vld [vmem:[%s403] sm:$0xf]
      %v447 = vld [vmem:[%s403 + $0x4] sm:$0xf]
      %v448 = vld [vmem:[%s403 + $0x8] sm:$0xf]
      %v449 = vld [vmem:[%s403 + $0xc] sm:$0xf]
      %v450 = vld [vmem:[%s403 + $0x10] sm:$0xf]
      %v451 = vld [vmem:[%s403 + $0x14] sm:$0xf]
      %v452 = vld [vmem:[%s403 + $0x18] sm:$0xf]
      %v453 = vld [vmem:[%s403 + $0x1c] sm:$0xf]
      %s454 = scalar_select %p445, 1, 0
      %v455 = vstv %s454
      %vm456 = vcmp.eq.s32.totalorder %v455, 1
      %v457 = vsel %vm456, %v446, 0
      %v458 = vsel %vm456, %v447, 0
      %v459 = vsel %vm456, %v448, 0
      %v460 = vsel %vm456, %v449, 0
      %v461 = vsel %vm456, %v450, 0
      %v462 = vsel %vm456, %v451, 0
      %v463 = vsel %vm456, %v452, 0
      %v464 = vsel %vm456, %v453, 0
      %v465 = vld [vmem:[%s366] sm:$0xf]
      %v466 = vld [vmem:[%s366 + $0x4] sm:$0xf]
      %v467 = vld [vmem:[%s366 + $0x8] sm:$0xf]
      %v468 = vld [vmem:[%s366 + $0xc] sm:$0xf]
      %v469 = vld [vmem:[%s366 + $0x10] sm:$0xf]
      %v470 = vld [vmem:[%s366 + $0x14] sm:$0xf]
      %v471 = vld [vmem:[%s366 + $0x18] sm:$0xf]
      %v472 = vld [vmem:[%s366 + $0x1c] sm:$0xf]
      %v473 = vld [vmem:[%s366 + $0x20] sm:$0xf]
      %v474 = vld [vmem:[%s366 + $0x24] sm:$0xf]
      %v475 = vld [vmem:[%s366 + $0x28] sm:$0xf]
      %v476 = vld [vmem:[%s366 + $0x2c] sm:$0xf]
      %v477 = vld [vmem:[%s366 + $0x30] sm:$0xf]
      %v478 = vld [vmem:[%s366 + $0x34] sm:$0xf]
      %v479 = vld [vmem:[%s366 + $0x38] sm:$0xf]
      %v480 = vld [vmem:[%s366 + $0x3c] sm:$0xf]
      %v481 = vld [vmem:[%s366 + $0x40] sm:$0xf]
      %v482 = vld [vmem:[%s366 + $0x44] sm:$0xf]
      %v483 = vld [vmem:[%s366 + $0x48] sm:$0xf]
      %v484 = vld [vmem:[%s366 + $0x4c] sm:$0xf]
      %v485 = vld [vmem:[%s366 + $0x50] sm:$0xf]
      %v486 = vld [vmem:[%s366 + $0x54] sm:$0xf]
      %v487 = vld [vmem:[%s366 + $0x58] sm:$0xf]
      %v488 = vld [vmem:[%s366 + $0x5c] sm:$0xf]
      %v489 = vld [vmem:[%s366 + $0x60] sm:$0xf]
      %v490 = vld [vmem:[%s366 + $0x64] sm:$0xf]
      %v491 = vld [vmem:[%s366 + $0x68] sm:$0xf]
      %v492 = vld [vmem:[%s366 + $0x6c] sm:$0xf]
      %v493 = vld [vmem:[%s366 + $0x70] sm:$0xf]
      %v494 = vld [vmem:[%s366 + $0x74] sm:$0xf]
      %v495 = vld [vmem:[%s366 + $0x78] sm:$0xf]
      %v496 = vld [vmem:[%s366 + $0x7c] sm:$0xf]
      %v545 = vunpack.c.l.b16 %v436
      %v546 = vunpack.c.l.b16 %v437
      %v547 = vunpack.c.l.b16 %v438
      %v548 = vunpack.c.l.b16 %v439
      %v549 = vunpack.c.l.b16 %v440
      %v550 = vunpack.c.l.b16 %v441
      %v551 = vunpack.c.l.b16 %v442
      %v552 = vunpack.c.l.b16 %v443
      %v553 = vunpack.c.l.b16 %v465
      %v554 = vunpack.c.l.b16 %v466
      %v555 = vunpack.c.l.b16 %v467
      %v556 = vunpack.c.l.b16 %v468
      %v557 = vunpack.c.l.b16 %v469
      %v558 = vunpack.c.l.b16 %v470
      %v559 = vunpack.c.l.b16 %v471
      %v560 = vunpack.c.l.b16 %v472
      %v561 = vunpack.c.l.b16 %v473
      %v562 = vunpack.c.l.b16 %v474
      %v563 = vunpack.c.l.b16 %v475
      %v564 = vunpack.c.l.b16 %v476
      %v565 = vunpack.c.l.b16 %v477
      %v566 = vunpack.c.l.b16 %v478
      %v567 = vunpack.c.l.b16 %v479
      %v568 = vunpack.c.l.b16 %v480
      %v569 = vunpack.c.l.b16 %v481
      %v570 = vunpack.c.l.b16 %v482
      %v571 = vunpack.c.l.b16 %v483
      %v572 = vunpack.c.l.b16 %v484
      %v573 = vunpack.c.l.b16 %v485
      %v574 = vunpack.c.l.b16 %v486
      %v575 = vunpack.c.l.b16 %v487
      %v576 = vunpack.c.l.b16 %v488
      %v577 = vunpack.c.l.b16 %v489
      %v578 = vunpack.c.l.b16 %v490
      %v579 = vunpack.c.l.b16 %v491
      %v580 = vunpack.c.l.b16 %v492
      %v581 = vunpack.c.l.b16 %v493
      %v582 = vunpack.c.l.b16 %v494
      %v583 = vunpack.c.l.b16 %v495
      %v584 = vunpack.c.l.b16 %v496
      %v585 = vunpack.c.l.b16 %v457
      %v586 = vunpack.c.l.b16 %v458
      %v587 = vunpack.c.l.b16 %v459
      %v588 = vunpack.c.l.b16 %v460
      %v589 = vunpack.c.l.b16 %v461
      %v590 = vunpack.c.l.b16 %v462
      %v591 = vunpack.c.l.b16 %v463
      %v592 = vunpack.c.l.b16 %v464
      %v593 = vpack.c.b16 %v546, %v545
      %v594 = vpack.c.b16 %v548, %v547
      %v595 = vpack.c.b16 %v550, %v549
      %v596 = vpack.c.b16 %v552, %v551
      %v597 = vpack.c.b16 %v554, %v553
      %v598 = vpack.c.b16 %v556, %v555
      %v599 = vpack.c.b16 %v558, %v557
      %v600 = vpack.c.b16 %v560, %v559
      %v601 = vpack.c.b16 %v562, %v561
      %v602 = vpack.c.b16 %v564, %v563
      %v603 = vpack.c.b16 %v566, %v565
      %v604 = vpack.c.b16 %v568, %v567
      %v605 = vpack.c.b16 %v570, %v569
      %v606 = vpack.c.b16 %v572, %v571
      %v607 = vpack.c.b16 %v574, %v573
      %v608 = vpack.c.b16 %v576, %v575
      %v609 = vpack.c.b16 %v578, %v577
      %v610 = vpack.c.b16 %v580, %v579
      %v611 = vpack.c.b16 %v582, %v581
      %v612 = vpack.c.b16 %v584, %v583
      %v613 = vpack.c.b16 %v586, %v585
      %v614 = vpack.c.b16 %v588, %v587
      %v615 = vpack.c.b16 %v590, %v589
      %v616 = vpack.c.b16 %v592, %v591
      %vm617 = vsmask.f32 256
      %v619 = vshrl.u32 %v593, 16
      %v621 = vrot.slane %v619, 7
      %v622 = vshll.u32 %v593, 16
      %v624 = vor.u32 %v621, %v622
      %v626 = vshrl.u32 %v594, 16
      %v628 = vrot.slane %v626, 7
      %v629 = vshll.u32 %v594, 16
      %v631 = vor.u32 %v628, %v629
      %v632 = vsel %vm617, %v621, %v631
      %v634 = vshrl.u32 %v595, 16
      %v636 = vrot.slane %v634, 7
      %v637 = vshll.u32 %v595, 16
      %v639 = vor.u32 %v636, %v637
      %v640 = vsel %vm617, %v628, %v639
      %v642 = vshrl.u32 %v596, 16
      %v644 = vrot.slane %v642, 7
      %v645 = vshll.u32 %v596, 16
      %v647 = vor.u32 %v644, %v645
      %v648 = vsel %vm617, %v636, %v647
      %v650 = vshrl.u32 %v597, 16
      %v652 = vrot.slane %v650, 7
      %v653 = vshll.u32 %v597, 16
      %v655 = vor.u32 %v652, %v653
      %v657 = vshrl.u32 %v598, 16
      %v659 = vrot.slane %v657, 7
      %v660 = vshll.u32 %v598, 16
      %v662 = vor.u32 %v659, %v660
      %v663 = vsel %vm617, %v652, %v662
      %v665 = vshrl.u32 %v599, 16
      %v667 = vrot.slane %v665, 7
      %v668 = vshll.u32 %v599, 16
      %v670 = vor.u32 %v667, %v668
      %v671 = vsel %vm617, %v659, %v670
      %v673 = vshrl.u32 %v600, 16
      %v675 = vrot.slane %v673, 7
      %v676 = vshll.u32 %v600, 16
      %v678 = vor.u32 %v675, %v676
      %v679 = vsel %vm617, %v667, %v678
      %v681 = vshrl.u32 %v601, 16
      %v683 = vrot.slane %v681, 7
      %v684 = vshll.u32 %v601, 16
      %v686 = vor.u32 %v683, %v684
      %v688 = vshrl.u32 %v602, 16
      %v690 = vrot.slane %v688, 7
      %v691 = vshll.u32 %v602, 16
      %v693 = vor.u32 %v690, %v691
      %v694 = vsel %vm617, %v683, %v693
      %v696 = vshrl.u32 %v603, 16
      %v698 = vrot.slane %v696, 7
      %v699 = vshll.u32 %v603, 16
      %v701 = vor.u32 %v698, %v699
      %v702 = vsel %vm617, %v690, %v701
      %v704 = vshrl.u32 %v604, 16
      %v706 = vrot.slane %v704, 7
      %v707 = vshll.u32 %v604, 16
      %v709 = vor.u32 %v706, %v707
      %v710 = vsel %vm617, %v698, %v709
      %v712 = vshrl.u32 %v605, 16
      %v714 = vrot.slane %v712, 7
      %v715 = vshll.u32 %v605, 16
      %v717 = vor.u32 %v714, %v715
      %v719 = vshrl.u32 %v606, 16
      %v721 = vrot.slane %v719, 7
      %v722 = vshll.u32 %v606, 16
      %v724 = vor.u32 %v721, %v722
      %v725 = vsel %vm617, %v714, %v724
      %v727 = vshrl.u32 %v607, 16
      %v729 = vrot.slane %v727, 7
      %v730 = vshll.u32 %v607, 16
      %v732 = vor.u32 %v729, %v730
      %v733 = vsel %vm617, %v721, %v732
      %v735 = vshrl.u32 %v608, 16
      %v737 = vrot.slane %v735, 7
      %v738 = vshll.u32 %v608, 16
      %v740 = vor.u32 %v737, %v738
      %v741 = vsel %vm617, %v729, %v740
      %v743 = vshrl.u32 %v609, 16
      %v745 = vrot.slane %v743, 7
      %v746 = vshll.u32 %v609, 16
      %v748 = vor.u32 %v745, %v746
      %v750 = vshrl.u32 %v610, 16
      %v752 = vrot.slane %v750, 7
      %v753 = vshll.u32 %v610, 16
      %v755 = vor.u32 %v752, %v753
      %v756 = vsel %vm617, %v745, %v755
      %v758 = vshrl.u32 %v611, 16
      %v760 = vrot.slane %v758, 7
      %v761 = vshll.u32 %v611, 16
      %v763 = vor.u32 %v760, %v761
      %v764 = vsel %vm617, %v752, %v763
      %v766 = vshrl.u32 %v612, 16
      %v768 = vrot.slane %v766, 7
      %v769 = vshll.u32 %v612, 16
      %v771 = vor.u32 %v768, %v769
      %v772 = vsel %vm617, %v760, %v771
      %v774 = vshrl.u32 %v613, 16
      %v776 = vrot.slane %v774, 7
      %v777 = vshll.u32 %v613, 16
      %v779 = vor.u32 %v776, %v777
      %v781 = vshrl.u32 %v614, 16
      %v783 = vrot.slane %v781, 7
      %v784 = vshll.u32 %v614, 16
      %v786 = vor.u32 %v783, %v784
      %v787 = vsel %vm617, %v776, %v786
      %v789 = vshrl.u32 %v615, 16
      %v791 = vrot.slane %v789, 7
      %v792 = vshll.u32 %v615, 16
      %v794 = vor.u32 %v791, %v792
      %v795 = vsel %vm617, %v783, %v794
      %v797 = vshrl.u32 %v616, 16
      %v799 = vrot.slane %v797, 7
      %v800 = vshll.u32 %v616, 16
      %v802 = vor.u32 %v799, %v800
      %v803 = vsel %vm617, %v791, %v802
      %vm816 = vcmask 1040384
      %vm817 = vmand %vm816, %vm617
      %v818 = vsel %vm817, 0, %v624
      %v819 = vsel %vm817, 0, %v655
      %v820 = vsel %vm817, 0, %v686
      %v821 = vsel %vm817, 0, %v717
      %v822 = vsel %vm817, 0, %v748
      %v823 = vsel %vm817, 0, %v779
      %v824 = vsel %vm817, %v644, 0
      %v825 = vsel %vm817, %v675, 0
      %v826 = vsel %vm817, %v706, 0
      %v827 = vsel %vm817, %v737, 0
      %v828 = vsel %vm817, %v768, 0
      %v829 = vsel %vm817, %v799, 0
      %vm830 = vsmask.f32 7424
      %v832 = vshrl.u32 %v818, 16
      %v834 = vshll.u32 %v818, 16
      %v836 = vrot.slane %v834, 1
      %v837 = vor.u32 %v832, %v836
      %v839 = vshll.u32 %v632, 16
      %v841 = vrot.slane %v839, 1
      %v842 = vsel %vm830, %v837, %v841
      %v843 = vshrl.u32 %v632, 16
      %v845 = vor.u32 %v843, %v841
      %v847 = vshll.u32 %v640, 16
      %v849 = vrot.slane %v847, 1
      %v850 = vsel %vm830, %v845, %v849
      %v851 = vshrl.u32 %v640, 16
      %v853 = vor.u32 %v851, %v849
      %v855 = vshll.u32 %v648, 16
      %v857 = vrot.slane %v855, 1
      %v858 = vsel %vm830, %v853, %v857
      %v859 = vshrl.u32 %v648, 16
      %v861 = vor.u32 %v859, %v857
      %v863 = vshll.u32 %v824, 16
      %v865 = vrot.slane %v863, 1
      %v866 = vsel %vm830, %v861, %v865
      %v868 = vshrl.u32 %v819, 16
      %v870 = vshll.u32 %v819, 16
      %v872 = vrot.slane %v870, 1
      %v873 = vor.u32 %v868, %v872
      %v875 = vshll.u32 %v663, 16
      %v877 = vrot.slane %v875, 1
      %v878 = vsel %vm830, %v873, %v877
      %v879 = vshrl.u32 %v663, 16
      %v881 = vor.u32 %v879, %v877
      %v883 = vshll.u32 %v671, 16
      %v885 = vrot.slane %v883, 1
      %v886 = vsel %vm830, %v881, %v885
      %v887 = vshrl.u32 %v671, 16
      %v889 = vor.u32 %v887, %v885
      %v891 = vshll.u32 %v679, 16
      %v893 = vrot.slane %v891, 1
      %v894 = vsel %vm830, %v889, %v893
      %v895 = vshrl.u32 %v679, 16
      %v897 = vor.u32 %v895, %v893
      %v899 = vshll.u32 %v825, 16
      %v901 = vrot.slane %v899, 1
      %v902 = vsel %vm830, %v897, %v901
      %v904 = vshrl.u32 %v820, 16
      %v906 = vshll.u32 %v820, 16
      %v908 = vrot.slane %v906, 1
      %v909 = vor.u32 %v904, %v908
      %v911 = vshll.u32 %v694, 16
      %v913 = vrot.slane %v911, 1
      %v914 = vsel %vm830, %v909, %v913
      %v915 = vshrl.u32 %v694, 16
      %v917 = vor.u32 %v915, %v913
      %v919 = vshll.u32 %v702, 16
      %v921 = vrot.slane %v919, 1
      %v922 = vsel %vm830, %v917, %v921
      %v923 = vshrl.u32 %v702, 16
      %v925 = vor.u32 %v923, %v921
      %v927 = vshll.u32 %v710, 16
      %v929 = vrot.slane %v927, 1
      %v930 = vsel %vm830, %v925, %v929
      %v931 = vshrl.u32 %v710, 16
      %v933 = vor.u32 %v931, %v929
      %v935 = vshll.u32 %v826, 16
      %v937 = vrot.slane %v935, 1
      %v938 = vsel %vm830, %v933, %v937
      %v940 = vshrl.u32 %v821, 16
      %v942 = vshll.u32 %v821, 16
      %v944 = vrot.slane %v942, 1
      %v945 = vor.u32 %v940, %v944
      %v947 = vshll.u32 %v725, 16
      %v949 = vrot.slane %v947, 1
      %v950 = vsel %vm830, %v945, %v949
      %v951 = vshrl.u32 %v725, 16
      %v953 = vor.u32 %v951, %v949
      %v955 = vshll.u32 %v733, 16
      %v957 = vrot.slane %v955, 1
      %v958 = vsel %vm830, %v953, %v957
      %v959 = vshrl.u32 %v733, 16
      %v961 = vor.u32 %v959, %v957
      %v963 = vshll.u32 %v741, 16
      %v965 = vrot.slane %v963, 1
      %v966 = vsel %vm830, %v961, %v965
      %v967 = vshrl.u32 %v741, 16
      %v969 = vor.u32 %v967, %v965
      %v971 = vshll.u32 %v827, 16
      %v973 = vrot.slane %v971, 1
      %v974 = vsel %vm830, %v969, %v973
      %975 = vrot.lane.b32.xlu0 %v842, 16
      %v976 = vpop.permute.xlu0 %975
      %977 = vrot.lane.b32.xlu0 %v850, 16
      %v978 = vpop.permute.xlu0 %977
      %979 = vrot.lane.b32.xlu0 %v858, 16
      %v980 = vpop.permute.xlu0 %979
      %981 = vrot.lane.b32.xlu0 %v866, 16
      %v982 = vpop.permute.xlu0 %981
      %983 = vrot.lane.b32.xlu0 %v878, 16
      %v984 = vpop.permute.xlu0 %983
      %985 = vrot.lane.b32.xlu0 %v886, 16
      %v986 = vpop.permute.xlu0 %985
      %987 = vrot.lane.b32.xlu0 %v894, 16
      %v988 = vpop.permute.xlu0 %987
      %989 = vrot.lane.b32.xlu0 %v902, 16
      %v990 = vpop.permute.xlu0 %989
      %991 = vrot.lane.b32.xlu0 %v914, 16
      %v992 = vpop.permute.xlu0 %991
      %993 = vrot.lane.b32.xlu0 %v922, 16
      %v994 = vpop.permute.xlu0 %993
      %995 = vrot.lane.b32.xlu0 %v930, 16
      %v996 = vpop.permute.xlu0 %995
      %997 = vrot.lane.b32.xlu0 %v938, 16
      %v998 = vpop.permute.xlu0 %997
      %999 = vrot.lane.b32.xlu0 %v950, 16
      %v1000 = vpop.permute.xlu0 %999
      %1001 = vrot.lane.b32.xlu0 %v958, 16
      %v1002 = vpop.permute.xlu0 %1001
      %1003 = vrot.lane.b32.xlu0 %v966, 16
      %v1004 = vpop.permute.xlu0 %1003
      %1005 = vrot.lane.b32.xlu0 %v974, 16
      %v1006 = vpop.permute.xlu0 %1005
      %vm1015 = vcmask 1046528
      %v1016 = vrot.slane %v818, 1
      %v1017 = vrot.slane %v632, 1
      %v1018 = vsel %vm1015, %v1016, %v1017
      %v1019 = vrot.slane %v640, 1
      %v1020 = vsel %vm1015, %v1017, %v1019
      %v1021 = vrot.slane %v648, 1
      %v1022 = vsel %vm1015, %v1019, %v1021
      %v1023 = vrot.slane %v824, 1
      %v1024 = vsel %vm1015, %v1021, %v1023
      %v1025 = vrot.slane %v819, 1
      %v1026 = vrot.slane %v663, 1
      %v1027 = vsel %vm1015, %v1025, %v1026
      %v1028 = vrot.slane %v671, 1
      %v1029 = vsel %vm1015, %v1026, %v1028
      %v1030 = vrot.slane %v679, 1
      %v1031 = vsel %vm1015, %v1028, %v1030
      %v1032 = vrot.slane %v825, 1
      %v1033 = vsel %vm1015, %v1030, %v1032
      %v1034 = vrot.slane %v820, 1
      %v1035 = vrot.slane %v694, 1
      %v1036 = vsel %vm1015, %v1034, %v1035
      %v1037 = vrot.slane %v702, 1
      %v1038 = vsel %vm1015, %v1035, %v1037
      %v1039 = vrot.slane %v710, 1
      %v1040 = vsel %vm1015, %v1037, %v1039
      %v1041 = vrot.slane %v826, 1
      %v1042 = vsel %vm1015, %v1039, %v1041
      %v1043 = vrot.slane %v821, 1
      %v1044 = vrot.slane %v725, 1
      %v1045 = vsel %vm1015, %v1043, %v1044
      %v1046 = vrot.slane %v733, 1
      %v1047 = vsel %vm1015, %v1044, %v1046
      %v1048 = vrot.slane %v741, 1
      %v1049 = vsel %vm1015, %v1046, %v1048
      %v1050 = vrot.slane %v827, 1
      %v1051 = vsel %vm1015, %v1048, %v1050
      %1052 = vrot.lane.b32.xlu0 %v1018, 32
      %v1053 = vpop.permute.xlu0 %1052
      %1054 = vrot.lane.b32.xlu0 %v1020, 32
      %v1055 = vpop.permute.xlu0 %1054
      %1056 = vrot.lane.b32.xlu0 %v1022, 32
      %v1057 = vpop.permute.xlu0 %1056
      %1058 = vrot.lane.b32.xlu0 %v1024, 32
      %v1059 = vpop.permute.xlu0 %1058
      %1060 = vrot.lane.b32.xlu0 %v1027, 32
      %v1061 = vpop.permute.xlu0 %1060
      %1062 = vrot.lane.b32.xlu0 %v1029, 32
      %v1063 = vpop.permute.xlu0 %1062
      %1064 = vrot.lane.b32.xlu0 %v1031, 32
      %v1065 = vpop.permute.xlu0 %1064
      %1066 = vrot.lane.b32.xlu0 %v1033, 32
      %v1067 = vpop.permute.xlu0 %1066
      %1068 = vrot.lane.b32.xlu0 %v1036, 32
      %v1069 = vpop.permute.xlu0 %1068
      %1070 = vrot.lane.b32.xlu0 %v1038, 32
      %v1071 = vpop.permute.xlu0 %1070
      %1072 = vrot.lane.b32.xlu0 %v1040, 32
      %v1073 = vpop.permute.xlu0 %1072
      %1074 = vrot.lane.b32.xlu0 %v1042, 32
      %v1075 = vpop.permute.xlu0 %1074
      %1076 = vrot.lane.b32.xlu0 %v1045, 32
      %v1077 = vpop.permute.xlu0 %1076
      %1078 = vrot.lane.b32.xlu0 %v1047, 32
      %v1079 = vpop.permute.xlu0 %1078
      %1080 = vrot.lane.b32.xlu0 %v1049, 32
      %v1081 = vpop.permute.xlu0 %1080
      %1082 = vrot.lane.b32.xlu0 %v1051, 32
      %v1083 = vpop.permute.xlu0 %1082
      %vm1084 = vcmask 130048
      %v1086 = vsel %vm1084, %v818, %v976
      %v1088 = vsel %vm1084, %v632, %v978
      %v1090 = vsel %vm1084, %v640, %v980
      %v1092 = vsel %vm1084, %v648, %v982
      %v1094 = vsel %vm1084, %v819, %v984
      %v1096 = vsel %vm1084, %v663, %v986
      %v1098 = vsel %vm1084, %v671, %v988
      %v1100 = vsel %vm1084, %v679, %v990
      %v1102 = vsel %vm1084, %v820, %v992
      %v1104 = vsel %vm1084, %v694, %v994
      %v1106 = vsel %vm1084, %v702, %v996
      %v1108 = vsel %vm1084, %v710, %v998
      %v1110 = vsel %vm1084, %v821, %v1000
      %v1112 = vsel %vm1084, %v725, %v1002
      %v1114 = vsel %vm1084, %v733, %v1004
      %v1116 = vsel %vm1084, %v741, %v1006
      %vm1117 = vcmask 261120
      %v1119 = vsel %vm1117, %v1086, %v1053
      %v1121 = vsel %vm1117, %v1088, %v1055
      %v1123 = vsel %vm1117, %v1090, %v1057
      %v1125 = vsel %vm1117, %v1092, %v1059
      %v1127 = vsel %vm1117, %v1094, %v1061
      %v1129 = vsel %vm1117, %v1096, %v1063
      %v1131 = vsel %vm1117, %v1098, %v1065
      %v1133 = vsel %vm1117, %v1100, %v1067
      %v1135 = vsel %vm1117, %v1102, %v1069
      %v1137 = vsel %vm1117, %v1104, %v1071
      %v1139 = vsel %vm1117, %v1106, %v1073
      %v1141 = vsel %vm1117, %v1108, %v1075
      %v1143 = vsel %vm1117, %v1110, %v1077
      %v1145 = vsel %vm1117, %v1112, %v1079
      %v1147 = vsel %vm1117, %v1114, %v1081
      %v1149 = vsel %vm1117, %v1116, %v1083
      %v1150 = vld [vmem:[%s3] sm:$0xf]
      %v1151 = vld [vmem:[%s3 + $0x4] sm:$0xf]
      %v1152 = vld [vmem:[%s3 + $0x8] sm:$0xf]
      %v1153 = vld [vmem:[%s3 + $0xc] sm:$0xf]
      %v1154 = vld [vmem:[%s3 + $0x10] sm:$0xf]
      %v1155 = vld [vmem:[%s3 + $0x14] sm:$0xf]
      %v1157 = vshrl.u32 %v822, 16
      %v1159 = vshll.u32 %v822, 16
      %v1161 = vrot.slane %v1159, 1
      %v1162 = vor.u32 %v1157, %v1161
      %v1164 = vshll.u32 %v756, 16
      %v1166 = vrot.slane %v1164, 1
      %v1167 = vsel %vm830, %v1162, %v1166
      %v1168 = vshrl.u32 %v756, 16
      %v1170 = vor.u32 %v1168, %v1166
      %v1172 = vshll.u32 %v764, 16
      %v1174 = vrot.slane %v1172, 1
      %v1175 = vsel %vm830, %v1170, %v1174
      %v1176 = vshrl.u32 %v764, 16
      %v1178 = vor.u32 %v1176, %v1174
      %v1180 = vshll.u32 %v772, 16
      %v1182 = vrot.slane %v1180, 1
      %v1183 = vsel %vm830, %v1178, %v1182
      %v1184 = vshrl.u32 %v772, 16
      %v1186 = vor.u32 %v1184, %v1182
      %v1188 = vshll.u32 %v828, 16
      %v1190 = vrot.slane %v1188, 1
      %v1191 = vsel %vm830, %v1186, %v1190
      %1192 = vrot.lane.b32.xlu0 %v1167, 16
      %v1193 = vpop.permute.xlu0 %1192
      %1194 = vrot.lane.b32.xlu0 %v1175, 16
      %v1195 = vpop.permute.xlu0 %1194
      %1196 = vrot.lane.b32.xlu0 %v1183, 16
      %v1197 = vpop.permute.xlu0 %1196
      %1198 = vrot.lane.b32.xlu0 %v1191, 16
      %v1199 = vpop.permute.xlu0 %1198
      %v1202 = vrot.slane %v822, 1
      %v1203 = vrot.slane %v756, 1
      %v1204 = vsel %vm1015, %v1202, %v1203
      %v1205 = vrot.slane %v764, 1
      %v1206 = vsel %vm1015, %v1203, %v1205
      %v1207 = vrot.slane %v772, 1
      %v1208 = vsel %vm1015, %v1205, %v1207
      %v1209 = vrot.slane %v828, 1
      %v1210 = vsel %vm1015, %v1207, %v1209
      %1211 = vrot.lane.b32.xlu0 %v1204, 32
      %v1212 = vpop.permute.xlu0 %1211
      %1213 = vrot.lane.b32.xlu0 %v1206, 32
      %v1214 = vpop.permute.xlu0 %1213
      %1215 = vrot.lane.b32.xlu0 %v1208, 32
      %v1216 = vpop.permute.xlu0 %1215
      %1217 = vrot.lane.b32.xlu0 %v1210, 32
      %v1218 = vpop.permute.xlu0 %1217
      %v1220 = vsel %vm1084, %v822, %v1193
      %v1222 = vsel %vm1084, %v756, %v1195
      %v1224 = vsel %vm1084, %v764, %v1197
      %v1226 = vsel %vm1084, %v772, %v1199
      %v1228 = vsel %vm1117, %v1220, %v1212
      %v1230 = vsel %vm1117, %v1222, %v1214
      %v1232 = vsel %vm1117, %v1224, %v1216
      %v1234 = vsel %vm1117, %v1226, %v1218
      %s1235 = scalar_lea.vmem %s3, 24
      %v1236 = vld [vmem:[%s1235] sm:$0xf]
      %v1237 = vld [vmem:[%s1235 + $0x4] sm:$0xf]
      %v1238 = vld [vmem:[%s1235 + $0x8] sm:$0xf]
      %v1239 = vld [vmem:[%s1235 + $0xc] sm:$0xf]
      %v1240 = vld [vmem:[%s1235 + $0x10] sm:$0xf]
      %v1241 = vld [vmem:[%s1235 + $0x14] sm:$0xf]
      %v1248 = vunpack.c.l.b16 %v1236
      %v1249 = vunpack.c.l.b16 %v1237
      %v1250 = vunpack.c.l.b16 %v1238
      %v1251 = vunpack.c.l.b16 %v1239
      %v1252 = vunpack.c.l.b16 %v1240
      %v1253 = vunpack.c.l.b16 %v1241
      %v1254 = vpack.c.b16 %v1249, %v1248
      %v1255 = vpack.c.b16 %v1251, %v1250
      %v1256 = vpack.c.b16 %v1253, %v1252
      %vm1260 = vcmask 392192
      %v1261 = vsel %vm1260, %v1127, 0
      %v1263 = vsel %vm1260, %v1129, 0
      %v1265 = vsel %vm1260, %v1131, 0
      %v1267 = vsel %vm1260, %v1133, 0
      %v1269 = vsel %vm1260, %v1135, 0
      %v1271 = vsel %vm1260, %v1137, 0
      %v1273 = vsel %vm1260, %v1139, 0
      %v1275 = vsel %vm1260, %v1141, 0
      %v1277 = vsel %vm1260, %v1143, 0
      %v1279 = vsel %vm1260, %v1145, 0
      %v1281 = vsel %vm1260, %v1147, 0
      %v1283 = vsel %vm1260, %v1149, 0
      %v1285 = vsel %vm1260, %v1228, 0
      %v1287 = vsel %vm1260, %v1230, 0
      %v1289 = vsel %vm1260, %v1232, 0
      %v1291 = vsel %vm1260, %v1234, 0
      %1293 = vmatpush.bf16.msra.mxu0 0
      %1294 = vmatpush.bf16.msra.mxu0 0
      %1295 = vmatpush.bf16.msra.mxu0 0
      %1296 = vmatpush.bf16.msra.mxu0 0
      %1297 = vmatpush.bf16.msra.mxu0 0
      %1298 = vmatpush.bf16.msra.mxu0 %v1256
      %1299 = vmatpush.bf16.msra.mxu0 %v1255
      %1300 = vmatpush.bf16.msra.mxu0 %v1254
      %1301 = vmatmul.bf16.gmra.mxu0 %v1261
      %v1302 = vpop.f32.mrf.mxu0
      %v1303 = vadd.f32 0.0, %v1302
      %v1304 = vpop.f32.mrf.mxu0
      %v1305 = vadd.f32 0.0, %v1304
      %1306 = vmatmul.bf16.gmra.mxu0 %v1263
      %v1307 = vpop.f32.mrf.mxu0
      %v1308 = vadd.f32 0.0, %v1307
      %v1309 = vpop.f32.mrf.mxu0
      %v1310 = vadd.f32 0.0, %v1309
      %1311 = vmatmul.bf16.gmra.mxu0 %v1265
      %v1312 = vpop.f32.mrf.mxu0
      %v1313 = vadd.f32 0.0, %v1312
      %v1314 = vpop.f32.mrf.mxu0
      %v1315 = vadd.f32 0.0, %v1314
      %1316 = vmatmul.bf16.gmra.mxu0 %v1267
      %v1317 = vpop.f32.mrf.mxu0
      %v1318 = vadd.f32 0.0, %v1317
      %v1319 = vpop.f32.mrf.mxu0
      %v1320 = vadd.f32 0.0, %v1319
      %1321 = vmatmul.bf16.gmra.mxu0 %v1269
      %v1322 = vpop.f32.mrf.mxu0
      %v1323 = vadd.f32 0.0, %v1322
      %v1324 = vpop.f32.mrf.mxu0
      %v1325 = vadd.f32 0.0, %v1324
      %1326 = vmatmul.bf16.gmra.mxu0 %v1271
      %v1327 = vpop.f32.mrf.mxu0
      %v1328 = vadd.f32 0.0, %v1327
      %v1329 = vpop.f32.mrf.mxu0
      %v1330 = vadd.f32 0.0, %v1329
      %1331 = vmatmul.bf16.gmra.mxu0 %v1273
      %v1332 = vpop.f32.mrf.mxu0
      %v1333 = vadd.f32 0.0, %v1332
      %v1334 = vpop.f32.mrf.mxu0
      %v1335 = vadd.f32 0.0, %v1334
      %1336 = vmatmul.bf16.gmra.mxu0 %v1275
      %v1337 = vpop.f32.mrf.mxu0
      %v1338 = vadd.f32 0.0, %v1337
      %v1339 = vpop.f32.mrf.mxu0
      %v1340 = vadd.f32 0.0, %v1339
      %1341 = vmatmul.bf16.gmra.mxu0 %v1277
      %v1342 = vpop.f32.mrf.mxu0
      %v1343 = vadd.f32 0.0, %v1342
      %v1344 = vpop.f32.mrf.mxu0
      %v1345 = vadd.f32 0.0, %v1344
      %1346 = vmatmul.bf16.gmra.mxu0 %v1279
      %v1347 = vpop.f32.mrf.mxu0
      %v1348 = vadd.f32 0.0, %v1347
      %v1349 = vpop.f32.mrf.mxu0
      %v1350 = vadd.f32 0.0, %v1349
      %1351 = vmatmul.bf16.gmra.mxu0 %v1281
      %v1352 = vpop.f32.mrf.mxu0
      %v1353 = vadd.f32 0.0, %v1352
      %v1354 = vpop.f32.mrf.mxu0
      %v1355 = vadd.f32 0.0, %v1354
      %1356 = vmatmul.bf16.gmra.mxu0 %v1283
      %v1357 = vpop.f32.mrf.mxu0
      %v1358 = vadd.f32 0.0, %v1357
      %v1359 = vpop.f32.mrf.mxu0
      %v1360 = vadd.f32 0.0, %v1359
      %1361 = vmatmul.bf16.gmra.mxu0 %v1285
      %v1362 = vpop.f32.mrf.mxu0
      %v1363 = vadd.f32 0.0, %v1362
      %v1364 = vpop.f32.mrf.mxu0
      %v1365 = vadd.f32 0.0, %v1364
      %1366 = vmatmul.bf16.gmra.mxu0 %v1287
      %v1367 = vpop.f32.mrf.mxu0
      %v1368 = vadd.f32 0.0, %v1367
      %v1369 = vpop.f32.mrf.mxu0
      %v1370 = vadd.f32 0.0, %v1369
      %1371 = vmatmul.bf16.gmra.mxu0 %v1289
      %v1372 = vpop.f32.mrf.mxu0
      %v1373 = vadd.f32 0.0, %v1372
      %v1374 = vpop.f32.mrf.mxu0
      %v1375 = vadd.f32 0.0, %v1374
      %1376 = vmatmul.bf16.gmra.mxu0 %v1291
      %v1377 = vpop.f32.mrf.mxu0
      %v1378 = vadd.f32 0.0, %v1377
      %v1379 = vpop.f32.mrf.mxu0
      %v1380 = vadd.f32 0.0, %v1379
      %1381 = vdwg.mxu0
      %v1388 = vunpack.c.l.b16 %v1150
      %v1389 = vunpack.c.l.b16 %v1151
      %v1390 = vunpack.c.l.b16 %v1152
      %v1391 = vunpack.c.l.b16 %v1153
      %v1392 = vunpack.c.l.b16 %v1154
      %v1393 = vunpack.c.l.b16 %v1155
      %v1394 = vpack.c.b16 %v1389, %v1388
      %v1395 = vpack.c.b16 %v1391, %v1390
      %v1396 = vpack.c.b16 %v1393, %v1392
      %v1400 = vsel %vm1260, %v1119, 0
      %v1402 = vsel %vm1260, %v1121, 0
      %v1404 = vsel %vm1260, %v1123, 0
      %v1406 = vsel %vm1260, %v1125, 0
      %1408 = vmatpush.bf16.msra.mxu0 0
      %1409 = vmatpush.bf16.msra.mxu0 0
      %1410 = vmatpush.bf16.msra.mxu0 0
      %1411 = vmatpush.bf16.msra.mxu0 0
      %1412 = vmatpush.bf16.msra.mxu0 0
      %1413 = vmatpush.bf16.msra.mxu0 %v1396
      %1414 = vmatpush.bf16.msra.mxu0 %v1395
      %1415 = vmatpush.bf16.msra.mxu0 %v1394
      %1416 = vmatmul.bf16.gmra.mxu0 %v1400
      %v1417 = vpop.f32.mrf.mxu0
      %v1418 = vadd.f32 %v1303, %v1417
      %v1419 = vpop.f32.mrf.mxu0
      %v1420 = vadd.f32 %v1305, %v1419
      %1421 = vmatmul.bf16.gmra.mxu0 %v1402
      %v1422 = vpop.f32.mrf.mxu0
      %v1423 = vadd.f32 %v1308, %v1422
      %v1424 = vpop.f32.mrf.mxu0
      %v1425 = vadd.f32 %v1310, %v1424
      %1426 = vmatmul.bf16.gmra.mxu0 %v1404
      %v1427 = vpop.f32.mrf.mxu0
      %v1428 = vadd.f32 %v1313, %v1427
      %v1429 = vpop.f32.mrf.mxu0
      %v1430 = vadd.f32 %v1315, %v1429
      %1431 = vmatmul.bf16.gmra.mxu0 %v1406
      %v1432 = vpop.f32.mrf.mxu0
      %v1433 = vadd.f32 %v1318, %v1432
      %v1434 = vpop.f32.mrf.mxu0
      %v1435 = vadd.f32 %v1320, %v1434
      %1436 = vmatmul.bf16.gmra.mxu0 %v1261
      %v1437 = vpop.f32.mrf.mxu0
      %v1438 = vadd.f32 %v1323, %v1437
      %v1439 = vpop.f32.mrf.mxu0
      %v1440 = vadd.f32 %v1325, %v1439
      %1441 = vmatmul.bf16.gmra.mxu0 %v1263
      %v1442 = vpop.f32.mrf.mxu0
      %v1443 = vadd.f32 %v1328, %v1442
      %v1444 = vpop.f32.mrf.mxu0
      %v1445 = vadd.f32 %v1330, %v1444
      %1446 = vmatmul.bf16.gmra.mxu0 %v1265
      %v1447 = vpop.f32.mrf.mxu0
      %v1448 = vadd.f32 %v1333, %v1447
      %v1449 = vpop.f32.mrf.mxu0
      %v1450 = vadd.f32 %v1335, %v1449
      %1451 = vmatmul.bf16.gmra.mxu0 %v1267
      %v1452 = vpop.f32.mrf.mxu0
      %v1453 = vadd.f32 %v1338, %v1452
      %v1454 = vpop.f32.mrf.mxu0
      %v1455 = vadd.f32 %v1340, %v1454
      %1456 = vmatmul.bf16.gmra.mxu0 %v1269
      %v1457 = vpop.f32.mrf.mxu0
      %v1458 = vadd.f32 %v1343, %v1457
      %v1459 = vpop.f32.mrf.mxu0
      %v1460 = vadd.f32 %v1345, %v1459
      %1461 = vmatmul.bf16.gmra.mxu0 %v1271
      %v1462 = vpop.f32.mrf.mxu0
      %v1463 = vadd.f32 %v1348, %v1462
      %v1464 = vpop.f32.mrf.mxu0
      %v1465 = vadd.f32 %v1350, %v1464
      %1466 = vmatmul.bf16.gmra.mxu0 %v1273
      %v1467 = vpop.f32.mrf.mxu0
      %v1468 = vadd.f32 %v1353, %v1467
      %v1469 = vpop.f32.mrf.mxu0
      %v1470 = vadd.f32 %v1355, %v1469
      %1471 = vmatmul.bf16.gmra.mxu0 %v1275
      %v1472 = vpop.f32.mrf.mxu0
      %v1473 = vadd.f32 %v1358, %v1472
      %v1474 = vpop.f32.mrf.mxu0
      %v1475 = vadd.f32 %v1360, %v1474
      %1476 = vmatmul.bf16.gmra.mxu0 %v1277
      %v1477 = vpop.f32.mrf.mxu0
      %v1478 = vadd.f32 %v1363, %v1477
      %v1479 = vpop.f32.mrf.mxu0
      %v1480 = vadd.f32 %v1365, %v1479
      %1481 = vmatmul.bf16.gmra.mxu0 %v1279
      %v1482 = vpop.f32.mrf.mxu0
      %v1483 = vadd.f32 %v1368, %v1482
      %v1484 = vpop.f32.mrf.mxu0
      %v1485 = vadd.f32 %v1370, %v1484
      %1486 = vmatmul.bf16.gmra.mxu0 %v1281
      %v1487 = vpop.f32.mrf.mxu0
      %v1488 = vadd.f32 %v1373, %v1487
      %v1489 = vpop.f32.mrf.mxu0
      %v1490 = vadd.f32 %v1375, %v1489
      %1491 = vmatmul.bf16.gmra.mxu0 %v1283
      %v1492 = vpop.f32.mrf.mxu0
      %v1493 = vadd.f32 %v1378, %v1492
      %v1494 = vpop.f32.mrf.mxu0
      %v1495 = vadd.f32 %v1380, %v1494
      %1496 = vdwg.mxu0
      %v1498 = vshrl.u32 %v823, 16
      %v1500 = vshll.u32 %v823, 16
      %v1502 = vrot.slane %v1500, 1
      %v1503 = vor.u32 %v1498, %v1502
      %v1505 = vshll.u32 %v787, 16
      %v1507 = vrot.slane %v1505, 1
      %v1508 = vsel %vm830, %v1503, %v1507
      %v1509 = vshrl.u32 %v787, 16
      %v1511 = vor.u32 %v1509, %v1507
      %v1513 = vshll.u32 %v795, 16
      %v1515 = vrot.slane %v1513, 1
      %v1516 = vsel %vm830, %v1511, %v1515
      %v1517 = vshrl.u32 %v795, 16
      %v1519 = vor.u32 %v1517, %v1515
      %v1521 = vshll.u32 %v803, 16
      %v1523 = vrot.slane %v1521, 1
      %v1524 = vsel %vm830, %v1519, %v1523
      %v1525 = vshrl.u32 %v803, 16
      %v1527 = vor.u32 %v1525, %v1523
      %v1529 = vshll.u32 %v829, 16
      %v1531 = vrot.slane %v1529, 1
      %v1532 = vsel %vm830, %v1527, %v1531
      %1533 = vrot.lane.b32.xlu0 %v1508, 16
      %v1534 = vpop.permute.xlu0 %1533
      %1535 = vrot.lane.b32.xlu0 %v1516, 16
      %v1536 = vpop.permute.xlu0 %1535
      %1537 = vrot.lane.b32.xlu0 %v1524, 16
      %v1538 = vpop.permute.xlu0 %1537
      %1539 = vrot.lane.b32.xlu0 %v1532, 16
      %v1540 = vpop.permute.xlu0 %1539
      %v1543 = vrot.slane %v823, 1
      %v1544 = vrot.slane %v787, 1
      %v1545 = vsel %vm1015, %v1543, %v1544
      %v1546 = vrot.slane %v795, 1
      %v1547 = vsel %vm1015, %v1544, %v1546
      %v1548 = vrot.slane %v803, 1
      %v1549 = vsel %vm1015, %v1546, %v1548
      %v1550 = vrot.slane %v829, 1
      %v1551 = vsel %vm1015, %v1548, %v1550
      %1552 = vrot.lane.b32.xlu0 %v1545, 32
      %v1553 = vpop.permute.xlu0 %1552
      %1554 = vrot.lane.b32.xlu0 %v1547, 32
      %v1555 = vpop.permute.xlu0 %1554
      %1556 = vrot.lane.b32.xlu0 %v1549, 32
      %v1557 = vpop.permute.xlu0 %1556
      %1558 = vrot.lane.b32.xlu0 %v1551, 32
      %v1559 = vpop.permute.xlu0 %1558
      %v1561 = vsel %vm1084, %v823, %v1534
      %v1563 = vsel %vm1084, %v787, %v1536
      %v1565 = vsel %vm1084, %v795, %v1538
      %v1567 = vsel %vm1084, %v803, %v1540
      %v1569 = vsel %vm1117, %v1561, %v1553
      %v1571 = vsel %vm1117, %v1563, %v1555
      %v1573 = vsel %vm1117, %v1565, %v1557
      %v1575 = vsel %vm1117, %v1567, %v1559
      %s1576 = scalar_lea.vmem %s3, 48
      %v1577 = vld [vmem:[%s1576] sm:$0xf]
      %v1578 = vld [vmem:[%s1576 + $0x4] sm:$0xf]
      %v1579 = vld [vmem:[%s1576 + $0x8] sm:$0xf]
      %v1580 = vld [vmem:[%s1576 + $0xc] sm:$0xf]
      %v1581 = vld [vmem:[%s1576 + $0x10] sm:$0xf]
      %v1582 = vld [vmem:[%s1576 + $0x14] sm:$0xf]
      %v1589 = vunpack.c.l.b16 %v1577
      %v1590 = vunpack.c.l.b16 %v1578
      %v1591 = vunpack.c.l.b16 %v1579
      %v1592 = vunpack.c.l.b16 %v1580
      %v1593 = vunpack.c.l.b16 %v1581
      %v1594 = vunpack.c.l.b16 %v1582
      %v1595 = vpack.c.b16 %v1590, %v1589
      %v1596 = vpack.c.b16 %v1592, %v1591
      %v1597 = vpack.c.b16 %v1594, %v1593
      %v1601 = vsel %vm1260, %v1569, 0
      %v1603 = vsel %vm1260, %v1571, 0
      %v1605 = vsel %vm1260, %v1573, 0
      %v1607 = vsel %vm1260, %v1575, 0
      %1609 = vmatpush.bf16.msra.mxu0 0
      %1610 = vmatpush.bf16.msra.mxu0 0
      %1611 = vmatpush.bf16.msra.mxu0 0
      %1612 = vmatpush.bf16.msra.mxu0 0
      %1613 = vmatpush.bf16.msra.mxu0 0
      %1614 = vmatpush.bf16.msra.mxu0 %v1597
      %1615 = vmatpush.bf16.msra.mxu0 %v1596
      %1616 = vmatpush.bf16.msra.mxu0 %v1595
      %1617 = vmatmul.bf16.gmra.mxu0 %v1269
      %v1618 = vpop.f32.mrf.mxu0
      %v1619 = vadd.f32 0.0, %v1618
      %v1620 = vpop.f32.mrf.mxu0
      %v1621 = vadd.f32 0.0, %v1620
      %1622 = vmatmul.bf16.gmra.mxu0 %v1271
      %v1623 = vpop.f32.mrf.mxu0
      %v1624 = vadd.f32 0.0, %v1623
      %v1625 = vpop.f32.mrf.mxu0
      %v1626 = vadd.f32 0.0, %v1625
      %1627 = vmatmul.bf16.gmra.mxu0 %v1273
      %v1628 = vpop.f32.mrf.mxu0
      %v1629 = vadd.f32 0.0, %v1628
      %v1630 = vpop.f32.mrf.mxu0
      %v1631 = vadd.f32 0.0, %v1630
      %1632 = vmatmul.bf16.gmra.mxu0 %v1275
      %v1633 = vpop.f32.mrf.mxu0
      %v1634 = vadd.f32 0.0, %v1633
      %v1635 = vpop.f32.mrf.mxu0
      %v1636 = vadd.f32 0.0, %v1635
      %1637 = vmatmul.bf16.gmra.mxu0 %v1277
      %v1638 = vpop.f32.mrf.mxu0
      %v1639 = vadd.f32 0.0, %v1638
      %v1640 = vpop.f32.mrf.mxu0
      %v1641 = vadd.f32 0.0, %v1640
      %1642 = vmatmul.bf16.gmra.mxu0 %v1279
      %v1643 = vpop.f32.mrf.mxu0
      %v1644 = vadd.f32 0.0, %v1643
      %v1645 = vpop.f32.mrf.mxu0
      %v1646 = vadd.f32 0.0, %v1645
      %1647 = vmatmul.bf16.gmra.mxu0 %v1281
      %v1648 = vpop.f32.mrf.mxu0
      %v1649 = vadd.f32 0.0, %v1648
      %v1650 = vpop.f32.mrf.mxu0
      %v1651 = vadd.f32 0.0, %v1650
      %1652 = vmatmul.bf16.gmra.mxu0 %v1283
      %v1653 = vpop.f32.mrf.mxu0
      %v1654 = vadd.f32 0.0, %v1653
      %v1655 = vpop.f32.mrf.mxu0
      %v1656 = vadd.f32 0.0, %v1655
      %1657 = vmatmul.bf16.gmra.mxu0 %v1285
      %v1658 = vpop.f32.mrf.mxu0
      %v1659 = vadd.f32 0.0, %v1658
      %v1660 = vpop.f32.mrf.mxu0
      %v1661 = vadd.f32 0.0, %v1660
      %1662 = vmatmul.bf16.gmra.mxu0 %v1287
      %v1663 = vpop.f32.mrf.mxu0
      %v1664 = vadd.f32 0.0, %v1663
      %v1665 = vpop.f32.mrf.mxu0
      %v1666 = vadd.f32 0.0, %v1665
      %1667 = vmatmul.bf16.gmra.mxu0 %v1289
      %v1668 = vpop.f32.mrf.mxu0
      %v1669 = vadd.f32 0.0, %v1668
      %v1670 = vpop.f32.mrf.mxu0
      %v1671 = vadd.f32 0.0, %v1670
      %1672 = vmatmul.bf16.gmra.mxu0 %v1291
      %v1673 = vpop.f32.mrf.mxu0
      %v1674 = vadd.f32 0.0, %v1673
      %v1675 = vpop.f32.mrf.mxu0
      %v1676 = vadd.f32 0.0, %v1675
      %1677 = vmatmul.bf16.gmra.mxu0 %v1601
      %v1678 = vpop.f32.mrf.mxu0
      %v1679 = vadd.f32 0.0, %v1678
      %v1680 = vpop.f32.mrf.mxu0
      %v1681 = vadd.f32 0.0, %v1680
      %1682 = vmatmul.bf16.gmra.mxu0 %v1603
      %v1683 = vpop.f32.mrf.mxu0
      %v1684 = vadd.f32 0.0, %v1683
      %v1685 = vpop.f32.mrf.mxu0
      %v1686 = vadd.f32 0.0, %v1685
      %1687 = vmatmul.bf16.gmra.mxu0 %v1605
      %v1688 = vpop.f32.mrf.mxu0
      %v1689 = vadd.f32 0.0, %v1688
      %v1690 = vpop.f32.mrf.mxu0
      %v1691 = vadd.f32 0.0, %v1690
      %1692 = vmatmul.bf16.gmra.mxu0 %v1607
      %v1693 = vpop.f32.mrf.mxu0
      %v1694 = vadd.f32 0.0, %v1693
      %v1695 = vpop.f32.mrf.mxu0
      %v1696 = vadd.f32 0.0, %v1695
      %1697 = vdwg.mxu0
      %v1698 = vadd.f32 %v1418, %v1619
      %v1699 = vadd.f32 %v1420, %v1621
      %v1700 = vadd.f32 %v1423, %v1624
      %v1701 = vadd.f32 %v1425, %v1626
      %v1702 = vadd.f32 %v1428, %v1629
      %v1703 = vadd.f32 %v1430, %v1631
      %v1704 = vadd.f32 %v1433, %v1634
      %v1705 = vadd.f32 %v1435, %v1636
      %v1706 = vadd.f32 %v1438, %v1639
      %v1707 = vadd.f32 %v1440, %v1641
      %v1708 = vadd.f32 %v1443, %v1644
      %v1709 = vadd.f32 %v1445, %v1646
      %v1710 = vadd.f32 %v1448, %v1649
      %v1711 = vadd.f32 %v1450, %v1651
      %v1712 = vadd.f32 %v1453, %v1654
      %v1713 = vadd.f32 %v1455, %v1656
      %v1714 = vadd.f32 %v1458, %v1659
      %v1715 = vadd.f32 %v1460, %v1661
      %v1716 = vadd.f32 %v1463, %v1664
      %v1717 = vadd.f32 %v1465, %v1666
      %v1718 = vadd.f32 %v1468, %v1669
      %v1719 = vadd.f32 %v1470, %v1671
      %v1720 = vadd.f32 %v1473, %v1674
      %v1721 = vadd.f32 %v1475, %v1676
      %v1722 = vadd.f32 %v1478, %v1679
      %v1723 = vadd.f32 %v1480, %v1681
      %v1724 = vadd.f32 %v1483, %v1684
      %v1725 = vadd.f32 %v1485, %v1686
      %v1726 = vadd.f32 %v1488, %v1689
      %v1727 = vadd.f32 %v1490, %v1691
      %v1728 = vadd.f32 %v1493, %v1694
      %v1729 = vadd.f32 %v1495, %v1696
      %v1730 = vld [vmem:[%s4] sm:$0x1]
      %v1732 = vperm.slane %v1730, 0
      %v1734 = vadd.f32 %v1698, %v1732
      %v1735 = vadd.f32 %v1699, %v1732
      %v1736 = vadd.f32 %v1700, %v1732
      %v1737 = vadd.f32 %v1701, %v1732
      %v1738 = vadd.f32 %v1702, %v1732
      %v1739 = vadd.f32 %v1703, %v1732
      %v1740 = vadd.f32 %v1704, %v1732
      %v1741 = vadd.f32 %v1705, %v1732
      %v1742 = vadd.f32 %v1706, %v1732
      %v1743 = vadd.f32 %v1707, %v1732
      %v1744 = vadd.f32 %v1708, %v1732
      %v1745 = vadd.f32 %v1709, %v1732
      %v1746 = vadd.f32 %v1710, %v1732
      %v1747 = vadd.f32 %v1711, %v1732
      %v1748 = vadd.f32 %v1712, %v1732
      %v1749 = vadd.f32 %v1713, %v1732
      %v1750 = vadd.f32 %v1714, %v1732
      %v1751 = vadd.f32 %v1715, %v1732
      %v1752 = vadd.f32 %v1716, %v1732
      %v1753 = vadd.f32 %v1717, %v1732
      %v1754 = vadd.f32 %v1718, %v1732
      %v1755 = vadd.f32 %v1719, %v1732
      %v1756 = vadd.f32 %v1720, %v1732
      %v1757 = vadd.f32 %v1721, %v1732
      %v1758 = vadd.f32 %v1722, %v1732
      %v1759 = vadd.f32 %v1723, %v1732
      %v1760 = vadd.f32 %v1724, %v1732
      %v1761 = vadd.f32 %v1725, %v1732
      %v1762 = vadd.f32 %v1726, %v1732
      %v1763 = vadd.f32 %v1727, %v1732
      %v1764 = vadd.f32 %v1728, %v1732
      %v1765 = vadd.f32 %v1729, %v1732
      %vm1766 = vcmp.ge.f32.partialorder %v1734, 0.0
      %vm1767 = vcmp.ge.f32.partialorder %v1735, 0.0
      %vm1768 = vcmp.ge.f32.partialorder %v1736, 0.0
      %vm1769 = vcmp.ge.f32.partialorder %v1737, 0.0
      %vm1770 = vcmp.ge.f32.partialorder %v1738, 0.0
      %vm1771 = vcmp.ge.f32.partialorder %v1739, 0.0
      %vm1772 = vcmp.ge.f32.partialorder %v1740, 0.0
      %vm1773 = vcmp.ge.f32.partialorder %v1741, 0.0
      %vm1774 = vcmp.ge.f32.partialorder %v1742, 0.0
      %vm1775 = vcmp.ge.f32.partialorder %v1743, 0.0
      %vm1776 = vcmp.ge.f32.partialorder %v1744, 0.0
      %vm1777 = vcmp.ge.f32.partialorder %v1745, 0.0
      %vm1778 = vcmp.ge.f32.partialorder %v1746, 0.0
      %vm1779 = vcmp.ge.f32.partialorder %v1747, 0.0
      %vm1780 = vcmp.ge.f32.partialorder %v1748, 0.0
      %vm1781 = vcmp.ge.f32.partialorder %v1749, 0.0
      %vm1782 = vcmp.ge.f32.partialorder %v1750, 0.0
      %vm1783 = vcmp.ge.f32.partialorder %v1751, 0.0
      %vm1784 = vcmp.ge.f32.partialorder %v1752, 0.0
      %vm1785 = vcmp.ge.f32.partialorder %v1753, 0.0
      %vm1786 = vcmp.ge.f32.partialorder %v1754, 0.0
      %vm1787 = vcmp.ge.f32.partialorder %v1755, 0.0
      %vm1788 = vcmp.ge.f32.partialorder %v1756, 0.0
      %vm1789 = vcmp.ge.f32.partialorder %v1757, 0.0
      %vm1790 = vcmp.ge.f32.partialorder %v1758, 0.0
      %vm1791 = vcmp.ge.f32.partialorder %v1759, 0.0
      %vm1792 = vcmp.ge.f32.partialorder %v1760, 0.0
      %vm1793 = vcmp.ge.f32.partialorder %v1761, 0.0
      %vm1794 = vcmp.ge.f32.partialorder %v1762, 0.0
      %vm1795 = vcmp.ge.f32.partialorder %v1763, 0.0
      %vm1796 = vcmp.ge.f32.partialorder %v1764, 0.0
      %vm1797 = vcmp.ge.f32.partialorder %v1765, 0.0
      %v1798 = vmul.f32 %v1734, 0.1
      %v1799 = vmul.f32 %v1735, 0.1
      %v1800 = vmul.f32 %v1736, 0.1
      %v1801 = vmul.f32 %v1737, 0.1
      %v1802 = vmul.f32 %v1738, 0.1
      %v1803 = vmul.f32 %v1739, 0.1
      %v1804 = vmul.f32 %v1740, 0.1
      %v1805 = vmul.f32 %v1741, 0.1
      %v1806 = vmul.f32 %v1742, 0.1
      %v1807 = vmul.f32 %v1743, 0.1
      %v1808 = vmul.f32 %v1744, 0.1
      %v1809 = vmul.f32 %v1745, 0.1
      %v1810 = vmul.f32 %v1746, 0.1
      %v1811 = vmul.f32 %v1747, 0.1
      %v1812 = vmul.f32 %v1748, 0.1
      %v1813 = vmul.f32 %v1749, 0.1
      %v1814 = vmul.f32 %v1750, 0.1
      %v1815 = vmul.f32 %v1751, 0.1
      %v1816 = vmul.f32 %v1752, 0.1
      %v1817 = vmul.f32 %v1753, 0.1
      %v1818 = vmul.f32 %v1754, 0.1
      %v1819 = vmul.f32 %v1755, 0.1
      %v1820 = vmul.f32 %v1756, 0.1
      %v1821 = vmul.f32 %v1757, 0.1
      %v1822 = vmul.f32 %v1758, 0.1
      %v1823 = vmul.f32 %v1759, 0.1
      %v1824 = vmul.f32 %v1760, 0.1
      %v1825 = vmul.f32 %v1761, 0.1
      %v1826 = vmul.f32 %v1762, 0.1
      %v1827 = vmul.f32 %v1763, 0.1
      %v1828 = vmul.f32 %v1764, 0.1
      %v1829 = vmul.f32 %v1765, 0.1
      %v1830 = vsel %vm1766, %v1734, %v1798
      %v1831 = vsel %vm1767, %v1735, %v1799
      %v1832 = vsel %vm1768, %v1736, %v1800
      %v1833 = vsel %vm1769, %v1737, %v1801
      %v1834 = vsel %vm1770, %v1738, %v1802
      %v1835 = vsel %vm1771, %v1739, %v1803
      %v1836 = vsel %vm1772, %v1740, %v1804
      %v1837 = vsel %vm1773, %v1741, %v1805
      %v1838 = vsel %vm1774, %v1742, %v1806
      %v1839 = vsel %vm1775, %v1743, %v1807
      %v1840 = vsel %vm1776, %v1744, %v1808
      %v1841 = vsel %vm1777, %v1745, %v1809
      %v1842 = vsel %vm1778, %v1746, %v1810
      %v1843 = vsel %vm1779, %v1747, %v1811
      %v1844 = vsel %vm1780, %v1748, %v1812
      %v1845 = vsel %vm1781, %v1749, %v1813
      %v1846 = vsel %vm1782, %v1750, %v1814
      %v1847 = vsel %vm1783, %v1751, %v1815
      %v1848 = vsel %vm1784, %v1752, %v1816
      %v1849 = vsel %vm1785, %v1753, %v1817
      %v1850 = vsel %vm1786, %v1754, %v1818
      %v1851 = vsel %vm1787, %v1755, %v1819
      %v1852 = vsel %vm1788, %v1756, %v1820
      %v1853 = vsel %vm1789, %v1757, %v1821
      %v1854 = vsel %vm1790, %v1758, %v1822
      %v1855 = vsel %vm1791, %v1759, %v1823
      %v1856 = vsel %vm1792, %v1760, %v1824
      %v1857 = vsel %vm1793, %v1761, %v1825
      %v1858 = vsel %vm1794, %v1762, %v1826
      %v1859 = vsel %vm1795, %v1763, %v1827
      %v1860 = vsel %vm1796, %v1764, %v1828
      %v1861 = vsel %vm1797, %v1765, %v1829
      %v1862 = vpack.c.bf16 %v1830, %v1830
      %v1863 = vpack.c.bf16 %v1831, %v1831
      %v1864 = vpack.c.bf16 %v1832, %v1832
      %v1865 = vpack.c.bf16 %v1833, %v1833
      %v1866 = vpack.c.bf16 %v1834, %v1834
      %v1867 = vpack.c.bf16 %v1835, %v1835
      %v1868 = vpack.c.bf16 %v1836, %v1836
      %v1869 = vpack.c.bf16 %v1837, %v1837
      %v1870 = vpack.c.bf16 %v1838, %v1838
      %v1871 = vpack.c.bf16 %v1839, %v1839
      %v1872 = vpack.c.bf16 %v1840, %v1840
      %v1873 = vpack.c.bf16 %v1841, %v1841
      %v1874 = vpack.c.bf16 %v1842, %v1842
      %v1875 = vpack.c.bf16 %v1843, %v1843
      %v1876 = vpack.c.bf16 %v1844, %v1844
      %v1877 = vpack.c.bf16 %v1845, %v1845
      %v1878 = vpack.c.bf16 %v1846, %v1846
      %v1879 = vpack.c.bf16 %v1847, %v1847
      %v1880 = vpack.c.bf16 %v1848, %v1848
      %v1881 = vpack.c.bf16 %v1849, %v1849
      %v1882 = vpack.c.bf16 %v1850, %v1850
      %v1883 = vpack.c.bf16 %v1851, %v1851
      %v1884 = vpack.c.bf16 %v1852, %v1852
      %v1885 = vpack.c.bf16 %v1853, %v1853
      %v1886 = vpack.c.bf16 %v1854, %v1854
      %v1887 = vpack.c.bf16 %v1855, %v1855
      %v1888 = vpack.c.bf16 %v1856, %v1856
      %v1889 = vpack.c.bf16 %v1857, %v1857
      %v1890 = vpack.c.bf16 %v1858, %v1858
      %v1891 = vpack.c.bf16 %v1859, %v1859
      %v1892 = vpack.c.bf16 %v1860, %v1860
      %v1893 = vpack.c.bf16 %v1861, %v1861
      %vm1894 = vcmask 125952
      %1895 = vst.msk [vmem:[%s419] sm:$0xf] %vm1894, %v1862
      %1896 = vst.msk [vmem:[%s419 + $0x4] sm:$0xf] %vm1894, %v1863
      %1897 = vst.msk [vmem:[%s419 + $0x8] sm:$0xf] %vm1894, %v1864
      %1898 = vst.msk [vmem:[%s419 + $0xc] sm:$0xf] %vm1894, %v1865
      %1899 = vst.msk [vmem:[%s419 + $0x10] sm:$0xf] %vm1894, %v1866
      %1900 = vst.msk [vmem:[%s419 + $0x14] sm:$0xf] %vm1894, %v1867
      %1901 = vst.msk [vmem:[%s419 + $0x18] sm:$0xf] %vm1894, %v1868
      %1902 = vst.msk [vmem:[%s419 + $0x1c] sm:$0xf] %vm1894, %v1869
      %1903 = vst.msk [vmem:[%s419 + $0x20] sm:$0xf] %vm1894, %v1870
      %1904 = vst.msk [vmem:[%s419 + $0x24] sm:$0xf] %vm1894, %v1871
      %1905 = vst.msk [vmem:[%s419 + $0x28] sm:$0xf] %vm1894, %v1872
      %1906 = vst.msk [vmem:[%s419 + $0x2c] sm:$0xf] %vm1894, %v1873
      %1907 = vst.msk [vmem:[%s419 + $0x30] sm:$0xf] %vm1894, %v1874
      %1908 = vst.msk [vmem:[%s419 + $0x34] sm:$0xf] %vm1894, %v1875
      %1909 = vst.msk [vmem:[%s419 + $0x38] sm:$0xf] %vm1894, %v1876
      %1910 = vst.msk [vmem:[%s419 + $0x3c] sm:$0xf] %vm1894, %v1877
      %1911 = vst.msk [vmem:[%s419 + $0x40] sm:$0xf] %vm1894, %v1878
      %1912 = vst.msk [vmem:[%s419 + $0x44] sm:$0xf] %vm1894, %v1879
      %1913 = vst.msk [vmem:[%s419 + $0x48] sm:$0xf] %vm1894, %v1880
      %1914 = vst.msk [vmem:[%s419 + $0x4c] sm:$0xf] %vm1894, %v1881
      %1915 = vst.msk [vmem:[%s419 + $0x50] sm:$0xf] %vm1894, %v1882
      %1916 = vst.msk [vmem:[%s419 + $0x54] sm:$0xf] %vm1894, %v1883
      %1917 = vst.msk [vmem:[%s419 + $0x58] sm:$0xf] %vm1894, %v1884
      %1918 = vst.msk [vmem:[%s419 + $0x5c] sm:$0xf] %vm1894, %v1885
      %1919 = vst.msk [vmem:[%s419 + $0x60] sm:$0xf] %vm1894, %v1886
      %1920 = vst.msk [vmem:[%s419 + $0x64] sm:$0xf] %vm1894, %v1887
      %1921 = vst.msk [vmem:[%s419 + $0x68] sm:$0xf] %vm1894, %v1888
      %1922 = vst.msk [vmem:[%s419 + $0x6c] sm:$0xf] %vm1894, %v1889
      %1923 = vst.msk [vmem:[%s419 + $0x70] sm:$0xf] %vm1894, %v1890
      %1924 = vst.msk [vmem:[%s419 + $0x74] sm:$0xf] %vm1894, %v1891
      %1925 = vst.msk [vmem:[%s419 + $0x78] sm:$0xf] %vm1894, %v1892
      %1926 = vst.msk [vmem:[%s419 + $0x7c] sm:$0xf] %vm1894, %v1893
      %s1927 = smul.u32 4, %s21
      %p1928 = scmp.lt.s32.totalorder %s20, 1
      %s1929 = scalar_select %p1928, %s20, 1
      %p1930 = scmp.lt.s32.totalorder %s1927, 63
      %s1931 = scalar_select %p1930, %s1927, 63
      %s1932 = smul.addr %s1931, 8
      %s1933 = smul.addr %s1929, 512
      %s1934 = sadd.s32 %s1932, %s1933
      %s1935 = smul.addr %s1934, 4
      %s1936 = scalar_lea.vmem %s5, %s1935
      // Predicated region
      $region41: #{forward_pallas.10} parent=39 // pred_check
        %p1937 = pneg %p198
      $region42: #{forward_pallas.10} parent=39 // pred_check_branch
        %1939 = sbr.rel (%p1937) target = $region44
      $region43: #{forward_pallas.10} parent=39 // pred_region
        %s1940 = smul.u32 4, %s21
      $region44: #{forward_pallas.10} parent=39 // pred_fallthru
        _
    $region40: #{forward_pallas.10} parent=5 // pred_fallthru
      _
    %p1941 = scmp.le.s32.totalorder 2, %s11
    // Predicated region
    $region45: #{forward_pallas.10} parent=5 // pred_check
      %p1942 = pneg %p1941
    $region46: #{forward_pallas.10} parent=5 // pred_check_branch
      %1944 = sbr.rel (%p1942) target = $region48
    $region47: #{forward_pallas.10} parent=5 // pred_region
      %s1945 = ssub.s32 %s11, 2
      // Predicated region
      $region49: #{forward_pallas.10} parent=47 // pred_check
        %p1946 = pneg %p204
      $region50: #{forward_pallas.10} parent=47 // pred_check_branch
        %1948 = sbr.rel (%p1946) target = $region52
      $region51: #{forward_pallas.10} parent=47 // pred_region
        %s1949 = smul.u32 4, %s23
        %p1950 = scmp.lt.s32.totalorder %s22, 1
        %s1951 = scalar_select %p1950, %s22, 1
        %p1952 = scmp.lt.s32.totalorder %s1949, 63
        %s1953 = scalar_select %p1952, %s1949, 63
        %s1954 = smul.addr %s1953, 8
        %s1955 = smul.addr %s1951, 512
        %s1956 = sadd.s32 %s1954, %s1955
        %s1957 = smul.addr %s1956, 4
        %s1958 = scalar_lea.vmem %s5, %s1957
      $region52: #{forward_pallas.10} parent=47 // pred_fallthru
        _
    $region48: #{forward_pallas.10} parent=5 // pred_fallthru
      _
  $region6: #{forward_pallas.10} parent=0 // loop_footer
    %s15 = sadd.s32 1, %s11
  $region7: #{forward_pallas.10} parent=0 // loop_footer_branch
    %10 = sbr.rel target = $region3
  $region8: #{forward_pallas.10} parent=0 // loop_exit
    _

// kernel: forward_pallas.11
$region0: #{forward_pallas.11}
  #allocation0 [shape = 'u32[]', space=smem, size = 0x4, offset = 0x4, fixed_abs, tag = 'smem constant byte address 0x4 - core index']
  #allocation1 [shape = 'u32[72,128]{1,0:T(1,128)}', space=vmem, size = 0x9000, scoped, tag = 'internal scratch']
  %s0 = inlined_call_operand.vmem [shape: bf16[2,64,64,16], index: 0, kind: input, shape index: {}, may-alias: {0,1,2}]
  %s1 = inlined_call_operand.vmem [shape: bf16[2,64,64,16], index: 1, kind: input, shape index: {}, may-alias: {0,1,2}]
  %s2 = inlined_call_operand.vmem [shape: bf16[2,64,64,16], index: 2, kind: input, shape index: {}, may-alias: {0,1,2}]
  %s3 = inlined_call_operand.vmem [shape: bf16[3,48,3], index: 3, kind: input, shape index: {}]
  %s4 = inlined_call_operand.vmem [shape: f32[1,3], index: 4, kind: input, shape index: {}]
  %s5 = inlined_call_operand.vmem [shape: bf16[2,64,64,3], index: 5, kind: input, shape index: {}]
  %s6 = inlined_call_operand.vmem [shape: f32[2,64,64,3], index: 6, kind: output, shape index: {}]
  %s7 = sld [smem:[#allocation0]]
  $region57: #{forward_pallas.11} parent=0
    _
  %s9 = ssub.s32 1, %s7
  %s10 = scalar_select 0, %s9, %s7
  loop: start=0, step=1, limit=34
  $region2: #{forward_pallas.11} parent=0 // loop_pre_header
    _
  $region3: #{forward_pallas.11} parent=0 // loop_header
    %s12 = sphi 0, %s16
    %p13 = scmp.ge.s32.totalorder %s12, 34
    %s19 = sphi 0, %s31
    %s20 = sphi 0, %s27
    %s21 = sphi 0, %s19
    %s22 = sphi 0, %s20
    %s23 = sphi 0, %s21
    %s24 = sphi 0, %s22
    %s36 = sphi 0, %s38
    %s39 = sphi 0, %s36
    %s40 = sphi 0, %s39
    %s56 = sphi 0, %s40
    %s76 = sphi 0, %s78
    %s79 = sphi 0, %s76
    %s80 = sphi 0, %s79
    %s96 = sphi 0, %s80
    %s116 = sphi 0, %s118
    %s119 = sphi 0, %s116
    %s120 = sphi 0, %s119
    %s136 = sphi 0, %s120
    %s140 = sphi 0, %s140
    %s142 = sphi 0, %s140
    %s143 = sphi 0, %s142
    %s157 = sphi 0, %s143
    %s161 = sphi 0, %s161
    %s163 = sphi 0, %s161
    %s164 = sphi 0, %s163
    %s178 = sphi 0, %s164
    %s186 = sphi 0, %s188
    %s189 = sphi 0, %s186
    %s190 = sphi 0, %s189
    %s206 = sphi 0, %s190
    %s214 = sphi 0, %s216
    %s217 = sphi 0, %s214
    %s218 = sphi 0, %s217
    %s234 = sphi 0, %s218
  $region4: #{forward_pallas.11} parent=0 // loop_header_branch
    %15 = sbr.rel (%p13) target = $region8
  $region5: #{forward_pallas.11} parent=0 // loop_body
    %s17 = ssub.s32 %s12, 1
    %s18 = ssub.s32 %s12, 2
    %s25 = sadd.s32 1, %s20
    %p26 = scmp.ge.s32.totalorder %s25, 16
    %s27 = scalar_select %p26, 0, %s25
    %s28 = sadd.s32 1, %s19
    %s29 = scalar_select %p26, %s28, %s19
    %p30 = scmp.ge.s32.totalorder %s29, 2
    %s31 = scalar_select %p30, 0, %s29
    %s32 = ssub.s32 %s19, %s31
    %s33 = ssub.s32 %s20, %s27
    %s34 = sor.u32 %s32, %s33
    %p35 = scmp.eq.s32.totalorder %s34, 0
    %s37 = sadd.s32 %s36, 1
    %s38 = scalar_select %p35, %s36, %s37
    %p41 = pneg %p35
    %p42 = scmp.eq.s32.totalorder %s12, 31
    %p43 = por %p41, %p42
    %p44 = scmp.ne.s32.totalorder %s36, %s39
    %p45 = scmp.eq.s32.totalorder %s12, 0
    %p46 = por %p44, %p45
    %p47 = scmp.ne.s32.totalorder %s36, %s39
    %p48 = scmp.eq.s32.totalorder %s17, 31
    %p49 = por %p47, %p48
    %p50 = scmp.ne.s32.totalorder %s39, %s40
    %p51 = scmp.eq.s32.totalorder %s17, 0
    %p52 = por %p50, %p51
    %p53 = scmp.ne.s32.totalorder %s39, %s40
    %p54 = scmp.eq.s32.totalorder %s18, 31
    %p55 = por %p53, %p54
    %p57 = scmp.ne.s32.totalorder %s40, %s56
    %p58 = scmp.eq.s32.totalorder %s18, 0
    %p59 = por %p57, %p58
    %s60 = smul.u32 %s20, 4
    %s61 = sadd.s32 %s60, 4294967295
    %p62 = scmp.gt.s32.totalorder %s61, 0
    %s63 = scalar_select %p62, %s61, 0
    %p64 = scmp.lt.s32.totalorder %s63, 63
    %s65 = scalar_select %p64, %s63, 63
    %s66 = smul.u32 %s27, 4
    %s67 = sadd.s32 %s66, 4294967295
    %p68 = scmp.gt.s32.totalorder %s67, 0
    %s69 = scalar_select %p68, %s67, 0
    %p70 = scmp.lt.s32.totalorder %s69, 63
    %s71 = scalar_select %p70, %s69, 63
    %s72 = ssub.s32 %s19, %s31
    %s73 = ssub.s32 %s65, %s71
    %s74 = sor.u32 %s72, %s73
    %p75 = scmp.eq.s32.totalorder %s74, 0
    %s77 = sadd.s32 %s76, 1
    %s78 = scalar_select %p75, %s76, %s77
    %p81 = pneg %p75
    %p82 = scmp.eq.s32.totalorder %s12, 31
    %p83 = por %p81, %p82
    %p84 = scmp.ne.s32.totalorder %s76, %s79
    %p85 = scmp.eq.s32.totalorder %s12, 0
    %p86 = por %p84, %p85
    %p87 = scmp.ne.s32.totalorder %s76, %s79
    %p88 = scmp.eq.s32.totalorder %s17, 31
    %p89 = por %p87, %p88
    %p90 = scmp.ne.s32.totalorder %s79, %s80
    %p91 = scmp.eq.s32.totalorder %s17, 0
    %p92 = por %p90, %p91
    %p93 = scmp.ne.s32.totalorder %s79, %s80
    %p94 = scmp.eq.s32.totalorder %s18, 31
    %p95 = por %p93, %p94
    %p97 = scmp.ne.s32.totalorder %s80, %s96
    %p98 = scmp.eq.s32.totalorder %s18, 0
    %p99 = por %p97, %p98
    %s100 = smul.u32 %s20, 4
    %s101 = sadd.s32 %s100, 4
    %p102 = scmp.gt.s32.totalorder %s101, 0
    %s103 = scalar_select %p102, %s101, 0
    %p104 = scmp.lt.s32.totalorder %s103, 63
    %s105 = scalar_select %p104, %s103, 63
    %s106 = smul.u32 %s27, 4
    %s107 = sadd.s32 %s106, 4
    %p108 = scmp.gt.s32.totalorder %s107, 0
    %s109 = scalar_select %p108, %s107, 0
    %p110 = scmp.lt.s32.totalorder %s109, 63
    %s111 = scalar_select %p110, %s109, 63
    %s112 = ssub.s32 %s19, %s31
    %s113 = ssub.s32 %s105, %s111
    %s114 = sor.u32 %s112, %s113
    %p115 = scmp.eq.s32.totalorder %s114, 0
    %s117 = sadd.s32 %s116, 1
    %s118 = scalar_select %p115, %s116, %s117
    %p121 = pneg %p115
    %p122 = scmp.eq.s32.totalorder %s12, 31
    %p123 = por %p121, %p122
    %p124 = scmp.ne.s32.totalorder %s116, %s119
    %p125 = scmp.eq.s32.totalorder %s12, 0
    %p126 = por %p124, %p125
    %p127 = scmp.ne.s32.totalorder %s116, %s119
    %p128 = scmp.eq.s32.totalorder %s17, 31
    %p129 = por %p127, %p128
    %p130 = scmp.ne.s32.totalorder %s119, %s120
    %p131 = scmp.eq.s32.totalorder %s17, 0
    %p132 = por %p130, %p131
    %p133 = scmp.ne.s32.totalorder %s119, %s120
    %p134 = scmp.eq.s32.totalorder %s18, 31
    %p135 = por %p133, %p134
    %p137 = scmp.ne.s32.totalorder %s120, %s136
    %p138 = scmp.eq.s32.totalorder %s18, 0
    %p139 = por %p137, %p138
    %s141 = sadd.s32 %s140, 1
    %p144 = scmp.eq.s32.totalorder %s12, 31
    %p145 = scmp.ne.s32.totalorder %s140, %s142
    %p146 = scmp.eq.s32.totalorder %s12, 0
    %p147 = por %p145, %p146
    %p148 = scmp.ne.s32.totalorder %s140, %s142
    %p149 = scmp.eq.s32.totalorder %s17, 31
    %p150 = por %p148, %p149
    %p151 = scmp.ne.s32.totalorder %s142, %s143
    %p152 = scmp.eq.s32.totalorder %s17, 0
    %p153 = por %p151, %p152
    %p154 = scmp.ne.s32.totalorder %s142, %s143
    %p155 = scmp.eq.s32.totalorder %s18, 31
    %p156 = por %p154, %p155
    %p158 = scmp.ne.s32.totalorder %s143, %s157
    %p159 = scmp.eq.s32.totalorder %s18, 0
    %p160 = por %p158, %p159
    %s162 = sadd.s32 %s161, 1
    %p165 = scmp.eq.s32.totalorder %s12, 31
    %p166 = scmp.ne.s32.totalorder %s161, %s163
    %p167 = scmp.eq.s32.totalorder %s12, 0
    %p168 = por %p166, %p167
    %p169 = scmp.ne.s32.totalorder %s161, %s163
    %p170 = scmp.eq.s32.totalorder %s17, 31
    %p171 = por %p169, %p170
    %p172 = scmp.ne.s32.totalorder %s163, %s164
    %p173 = scmp.eq.s32.totalorder %s17, 0
    %p174 = por %p172, %p173
    %p175 = scmp.ne.s32.totalorder %s163, %s164
    %p176 = scmp.eq.s32.totalorder %s18, 31
    %p177 = por %p175, %p176
    %p179 = scmp.ne.s32.totalorder %s164, %s178
    %p180 = scmp.eq.s32.totalorder %s18, 0
    %p181 = por %p179, %p180
    %s182 = ssub.s32 %s19, %s31
    %s183 = ssub.s32 %s20, %s27
    %s184 = sor.u32 %s182, %s183
    %p185 = scmp.eq.s32.totalorder %s184, 0
    %s187 = sadd.s32 %s186, 1
    %s188 = scalar_select %p185, %s186, %s187
    %p191 = pneg %p185
    %p192 = scmp.eq.s32.totalorder %s12, 31
    %p193 = por %p191, %p192
    %p194 = scmp.ne.s32.totalorder %s186, %s189
    %p195 = scmp.eq.s32.totalorder %s12, 0
    %p196 = por %p194, %p195
    %p197 = scmp.ne.s32.totalorder %s186, %s189
    %p198 = scmp.eq.s32.totalorder %s17, 31
    %p199 = por %p197, %p198
    %p200 = scmp.ne.s32.totalorder %s189, %s190
    %p201 = scmp.eq.s32.totalorder %s17, 0
    %p202 = por %p200, %p201
    %p203 = scmp.ne.s32.totalorder %s189, %s190
    %p204 = scmp.eq.s32.totalorder %s18, 31
    %p205 = por %p203, %p204
    %p207 = scmp.ne.s32.totalorder %s190, %s206
    %p208 = scmp.eq.s32.totalorder %s18, 0
    %p209 = por %p207, %p208
    %s210 = ssub.s32 %s19, %s31
    %s211 = ssub.s32 %s20, %s27
    %s212 = sor.u32 %s210, %s211
    %p213 = scmp.eq.s32.totalorder %s212, 0
    %s215 = sadd.s32 %s214, 1
    %s216 = scalar_select %p213, %s214, %s215
    %p219 = pneg %p213
    %p220 = scmp.eq.s32.totalorder %s12, 31
    %p221 = por %p219, %p220
    %p222 = scmp.ne.s32.totalorder %s214, %s217
    %p223 = scmp.eq.s32.totalorder %s12, 0
    %p224 = por %p222, %p223
    %p225 = scmp.ne.s32.totalorder %s214, %s217
    %p226 = scmp.eq.s32.totalorder %s17, 31
    %p227 = por %p225, %p226
    %p228 = scmp.ne.s32.totalorder %s217, %s218
    %p229 = scmp.eq.s32.totalorder %s17, 0
    %p230 = por %p228, %p229
    %p231 = scmp.ne.s32.totalorder %s217, %s218
    %p232 = scmp.eq.s32.totalorder %s18, 31
    %p233 = por %p231, %p232
    %p235 = scmp.ne.s32.totalorder %s218, %s234
    %p236 = scmp.eq.s32.totalorder %s18, 0
    %p237 = por %p235, %p236
    %p238 = scmp.le.s32.totalorder 1, %s12
    %p239 = scmp.lt.s32.totalorder %s12, 33
    %p240 = pnand %p238, %p239
    %p241 = pneg %p240
    // Predicated region
    $region9: #{forward_pallas.11} parent=5 // pred_check
      _
    $region10: #{forward_pallas.11} parent=5 // pred_check_branch
      %243 = sbr.rel (%p240) target = $region12
    $region11: #{forward_pallas.11} parent=5 // pred_region
      %s244 = ssub.s32 %s12, 1
      // Predicated region
      $region13: #{forward_pallas.11} parent=11 // pred_check
        %p245 = pneg %p153
      $region14: #{forward_pallas.11} parent=11 // pred_check_branch
        %247 = sbr.rel (%p245) target = $region16
      $region15: #{forward_pallas.11} parent=11 // pred_region
        _
      $region16: #{forward_pallas.11} parent=11 // pred_fallthru
        _
      // Predicated region
      $region17: #{forward_pallas.11} parent=11 // pred_check
        %p248 = pneg %p174
      $region18: #{forward_pallas.11} parent=11 // pred_check_branch
        %250 = sbr.rel (%p248) target = $region20
      $region19: #{forward_pallas.11} parent=11 // pred_region
        _
      $region20: #{forward_pallas.11} parent=11 // pred_fallthru
        _
    $region12: #{forward_pallas.11} parent=5 // pred_fallthru
      _
    %p251 = scmp.lt.s32.totalorder %s12, 32
    // Predicated region
    $region21: #{forward_pallas.11} parent=5 // pred_check
      %p252 = pneg %p251
    $region22: #{forward_pallas.11} parent=5 // pred_check_branch
      %254 = sbr.rel (%p252) target = $region24
    $region23: #{forward_pallas.11} parent=5 // pred_region
      // Predicated region
      $region25: #{forward_pallas.11} parent=23 // pred_check
        %p255 = pneg %p46
      $region26: #{forward_pallas.11} parent=23 // pred_check_branch
        %257 = sbr.rel (%p255) target = $region28
      $region27: #{forward_pallas.11} parent=23 // pred_region
        %s258 = smul.u32 4, %s20
        %p259 = scmp.lt.s32.totalorder %s19, 1
        %s260 = scalar_select %p259, %s19, 1
        %p261 = scmp.lt.s32.totalorder %s258, 63
        %s262 = scalar_select %p261, %s258, 63
        %s263 = smul.addr %s262, 8
        %s264 = smul.addr %s260, 512
        %s265 = sadd.s32 %s263, %s264
        %s266 = smul.addr %s265, 4
        %s267 = scalar_lea.vmem %s0, %s266
        %s268 = smul.u32 4, %s20
      $region28: #{forward_pallas.11} parent=23 // pred_fallthru
        _
      // Predicated region
      $region29: #{forward_pallas.11} parent=23 // pred_check
        %p269 = pneg %p86
      $region30: #{forward_pallas.11} parent=23 // pred_check_branch
        %271 = sbr.rel (%p269) target = $region32
      $region31: #{forward_pallas.11} parent=23 // pred_region
        %s272 = smul.u32 %s20, 4
        %s273 = sadd.s32 %s272, 4294967295
        %p274 = scmp.gt.s32.totalorder %s273, 0
        %s275 = scalar_select %p274, %s273, 0
        %p276 = scmp.lt.s32.totalorder %s275, 63
        %s277 = scalar_select %p276, %s275, 63
        %p278 = scmp.lt.s32.totalorder %s19, 1
        %s279 = scalar_select %p278, %s19, 1
        %p280 = scmp.lt.s32.totalorder %s277, 63
        %s281 = scalar_select %p280, %s277, 63
        %s282 = smul.addr %s281, 8
        %s283 = smul.addr %s279, 512
        %s284 = sadd.s32 %s282, %s283
        %s285 = smul.addr %s284, 4
        %s286 = scalar_lea.vmem %s1, %s285
        %s287 = smul.u32 %s20, 4
        %s288 = sadd.s32 %s287, 4294967295
        %p289 = scmp.gt.s32.totalorder %s288, 0
        %s290 = scalar_select %p289, %s288, 0
        %p291 = scmp.lt.s32.totalorder %s290, 63
        %s292 = scalar_select %p291, %s290, 63
      $region32: #{forward_pallas.11} parent=23 // pred_fallthru
        _
      // Predicated region
      $region33: #{forward_pallas.11} parent=23 // pred_check
        %p293 = pneg %p126
      $region34: #{forward_pallas.11} parent=23 // pred_check_branch
        %295 = sbr.rel (%p293) target = $region36
      $region35: #{forward_pallas.11} parent=23 // pred_region
        %s296 = smul.u32 %s20, 4
        %s297 = sadd.s32 %s296, 4
        %p298 = scmp.gt.s32.totalorder %s297, 0
        %s299 = scalar_select %p298, %s297, 0
        %p300 = scmp.lt.s32.totalorder %s299, 63
        %s301 = scalar_select %p300, %s299, 63
        %p302 = scmp.lt.s32.totalorder %s19, 1
        %s303 = scalar_select %p302, %s19, 1
        %p304 = scmp.lt.s32.totalorder %s301, 63
        %s305 = scalar_select %p304, %s301, 63
        %s306 = smul.addr %s305, 8
        %s307 = smul.addr %s303, 512
        %s308 = sadd.s32 %s306, %s307
        %s309 = smul.addr %s308, 4
        %s310 = scalar_lea.vmem %s2, %s309
        %s311 = smul.u32 %s20, 4
        %s312 = sadd.s32 %s311, 4
        %p313 = scmp.gt.s32.totalorder %s312, 0
        %s314 = scalar_select %p313, %s312, 0
        %p315 = scmp.lt.s32.totalorder %s314, 63
        %s316 = scalar_select %p315, %s314, 63
      $region36: #{forward_pallas.11} parent=23 // pred_fallthru
        _
      // Predicated region
      $region37: #{forward_pallas.11} parent=23 // pred_check
        %p317 = pneg %p196
      $region38: #{forward_pallas.11} parent=23 // pred_check_branch
        %319 = sbr.rel (%p317) target = $region40
      $region39: #{forward_pallas.11} parent=23 // pred_region
        %s320 = smul.u32 4, %s20
        %p321 = scmp.lt.s32.totalorder %s19, 1
        %s322 = scalar_select %p321, %s19, 1
        %p323 = scmp.lt.s32.totalorder %s320, 63
        %s324 = scalar_select %p323, %s320, 63
        %s325 = smul.addr %s324, 8
        %s326 = smul.addr %s322, 512
        %s327 = sadd.s32 %s325, %s326
        %s328 = smul.addr %s327, 4
        %s329 = scalar_lea.vmem %s5, %s328
        %s330 = smul.u32 4, %s20
      $region40: #{forward_pallas.11} parent=23 // pred_fallthru
        _
    $region24: #{forward_pallas.11} parent=5 // pred_fallthru
      _
    %p331 = scmp.le.s32.totalorder 1, %s12
    %p332 = scmp.lt.s32.totalorder %s12, 33
    %p333 = pnand %p331, %p332
    %p334 = pneg %p333
    // Predicated region
    $region41: #{forward_pallas.11} parent=5 // pred_check
      _
    $region42: #{forward_pallas.11} parent=5 // pred_check_branch
      %336 = sbr.rel (%p333) target = $region44
    $region43: #{forward_pallas.11} parent=5 // pred_region
      %s337 = ssub.s32 %s12, 1
      %s338 = smul.u32 4, %s22
      %p339 = scmp.lt.s32.totalorder %s21, 1
      %s340 = scalar_select %p339, %s21, 1
      %p341 = scmp.lt.s32.totalorder %s338, 63
      %s342 = scalar_select %p341, %s338, 63
      %s343 = smul.addr %s342, 8
      %s344 = smul.addr %s340, 512
      %s345 = sadd.s32 %s343, %s344
      %s346 = smul.addr %s345, 4
      %s347 = scalar_lea.vmem %s0, %s346
      %p348 = pneg %p52
      %p349 = pneg %p49
      %s350 = smul.u32 %s22, 4
      %s351 = sadd.s32 %s350, 4294967295
      %p352 = scmp.gt.s32.totalorder %s351, 0
      %s353 = scalar_select %p352, %s351, 0
      %p354 = scmp.lt.s32.totalorder %s353, 63
      %s355 = scalar_select %p354, %s353, 63
      %p356 = scmp.lt.s32.totalorder %s21, 1
      %s357 = scalar_select %p356, %s21, 1
      %p358 = scmp.lt.s32.totalorder %s355, 63
      %s359 = scalar_select %p358, %s355, 63
      %s360 = smul.addr %s359, 8
      %s361 = smul.addr %s357, 512
      %s362 = sadd.s32 %s360, %s361
      %s363 = smul.addr %s362, 4
      %s364 = scalar_lea.vmem %s1, %s363
      %p365 = pneg %p92
      %p366 = pneg %p89
      %s367 = smul.u32 %s22, 4
      %s368 = sadd.s32 %s367, 4
      %p369 = scmp.gt.s32.totalorder %s368, 0
      %s370 = scalar_select %p369, %s368, 0
      %p371 = scmp.lt.s32.totalorder %s370, 63
      %s372 = scalar_select %p371, %s370, 63
      %p373 = scmp.lt.s32.totalorder %s21, 1
      %s374 = scalar_select %p373, %s21, 1
      %p375 = scmp.lt.s32.totalorder %s372, 63
      %s376 = scalar_select %p375, %s372, 63
      %s377 = smul.addr %s376, 8
      %s378 = smul.addr %s374, 512
      %s379 = sadd.s32 %s377, %s378
      %s380 = smul.addr %s379, 4
      %s381 = scalar_lea.vmem %s2, %s380
      %p382 = pneg %p132
      %p383 = pneg %p129
      %p384 = pneg %p153
      %p385 = pneg %p150
      %p386 = pneg %p174
      %p387 = pneg %p171
      %s388 = smul.u32 4, %s22
      %p389 = scmp.lt.s32.totalorder %s21, 1
      %s390 = scalar_select %p389, %s21, 1
      %p391 = scmp.lt.s32.totalorder %s388, 63
      %s392 = scalar_select %p391, %s388, 63
      %s393 = smul.addr %s392, 8
      %s394 = smul.addr %s390, 512
      %s395 = sadd.s32 %s393, %s394
      %s396 = smul.addr %s395, 4
      %s397 = scalar_lea.vmem %s5, %s396
      %p398 = pneg %p202
      %p399 = pneg %p199
      %p400 = pneg %p230
      %p401 = pneg %p227
      %s402 = smul.u32 4, %s22
      %p403 = scmp.lt.s32.totalorder %s21, 1
      %s404 = scalar_select %p403, %s21, 1
      %p405 = scmp.lt.s32.totalorder %s402, 63
      %s406 = scalar_select %p405, %s402, 63
      %s407 = smul.addr %s406, 8
      %s408 = smul.addr %s404, 512
      %s409 = sadd.s32 %s407, %s408
      %s410 = smul.addr %s409, 8
      %s411 = scalar_lea.vmem %s6, %s410
      %s412 = smul.u32 4, %s22
      %p413 = scmp.lt.s32.totalorder %s21, 1
      %s414 = scalar_select %p413, %s21, 1
      %p415 = scmp.lt.s32.totalorder %s412, 63
      %s416 = scalar_select %p415, %s412, 63
      %s417 = smul.addr %s416, 8
      %s418 = smul.addr %s414, 512
      %s419 = sadd.s32 %s417, %s418
      %s420 = smul.addr %s419, 4
      %s421 = scalar_lea.vmem %s0, %s420
      %s422 = smul.u32 4, %s22
      %s423 = smul.u32 %s22, 4
      %s424 = sadd.s32 %s423, 4294967295
      %p425 = scmp.gt.s32.totalorder %s424, 0
      %s426 = scalar_select %p425, %s424, 0
      %p427 = scmp.lt.s32.totalorder %s426, 63
      %s428 = scalar_select %p427, %s426, 63
      %p429 = scmp.lt.s32.totalorder %s21, 1
      %s430 = scalar_select %p429, %s21, 1
      %p431 = scmp.lt.s32.totalorder %s428, 63
      %s432 = scalar_select %p431, %s428, 63
      %s433 = smul.addr %s432, 8
      %s434 = smul.addr %s430, 512
      %s435 = sadd.s32 %s433, %s434
      %s436 = smul.addr %s435, 4
      %s437 = scalar_lea.vmem %s1, %s436
      %s438 = smul.u32 %s22, 4
      %s439 = sadd.s32 %s438, 4294967295
      %p440 = scmp.gt.s32.totalorder %s439, 0
      %s441 = scalar_select %p440, %s439, 0
      %p442 = scmp.lt.s32.totalorder %s441, 63
      %s443 = scalar_select %p442, %s441, 63
      %s444 = smul.u32 %s22, 4
      %s445 = sadd.s32 %s444, 4
      %p446 = scmp.gt.s32.totalorder %s445, 0
      %s447 = scalar_select %p446, %s445, 0
      %p448 = scmp.lt.s32.totalorder %s447, 63
      %s449 = scalar_select %p448, %s447, 63
      %p450 = scmp.lt.s32.totalorder %s21, 1
      %s451 = scalar_select %p450, %s21, 1
      %p452 = scmp.lt.s32.totalorder %s449, 63
      %s453 = scalar_select %p452, %s449, 63
      %s454 = smul.addr %s453, 8
      %s455 = smul.addr %s451, 512
      %s456 = sadd.s32 %s454, %s455
      %s457 = smul.addr %s456, 4
      %s458 = scalar_lea.vmem %s2, %s457
      %s459 = smul.u32 %s22, 4
      %s460 = sadd.s32 %s459, 4
      %p461 = scmp.gt.s32.totalorder %s460, 0
      %s462 = scalar_select %p461, %s460, 0
      %p463 = scmp.lt.s32.totalorder %s462, 63
      %s464 = scalar_select %p463, %s462, 63
      %s465 = smul.u32 4, %s22
      %p466 = scmp.lt.s32.totalorder %s21, 1
      %s467 = scalar_select %p466, %s21, 1
      %p468 = scmp.lt.s32.totalorder %s465, 63
      %s469 = scalar_select %p468, %s465, 63
      %s470 = smul.addr %s469, 8
      %s471 = smul.addr %s467, 512
      %s472 = sadd.s32 %s470, %s471
      %s473 = smul.addr %s472, 4
      %s474 = scalar_lea.vmem %s5, %s473
      %s475 = smul.u32 4, %s22
      %s476 = smul.u32 4, %s22
      %p477 = scmp.lt.s32.totalorder %s21, 1
      %s478 = scalar_select %p477, %s21, 1
      %p479 = scmp.lt.s32.totalorder %s476, 63
      %s480 = scalar_select %p479, %s476, 63
      %s481 = smul.addr %s480, 8
      %s482 = smul.addr %s478, 512
      %s483 = sadd.s32 %s481, %s482
      %s484 = smul.addr %s483, 8
      %s485 = scalar_lea.vmem %s6, %s484
      %s486 = smul.u32 4, %s22
      %s488 = smul.u32 %s22, 4
      %s489 = ssub.s32 %s488, 1
      %p490 = scmp.ge.s32.totalorder %s489, 0
      %v491 = vld [vmem:[%s437] sm:$0xf]
      %v492 = vld [vmem:[%s437 + $0x4] sm:$0xf]
      %v493 = vld [vmem:[%s437 + $0x8] sm:$0xf]
      %v494 = vld [vmem:[%s437 + $0xc] sm:$0xf]
      %v495 = vld [vmem:[%s437 + $0x10] sm:$0xf]
      %v496 = vld [vmem:[%s437 + $0x14] sm:$0xf]
      %v497 = vld [vmem:[%s437 + $0x18] sm:$0xf]
      %v498 = vld [vmem:[%s437 + $0x1c] sm:$0xf]
      %s499 = scalar_select %p490, 1, 0
      %v500 = vstv %s499
      %vm501 = vcmp.eq.s32.totalorder %v500, 1
      %v502 = vsel %vm501, %v491, 0
      %v503 = vsel %vm501, %v492, 0
      %v504 = vsel %vm501, %v493, 0
      %v505 = vsel %vm501, %v494, 0
      %v506 = vsel %vm501, %v495, 0
      %v507 = vsel %vm501, %v496, 0
      %v508 = vsel %vm501, %v497, 0
      %v509 = vsel %vm501, %v498, 0
      %s510 = sadd.s32 %s488, 4
      %p511 = scmp.le.s32.totalorder %s510, 63
      %v512 = vld [vmem:[%s458] sm:$0xf]
      %v513 = vld [vmem:[%s458 + $0x4] sm:$0xf]
      %v514 = vld [vmem:[%s458 + $0x8] sm:$0xf]
      %v515 = vld [vmem:[%s458 + $0xc] sm:$0xf]
      %v516 = vld [vmem:[%s458 + $0x10] sm:$0xf]
      %v517 = vld [vmem:[%s458 + $0x14] sm:$0xf]
      %v518 = vld [vmem:[%s458 + $0x18] sm:$0xf]
      %v519 = vld [vmem:[%s458 + $0x1c] sm:$0xf]
      %s520 = scalar_select %p511, 1, 0
      %v521 = vstv %s520
      %vm522 = vcmp.eq.s32.totalorder %v521, 1
      %v523 = vsel %vm522, %v512, 0
      %v524 = vsel %vm522, %v513, 0
      %v525 = vsel %vm522, %v514, 0
      %v526 = vsel %vm522, %v515, 0
      %v527 = vsel %vm522, %v516, 0
      %v528 = vsel %vm522, %v517, 0
      %v529 = vsel %vm522, %v518, 0
      %v530 = vsel %vm522, %v519, 0
      %v531 = vld [vmem:[%s421] sm:$0xf]
      %v532 = vld [vmem:[%s421 + $0x4] sm:$0xf]
      %v533 = vld [vmem:[%s421 + $0x8] sm:$0xf]
      %v534 = vld [vmem:[%s421 + $0xc] sm:$0xf]
      %v535 = vld [vmem:[%s421 + $0x10] sm:$0xf]
      %v536 = vld [vmem:[%s421 + $0x14] sm:$0xf]
      %v537 = vld [vmem:[%s421 + $0x18] sm:$0xf]
      %v538 = vld [vmem:[%s421 + $0x1c] sm:$0xf]
      %v539 = vld [vmem:[%s421 + $0x20] sm:$0xf]
      %v540 = vld [vmem:[%s421 + $0x24] sm:$0xf]
      %v541 = vld [vmem:[%s421 + $0x28] sm:$0xf]
      %v542 = vld [vmem:[%s421 + $0x2c] sm:$0xf]
      %v543 = vld [vmem:[%s421 + $0x30] sm:$0xf]
      %v544 = vld [vmem:[%s421 + $0x34] sm:$0xf]
      %v545 = vld [vmem:[%s421 + $0x38] sm:$0xf]
      %v546 = vld [vmem:[%s421 + $0x3c] sm:$0xf]
      %v547 = vld [vmem:[%s421 + $0x40] sm:$0xf]
      %v548 = vld [vmem:[%s421 + $0x44] sm:$0xf]
      %v549 = vld [vmem:[%s421 + $0x48] sm:$0xf]
      %v550 = vld [vmem:[%s421 + $0x4c] sm:$0xf]
      %v551 = vld [vmem:[%s421 + $0x50] sm:$0xf]
      %v552 = vld [vmem:[%s421 + $0x54] sm:$0xf]
      %v553 = vld [vmem:[%s421 + $0x58] sm:$0xf]
      %v554 = vld [vmem:[%s421 + $0x5c] sm:$0xf]
      %v555 = vld [vmem:[%s421 + $0x60] sm:$0xf]
      %v556 = vld [vmem:[%s421 + $0x64] sm:$0xf]
      %v557 = vld [vmem:[%s421 + $0x68] sm:$0xf]
      %v558 = vld [vmem:[%s421 + $0x6c] sm:$0xf]
      %v559 = vld [vmem:[%s421 + $0x70] sm:$0xf]
      %v560 = vld [vmem:[%s421 + $0x74] sm:$0xf]
      %v561 = vld [vmem:[%s421 + $0x78] sm:$0xf]
      %v562 = vld [vmem:[%s421 + $0x7c] sm:$0xf]
      %v611 = vunpack.c.l.b16 %v502
      %v612 = vunpack.c.l.b16 %v503
      %v613 = vunpack.c.l.b16 %v504
      %v614 = vunpack.c.l.b16 %v505
      %v615 = vunpack.c.l.b16 %v506
      %v616 = vunpack.c.l.b16 %v507
      %v617 = vunpack.c.l.b16 %v508
      %v618 = vunpack.c.l.b16 %v509
      %v619 = vunpack.c.l.b16 %v531
      %v620 = vunpack.c.l.b16 %v532
      %v621 = vunpack.c.l.b16 %v533
      %v622 = vunpack.c.l.b16 %v534
      %v623 = vunpack.c.l.b16 %v535
      %v624 = vunpack.c.l.b16 %v536
      %v625 = vunpack.c.l.b16 %v537
      %v626 = vunpack.c.l.b16 %v538
      %v627 = vunpack.c.l.b16 %v539
      %v628 = vunpack.c.l.b16 %v540
      %v629 = vunpack.c.l.b16 %v541
      %v630 = vunpack.c.l.b16 %v542
      %v631 = vunpack.c.l.b16 %v543
      %v632 = vunpack.c.l.b16 %v544
      %v633 = vunpack.c.l.b16 %v545
      %v634 = vunpack.c.l.b16 %v546
      %v635 = vunpack.c.l.b16 %v547
      %v636 = vunpack.c.l.b16 %v548
      %v637 = vunpack.c.l.b16 %v549
      %v638 = vunpack.c.l.b16 %v550
      %v639 = vunpack.c.l.b16 %v551
      %v640 = vunpack.c.l.b16 %v552
      %v641 = vunpack.c.l.b16 %v553
      %v642 = vunpack.c.l.b16 %v554
      %v643 = vunpack.c.l.b16 %v555
      %v644 = vunpack.c.l.b16 %v556
      %v645 = vunpack.c.l.b16 %v557
      %v646 = vunpack.c.l.b16 %v558
      %v647 = vunpack.c.l.b16 %v559
      %v648 = vunpack.c.l.b16 %v560
      %v649 = vunpack.c.l.b16 %v561
      %v650 = vunpack.c.l.b16 %v562
      %v651 = vunpack.c.l.b16 %v523
      %v652 = vunpack.c.l.b16 %v524
      %v653 = vunpack.c.l.b16 %v525
      %v654 = vunpack.c.l.b16 %v526
      %v655 = vunpack.c.l.b16 %v527
      %v656 = vunpack.c.l.b16 %v528
      %v657 = vunpack.c.l.b16 %v529
      %v658 = vunpack.c.l.b16 %v530
      %v659 = vpack.c.b16 %v612, %v611
      %v660 = vpack.c.b16 %v614, %v613
      %v661 = vpack.c.b16 %v616, %v615
      %v662 = vpack.c.b16 %v618, %v617
      %v663 = vpack.c.b16 %v620, %v619
      %v664 = vpack.c.b16 %v622, %v621
      %v665 = vpack.c.b16 %v624, %v623
      %v666 = vpack.c.b16 %v626, %v625
      %v667 = vpack.c.b16 %v628, %v627
      %v668 = vpack.c.b16 %v630, %v629
      %v669 = vpack.c.b16 %v632, %v631
      %v670 = vpack.c.b16 %v634, %v633
      %v671 = vpack.c.b16 %v636, %v635
      %v672 = vpack.c.b16 %v638, %v637
      %v673 = vpack.c.b16 %v640, %v639
      %v674 = vpack.c.b16 %v642, %v641
      %v675 = vpack.c.b16 %v644, %v643
      %v676 = vpack.c.b16 %v646, %v645
      %v677 = vpack.c.b16 %v648, %v647
      %v678 = vpack.c.b16 %v650, %v649
      %v679 = vpack.c.b16 %v652, %v651
      %v680 = vpack.c.b16 %v654, %v653
      %v681 = vpack.c.b16 %v656, %v655
      %v682 = vpack.c.b16 %v658, %v657
      %vm683 = vsmask.f32 256
      %v685 = vshrl.u32 %v659, 16
      %v687 = vrot.slane %v685, 7
      %v688 = vshll.u32 %v659, 16
      %v690 = vor.u32 %v687, %v688
      %v692 = vshrl.u32 %v660, 16
      %v694 = vrot.slane %v692, 7
      %v695 = vshll.u32 %v660, 16
      %v697 = vor.u32 %v694, %v695
      %v698 = vsel %vm683, %v687, %v697
      %v700 = vshrl.u32 %v661, 16
      %v702 = vrot.slane %v700, 7
      %v703 = vshll.u32 %v661, 16
      %v705 = vor.u32 %v702, %v703
      %v706 = vsel %vm683, %v694, %v705
      %v708 = vshrl.u32 %v662, 16
      %v710 = vrot.slane %v708, 7
      %v711 = vshll.u32 %v662, 16
      %v713 = vor.u32 %v710, %v711
      %v714 = vsel %vm683, %v702, %v713
      %v716 = vshrl.u32 %v663, 16
      %v718 = vrot.slane %v716, 7
      %v719 = vshll.u32 %v663, 16
      %v721 = vor.u32 %v718, %v719
      %v723 = vshrl.u32 %v664, 16
      %v725 = vrot.slane %v723, 7
      %v726 = vshll.u32 %v664, 16
      %v728 = vor.u32 %v725, %v726
      %v729 = vsel %vm683, %v718, %v728
      %v731 = vshrl.u32 %v665, 16
      %v733 = vrot.slane %v731, 7
      %v734 = vshll.u32 %v665, 16
      %v736 = vor.u32 %v733, %v734
      %v737 = vsel %vm683, %v725, %v736
      %v739 = vshrl.u32 %v666, 16
      %v741 = vrot.slane %v739, 7
      %v742 = vshll.u32 %v666, 16
      %v744 = vor.u32 %v741, %v742
      %v745 = vsel %vm683, %v733, %v744
      %v747 = vshrl.u32 %v667, 16
      %v749 = vrot.slane %v747, 7
      %v750 = vshll.u32 %v667, 16
      %v752 = vor.u32 %v749, %v750
      %v754 = vshrl.u32 %v668, 16
      %v756 = vrot.slane %v754, 7
      %v757 = vshll.u32 %v668, 16
      %v759 = vor.u32 %v756, %v757
      %v760 = vsel %vm683, %v749, %v759
      %v762 = vshrl.u32 %v669, 16
      %v764 = vrot.slane %v762, 7
      %v765 = vshll.u32 %v669, 16
      %v767 = vor.u32 %v764, %v765
      %v768 = vsel %vm683, %v756, %v767
      %v770 = vshrl.u32 %v670, 16
      %v772 = vrot.slane %v770, 7
      %v773 = vshll.u32 %v670, 16
      %v775 = vor.u32 %v772, %v773
      %v776 = vsel %vm683, %v764, %v775
      %v778 = vshrl.u32 %v671, 16
      %v780 = vrot.slane %v778, 7
      %v781 = vshll.u32 %v671, 16
      %v783 = vor.u32 %v780, %v781
      %v785 = vshrl.u32 %v672, 16
      %v787 = vrot.slane %v785, 7
      %v788 = vshll.u32 %v672, 16
      %v790 = vor.u32 %v787, %v788
      %v791 = vsel %vm683, %v780, %v790
      %v793 = vshrl.u32 %v673, 16
      %v795 = vrot.slane %v793, 7
      %v796 = vshll.u32 %v673, 16
      %v798 = vor.u32 %v795, %v796
      %v799 = vsel %vm683, %v787, %v798
      %v801 = vshrl.u32 %v674, 16
      %v803 = vrot.slane %v801, 7
      %v804 = vshll.u32 %v674, 16
      %v806 = vor.u32 %v803, %v804
      %v807 = vsel %vm683, %v795, %v806
      %v809 = vshrl.u32 %v675, 16
      %v811 = vrot.slane %v809, 7
      %v812 = vshll.u32 %v675, 16
      %v814 = vor.u32 %v811, %v812
      %v816 = vshrl.u32 %v676, 16
      %v818 = vrot.slane %v816, 7
      %v819 = vshll.u32 %v676, 16
      %v821 = vor.u32 %v818, %v819
      %v822 = vsel %vm683, %v811, %v821
      %v824 = vshrl.u32 %v677, 16
      %v826 = vrot.slane %v824, 7
      %v827 = vshll.u32 %v677, 16
      %v829 = vor.u32 %v826, %v827
      %v830 = vsel %vm683, %v818, %v829
      %v832 = vshrl.u32 %v678, 16
      %v834 = vrot.slane %v832, 7
      %v835 = vshll.u32 %v678, 16
      %v837 = vor.u32 %v834, %v835
      %v838 = vsel %vm683, %v826, %v837
      %v840 = vshrl.u32 %v679, 16
      %v842 = vrot.slane %v840, 7
      %v843 = vshll.u32 %v679, 16
      %v845 = vor.u32 %v842, %v843
      %v847 = vshrl.u32 %v680, 16
      %v849 = vrot.slane %v847, 7
      %v850 = vshll.u32 %v680, 16
      %v852 = vor.u32 %v849, %v850
      %v853 = vsel %vm683, %v842, %v852
      %v855 = vshrl.u32 %v681, 16
      %v857 = vrot.slane %v855, 7
      %v858 = vshll.u32 %v681, 16
      %v860 = vor.u32 %v857, %v858
      %v861 = vsel %vm683, %v849, %v860
      %v863 = vshrl.u32 %v682, 16
      %v865 = vrot.slane %v863, 7
      %v866 = vshll.u32 %v682, 16
      %v868 = vor.u32 %v865, %v866
      %v869 = vsel %vm683, %v857, %v868
      %vm882 = vcmask 1040384
      %vm883 = vmand %vm882, %vm683
      %v884 = vsel %vm883, 0, %v690
      %v885 = vsel %vm883, 0, %v721
      %v886 = vsel %vm883, 0, %v752
      %v887 = vsel %vm883, 0, %v783
      %v888 = vsel %vm883, 0, %v814
      %v889 = vsel %vm883, 0, %v845
      %v890 = vsel %vm883, %v710, 0
      %v891 = vsel %vm883, %v741, 0
      %v892 = vsel %vm883, %v772, 0
      %v893 = vsel %vm883, %v803, 0
      %v894 = vsel %vm883, %v834, 0
      %v895 = vsel %vm883, %v865, 0
      %vm896 = vsmask.f32 7424
      %v898 = vshrl.u32 %v884, 16
      %v900 = vshll.u32 %v884, 16
      %v902 = vrot.slane %v900, 1
      %v903 = vor.u32 %v898, %v902
      %v905 = vshll.u32 %v698, 16
      %v907 = vrot.slane %v905, 1
      %v908 = vsel %vm896, %v903, %v907
      %v909 = vshrl.u32 %v698, 16
      %v911 = vor.u32 %v909, %v907
      %v913 = vshll.u32 %v706, 16
      %v915 = vrot.slane %v913, 1
      %v916 = vsel %vm896, %v911, %v915
      %v917 = vshrl.u32 %v706, 16
      %v919 = vor.u32 %v917, %v915
      %v921 = vshll.u32 %v714, 16
      %v923 = vrot.slane %v921, 1
      %v924 = vsel %vm896, %v919, %v923
      %v925 = vshrl.u32 %v714, 16
      %v927 = vor.u32 %v925, %v923
      %v929 = vshll.u32 %v890, 16
      %v931 = vrot.slane %v929, 1
      %v932 = vsel %vm896, %v927, %v931
      %v934 = vshrl.u32 %v885, 16
      %v936 = vshll.u32 %v885, 16
      %v938 = vrot.slane %v936, 1
      %v939 = vor.u32 %v934, %v938
      %v941 = vshll.u32 %v729, 16
      %v943 = vrot.slane %v941, 1
      %v944 = vsel %vm896, %v939, %v943
      %v945 = vshrl.u32 %v729, 16
      %v947 = vor.u32 %v945, %v943
      %v949 = vshll.u32 %v737, 16
      %v951 = vrot.slane %v949, 1
      %v952 = vsel %vm896, %v947, %v951
      %v953 = vshrl.u32 %v737, 16
      %v955 = vor.u32 %v953, %v951
      %v957 = vshll.u32 %v745, 16
      %v959 = vrot.slane %v957, 1
      %v960 = vsel %vm896, %v955, %v959
      %v961 = vshrl.u32 %v745, 16
      %v963 = vor.u32 %v961, %v959
      %v965 = vshll.u32 %v891, 16
      %v967 = vrot.slane %v965, 1
      %v968 = vsel %vm896, %v963, %v967
      %v970 = vshrl.u32 %v886, 16
      %v972 = vshll.u32 %v886, 16
      %v974 = vrot.slane %v972, 1
      %v975 = vor.u32 %v970, %v974
      %v977 = vshll.u32 %v760, 16
      %v979 = vrot.slane %v977, 1
      %v980 = vsel %vm896, %v975, %v979
      %v981 = vshrl.u32 %v760, 16
      %v983 = vor.u32 %v981, %v979
      %v985 = vshll.u32 %v768, 16
      %v987 = vrot.slane %v985, 1
      %v988 = vsel %vm896, %v983, %v987
      %v989 = vshrl.u32 %v768, 16
      %v991 = vor.u32 %v989, %v987
      %v993 = vshll.u32 %v776, 16
      %v995 = vrot.slane %v993, 1
      %v996 = vsel %vm896, %v991, %v995
      %v997 = vshrl.u32 %v776, 16
      %v999 = vor.u32 %v997, %v995
      %v1001 = vshll.u32 %v892, 16
      %v1003 = vrot.slane %v1001, 1
      %v1004 = vsel %vm896, %v999, %v1003
      %v1006 = vshrl.u32 %v887, 16
      %v1008 = vshll.u32 %v887, 16
      %v1010 = vrot.slane %v1008, 1
      %v1011 = vor.u32 %v1006, %v1010
      %v1013 = vshll.u32 %v791, 16
      %v1015 = vrot.slane %v1013, 1
      %v1016 = vsel %vm896, %v1011, %v1015
      %v1017 = vshrl.u32 %v791, 16
      %v1019 = vor.u32 %v1017, %v1015
      %v1021 = vshll.u32 %v799, 16
      %v1023 = vrot.slane %v1021, 1
      %v1024 = vsel %vm896, %v1019, %v1023
      %v1025 = vshrl.u32 %v799, 16
      %v1027 = vor.u32 %v1025, %v1023
      %v1029 = vshll.u32 %v807, 16
      %v1031 = vrot.slane %v1029, 1
      %v1032 = vsel %vm896, %v1027, %v1031
      %v1033 = vshrl.u32 %v807, 16
      %v1035 = vor.u32 %v1033, %v1031
      %v1037 = vshll.u32 %v893, 16
      %v1039 = vrot.slane %v1037, 1
      %v1040 = vsel %vm896, %v1035, %v1039
      %1041 = vrot.lane.b32.xlu0 %v908, 16
      %v1042 = vpop.permute.xlu0 %1041
      %1043 = vrot.lane.b32.xlu0 %v916, 16
      %v1044 = vpop.permute.xlu0 %1043
      %1045 = vrot.lane.b32.xlu0 %v924, 16
      %v1046 = vpop.permute.xlu0 %1045
      %1047 = vrot.lane.b32.xlu0 %v932, 16
      %v1048 = vpop.permute.xlu0 %1047
      %1049 = vrot.lane.b32.xlu0 %v944, 16
      %v1050 = vpop.permute.xlu0 %1049
      %1051 = vrot.lane.b32.xlu0 %v952, 16
      %v1052 = vpop.permute.xlu0 %1051
      %1053 = vrot.lane.b32.xlu0 %v960, 16
      %v1054 = vpop.permute.xlu0 %1053
      %1055 = vrot.lane.b32.xlu0 %v968, 16
      %v1056 = vpop.permute.xlu0 %1055
      %1057 = vrot.lane.b32.xlu0 %v980, 16
      %v1058 = vpop.permute.xlu0 %1057
      %1059 = vrot.lane.b32.xlu0 %v988, 16
      %v1060 = vpop.permute.xlu0 %1059
      %1061 = vrot.lane.b32.xlu0 %v996, 16
      %v1062 = vpop.permute.xlu0 %1061
      %1063 = vrot.lane.b32.xlu0 %v1004, 16
      %v1064 = vpop.permute.xlu0 %1063
      %1065 = vrot.lane.b32.xlu0 %v1016, 16
      %v1066 = vpop.permute.xlu0 %1065
      %1067 = vrot.lane.b32.xlu0 %v1024, 16
      %v1068 = vpop.permute.xlu0 %1067
      %1069 = vrot.lane.b32.xlu0 %v1032, 16
      %v1070 = vpop.permute.xlu0 %1069
      %1071 = vrot.lane.b32.xlu0 %v1040, 16
      %v1072 = vpop.permute.xlu0 %1071
      %vm1081 = vcmask 1046528
      %v1082 = vrot.slane %v884, 1
      %v1083 = vrot.slane %v698, 1
      %v1084 = vsel %vm1081, %v1082, %v1083
      %v1085 = vrot.slane %v706, 1
      %v1086 = vsel %vm1081, %v1083, %v1085
      %v1087 = vrot.slane %v714, 1
      %v1088 = vsel %vm1081, %v1085, %v1087
      %v1089 = vrot.slane %v890, 1
      %v1090 = vsel %vm1081, %v1087, %v1089
      %v1091 = vrot.slane %v885, 1
      %v1092 = vrot.slane %v729, 1
      %v1093 = vsel %vm1081, %v1091, %v1092
      %v1094 = vrot.slane %v737, 1
      %v1095 = vsel %vm1081, %v1092, %v1094
      %v1096 = vrot.slane %v745, 1
      %v1097 = vsel %vm1081, %v1094, %v1096
      %v1098 = vrot.slane %v891, 1
      %v1099 = vsel %vm1081, %v1096, %v1098
      %v1100 = vrot.slane %v886, 1
      %v1101 = vrot.slane %v760, 1
      %v1102 = vsel %vm1081, %v1100, %v1101
      %v1103 = vrot.slane %v768, 1
      %v1104 = vsel %vm1081, %v1101, %v1103
      %v1105 = vrot.slane %v776, 1
      %v1106 = vsel %vm1081, %v1103, %v1105
      %v1107 = vrot.slane %v892, 1
      %v1108 = vsel %vm1081, %v1105, %v1107
      %v1109 = vrot.slane %v887, 1
      %v1110 = vrot.slane %v791, 1
      %v1111 = vsel %vm1081, %v1109, %v1110
      %v1112 = vrot.slane %v799, 1
      %v1113 = vsel %vm1081, %v1110, %v1112
      %v1114 = vrot.slane %v807, 1
      %v1115 = vsel %vm1081, %v1112, %v1114
      %v1116 = vrot.slane %v893, 1
      %v1117 = vsel %vm1081, %v1114, %v1116
      %1118 = vrot.lane.b32.xlu0 %v1084, 32
      %v1119 = vpop.permute.xlu0 %1118
      %1120 = vrot.lane.b32.xlu0 %v1086, 32
      %v1121 = vpop.permute.xlu0 %1120
      %1122 = vrot.lane.b32.xlu0 %v1088, 32
      %v1123 = vpop.permute.xlu0 %1122
      %1124 = vrot.lane.b32.xlu0 %v1090, 32
      %v1125 = vpop.permute.xlu0 %1124
      %1126 = vrot.lane.b32.xlu0 %v1093, 32
      %v1127 = vpop.permute.xlu0 %1126
      %1128 = vrot.lane.b32.xlu0 %v1095, 32
      %v1129 = vpop.permute.xlu0 %1128
      %1130 = vrot.lane.b32.xlu0 %v1097, 32
      %v1131 = vpop.permute.xlu0 %1130
      %1132 = vrot.lane.b32.xlu0 %v1099, 32
      %v1133 = vpop.permute.xlu0 %1132
      %1134 = vrot.lane.b32.xlu0 %v1102, 32
      %v1135 = vpop.permute.xlu0 %1134
      %1136 = vrot.lane.b32.xlu0 %v1104, 32
      %v1137 = vpop.permute.xlu0 %1136
      %1138 = vrot.lane.b32.xlu0 %v1106, 32
      %v1139 = vpop.permute.xlu0 %1138
      %1140 = vrot.lane.b32.xlu0 %v1108, 32
      %v1141 = vpop.permute.xlu0 %1140
      %1142 = vrot.lane.b32.xlu0 %v1111, 32
      %v1143 = vpop.permute.xlu0 %1142
      %1144 = vrot.lane.b32.xlu0 %v1113, 32
      %v1145 = vpop.permute.xlu0 %1144
      %1146 = vrot.lane.b32.xlu0 %v1115, 32
      %v1147 = vpop.permute.xlu0 %1146
      %1148 = vrot.lane.b32.xlu0 %v1117, 32
      %v1149 = vpop.permute.xlu0 %1148
      %vm1150 = vcmask 130048
      %v1152 = vsel %vm1150, %v884, %v1042
      %v1154 = vsel %vm1150, %v698, %v1044
      %v1156 = vsel %vm1150, %v706, %v1046
      %v1158 = vsel %vm1150, %v714, %v1048
      %v1160 = vsel %vm1150, %v885, %v1050
      %v1162 = vsel %vm1150, %v729, %v1052
      %v1164 = vsel %vm1150, %v737, %v1054
      %v1166 = vsel %vm1150, %v745, %v1056
      %v1168 = vsel %vm1150, %v886, %v1058
      %v1170 = vsel %vm1150, %v760, %v1060
      %v1172 = vsel %vm1150, %v768, %v1062
      %v1174 = vsel %vm1150, %v776, %v1064
      %v1176 = vsel %vm1150, %v887, %v1066
      %v1178 = vsel %vm1150, %v791, %v1068
      %v1180 = vsel %vm1150, %v799, %v1070
      %v1182 = vsel %vm1150, %v807, %v1072
      %vm1183 = vcmask 261120
      %v1185 = vsel %vm1183, %v1152, %v1119
      %v1187 = vsel %vm1183, %v1154, %v1121
      %v1189 = vsel %vm1183, %v1156, %v1123
      %v1191 = vsel %vm1183, %v1158, %v1125
      %v1193 = vsel %vm1183, %v1160, %v1127
      %v1195 = vsel %vm1183, %v1162, %v1129
      %v1197 = vsel %vm1183, %v1164, %v1131
      %v1199 = vsel %vm1183, %v1166, %v1133
      %v1201 = vsel %vm1183, %v1168, %v1135
      %v1203 = vsel %vm1183, %v1170, %v1137
      %v1205 = vsel %vm1183, %v1172, %v1139
      %v1207 = vsel %vm1183, %v1174, %v1141
      %v1209 = vsel %vm1183, %v1176, %v1143
      %v1211 = vsel %vm1183, %v1178, %v1145
      %v1213 = vsel %vm1183, %v1180, %v1147
      %v1215 = vsel %vm1183, %v1182, %v1149
      %v1216 = vld [vmem:[%s3] sm:$0xf]
      %v1217 = vld [vmem:[%s3 + $0x4] sm:$0xf]
      %v1218 = vld [vmem:[%s3 + $0x8] sm:$0xf]
      %v1219 = vld [vmem:[%s3 + $0xc] sm:$0xf]
      %v1220 = vld [vmem:[%s3 + $0x10] sm:$0xf]
      %v1221 = vld [vmem:[%s3 + $0x14] sm:$0xf]
      %v1223 = vshrl.u32 %v888, 16
      %v1225 = vshll.u32 %v888, 16
      %v1227 = vrot.slane %v1225, 1
      %v1228 = vor.u32 %v1223, %v1227
      %v1230 = vshll.u32 %v822, 16
      %v1232 = vrot.slane %v1230, 1
      %v1233 = vsel %vm896, %v1228, %v1232
      %v1234 = vshrl.u32 %v822, 16
      %v1236 = vor.u32 %v1234, %v1232
      %v1238 = vshll.u32 %v830, 16
      %v1240 = vrot.slane %v1238, 1
      %v1241 = vsel %vm896, %v1236, %v1240
      %v1242 = vshrl.u32 %v830, 16
      %v1244 = vor.u32 %v1242, %v1240
      %v1246 = vshll.u32 %v838, 16
      %v1248 = vrot.slane %v1246, 1
      %v1249 = vsel %vm896, %v1244, %v1248
      %v1250 = vshrl.u32 %v838, 16
      %v1252 = vor.u32 %v1250, %v1248
      %v1254 = vshll.u32 %v894, 16
      %v1256 = vrot.slane %v1254, 1
      %v1257 = vsel %vm896, %v1252, %v1256
      %1258 = vrot.lane.b32.xlu0 %v1233, 16
      %v1259 = vpop.permute.xlu0 %1258
      %1260 = vrot.lane.b32.xlu0 %v1241, 16
      %v1261 = vpop.permute.xlu0 %1260
      %1262 = vrot.lane.b32.xlu0 %v1249, 16
      %v1263 = vpop.permute.xlu0 %1262
      %1264 = vrot.lane.b32.xlu0 %v1257, 16
      %v1265 = vpop.permute.xlu0 %1264
      %v1268 = vrot.slane %v888, 1
      %v1269 = vrot.slane %v822, 1
      %v1270 = vsel %vm1081, %v1268, %v1269
      %v1271 = vrot.slane %v830, 1
      %v1272 = vsel %vm1081, %v1269, %v1271
      %v1273 = vrot.slane %v838, 1
      %v1274 = vsel %vm1081, %v1271, %v1273
      %v1275 = vrot.slane %v894, 1
      %v1276 = vsel %vm1081, %v1273, %v1275
      %1277 = vrot.lane.b32.xlu0 %v1270, 32
      %v1278 = vpop.permute.xlu0 %1277
      %1279 = vrot.lane.b32.xlu0 %v1272, 32
      %v1280 = vpop.permute.xlu0 %1279
      %1281 = vrot.lane.b32.xlu0 %v1274, 32
      %v1282 = vpop.permute.xlu0 %1281
      %1283 = vrot.lane.b32.xlu0 %v1276, 32
      %v1284 = vpop.permute.xlu0 %1283
      %v1286 = vsel %vm1150, %v888, %v1259
      %v1288 = vsel %vm1150, %v822, %v1261
      %v1290 = vsel %vm1150, %v830, %v1263
      %v1292 = vsel %vm1150, %v838, %v1265
      %v1294 = vsel %vm1183, %v1286, %v1278
      %v1296 = vsel %vm1183, %v1288, %v1280
      %v1298 = vsel %vm1183, %v1290, %v1282
      %v1300 = vsel %vm1183, %v1292, %v1284
      %s1301 = scalar_lea.vmem %s3, 24
      %v1302 = vld [vmem:[%s1301] sm:$0xf]
      %v1303 = vld [vmem:[%s1301 + $0x4] sm:$0xf]
      %v1304 = vld [vmem:[%s1301 + $0x8] sm:$0xf]
      %v1305 = vld [vmem:[%s1301 + $0xc] sm:$0xf]
      %v1306 = vld [vmem:[%s1301 + $0x10] sm:$0xf]
      %v1307 = vld [vmem:[%s1301 + $0x14] sm:$0xf]
      %v1314 = vunpack.c.l.b16 %v1302
      %v1315 = vunpack.c.l.b16 %v1303
      %v1316 = vunpack.c.l.b16 %v1304
      %v1317 = vunpack.c.l.b16 %v1305
      %v1318 = vunpack.c.l.b16 %v1306
      %v1319 = vunpack.c.l.b16 %v1307
      %v1320 = vpack.c.b16 %v1315, %v1314
      %v1321 = vpack.c.b16 %v1317, %v1316
      %v1322 = vpack.c.b16 %v1319, %v1318
      %vm1326 = vcmask 392192
      %v1327 = vsel %vm1326, %v1193, 0
      %v1329 = vsel %vm1326, %v1195, 0
      %v1331 = vsel %vm1326, %v1197, 0
      %v1333 = vsel %vm1326, %v1199, 0
      %v1335 = vsel %vm1326, %v1201, 0
      %v1337 = vsel %vm1326, %v1203, 0
      %v1339 = vsel %vm1326, %v1205, 0
      %v1341 = vsel %vm1326, %v1207, 0
      %v1343 = vsel %vm1326, %v1209, 0
      %v1345 = vsel %vm1326, %v1211, 0
      %v1347 = vsel %vm1326, %v1213, 0
      %v1349 = vsel %vm1326, %v1215, 0
      %v1351 = vsel %vm1326, %v1294, 0
      %v1353 = vsel %vm1326, %v1296, 0
      %v1355 = vsel %vm1326, %v1298, 0
      %v1357 = vsel %vm1326, %v1300, 0
      %1359 = vmatpush.bf16.msra.mxu0 0
      %1360 = vmatpush.bf16.msra.mxu0 0
      %1361 = vmatpush.bf16.msra.mxu0 0
      %1362 = vmatpush.bf16.msra.mxu0 0
      %1363 = vmatpush.bf16.msra.mxu0 0
      %1364 = vmatpush.bf16.msra.mxu0 %v1322
      %1365 = vmatpush.bf16.msra.mxu0 %v1321
      %1366 = vmatpush.bf16.msra.mxu0 %v1320
      %1367 = vmatmul.bf16.gmra.mxu0 %v1327
      %v1368 = vpop.f32.mrf.mxu0
      %v1369 = vadd.f32 0.0, %v1368
      %v1370 = vpop.f32.mrf.mxu0
      %v1371 = vadd.f32 0.0, %v1370
      %1372 = vmatmul.bf16.gmra.mxu0 %v1329
      %v1373 = vpop.f32.mrf.mxu0
      %v1374 = vadd.f32 0.0, %v1373
      %v1375 = vpop.f32.mrf.mxu0
      %v1376 = vadd.f32 0.0, %v1375
      %1377 = vmatmul.bf16.gmra.mxu0 %v1331
      %v1378 = vpop.f32.mrf.mxu0
      %v1379 = vadd.f32 0.0, %v1378
      %v1380 = vpop.f32.mrf.mxu0
      %v1381 = vadd.f32 0.0, %v1380
      %1382 = vmatmul.bf16.gmra.mxu0 %v1333
      %v1383 = vpop.f32.mrf.mxu0
      %v1384 = vadd.f32 0.0, %v1383
      %v1385 = vpop.f32.mrf.mxu0
      %v1386 = vadd.f32 0.0, %v1385
      %1387 = vmatmul.bf16.gmra.mxu0 %v1335
      %v1388 = vpop.f32.mrf.mxu0
      %v1389 = vadd.f32 0.0, %v1388
      %v1390 = vpop.f32.mrf.mxu0
      %v1391 = vadd.f32 0.0, %v1390
      %1392 = vmatmul.bf16.gmra.mxu0 %v1337
      %v1393 = vpop.f32.mrf.mxu0
      %v1394 = vadd.f32 0.0, %v1393
      %v1395 = vpop.f32.mrf.mxu0
      %v1396 = vadd.f32 0.0, %v1395
      %1397 = vmatmul.bf16.gmra.mxu0 %v1339
      %v1398 = vpop.f32.mrf.mxu0
      %v1399 = vadd.f32 0.0, %v1398
      %v1400 = vpop.f32.mrf.mxu0
      %v1401 = vadd.f32 0.0, %v1400
      %1402 = vmatmul.bf16.gmra.mxu0 %v1341
      %v1403 = vpop.f32.mrf.mxu0
      %v1404 = vadd.f32 0.0, %v1403
      %v1405 = vpop.f32.mrf.mxu0
      %v1406 = vadd.f32 0.0, %v1405
      %1407 = vmatmul.bf16.gmra.mxu0 %v1343
      %v1408 = vpop.f32.mrf.mxu0
      %v1409 = vadd.f32 0.0, %v1408
      %v1410 = vpop.f32.mrf.mxu0
      %v1411 = vadd.f32 0.0, %v1410
      %1412 = vmatmul.bf16.gmra.mxu0 %v1345
      %v1413 = vpop.f32.mrf.mxu0
      %v1414 = vadd.f32 0.0, %v1413
      %v1415 = vpop.f32.mrf.mxu0
      %v1416 = vadd.f32 0.0, %v1415
      %1417 = vmatmul.bf16.gmra.mxu0 %v1347
      %v1418 = vpop.f32.mrf.mxu0
      %v1419 = vadd.f32 0.0, %v1418
      %v1420 = vpop.f32.mrf.mxu0
      %v1421 = vadd.f32 0.0, %v1420
      %1422 = vmatmul.bf16.gmra.mxu0 %v1349
      %v1423 = vpop.f32.mrf.mxu0
      %v1424 = vadd.f32 0.0, %v1423
      %v1425 = vpop.f32.mrf.mxu0
      %v1426 = vadd.f32 0.0, %v1425
      %1427 = vmatmul.bf16.gmra.mxu0 %v1351
      %v1428 = vpop.f32.mrf.mxu0
      %v1429 = vadd.f32 0.0, %v1428
      %v1430 = vpop.f32.mrf.mxu0
      %v1431 = vadd.f32 0.0, %v1430
      %1432 = vmatmul.bf16.gmra.mxu0 %v1353
      %v1433 = vpop.f32.mrf.mxu0
      %v1434 = vadd.f32 0.0, %v1433
      %v1435 = vpop.f32.mrf.mxu0
      %v1436 = vadd.f32 0.0, %v1435
      %1437 = vmatmul.bf16.gmra.mxu0 %v1355
      %v1438 = vpop.f32.mrf.mxu0
      %v1439 = vadd.f32 0.0, %v1438
      %v1440 = vpop.f32.mrf.mxu0
      %v1441 = vadd.f32 0.0, %v1440
      %1442 = vmatmul.bf16.gmra.mxu0 %v1357
      %v1443 = vpop.f32.mrf.mxu0
      %v1444 = vadd.f32 0.0, %v1443
      %v1445 = vpop.f32.mrf.mxu0
      %v1446 = vadd.f32 0.0, %v1445
      %1447 = vdwg.mxu0
      %v1454 = vunpack.c.l.b16 %v1216
      %v1455 = vunpack.c.l.b16 %v1217
      %v1456 = vunpack.c.l.b16 %v1218
      %v1457 = vunpack.c.l.b16 %v1219
      %v1458 = vunpack.c.l.b16 %v1220
      %v1459 = vunpack.c.l.b16 %v1221
      %v1460 = vpack.c.b16 %v1455, %v1454
      %v1461 = vpack.c.b16 %v1457, %v1456
      %v1462 = vpack.c.b16 %v1459, %v1458
      %v1466 = vsel %vm1326, %v1185, 0
      %v1468 = vsel %vm1326, %v1187, 0
      %v1470 = vsel %vm1326, %v1189, 0
      %v1472 = vsel %vm1326, %v1191, 0
      %1474 = vmatpush.bf16.msra.mxu0 0
      %1475 = vmatpush.bf16.msra.mxu0 0
      %1476 = vmatpush.bf16.msra.mxu0 0
      %1477 = vmatpush.bf16.msra.mxu0 0
      %1478 = vmatpush.bf16.msra.mxu0 0
      %1479 = vmatpush.bf16.msra.mxu0 %v1462
      %1480 = vmatpush.bf16.msra.mxu0 %v1461
      %1481 = vmatpush.bf16.msra.mxu0 %v1460
      %1482 = vmatmul.bf16.gmra.mxu0 %v1466
      %v1483 = vpop.f32.mrf.mxu0
      %v1484 = vadd.f32 %v1369, %v1483
      %v1485 = vpop.f32.mrf.mxu0
      %v1486 = vadd.f32 %v1371, %v1485
      %1487 = vmatmul.bf16.gmra.mxu0 %v1468
      %v1488 = vpop.f32.mrf.mxu0
      %v1489 = vadd.f32 %v1374, %v1488
      %v1490 = vpop.f32.mrf.mxu0
      %v1491 = vadd.f32 %v1376, %v1490
      %1492 = vmatmul.bf16.gmra.mxu0 %v1470
      %v1493 = vpop.f32.mrf.mxu0
      %v1494 = vadd.f32 %v1379, %v1493
      %v1495 = vpop.f32.mrf.mxu0
      %v1496 = vadd.f32 %v1381, %v1495
      %1497 = vmatmul.bf16.gmra.mxu0 %v1472
      %v1498 = vpop.f32.mrf.mxu0
      %v1499 = vadd.f32 %v1384, %v1498
      %v1500 = vpop.f32.mrf.mxu0
      %v1501 = vadd.f32 %v1386, %v1500
      %1502 = vmatmul.bf16.gmra.mxu0 %v1327
      %v1503 = vpop.f32.mrf.mxu0
      %v1504 = vadd.f32 %v1389, %v1503
      %v1505 = vpop.f32.mrf.mxu0
      %v1506 = vadd.f32 %v1391, %v1505
      %1507 = vmatmul.bf16.gmra.mxu0 %v1329
      %v1508 = vpop.f32.mrf.mxu0
      %v1509 = vadd.f32 %v1394, %v1508
      %v1510 = vpop.f32.mrf.mxu0
      %v1511 = vadd.f32 %v1396, %v1510
      %1512 = vmatmul.bf16.gmra.mxu0 %v1331
      %v1513 = vpop.f32.mrf.mxu0
      %v1514 = vadd.f32 %v1399, %v1513
      %v1515 = vpop.f32.mrf.mxu0
      %v1516 = vadd.f32 %v1401, %v1515
      %1517 = vmatmul.bf16.gmra.mxu0 %v1333
      %v1518 = vpop.f32.mrf.mxu0
      %v1519 = vadd.f32 %v1404, %v1518
      %v1520 = vpop.f32.mrf.mxu0
      %v1521 = vadd.f32 %v1406, %v1520
      %1522 = vmatmul.bf16.gmra.mxu0 %v1335
      %v1523 = vpop.f32.mrf.mxu0
      %v1524 = vadd.f32 %v1409, %v1523
      %v1525 = vpop.f32.mrf.mxu0
      %v1526 = vadd.f32 %v1411, %v1525
      %1527 = vmatmul.bf16.gmra.mxu0 %v1337
      %v1528 = vpop.f32.mrf.mxu0
      %v1529 = vadd.f32 %v1414, %v1528
      %v1530 = vpop.f32.mrf.mxu0
      %v1531 = vadd.f32 %v1416, %v1530
      %1532 = vmatmul.bf16.gmra.mxu0 %v1339
      %v1533 = vpop.f32.mrf.mxu0
      %v1534 = vadd.f32 %v1419, %v1533
      %v1535 = vpop.f32.mrf.mxu0
      %v1536 = vadd.f32 %v1421, %v1535
      %1537 = vmatmul.bf16.gmra.mxu0 %v1341
      %v1538 = vpop.f32.mrf.mxu0
      %v1539 = vadd.f32 %v1424, %v1538
      %v1540 = vpop.f32.mrf.mxu0
      %v1541 = vadd.f32 %v1426, %v1540
      %1542 = vmatmul.bf16.gmra.mxu0 %v1343
      %v1543 = vpop.f32.mrf.mxu0
      %v1544 = vadd.f32 %v1429, %v1543
      %v1545 = vpop.f32.mrf.mxu0
      %v1546 = vadd.f32 %v1431, %v1545
      %1547 = vmatmul.bf16.gmra.mxu0 %v1345
      %v1548 = vpop.f32.mrf.mxu0
      %v1549 = vadd.f32 %v1434, %v1548
      %v1550 = vpop.f32.mrf.mxu0
      %v1551 = vadd.f32 %v1436, %v1550
      %1552 = vmatmul.bf16.gmra.mxu0 %v1347
      %v1553 = vpop.f32.mrf.mxu0
      %v1554 = vadd.f32 %v1439, %v1553
      %v1555 = vpop.f32.mrf.mxu0
      %v1556 = vadd.f32 %v1441, %v1555
      %1557 = vmatmul.bf16.gmra.mxu0 %v1349
      %v1558 = vpop.f32.mrf.mxu0
      %v1559 = vadd.f32 %v1444, %v1558
      %v1560 = vpop.f32.mrf.mxu0
      %v1561 = vadd.f32 %v1446, %v1560
      %1562 = vdwg.mxu0
      %v1564 = vshrl.u32 %v889, 16
      %v1566 = vshll.u32 %v889, 16
      %v1568 = vrot.slane %v1566, 1
      %v1569 = vor.u32 %v1564, %v1568
      %v1571 = vshll.u32 %v853, 16
      %v1573 = vrot.slane %v1571, 1
      %v1574 = vsel %vm896, %v1569, %v1573
      %v1575 = vshrl.u32 %v853, 16
      %v1577 = vor.u32 %v1575, %v1573
      %v1579 = vshll.u32 %v861, 16
      %v1581 = vrot.slane %v1579, 1
      %v1582 = vsel %vm896, %v1577, %v1581
      %v1583 = vshrl.u32 %v861, 16
      %v1585 = vor.u32 %v1583, %v1581
      %v1587 = vshll.u32 %v869, 16
      %v1589 = vrot.slane %v1587, 1
      %v1590 = vsel %vm896, %v1585, %v1589
      %v1591 = vshrl.u32 %v869, 16
      %v1593 = vor.u32 %v1591, %v1589
      %v1595 = vshll.u32 %v895, 16
      %v1597 = vrot.slane %v1595, 1
      %v1598 = vsel %vm896, %v1593, %v1597
      %1599 = vrot.lane.b32.xlu0 %v1574, 16
      %v1600 = vpop.permute.xlu0 %1599
      %1601 = vrot.lane.b32.xlu0 %v1582, 16
      %v1602 = vpop.permute.xlu0 %1601
      %1603 = vrot.lane.b32.xlu0 %v1590, 16
      %v1604 = vpop.permute.xlu0 %1603
      %1605 = vrot.lane.b32.xlu0 %v1598, 16
      %v1606 = vpop.permute.xlu0 %1605
      %v1609 = vrot.slane %v889, 1
      %v1610 = vrot.slane %v853, 1
      %v1611 = vsel %vm1081, %v1609, %v1610
      %v1612 = vrot.slane %v861, 1
      %v1613 = vsel %vm1081, %v1610, %v1612
      %v1614 = vrot.slane %v869, 1
      %v1615 = vsel %vm1081, %v1612, %v1614
      %v1616 = vrot.slane %v895, 1
      %v1617 = vsel %vm1081, %v1614, %v1616
      %1618 = vrot.lane.b32.xlu0 %v1611, 32
      %v1619 = vpop.permute.xlu0 %1618
      %1620 = vrot.lane.b32.xlu0 %v1613, 32
      %v1621 = vpop.permute.xlu0 %1620
      %1622 = vrot.lane.b32.xlu0 %v1615, 32
      %v1623 = vpop.permute.xlu0 %1622
      %1624 = vrot.lane.b32.xlu0 %v1617, 32
      %v1625 = vpop.permute.xlu0 %1624
      %v1627 = vsel %vm1150, %v889, %v1600
      %v1629 = vsel %vm1150, %v853, %v1602
      %v1631 = vsel %vm1150, %v861, %v1604
      %v1633 = vsel %vm1150, %v869, %v1606
      %v1635 = vsel %vm1183, %v1627, %v1619
      %v1637 = vsel %vm1183, %v1629, %v1621
      %v1639 = vsel %vm1183, %v1631, %v1623
      %v1641 = vsel %vm1183, %v1633, %v1625
      %s1642 = scalar_lea.vmem %s3, 48
      %v1643 = vld [vmem:[%s1642] sm:$0xf]
      %v1644 = vld [vmem:[%s1642 + $0x4] sm:$0xf]
      %v1645 = vld [vmem:[%s1642 + $0x8] sm:$0xf]
      %v1646 = vld [vmem:[%s1642 + $0xc] sm:$0xf]
      %v1647 = vld [vmem:[%s1642 + $0x10] sm:$0xf]
      %v1648 = vld [vmem:[%s1642 + $0x14] sm:$0xf]
      %v1655 = vunpack.c.l.b16 %v1643
      %v1656 = vunpack.c.l.b16 %v1644
      %v1657 = vunpack.c.l.b16 %v1645
      %v1658 = vunpack.c.l.b16 %v1646
      %v1659 = vunpack.c.l.b16 %v1647
      %v1660 = vunpack.c.l.b16 %v1648
      %v1661 = vpack.c.b16 %v1656, %v1655
      %v1662 = vpack.c.b16 %v1658, %v1657
      %v1663 = vpack.c.b16 %v1660, %v1659
      %v1667 = vsel %vm1326, %v1635, 0
      %v1669 = vsel %vm1326, %v1637, 0
      %v1671 = vsel %vm1326, %v1639, 0
      %v1673 = vsel %vm1326, %v1641, 0
      %1675 = vmatpush.bf16.msra.mxu0 0
      %1676 = vmatpush.bf16.msra.mxu0 0
      %1677 = vmatpush.bf16.msra.mxu0 0
      %1678 = vmatpush.bf16.msra.mxu0 0
      %1679 = vmatpush.bf16.msra.mxu0 0
      %1680 = vmatpush.bf16.msra.mxu0 %v1663
      %1681 = vmatpush.bf16.msra.mxu0 %v1662
      %1682 = vmatpush.bf16.msra.mxu0 %v1661
      %1683 = vmatmul.bf16.gmra.mxu0 %v1335
      %v1684 = vpop.f32.mrf.mxu0
      %v1685 = vadd.f32 0.0, %v1684
      %v1686 = vpop.f32.mrf.mxu0
      %v1687 = vadd.f32 0.0, %v1686
      %1688 = vmatmul.bf16.gmra.mxu0 %v1337
      %v1689 = vpop.f32.mrf.mxu0
      %v1690 = vadd.f32 0.0, %v1689
      %v1691 = vpop.f32.mrf.mxu0
      %v1692 = vadd.f32 0.0, %v1691
      %1693 = vmatmul.bf16.gmra.mxu0 %v1339
      %v1694 = vpop.f32.mrf.mxu0
      %v1695 = vadd.f32 0.0, %v1694
      %v1696 = vpop.f32.mrf.mxu0
      %v1697 = vadd.f32 0.0, %v1696
      %1698 = vmatmul.bf16.gmra.mxu0 %v1341
      %v1699 = vpop.f32.mrf.mxu0
      %v1700 = vadd.f32 0.0, %v1699
      %v1701 = vpop.f32.mrf.mxu0
      %v1702 = vadd.f32 0.0, %v1701
      %1703 = vmatmul.bf16.gmra.mxu0 %v1343
      %v1704 = vpop.f32.mrf.mxu0
      %v1705 = vadd.f32 0.0, %v1704
      %v1706 = vpop.f32.mrf.mxu0
      %v1707 = vadd.f32 0.0, %v1706
      %1708 = vmatmul.bf16.gmra.mxu0 %v1345
      %v1709 = vpop.f32.mrf.mxu0
      %v1710 = vadd.f32 0.0, %v1709
      %v1711 = vpop.f32.mrf.mxu0
      %v1712 = vadd.f32 0.0, %v1711
      %1713 = vmatmul.bf16.gmra.mxu0 %v1347
      %v1714 = vpop.f32.mrf.mxu0
      %v1715 = vadd.f32 0.0, %v1714
      %v1716 = vpop.f32.mrf.mxu0
      %v1717 = vadd.f32 0.0, %v1716
      %1718 = vmatmul.bf16.gmra.mxu0 %v1349
      %v1719 = vpop.f32.mrf.mxu0
      %v1720 = vadd.f32 0.0, %v1719
      %v1721 = vpop.f32.mrf.mxu0
      %v1722 = vadd.f32 0.0, %v1721
      %1723 = vmatmul.bf16.gmra.mxu0 %v1351
      %v1724 = vpop.f32.mrf.mxu0
      %v1725 = vadd.f32 0.0, %v1724
      %v1726 = vpop.f32.mrf.mxu0
      %v1727 = vadd.f32 0.0, %v1726
      %1728 = vmatmul.bf16.gmra.mxu0 %v1353
      %v1729 = vpop.f32.mrf.mxu0
      %v1730 = vadd.f32 0.0, %v1729
      %v1731 = vpop.f32.mrf.mxu0
      %v1732 = vadd.f32 0.0, %v1731
      %1733 = vmatmul.bf16.gmra.mxu0 %v1355
      %v1734 = vpop.f32.mrf.mxu0
      %v1735 = vadd.f32 0.0, %v1734
      %v1736 = vpop.f32.mrf.mxu0
      %v1737 = vadd.f32 0.0, %v1736
      %1738 = vmatmul.bf16.gmra.mxu0 %v1357
      %v1739 = vpop.f32.mrf.mxu0
      %v1740 = vadd.f32 0.0, %v1739
      %v1741 = vpop.f32.mrf.mxu0
      %v1742 = vadd.f32 0.0, %v1741
      %1743 = vmatmul.bf16.gmra.mxu0 %v1667
      %v1744 = vpop.f32.mrf.mxu0
      %v1745 = vadd.f32 0.0, %v1744
      %v1746 = vpop.f32.mrf.mxu0
      %v1747 = vadd.f32 0.0, %v1746
      %1748 = vmatmul.bf16.gmra.mxu0 %v1669
      %v1749 = vpop.f32.mrf.mxu0
      %v1750 = vadd.f32 0.0, %v1749
      %v1751 = vpop.f32.mrf.mxu0
      %v1752 = vadd.f32 0.0, %v1751
      %1753 = vmatmul.bf16.gmra.mxu0 %v1671
      %v1754 = vpop.f32.mrf.mxu0
      %v1755 = vadd.f32 0.0, %v1754
      %v1756 = vpop.f32.mrf.mxu0
      %v1757 = vadd.f32 0.0, %v1756
      %1758 = vmatmul.bf16.gmra.mxu0 %v1673
      %v1759 = vpop.f32.mrf.mxu0
      %v1760 = vadd.f32 0.0, %v1759
      %v1761 = vpop.f32.mrf.mxu0
      %v1762 = vadd.f32 0.0, %v1761
      %1763 = vdwg.mxu0
      %v1764 = vadd.f32 %v1484, %v1685
      %v1765 = vadd.f32 %v1486, %v1687
      %v1766 = vadd.f32 %v1489, %v1690
      %v1767 = vadd.f32 %v1491, %v1692
      %v1768 = vadd.f32 %v1494, %v1695
      %v1769 = vadd.f32 %v1496, %v1697
      %v1770 = vadd.f32 %v1499, %v1700
      %v1771 = vadd.f32 %v1501, %v1702
      %v1772 = vadd.f32 %v1504, %v1705
      %v1773 = vadd.f32 %v1506, %v1707
      %v1774 = vadd.f32 %v1509, %v1710
      %v1775 = vadd.f32 %v1511, %v1712
      %v1776 = vadd.f32 %v1514, %v1715
      %v1777 = vadd.f32 %v1516, %v1717
      %v1778 = vadd.f32 %v1519, %v1720
      %v1779 = vadd.f32 %v1521, %v1722
      %v1780 = vadd.f32 %v1524, %v1725
      %v1781 = vadd.f32 %v1526, %v1727
      %v1782 = vadd.f32 %v1529, %v1730
      %v1783 = vadd.f32 %v1531, %v1732
      %v1784 = vadd.f32 %v1534, %v1735
      %v1785 = vadd.f32 %v1536, %v1737
      %v1786 = vadd.f32 %v1539, %v1740
      %v1787 = vadd.f32 %v1541, %v1742
      %v1788 = vadd.f32 %v1544, %v1745
      %v1789 = vadd.f32 %v1546, %v1747
      %v1790 = vadd.f32 %v1549, %v1750
      %v1791 = vadd.f32 %v1551, %v1752
      %v1792 = vadd.f32 %v1554, %v1755
      %v1793 = vadd.f32 %v1556, %v1757
      %v1794 = vadd.f32 %v1559, %v1760
      %v1795 = vadd.f32 %v1561, %v1762
      %v1796 = vld [vmem:[%s4] sm:$0x1]
      %v1798 = vperm.slane %v1796, 0
      %v1800 = vadd.f32 %v1764, %v1798
      %v1801 = vadd.f32 %v1765, %v1798
      %v1802 = vadd.f32 %v1766, %v1798
      %v1803 = vadd.f32 %v1767, %v1798
      %v1804 = vadd.f32 %v1768, %v1798
      %v1805 = vadd.f32 %v1769, %v1798
      %v1806 = vadd.f32 %v1770, %v1798
      %v1807 = vadd.f32 %v1771, %v1798
      %v1808 = vadd.f32 %v1772, %v1798
      %v1809 = vadd.f32 %v1773, %v1798
      %v1810 = vadd.f32 %v1774, %v1798
      %v1811 = vadd.f32 %v1775, %v1798
      %v1812 = vadd.f32 %v1776, %v1798
      %v1813 = vadd.f32 %v1777, %v1798
      %v1814 = vadd.f32 %v1778, %v1798
      %v1815 = vadd.f32 %v1779, %v1798
      %v1816 = vadd.f32 %v1780, %v1798
      %v1817 = vadd.f32 %v1781, %v1798
      %v1818 = vadd.f32 %v1782, %v1798
      %v1819 = vadd.f32 %v1783, %v1798
      %v1820 = vadd.f32 %v1784, %v1798
      %v1821 = vadd.f32 %v1785, %v1798
      %v1822 = vadd.f32 %v1786, %v1798
      %v1823 = vadd.f32 %v1787, %v1798
      %v1824 = vadd.f32 %v1788, %v1798
      %v1825 = vadd.f32 %v1789, %v1798
      %v1826 = vadd.f32 %v1790, %v1798
      %v1827 = vadd.f32 %v1791, %v1798
      %v1828 = vadd.f32 %v1792, %v1798
      %v1829 = vadd.f32 %v1793, %v1798
      %v1830 = vadd.f32 %v1794, %v1798
      %v1831 = vadd.f32 %v1795, %v1798
      %v1832 = vld [vmem:[%s474] sm:$0xf]
      %v1833 = vld [vmem:[%s474 + $0x4] sm:$0xf]
      %v1834 = vld [vmem:[%s474 + $0x8] sm:$0xf]
      %v1835 = vld [vmem:[%s474 + $0xc] sm:$0xf]
      %v1836 = vld [vmem:[%s474 + $0x10] sm:$0xf]
      %v1837 = vld [vmem:[%s474 + $0x14] sm:$0xf]
      %v1838 = vld [vmem:[%s474 + $0x18] sm:$0xf]
      %v1839 = vld [vmem:[%s474 + $0x1c] sm:$0xf]
      %v1840 = vld [vmem:[%s474 + $0x20] sm:$0xf]
      %v1841 = vld [vmem:[%s474 + $0x24] sm:$0xf]
      %v1842 = vld [vmem:[%s474 + $0x28] sm:$0xf]
      %v1843 = vld [vmem:[%s474 + $0x2c] sm:$0xf]
      %v1844 = vld [vmem:[%s474 + $0x30] sm:$0xf]
      %v1845 = vld [vmem:[%s474 + $0x34] sm:$0xf]
      %v1846 = vld [vmem:[%s474 + $0x38] sm:$0xf]
      %v1847 = vld [vmem:[%s474 + $0x3c] sm:$0xf]
      %v1848 = vld [vmem:[%s474 + $0x40] sm:$0xf]
      %v1849 = vld [vmem:[%s474 + $0x44] sm:$0xf]
      %v1850 = vld [vmem:[%s474 + $0x48] sm:$0xf]
      %v1851 = vld [vmem:[%s474 + $0x4c] sm:$0xf]
      %v1852 = vld [vmem:[%s474 + $0x50] sm:$0xf]
      %v1853 = vld [vmem:[%s474 + $0x54] sm:$0xf]
      %v1854 = vld [vmem:[%s474 + $0x58] sm:$0xf]
      %v1855 = vld [vmem:[%s474 + $0x5c] sm:$0xf]
      %v1856 = vld [vmem:[%s474 + $0x60] sm:$0xf]
      %v1857 = vld [vmem:[%s474 + $0x64] sm:$0xf]
      %v1858 = vld [vmem:[%s474 + $0x68] sm:$0xf]
      %v1859 = vld [vmem:[%s474 + $0x6c] sm:$0xf]
      %v1860 = vld [vmem:[%s474 + $0x70] sm:$0xf]
      %v1861 = vld [vmem:[%s474 + $0x74] sm:$0xf]
      %v1862 = vld [vmem:[%s474 + $0x78] sm:$0xf]
      %v1863 = vld [vmem:[%s474 + $0x7c] sm:$0xf]
      %v1864 = vunpack.c.l.bf16 %v1832
      %v1865 = vunpack.c.l.bf16 %v1833
      %v1866 = vunpack.c.l.bf16 %v1834
      %v1867 = vunpack.c.l.bf16 %v1835
      %v1868 = vunpack.c.l.bf16 %v1836
      %v1869 = vunpack.c.l.bf16 %v1837
      %v1870 = vunpack.c.l.bf16 %v1838
      %v1871 = vunpack.c.l.bf16 %v1839
      %v1872 = vunpack.c.l.bf16 %v1840
      %v1873 = vunpack.c.l.bf16 %v1841
      %v1874 = vunpack.c.l.bf16 %v1842
      %v1875 = vunpack.c.l.bf16 %v1843
      %v1876 = vunpack.c.l.bf16 %v1844
      %v1877 = vunpack.c.l.bf16 %v1845
      %v1878 = vunpack.c.l.bf16 %v1846
      %v1879 = vunpack.c.l.bf16 %v1847
      %v1880 = vunpack.c.l.bf16 %v1848
      %v1881 = vunpack.c.l.bf16 %v1849
      %v1882 = vunpack.c.l.bf16 %v1850
      %v1883 = vunpack.c.l.bf16 %v1851
      %v1884 = vunpack.c.l.bf16 %v1852
      %v1885 = vunpack.c.l.bf16 %v1853
      %v1886 = vunpack.c.l.bf16 %v1854
      %v1887 = vunpack.c.l.bf16 %v1855
      %v1888 = vunpack.c.l.bf16 %v1856
      %v1889 = vunpack.c.l.bf16 %v1857
      %v1890 = vunpack.c.l.bf16 %v1858
      %v1891 = vunpack.c.l.bf16 %v1859
      %v1892 = vunpack.c.l.bf16 %v1860
      %v1893 = vunpack.c.l.bf16 %v1861
      %v1894 = vunpack.c.l.bf16 %v1862
      %v1895 = vunpack.c.l.bf16 %v1863
      %v1896 = vadd.f32 %v1800, %v1864
      %v1897 = vadd.f32 %v1801, %v1865
      %v1898 = vadd.f32 %v1802, %v1866
      %v1899 = vadd.f32 %v1803, %v1867
      %v1900 = vadd.f32 %v1804, %v1868
      %v1901 = vadd.f32 %v1805, %v1869
      %v1902 = vadd.f32 %v1806, %v1870
      %v1903 = vadd.f32 %v1807, %v1871
      %v1904 = vadd.f32 %v1808, %v1872
      %v1905 = vadd.f32 %v1809, %v1873
      %v1906 = vadd.f32 %v1810, %v1874
      %v1907 = vadd.f32 %v1811, %v1875
      %v1908 = vadd.f32 %v1812, %v1876
      %v1909 = vadd.f32 %v1813, %v1877
      %v1910 = vadd.f32 %v1814, %v1878
      %v1911 = vadd.f32 %v1815, %v1879
      %v1912 = vadd.f32 %v1816, %v1880
      %v1913 = vadd.f32 %v1817, %v1881
      %v1914 = vadd.f32 %v1818, %v1882
      %v1915 = vadd.f32 %v1819, %v1883
      %v1916 = vadd.f32 %v1820, %v1884
      %v1917 = vadd.f32 %v1821, %v1885
      %v1918 = vadd.f32 %v1822, %v1886
      %v1919 = vadd.f32 %v1823, %v1887
      %v1920 = vadd.f32 %v1824, %v1888
      %v1921 = vadd.f32 %v1825, %v1889
      %v1922 = vadd.f32 %v1826, %v1890
      %v1923 = vadd.f32 %v1827, %v1891
      %v1924 = vadd.f32 %v1828, %v1892
      %v1925 = vadd.f32 %v1829, %v1893
      %v1926 = vadd.f32 %v1830, %v1894
      %v1927 = vadd.f32 %v1831, %v1895
      %vm1928 = vcmask 23552
      %1929 = vst.msk [vmem:[%s485] sm:$0xff] %vm1928, %v1896
      %1930 = vst.msk [vmem:[%s485 + $0x8] sm:$0xff] %vm1928, %v1897
      %1931 = vst.msk [vmem:[%s485 + $0x10] sm:$0xff] %vm1928, %v1898
      %1932 = vst.msk [vmem:[%s485 + $0x18] sm:$0xff] %vm1928, %v1899
      %1933 = vst.msk [vmem:[%s485 + $0x20] sm:$0xff] %vm1928, %v1900
      %1934 = vst.msk [vmem:[%s485 + $0x28] sm:$0xff] %vm1928, %v1901
      %1935 = vst.msk [vmem:[%s485 + $0x30] sm:$0xff] %vm1928, %v1902
      %1936 = vst.msk [vmem:[%s485 + $0x38] sm:$0xff] %vm1928, %v1903
      %1937 = vst.msk [vmem:[%s485 + $0x40] sm:$0xff] %vm1928, %v1904
      %1938 = vst.msk [vmem:[%s485 + $0x48] sm:$0xff] %vm1928, %v1905
      %1939 = vst.msk [vmem:[%s485 + $0x50] sm:$0xff] %vm1928, %v1906
      %1940 = vst.msk [vmem:[%s485 + $0x58] sm:$0xff] %vm1928, %v1907
      %1941 = vst.msk [vmem:[%s485 + $0x60] sm:$0xff] %vm1928, %v1908
      %1942 = vst.msk [vmem:[%s485 + $0x68] sm:$0xff] %vm1928, %v1909
      %1943 = vst.msk [vmem:[%s485 + $0x70] sm:$0xff] %vm1928, %v1910
      %1944 = vst.msk [vmem:[%s485 + $0x78] sm:$0xff] %vm1928, %v1911
      %1945 = vst.msk [vmem:[%s485 + $0x80] sm:$0xff] %vm1928, %v1912
      %1946 = vst.msk [vmem:[%s485 + $0x88] sm:$0xff] %vm1928, %v1913
      %1947 = vst.msk [vmem:[%s485 + $0x90] sm:$0xff] %vm1928, %v1914
      %1948 = vst.msk [vmem:[%s485 + $0x98] sm:$0xff] %vm1928, %v1915
      %1949 = vst.msk [vmem:[%s485 + $0xa0] sm:$0xff] %vm1928, %v1916
      %1950 = vst.msk [vmem:[%s485 + $0xa8] sm:$0xff] %vm1928, %v1917
      %1951 = vst.msk [vmem:[%s485 + $0xb0] sm:$0xff] %vm1928, %v1918
      %1952 = vst.msk [vmem:[%s485 + $0xb8] sm:$0xff] %vm1928, %v1919
      %1953 = vst.msk [vmem:[%s485 + $0xc0] sm:$0xff] %vm1928, %v1920
      %1954 = vst.msk [vmem:[%s485 + $0xc8] sm:$0xff] %vm1928, %v1921
      %1955 = vst.msk [vmem:[%s485 + $0xd0] sm:$0xff] %vm1928, %v1922
      %1956 = vst.msk [vmem:[%s485 + $0xd8] sm:$0xff] %vm1928, %v1923
      %1957 = vst.msk [vmem:[%s485 + $0xe0] sm:$0xff] %vm1928, %v1924
      %1958 = vst.msk [vmem:[%s485 + $0xe8] sm:$0xff] %vm1928, %v1925
      %1959 = vst.msk [vmem:[%s485 + $0xf0] sm:$0xff] %vm1928, %v1926
      %1960 = vst.msk [vmem:[%s485 + $0xf8] sm:$0xff] %vm1928, %v1927
      %s1961 = smul.u32 4, %s22
      %p1962 = scmp.lt.s32.totalorder %s21, 1
      %s1963 = scalar_select %p1962, %s21, 1
      %p1964 = scmp.lt.s32.totalorder %s1961, 63
      %s1965 = scalar_select %p1964, %s1961, 63
      %s1966 = smul.addr %s1965, 8
      %s1967 = smul.addr %s1963, 512
      %s1968 = sadd.s32 %s1966, %s1967
      %s1969 = smul.addr %s1968, 8
      %s1970 = scalar_lea.vmem %s6, %s1969
      // Predicated region
      $region45: #{forward_pallas.11} parent=43 // pred_check
        %p1971 = pneg %p227
      $region46: #{forward_pallas.11} parent=43 // pred_check_branch
        %1973 = sbr.rel (%p1971) target = $region48
      $region47: #{forward_pallas.11} parent=43 // pred_region
        %s1974 = smul.u32 4, %s22
      $region48: #{forward_pallas.11} parent=43 // pred_fallthru
        _
    $region44: #{forward_pallas.11} parent=5 // pred_fallthru
      _
    %p1975 = scmp.le.s32.totalorder 2, %s12
    // Predicated region
    $region49: #{forward_pallas.11} parent=5 // pred_check
      %p1976 = pneg %p1975
    $region50: #{forward_pallas.11} parent=5 // pred_check_branch
      %1978 = sbr.rel (%p1976) target = $region52
    $region51: #{forward_pallas.11} parent=5 // pred_region
      %s1979 = ssub.s32 %s12, 2
      // Predicated region
      $region53: #{forward_pallas.11} parent=51 // pred_check
        %p1980 = pneg %p233
      $region54: #{forward_pallas.11} parent=51 // pred_check_branch
        %1982 = sbr.rel (%p1980) target = $region56
      $region55: #{forward_pallas.11} parent=51 // pred_region
        %s1983 = smul.u32 4, %s24
        %p1984 = scmp.lt.s32.totalorder %s23, 1
        %s1985 = scalar_select %p1984, %s23, 1
        %p1986 = scmp.lt.s32.totalorder %s1983, 63
        %s1987 = scalar_select %p1986, %s1983, 63
        %s1988 = smul.addr %s1987, 8
        %s1989 = smul.addr %s1985, 512
        %s1990 = sadd.s32 %s1988, %s1989
        %s1991 = smul.addr %s1990, 8
        %s1992 = scalar_lea.vmem %s6, %s1991
      $region56: #{forward_pallas.11} parent=51 // pred_fallthru
        _
    $region52: #{forward_pallas.11} parent=5 // pred_fallthru
      _
  $region6: #{forward_pallas.11} parent=0 // loop_footer
    %s16 = sadd.s32 1, %s12
  $region7: #{forward_pallas.11} parent=0 // loop_footer_branch
    %11 = sbr.rel target = $region3
  $region8: #{forward_pallas.11} parent=0 // loop_exit
    _

</llo_original>
